<compile_context>
chip_gen: v5e
topology: v5e:2x2
jax: 0.10.0
libtpu: 0.0.40
codegen_flags: <defaults>
</compile_context>

<pallas_src>
import jax
import jax.numpy as jnp
from jax.experimental import pallas as pl
from jax.experimental.pallas import tpu as pltpu

_PADL = 16     # left halo width: 16 => interior staging writes are bf16 sublane aligned
_LANE = 128    # lane width: channel axis of activations/outputs padded to this


def _round_up(v, m):
    return (v + m - 1) // m * m


def _tpu_vmem_capacity_bytes():
    try:
        return int(getattr(pltpu.get_tpu_info(), "vmem_capacity_bytes", 64 << 20))
    except Exception:
        return 64 << 20


def _vmem_limit_bytes():
    # ~75% of physical VMEM: ~96 MiB on v5e/v6e (128 MiB), ~48 MiB on v7x (64 MiB).
    return min((_tpu_vmem_capacity_bytes() * 3) // 4, 100 << 20)


def _pick_block_h(h):
    # Larger row tiles on big-VMEM chips (v5e/v6e), smaller on v7x.
    target = 128 if _tpu_vmem_capacity_bytes() >= (100 << 20) else 64
    bh = min(h, target)
    while h % bh:
        bh -= 1
    if bh < 2:          # top/bottom halo logic needs TH >= 2 (or a single tile)
        bh = h
    return bh


def _double_conv_kernel(x_ref, w1_ref, s1_ref, b1_ref, w2_ref, s2_ref, b2_ref,
                        o_ref, xpad_ref, apad_ref):
    # x_ref    : (1, H, W, Cin)       bf16  full-height NHWC input (one batch element)
    # w1_ref   : (3, 3*Cin, Cm)       bf16  conv1 weights, one (3*Cin, Cm) slab per dw
    # s1/b1    : (1, Cm)              f32   fused BN1 scale / bias (conv bias folded)
    # w2_ref   : (3, 3*Cm, Cm)        bf16  conv2 weights
    # s2/b2    : (1, Cm)              f32   fused BN2 scale / bias
    # o_ref    : (1, TH, W, Cm)       out   lane-dense row-tile output
    # xpad_ref : (TH+4, WP, Cin)      bf16  halo-padded input staging (2-row halo)
    # apad_ref : (TH+2, WP, Cm)       bf16  halo-padded conv1 activations (1-row halo)
    TH = o_ref.shape[1]
    W = o_ref.shape[2]
    cm = o_ref.shape[3]
    cin = x_ref.shape[3]
    tt = pl.program_id(1)
    n_tt = pl.num_programs(1)
    r0 = tt * TH                      # first image row of this tile

    def zero_col_halos(ref):
        # Aligned slab zeros for the left/right column halos (all rows), every step
        # (scratch is uninitialized and persists only per-core; rewriting what we
        # read keeps both grid axes safely "parallel").
        rows, wp, c = ref.shape
        ref[:, 0:_PADL, :] = jnp.zeros((rows, _PADL, c), ref.dtype)
        ref[:, _PADL + W:wp, :] = jnp.zeros((rows, wp - _PADL - W, c), ref.dtype)

    def conv3x3(src_ref, out_rows, c, w_ref, s_ref, b_ref):
        # 3 accumulating MXU matmuls, one per kernel column dw.  Per dw, only the
        # 3 row-shifted (dh) windows are concatenated along lanes -> K = 3*c; the
        # dh shift is a plain leading-dim offset (no sublane shuffle).
        acc = jnp.zeros((out_rows * W, cm), jnp.float32)
        for dw in range(3):
            wins = [src_ref[dh:dh + out_rows, _PADL - 1 + dw:_PADL - 1 + dw + W, :]
                    for dh in range(3)]
            cols = jnp.concatenate(wins, axis=-1).reshape(out_rows * W, 3 * c)
            acc = acc + jnp.dot(cols, w_ref[dw],
                                preferred_element_type=jnp.float32)
        # fused eval-mode BatchNorm + ReLU; Dropout(eval) == identity
        return jnp.maximum(acc * s_ref[...] + b_ref[...], 0.0)

    # ---- stage haloed input rows (bf16, interior starts at aligned column 16) ----
    zero_col_halos(xpad_ref)
    xpad_ref[2:2 + TH, _PADL:_PADL + W, :] = x_ref[0, pl.ds(r0, TH), :, :]

    @pl.when(tt > 0)
    def _():
        xpad_ref[0:2, _PADL:_PADL + W, :] = x_ref[0, pl.ds(r0 - 2, 2), :, :]

    @pl.when(tt == 0)
    def _():
        xpad_ref[0:2, _PADL:_PADL + W, :] = jnp.zeros((2, W, cin), xpad_ref.dtype)

    @pl.when(tt < n_tt - 1)
    def _():
        xpad_ref[2 + TH:4 + TH, _PADL:_PADL + W, :] = x_ref[0, pl.ds(r0 + TH, 2), :, :]

    @pl.when(tt == n_tt - 1)
    def _():
        xpad_ref[2 + TH:4 + TH, _PADL:_PADL + W, :] = jnp.zeros((2, W, cin),
                                                                xpad_ref.dtype)

    # ---- Conv1 + BN1 + ReLU on TH+2 rows (1 recomputed halo row above/below) ----
    a1 = conv3x3(xpad_ref, TH + 2, cin, w1_ref, s1_ref, b1_ref)

    # ---- stage conv1 activations with halo (bf16 hand-off) ----
    zero_col_halos(apad_ref)
    apad_ref[0:TH + 2, _PADL:_PADL + W, :] = (
        a1.reshape(TH + 2, W, cm).astype(apad_ref.dtype))

    # At the image top/bottom the conv2 halo row is SAME-padding zeros, not conv1
    # evaluated on a zero-extended input (ReLU(bias) != 0), so overwrite it.
    @pl.when(tt == 0)
    def _():
        apad_ref[0:1, _PADL:_PADL + W, :] = jnp.zeros((1, W, cm), apad_ref.dtype)

    @pl.when(tt == n_tt - 1)
    def _():
        apad_ref[TH + 1:TH + 2, _PADL:_PADL + W, :] = jnp.zeros((1, W, cm),
                                                                apad_ref.dtype)

    # ---- Conv2 + BN2 + ReLU on the TH tile rows ----
    a2 = conv3x3(apad_ref, TH, cm, w2_ref, s2_ref, b2_ref)

    # lane-dense store: last dim Cm is a multiple of 128 -> unmasked vst
    o_ref[0] = a2.reshape(TH, W, cm).astype(o_ref.dtype)


def _call_pallas(x, weights, *, n, h, w, cin, cm, block_h, wp, out_dtype,
                 single_buffer_consts):
    n_tt = h // block_h

    def const_spec(arr):
        idx = lambda nn, tt: (0,) * arr.ndim
        if single_buffer_consts:
            # constant across the grid -> no double buffering, saves VMEM
            return pl.BlockSpec(arr.shape, idx, pipeline_mode=pl.Buffered(1))
        return pl.BlockSpec(arr.shape, idx)

    w1, s1, b1, w2, s2, b2 = weights
    return pl.pallas_call(
        _double_conv_kernel,
        out_shape=jax.ShapeDtypeStruct((n, h, w, cm), out_dtype),
        grid=(n, n_tt),
        in_specs=[
            pl.BlockSpec((1, h, w, cin), lambda nn, tt: (nn, 0, 0, 0)),
            const_spec(w1), const_spec(s1), const_spec(b1),
            const_spec(w2), const_spec(s2), const_spec(b2),
        ],
        out_specs=pl.BlockSpec((1, block_h, w, cm), lambda nn, tt: (nn, tt, 0, 0)),
        scratch_shapes=[
            pltpu.VMEM((block_h + 4, wp, cin), jnp.bfloat16),
            pltpu.VMEM((block_h + 2, wp, cm), jnp.bfloat16),
        ],
        compiler_params=pltpu.CompilerParams(
            dimension_semantics=("parallel", "parallel"),
            vmem_limit_bytes=_vmem_limit_bytes()),
    )(x, w1, s1, b1, w2, s2, b2)


def double_conv_pallas_nhwc(x_nhwc, params, *, block_h=None,
                            out_dtype=jnp.bfloat16, trim_channels=True):
    """Primary entry point. x_nhwc: (N, H, W, Cin) -> (N, H, W, Cout) in out_dtype.

    trim_channels=False returns the lane-padded (Cm = round_up(Cout,128)) layout and
    skips the extra post-kernel HBM slice pass; prefer it when the consumer can
    handle lane padding."""
    w1, s1, b1, w2, s2, b2, cout = params
    n, h, w, cin = x_nhwc.shape
    cm = w1.shape[2]

    if block_h is None:
        block_h = _pick_block_h(h)
    if h % block_h != 0 or (block_h < 2 and block_h != h):
        raise ValueError(f"block_h={block_h} must divide H={h} and be >= 2")

    wp = _PADL + _round_up(w + 1, 16)           # halo-padded staging width (bf16)
    x = x_nhwc.astype(jnp.bfloat16)             # halve input HBM traffic
    weights = (w1, s1, b1, w2, s2, b2)
    kw = dict(n=n, h=h, w=w, cin=cin, cm=cm, block_h=block_h, wp=wp,
              out_dtype=out_dtype)
    try:
        out = _call_pallas(x, weights, single_buffer_consts=True, **kw)
    except Exception:
        # Fallback if this backend rejects single-buffered (Buffered(1)) blocks.
        out = _call_pallas(x, weights, single_buffer_consts=False, **kw)

    if trim_channels and cout != cm:
        out = out[..., :cout]                   # extra HBM pass; see docstring
    return out


def double_conv_pallas(x_nchw, params, **kwargs):
    """PyTorch-layout adapter: (N, Cin, H, W) -> (N, Cout, H, W).
    Keep the surrounding model NHWC and call double_conv_pallas_nhwc directly to
    avoid these two full-array transposes."""
    y = double_conv_pallas_nhwc(jnp.transpose(x_nchw, (0, 2, 3, 1)), params, **kwargs)
    return jnp.transpose(y, (0, 3, 1, 2))


def fold_double_conv_params(conv1_w, conv1_b, bn1_gamma, bn1_beta, bn1_mean, bn1_var,
                            conv2_w, conv2_b, bn2_gamma, bn2_beta, bn2_mean, bn2_var,
                            eps=1e-5):
    """Fold eval-mode BatchNorm (+ conv bias) into per-channel scale/bias and reshape
    PyTorch OIHW conv weights into per-dw (3*Cin, Cm) slabs, zero-padding the
    output-channel (lane) axis to a multiple of 128."""
    cout, cin = conv1_w.shape[0], conv1_w.shape[1]
    cm = _round_up(cout, _LANE)
    padc = cm - cout

    # OIHW -> (dw, dh, ci, co), then merge (dh, ci) -> K axis of each dw slab
    w1 = jnp.transpose(conv1_w, (3, 2, 1, 0))
    w1 = jnp.pad(w1, ((0, 0), (0, 0), (0, 0), (0, padc)))
    w1 = w1.reshape(3, 3 * cin, cm).astype(jnp.bfloat16)

    w2 = jnp.transpose(conv2_w, (3, 2, 1, 0))
    w2 = jnp.pad(w2, ((0, 0), (0, 0), (0, padc), (0, padc)))
    w2 = w2.reshape(3, 3 * cm, cm).astype(jnp.bfloat16)

    def fuse(bias, gamma, beta, mean, var):
        s = gamma / jnp.sqrt(var + eps)
        t = (bias - mean) * s + beta
        pad = lambda v: jnp.pad(v, (0, padc)).reshape(1, cm).astype(jnp.float32)
        return pad(s), pad(t)

    s1, b1 = fuse(conv1_b, bn1_gamma, bn1_beta, bn1_mean, bn1_var)
    s2, b2 = fuse(conv2_b, bn2_gamma, bn2_beta, bn2_mean, bn2_var)
    return (w1, s1, b1, w2, s2, b2, cout)


def double_conv_reference(x_nchw, params):
    """Pure-JAX reference mirroring the kernel's numerics (bf16 inputs/weights,
    f32 accumulation, bf16 hand-off between the two convs). Returns f32."""
    w1, s1, b1, w2, s2, b2, cout = params
    cm = w1.shape[2]
    cin = w1.shape[1] // 3
    x = jnp.transpose(x_nchw, (0, 2, 3, 1)).astype(jnp.bfloat16).astype(jnp.float32)
    # (dw, dh, ci, co) -> HWIO (dh, dw, ci, co)
    k1 = jnp.transpose(w1.astype(jnp.float32).reshape(3, 3, cin, cm), (1, 0, 2, 3))
    k2 = jnp.transpose(w2.astype(jnp.float32).reshape(3, 3, cm, cm), (1, 0, 2, 3))

    def conv(inp, k):
        return jax.lax.conv_general_dilated(
            inp, k, window_strides=(1, 1), padding="SAME",
            dimension_numbers=("NHWC", "HWIO", "NHWC"),
            precision=jax.lax.Precision.HIGHEST)

    y = jnp.maximum(conv(x, k1) * s1 + b1, 0.0)
    y = y.astype(jnp.bfloat16).astype(jnp.float32)   # kernel feeds conv2 in bf16
    y = jnp.maximum(conv(y, k2) * s2 + b2, 0.0)
    return jnp.transpose(y[..., :cout], (0, 3, 1, 2))


if __name__ == "__main__":
    key = jax.random.PRNGKey(0)
    ks = jax.random.split(key, 13)

    N, Cin, Cout, H, W = 2, 4, 8, 16, 16
    dropout_p = 0.1   # eval-mode Dropout == identity (prob unused in forward)

    x = jax.random.normal(ks[0], (N, Cin, H, W), jnp.float32)

    conv1_w = 0.1 * jax.random.normal(ks[1], (Cout, Cin, 3, 3), jnp.float32)
    conv1_b = 0.1 * jax.random.normal(ks[2], (Cout,), jnp.float32)
    bn1_gamma = 1.0 + 0.1 * jax.random.normal(ks[3], (Cout,), jnp.float32)
    bn1_beta = 0.1 * jax.random.normal(ks[4], (Cout,), jnp.float32)
    bn1_mean = 0.1 * jax.random.normal(ks[5], (Cout,), jnp.float32)
    bn1_var = 1.0 + jnp.abs(0.1 * jax.random.normal(ks[6], (Cout,), jnp.float32))

    conv2_w = 0.1 * jax.random.normal(ks[7], (Cout, Cout, 3, 3), jnp.float32)
    conv2_b = 0.1 * jax.random.normal(ks[8], (Cout,), jnp.float32)
    bn2_gamma = 1.0 + 0.1 * jax.random.normal(ks[9], (Cout,), jnp.float32)
    bn2_beta = 0.1 * jax.random.normal(ks[10], (Cout,), jnp.float32)
    bn2_mean = 0.1 * jax.random.normal(ks[11], (Cout,), jnp.float32)
    bn2_var = 1.0 + jnp.abs(0.1 * jax.random.normal(ks[12], (Cout,), jnp.float32))

    params = fold_double_conv_params(
        conv1_w, conv1_b, bn1_gamma, bn1_beta, bn1_mean, bn1_var,
        conv2_w, conv2_b, bn2_gamma, bn2_beta, bn2_mean, bn2_var)

    y_ref = double_conv_reference(x, params)

    # Multi-row-tile path (2 tiles of 8 rows), bf16 output (default)
    y_bf16 = double_conv_pallas(x, params, block_h=8)
    y_bf16 = jax.block_until_ready(y_bf16)
    assert y_bf16.shape == (N, Cout, H, W)
    assert jnp.allclose(y_bf16.astype(jnp.float32), y_ref, rtol=2e-2, atol=2e-2), \
        float(jnp.max(jnp.abs(y_bf16.astype(jnp.float32) - y_ref)))

    # Single-tile path (default block_h), f32 output
    y_f32 = double_conv_pallas(x, params, out_dtype=jnp.float32)
    y_f32 = jax.block_until_ready(y_f32)
    assert y_f32.shape == (N, Cout, H, W)
    assert jnp.allclose(y_f32, y_ref, rtol=1e-2, atol=1e-2), \
        float(jnp.max(jnp.abs(y_f32 - y_ref)))

    print("KERNEL_OK")
</pallas_src>

<mosaic_0001>
module attributes {stable_mosaic.version = 11 : i64} {
  func.func @_double_conv_kernel(%arg0: i32, %arg1: i32, %arg2: memref<1x16x16x4xbf16, #tpu.memory_space<vmem>>, %arg3: memref<3x12x128xbf16, #tpu.memory_space<vmem>>, %arg4: memref<1x128xf32, #tpu.memory_space<vmem>>, %arg5: memref<1x128xf32, #tpu.memory_space<vmem>>, %arg6: memref<3x384x128xbf16, #tpu.memory_space<vmem>>, %arg7: memref<1x128xf32, #tpu.memory_space<vmem>>, %arg8: memref<1x128xf32, #tpu.memory_space<vmem>>, %arg9: memref<1x8x16x128xbf16, #tpu.memory_space<vmem>>, %arg10: memref<12x48x4xbf16, #tpu.memory_space<vmem>>, %arg11: memref<10x48x128xbf16, #tpu.memory_space<vmem>>) attributes {dimension_semantics = [#tpu.dimension_semantics<parallel>, #tpu.dimension_semantics<parallel>], iteration_bounds = array<i64: 2, 2>, scalar_prefetch = 0 : i64, scratch_operands = 2 : i64, tpu.core_type = #tpu.core_type<tc>, window_params = [{transform_indices = @transform_0, window_bounds = array<i64: 1, 16, 16, 4>}, {pipeline_mode = #tpu.pipeline_mode<synchronous>, transform_indices = @transform_1, window_bounds = array<i64: 3, 12, 128>}, {pipeline_mode = #tpu.pipeline_mode<synchronous>, transform_indices = @transform_2, window_bounds = array<i64: 1, 128>}, {pipeline_mode = #tpu.pipeline_mode<synchronous>, transform_indices = @transform_3, window_bounds = array<i64: 1, 128>}, {pipeline_mode = #tpu.pipeline_mode<synchronous>, transform_indices = @transform_4, window_bounds = array<i64: 3, 384, 128>}, {pipeline_mode = #tpu.pipeline_mode<synchronous>, transform_indices = @transform_5, window_bounds = array<i64: 1, 128>}, {pipeline_mode = #tpu.pipeline_mode<synchronous>, transform_indices = @transform_6, window_bounds = array<i64: 1, 128>}, {transform_indices = @transform_7, window_bounds = array<i64: 1, 8, 16, 128>}]} {
    %c8_i32 = arith.constant 8 : i32
    %0 = arith.muli %arg1, %c8_i32 : i32
    %cst = arith.constant 0.000000e+00 : bf16
    %1 = vector.broadcast %cst : bf16 to vector<12x16x4xbf16>
    %c0 = arith.constant 0 : index
    %c0_0 = arith.constant 0 : index
    %c0_1 = arith.constant 0 : index
    %2 = vector.load %arg10[%c0, %c0_0, %c0_1] : memref<12x48x4xbf16, #tpu.memory_space<vmem>>, vector<12x16x4xbf16>
    tpu.vector_store %arg10[%c0, %c0_0, %c0_1], %1 {strides = array<i32>} : memref<12x48x4xbf16, #tpu.memory_space<vmem>>, vector<12x16x4xbf16>,
    %cst_2 = arith.constant 0.000000e+00 : bf16
    %3 = vector.broadcast %cst_2 : bf16 to vector<12x16x4xbf16>
    %c0_3 = arith.constant 0 : index
    %c32 = arith.constant 32 : index
    %c0_4 = arith.constant 0 : index
    %4 = vector.load %arg10[%c0_3, %c32, %c0_4] : memref<12x48x4xbf16, #tpu.memory_space<vmem>>, vector<12x16x4xbf16>
    tpu.vector_store %arg10[%c0_3, %c32, %c0_4], %3 {strides = array<i32>} : memref<12x48x4xbf16, #tpu.memory_space<vmem>>, vector<12x16x4xbf16>,
    %c0_5 = arith.constant 0 : index
    %5 = arith.index_cast %0 : i32 to index
    %c0_6 = arith.constant 0 : index
    %c0_7 = arith.constant 0 : index
    %6 = vector.load %arg2[%c0_5, %5, %c0_6, %c0_7] : memref<1x16x16x4xbf16, #tpu.memory_space<vmem>>, vector<1x8x16x4xbf16>
    %7 = vector.shape_cast %6 : vector<1x8x16x4xbf16> to vector<8x16x4xbf16>
    %c2 = arith.constant 2 : index
    %c16 = arith.constant 16 : index
    %c0_8 = arith.constant 0 : index
    %8 = vector.load %arg10[%c2, %c16, %c0_8] : memref<12x48x4xbf16, #tpu.memory_space<vmem>>, vector<8x16x4xbf16>
    tpu.vector_store %arg10[%c2, %c16, %c0_8], %7 {strides = array<i32>} : memref<12x48x4xbf16, #tpu.memory_space<vmem>>, vector<8x16x4xbf16>,
    %c0_i32 = arith.constant 0 : i32
    %9 = arith.cmpi sgt, %arg1, %c0_i32 : i32
    %10 = arith.extui %9 : i1 to i32
    %c0_i32_9 = arith.constant 0 : i32
    %11 = arith.cmpi ne, %10, %c0_i32_9 : i32
    scf.if %11 {
      %c2_i32 = arith.constant 2 : i32
      %111 = arith.subi %0, %c2_i32 : i32
      %c0_121 = arith.constant 0 : index
      %112 = arith.index_cast %111 : i32 to index
      %c0_122 = arith.constant 0 : index
      %c0_123 = arith.constant 0 : index
      %113 = vector.load %arg2[%c0_121, %112, %c0_122, %c0_123] : memref<1x16x16x4xbf16, #tpu.memory_space<vmem>>, vector<1x2x16x4xbf16>
      %114 = vector.shape_cast %113 : vector<1x2x16x4xbf16> to vector<2x16x4xbf16>
      %c0_124 = arith.constant 0 : index
      %c16_125 = arith.constant 16 : index
      %c0_126 = arith.constant 0 : index
      %115 = vector.load %arg10[%c0_124, %c16_125, %c0_126] : memref<12x48x4xbf16, #tpu.memory_space<vmem>>, vector<2x16x4xbf16>
      tpu.vector_store %arg10[%c0_124, %c16_125, %c0_126], %114 {strides = array<i32>} : memref<12x48x4xbf16, #tpu.memory_space<vmem>>, vector<2x16x4xbf16>,
    } else {
    }
    %c0_i32_10 = arith.constant 0 : i32
    %12 = arith.cmpi eq, %arg1, %c0_i32_10 : i32
    %13 = arith.extui %12 : i1 to i32
    %c0_i32_11 = arith.constant 0 : i32
    %14 = arith.cmpi ne, %13, %c0_i32_11 : i32
    scf.if %14 {
      %cst_121 = arith.constant 0.000000e+00 : bf16
      %111 = vector.broadcast %cst_121 : bf16 to vector<2x16x4xbf16>
      %c0_122 = arith.constant 0 : index
      %c16_123 = arith.constant 16 : index
      %c0_124 = arith.constant 0 : index
      %112 = vector.load %arg10[%c0_122, %c16_123, %c0_124] : memref<12x48x4xbf16, #tpu.memory_space<vmem>>, vector<2x16x4xbf16>
      tpu.vector_store %arg10[%c0_122, %c16_123, %c0_124], %111 {strides = array<i32>} : memref<12x48x4xbf16, #tpu.memory_space<vmem>>, vector<2x16x4xbf16>,
    } else {
    }
    %c1_i32 = arith.constant 1 : i32
    %15 = arith.cmpi slt, %arg1, %c1_i32 : i32
    %16 = arith.extui %15 : i1 to i32
    %c0_i32_12 = arith.constant 0 : i32
    %17 = arith.cmpi ne, %16, %c0_i32_12 : i32
    scf.if %17 {
      %c8_i32_121 = arith.constant 8 : i32
      %111 = arith.addi %0, %c8_i32_121 : i32
      %c0_122 = arith.constant 0 : index
      %112 = arith.index_cast %111 : i32 to index
      %c0_123 = arith.constant 0 : index
      %c0_124 = arith.constant 0 : index
      %113 = vector.load %arg2[%c0_122, %112, %c0_123, %c0_124] : memref<1x16x16x4xbf16, #tpu.memory_space<vmem>>, vector<1x2x16x4xbf16>
      %114 = vector.shape_cast %113 : vector<1x2x16x4xbf16> to vector<2x16x4xbf16>
      %c10 = arith.constant 10 : index
      %c16_125 = arith.constant 16 : index
      %c0_126 = arith.constant 0 : index
      %115 = vector.load %arg10[%c10, %c16_125, %c0_126] : memref<12x48x4xbf16, #tpu.memory_space<vmem>>, vector<2x16x4xbf16>
      tpu.vector_store %arg10[%c10, %c16_125, %c0_126], %114 {strides = array<i32>} : memref<12x48x4xbf16, #tpu.memory_space<vmem>>, vector<2x16x4xbf16>,
    } else {
    }
    %c1_i32_13 = arith.constant 1 : i32
    %18 = arith.cmpi eq, %arg1, %c1_i32_13 : i32
    %19 = arith.extui %18 : i1 to i32
    %c0_i32_14 = arith.constant 0 : i32
    %20 = arith.cmpi ne, %19, %c0_i32_14 : i32
    scf.if %20 {
      %cst_121 = arith.constant 0.000000e+00 : bf16
      %111 = vector.broadcast %cst_121 : bf16 to vector<2x16x4xbf16>
      %c10 = arith.constant 10 : index
      %c16_122 = arith.constant 16 : index
      %c0_123 = arith.constant 0 : index
      %112 = vector.load %arg10[%c10, %c16_122, %c0_123] : memref<12x48x4xbf16, #tpu.memory_space<vmem>>, vector<2x16x4xbf16>
      tpu.vector_store %arg10[%c10, %c16_122, %c0_123], %111 {strides = array<i32>} : memref<12x48x4xbf16, #tpu.memory_space<vmem>>, vector<2x16x4xbf16>,
    } else {
    }
    %cst_15 = arith.constant 0.000000e+00 : f32
    %21 = vector.broadcast %cst_15 : f32 to vector<160x128xf32>
    %c0_16 = arith.constant 0 : index
    %c15 = arith.constant 15 : index
    %c0_17 = arith.constant 0 : index
    %22 = vector.load %arg10[%c0_16, %c15, %c0_17] : memref<12x48x4xbf16, #tpu.memory_space<vmem>>, vector<10x16x4xbf16>
    %c1 = arith.constant 1 : index
    %c15_18 = arith.constant 15 : index
    %c0_19 = arith.constant 0 : index
    %23 = vector.load %arg10[%c1, %c15_18, %c0_19] : memref<12x48x4xbf16, #tpu.memory_space<vmem>>, vector<10x16x4xbf16>
    %c2_20 = arith.constant 2 : index
    %c15_21 = arith.constant 15 : index
    %c0_22 = arith.constant 0 : index
    %24 = vector.load %arg10[%c2_20, %c15_21, %c0_22] : memref<12x48x4xbf16, #tpu.memory_space<vmem>>, vector<10x16x4xbf16>
    %25 = tpu.concatenate %22, %23, %24 in 2 : vector<10x16x4xbf16>, vector<10x16x4xbf16>, vector<10x16x4xbf16> -> vector<10x16x12xbf16>
    %26 = vector.shape_cast %25 : vector<10x16x12xbf16> to vector<160x12xbf16>
    %c0_23 = arith.constant 0 : index
    %c0_24 = arith.constant 0 : index
    %c0_25 = arith.constant 0 : index
    %27 = vector.load %arg3[%c0_23, %c0_24, %c0_25] : memref<3x12x128xbf16, #tpu.memory_space<vmem>>, vector<1x12x128xbf16>
    %28 = vector.shape_cast %27 : vector<1x12x128xbf16> to vector<12x128xbf16>
    %cst_26 = arith.constant dense<0.000000e+00> : vector<160x128xf32>
    %29 = tpu.matmul %26, %28, %cst_26 {dimension_numbers = #tpu.dot_dimension_numbers<[1], [0], [0], [1], [0, 0, 1, 1], [], []>} : vector<160x12xbf16>, vector<12x128xbf16>, vector<160x128xf32> -> vector<160x128xf32>
    %30 = arith.addf %21, %29 : vector<160x128xf32>
    %c0_27 = arith.constant 0 : index
    %c16_28 = arith.constant 16 : index
    %c0_29 = arith.constant 0 : index
    %31 = vector.load %arg10[%c0_27, %c16_28, %c0_29] : memref<12x48x4xbf16, #tpu.memory_space<vmem>>, vector<10x16x4xbf16>
    %c1_30 = arith.constant 1 : index
    %c16_31 = arith.constant 16 : index
    %c0_32 = arith.constant 0 : index
    %32 = vector.load %arg10[%c1_30, %c16_31, %c0_32] : memref<12x48x4xbf16, #tpu.memory_space<vmem>>, vector<10x16x4xbf16>
    %c2_33 = arith.constant 2 : index
    %c16_34 = arith.constant 16 : index
    %c0_35 = arith.constant 0 : index
    %33 = vector.load %arg10[%c2_33, %c16_34, %c0_35] : memref<12x48x4xbf16, #tpu.memory_space<vmem>>, vector<10x16x4xbf16>
    %34 = tpu.concatenate %31, %32, %33 in 2 : vector<10x16x4xbf16>, vector<10x16x4xbf16>, vector<10x16x4xbf16> -> vector<10x16x12xbf16>
    %35 = vector.shape_cast %34 : vector<10x16x12xbf16> to vector<160x12xbf16>
    %c1_36 = arith.constant 1 : index
    %c0_37 = arith.constant 0 : index
    %c0_38 = arith.constant 0 : index
    %36 = vector.load %arg3[%c1_36, %c0_37, %c0_38] : memref<3x12x128xbf16, #tpu.memory_space<vmem>>, vector<1x12x128xbf16>
    %37 = vector.shape_cast %36 : vector<1x12x128xbf16> to vector<12x128xbf16>
    %cst_39 = arith.constant dense<0.000000e+00> : vector<160x128xf32>
    %38 = tpu.matmul %35, %37, %cst_39 {dimension_numbers = #tpu.dot_dimension_numbers<[1], [0], [0], [1], [0, 0, 1, 1], [], []>} : vector<160x12xbf16>, vector<12x128xbf16>, vector<160x128xf32> -> vector<160x128xf32>
    %39 = arith.addf %30, %38 : vector<160x128xf32>
    %c0_40 = arith.constant 0 : index
    %c17 = arith.constant 17 : index
    %c0_41 = arith.constant 0 : index
    %40 = vector.load %arg10[%c0_40, %c17, %c0_41] : memref<12x48x4xbf16, #tpu.memory_space<vmem>>, vector<10x16x4xbf16>
    %c1_42 = arith.constant 1 : index
    %c17_43 = arith.constant 17 : index
    %c0_44 = arith.constant 0 : index
    %41 = vector.load %arg10[%c1_42, %c17_43, %c0_44] : memref<12x48x4xbf16, #tpu.memory_space<vmem>>, vector<10x16x4xbf16>
    %c2_45 = arith.constant 2 : index
    %c17_46 = arith.constant 17 : index
    %c0_47 = arith.constant 0 : index
    %42 = vector.load %arg10[%c2_45, %c17_46, %c0_47] : memref<12x48x4xbf16, #tpu.memory_space<vmem>>, vector<10x16x4xbf16>
    %43 = tpu.concatenate %40, %41, %42 in 2 : vector<10x16x4xbf16>, vector<10x16x4xbf16>, vector<10x16x4xbf16> -> vector<10x16x12xbf16>
    %44 = vector.shape_cast %43 : vector<10x16x12xbf16> to vector<160x12xbf16>
    %c2_48 = arith.constant 2 : index
    %c0_49 = arith.constant 0 : index
    %c0_50 = arith.constant 0 : index
    %45 = vector.load %arg3[%c2_48, %c0_49, %c0_50] : memref<3x12x128xbf16, #tpu.memory_space<vmem>>, vector<1x12x128xbf16>
    %46 = vector.shape_cast %45 : vector<1x12x128xbf16> to vector<12x128xbf16>
    %cst_51 = arith.constant dense<0.000000e+00> : vector<160x128xf32>
    %47 = tpu.matmul %44, %46, %cst_51 {dimension_numbers = #tpu.dot_dimension_numbers<[1], [0], [0], [1], [0, 0, 1, 1], [], []>} : vector<160x12xbf16>, vector<12x128xbf16>, vector<160x128xf32> -> vector<160x128xf32>
    %48 = arith.addf %39, %47 : vector<160x128xf32>
    %c0_52 = arith.constant 0 : index
    %c0_53 = arith.constant 0 : index
    %49 = vector.load %arg4[%c0_52, %c0_53] : memref<1x128xf32, #tpu.memory_space<vmem>>, vector<1x128xf32>
    %50 = vector.broadcast %49 : vector<1x128xf32> to vector<160x128xf32>
    %51 = arith.mulf %48, %50 : vector<160x128xf32>
    %c0_54 = arith.constant 0 : index
    %c0_55 = arith.constant 0 : index
    %52 = vector.load %arg5[%c0_54, %c0_55] : memref<1x128xf32, #tpu.memory_space<vmem>>, vector<1x128xf32>
    %53 = vector.broadcast %52 : vector<1x128xf32> to vector<160x128xf32>
    %54 = arith.addf %51, %53 : vector<160x128xf32>
    %cst_56 = arith.constant 0.000000e+00 : f32
    %55 = vector.broadcast %cst_56 : f32 to vector<160x128xf32>
    %56 = arith.maximumf %54, %55 : vector<160x128xf32>
    %cst_57 = arith.constant 0.000000e+00 : bf16
    %57 = vector.broadcast %cst_57 : bf16 to vector<10x16x128xbf16>
    %c0_58 = arith.constant 0 : index
    %c0_59 = arith.constant 0 : index
    %c0_60 = arith.constant 0 : index
    %58 = vector.load %arg11[%c0_58, %c0_59, %c0_60] : memref<10x48x128xbf16, #tpu.memory_space<vmem>>, vector<10x16x128xbf16>
    tpu.vector_store %arg11[%c0_58, %c0_59, %c0_60], %57 {strides = array<i32>} : memref<10x48x128xbf16, #tpu.memory_space<vmem>>, vector<10x16x128xbf16>,
    %cst_61 = arith.constant 0.000000e+00 : bf16
    %59 = vector.broadcast %cst_61 : bf16 to vector<10x16x128xbf16>
    %c0_62 = arith.constant 0 : index
    %c32_63 = arith.constant 32 : index
    %c0_64 = arith.constant 0 : index
    %60 = vector.load %arg11[%c0_62, %c32_63, %c0_64] : memref<10x48x128xbf16, #tpu.memory_space<vmem>>, vector<10x16x128xbf16>
    tpu.vector_store %arg11[%c0_62, %c32_63, %c0_64], %59 {strides = array<i32>} : memref<10x48x128xbf16, #tpu.memory_space<vmem>>, vector<10x16x128xbf16>,
    %61 = vector.shape_cast %56 : vector<160x128xf32> to vector<10x16x128xf32>
    %62 = arith.truncf %61 : vector<10x16x128xf32> to vector<10x16x128xbf16>
    %c0_65 = arith.constant 0 : index
    %c16_66 = arith.constant 16 : index
    %c0_67 = arith.constant 0 : index
    %63 = vector.load %arg11[%c0_65, %c16_66, %c0_67] : memref<10x48x128xbf16, #tpu.memory_space<vmem>>, vector<10x16x128xbf16>
    tpu.vector_store %arg11[%c0_65, %c16_66, %c0_67], %62 {strides = array<i32>} : memref<10x48x128xbf16, #tpu.memory_space<vmem>>, vector<10x16x128xbf16>,
    %c0_i32_68 = arith.constant 0 : i32
    %64 = arith.cmpi eq, %arg1, %c0_i32_68 : i32
    %65 = arith.extui %64 : i1 to i32
    %c0_i32_69 = arith.constant 0 : i32
    %66 = arith.cmpi ne, %65, %c0_i32_69 : i32
    scf.if %66 {
      %cst_121 = arith.constant 0.000000e+00 : bf16
      %111 = vector.broadcast %cst_121 : bf16 to vector<1x16x128xbf16>
      %c0_122 = arith.constant 0 : index
      %c16_123 = arith.constant 16 : index
      %c0_124 = arith.constant 0 : index
      %112 = vector.load %arg11[%c0_122, %c16_123, %c0_124] : memref<10x48x128xbf16, #tpu.memory_space<vmem>>, vector<1x16x128xbf16>
      tpu.vector_store %arg11[%c0_122, %c16_123, %c0_124], %111 {strides = array<i32>} : memref<10x48x128xbf16, #tpu.memory_space<vmem>>, vector<1x16x128xbf16>,
    } else {
    }
    %c1_i32_70 = arith.constant 1 : i32
    %67 = arith.cmpi eq, %arg1, %c1_i32_70 : i32
    %68 = arith.extui %67 : i1 to i32
    %c0_i32_71 = arith.constant 0 : i32
    %69 = arith.cmpi ne, %68, %c0_i32_71 : i32
    scf.if %69 {
      %cst_121 = arith.constant 0.000000e+00 : bf16
      %111 = vector.broadcast %cst_121 : bf16 to vector<1x16x128xbf16>
      %c9 = arith.constant 9 : index
      %c16_122 = arith.constant 16 : index
      %c0_123 = arith.constant 0 : index
      %112 = vector.load %arg11[%c9, %c16_122, %c0_123] : memref<10x48x128xbf16, #tpu.memory_space<vmem>>, vector<1x16x128xbf16>
      tpu.vector_store %arg11[%c9, %c16_122, %c0_123], %111 {strides = array<i32>} : memref<10x48x128xbf16, #tpu.memory_space<vmem>>, vector<1x16x128xbf16>,
    } else {
    }
    %cst_72 = arith.constant 0.000000e+00 : f32
    %70 = vector.broadcast %cst_72 : f32 to vector<128x128xf32>
    %c0_73 = arith.constant 0 : index
    %c15_74 = arith.constant 15 : index
    %c0_75 = arith.constant 0 : index
    %71 = vector.load %arg11[%c0_73, %c15_74, %c0_75] : memref<10x48x128xbf16, #tpu.memory_space<vmem>>, vector<8x16x128xbf16>
    %c1_76 = arith.constant 1 : index
    %c15_77 = arith.constant 15 : index
    %c0_78 = arith.constant 0 : index
    %72 = vector.load %arg11[%c1_76, %c15_77, %c0_78] : memref<10x48x128xbf16, #tpu.memory_space<vmem>>, vector<8x16x128xbf16>
    %c2_79 = arith.constant 2 : index
    %c15_80 = arith.constant 15 : index
    %c0_81 = arith.constant 0 : index
    %73 = vector.load %arg11[%c2_79, %c15_80, %c0_81] : memref<10x48x128xbf16, #tpu.memory_space<vmem>>, vector<8x16x128xbf16>
    %74 = tpu.concatenate %71, %72, %73 in 2 : vector<8x16x128xbf16>, vector<8x16x128xbf16>, vector<8x16x128xbf16> -> vector<8x16x384xbf16>
    %75 = vector.shape_cast %74 : vector<8x16x384xbf16> to vector<128x384xbf16>
    %c0_82 = arith.constant 0 : index
    %c0_83 = arith.constant 0 : index
    %c0_84 = arith.constant 0 : index
    %76 = vector.load %arg6[%c0_82, %c0_83, %c0_84] : memref<3x384x128xbf16, #tpu.memory_space<vmem>>, vector<1x384x128xbf16>
    %77 = vector.shape_cast %76 : vector<1x384x128xbf16> to vector<384x128xbf16>
    %cst_85 = arith.constant dense<0.000000e+00> : vector<128x128xf32>
    %78 = tpu.matmul %75, %77, %cst_85 {dimension_numbers = #tpu.dot_dimension_numbers<[1], [0], [0], [1], [0, 0, 1, 1], [], []>} : vector<128x384xbf16>, vector<384x128xbf16>, vector<128x128xf32> -> vector<128x128xf32>
    %79 = arith.addf %70, %78 : vector<128x128xf32>
    %c0_86 = arith.constant 0 : index
    %c16_87 = arith.constant 16 : index
    %c0_88 = arith.constant 0 : index
    %80 = vector.load %arg11[%c0_86, %c16_87, %c0_88] : memref<10x48x128xbf16, #tpu.memory_space<vmem>>, vector<8x16x128xbf16>
    %c1_89 = arith.constant 1 : index
    %c16_90 = arith.constant 16 : index
    %c0_91 = arith.constant 0 : index
    %81 = vector.load %arg11[%c1_89, %c16_90, %c0_91] : memref<10x48x128xbf16, #tpu.memory_space<vmem>>, vector<8x16x128xbf16>
    %c2_92 = arith.constant 2 : index
    %c16_93 = arith.constant 16 : index
    %c0_94 = arith.constant 0 : index
    %82 = vector.load %arg11[%c2_92, %c16_93, %c0_94] : memref<10x48x128xbf16, #tpu.memory_space<vmem>>, vector<8x16x128xbf16>
    %83 = tpu.concatenate %80, %81, %82 in 2 : vector<8x16x128xbf16>, vector<8x16x128xbf16>, vector<8x16x128xbf16> -> vector<8x16x384xbf16>
    %84 = vector.shape_cast %83 : vector<8x16x384xbf16> to vector<128x384xbf16>
    %c1_95 = arith.constant 1 : index
    %c0_96 = arith.constant 0 : index
    %c0_97 = arith.constant 0 : index
    %85 = vector.load %arg6[%c1_95, %c0_96, %c0_97] : memref<3x384x128xbf16, #tpu.memory_space<vmem>>, vector<1x384x128xbf16>
    %86 = vector.shape_cast %85 : vector<1x384x128xbf16> to vector<384x128xbf16>
    %cst_98 = arith.constant dense<0.000000e+00> : vector<128x128xf32>
    %87 = tpu.matmul %84, %86, %cst_98 {dimension_numbers = #tpu.dot_dimension_numbers<[1], [0], [0], [1], [0, 0, 1, 1], [], []>} : vector<128x384xbf16>, vector<384x128xbf16>, vector<128x128xf32> -> vector<128x128xf32>
    %88 = arith.addf %79, %87 : vector<128x128xf32>
    %c0_99 = arith.constant 0 : index
    %c17_100 = arith.constant 17 : index
    %c0_101 = arith.constant 0 : index
    %89 = vector.load %arg11[%c0_99, %c17_100, %c0_101] : memref<10x48x128xbf16, #tpu.memory_space<vmem>>, vector<8x16x128xbf16>
    %c1_102 = arith.constant 1 : index
    %c17_103 = arith.constant 17 : index
    %c0_104 = arith.constant 0 : index
    %90 = vector.load %arg11[%c1_102, %c17_103, %c0_104] : memref<10x48x128xbf16, #tpu.memory_space<vmem>>, vector<8x16x128xbf16>
    %c2_105 = arith.constant 2 : index
    %c17_106 = arith.constant 17 : index
    %c0_107 = arith.constant 0 : index
    %91 = vector.load %arg11[%c2_105, %c17_106, %c0_107] : memref<10x48x128xbf16, #tpu.memory_space<vmem>>, vector<8x16x128xbf16>
    %92 = tpu.concatenate %89, %90, %91 in 2 : vector<8x16x128xbf16>, vector<8x16x128xbf16>, vector<8x16x128xbf16> -> vector<8x16x384xbf16>
    %93 = vector.shape_cast %92 : vector<8x16x384xbf16> to vector<128x384xbf16>
    %c2_108 = arith.constant 2 : index
    %c0_109 = arith.constant 0 : index
    %c0_110 = arith.constant 0 : index
    %94 = vector.load %arg6[%c2_108, %c0_109, %c0_110] : memref<3x384x128xbf16, #tpu.memory_space<vmem>>, vector<1x384x128xbf16>
    %95 = vector.shape_cast %94 : vector<1x384x128xbf16> to vector<384x128xbf16>
    %cst_111 = arith.constant dense<0.000000e+00> : vector<128x128xf32>
    %96 = tpu.matmul %93, %95, %cst_111 {dimension_numbers = #tpu.dot_dimension_numbers<[1], [0], [0], [1], [0, 0, 1, 1], [], []>} : vector<128x384xbf16>, vector<384x128xbf16>, vector<128x128xf32> -> vector<128x128xf32>
    %97 = arith.addf %88, %96 : vector<128x128xf32>
    %c0_112 = arith.constant 0 : index
    %c0_113 = arith.constant 0 : index
    %98 = vector.load %arg7[%c0_112, %c0_113] : memref<1x128xf32, #tpu.memory_space<vmem>>, vector<1x128xf32>
    %99 = vector.broadcast %98 : vector<1x128xf32> to vector<128x128xf32>
    %100 = arith.mulf %97, %99 : vector<128x128xf32>
    %c0_114 = arith.constant 0 : index
    %c0_115 = arith.constant 0 : index
    %101 = vector.load %arg8[%c0_114, %c0_115] : memref<1x128xf32, #tpu.memory_space<vmem>>, vector<1x128xf32>
    %102 = vector.broadcast %101 : vector<1x128xf32> to vector<128x128xf32>
    %103 = arith.addf %100, %102 : vector<128x128xf32>
    %cst_116 = arith.constant 0.000000e+00 : f32
    %104 = vector.broadcast %cst_116 : f32 to vector<128x128xf32>
    %105 = arith.maximumf %103, %104 : vector<128x128xf32>
    %106 = vector.shape_cast %105 : vector<128x128xf32> to vector<8x16x128xf32>
    %107 = arith.truncf %106 : vector<8x16x128xf32> to vector<8x16x128xbf16>
    %c0_117 = arith.constant 0 : index
    %c0_118 = arith.constant 0 : index
    %c0_119 = arith.constant 0 : index
    %c0_120 = arith.constant 0 : index
    %108 = vector.load %arg9[%c0_117, %c0_118, %c0_119, %c0_120] : memref<1x8x16x128xbf16, #tpu.memory_space<vmem>>, vector<1x8x16x128xbf16>
    %109 = vector.shape_cast %108 : vector<1x8x16x128xbf16> to vector<8x16x128xbf16>
    %110 = vector.shape_cast %107 : vector<8x16x128xbf16> to vector<1x8x16x128xbf16>
    tpu.vector_store %arg9[%c0_117, %c0_118, %c0_119, %c0_120], %110 {strides = array<i32>} : memref<1x8x16x128xbf16, #tpu.memory_space<vmem>>, vector<1x8x16x128xbf16>,
    return
  }
  func.func @transform_0(%arg0: i32, %arg1: i32) -> (i32, i32, i32, i32) {
    %c0_i32 = arith.constant 0 : i32
    %c0_i32_0 = arith.constant 0 : i32
    %c0_i32_1 = arith.constant 0 : i32
    %c0_i32_2 = arith.constant 0 : i32
    return %arg0, %c0_i32, %c0_i32_0, %c0_i32_1 : i32, i32, i32, i32
  }
  func.func @transform_1(%arg0: i32, %arg1: i32) -> (i32, i32, i32) {
    %c0_i32 = arith.constant 0 : i32
    %c0_i32_0 = arith.constant 0 : i32
    %c0_i32_1 = arith.constant 0 : i32
    %c0_i32_2 = arith.constant 0 : i32
    return %c0_i32, %c0_i32_0, %c0_i32_1 : i32, i32, i32
  }
  func.func @transform_2(%arg0: i32, %arg1: i32) -> (i32, i32) {
    %c0_i32 = arith.constant 0 : i32
    %c0_i32_0 = arith.constant 0 : i32
    %c0_i32_1 = arith.constant 0 : i32
    return %c0_i32, %c0_i32_0 : i32, i32
  }
  func.func @transform_3(%arg0: i32, %arg1: i32) -> (i32, i32) {
    %c0_i32 = arith.constant 0 : i32
    %c0_i32_0 = arith.constant 0 : i32
    %c0_i32_1 = arith.constant 0 : i32
    return %c0_i32, %c0_i32_0 : i32, i32
  }
  func.func @transform_4(%arg0: i32, %arg1: i32) -> (i32, i32, i32) {
    %c0_i32 = arith.constant 0 : i32
    %c0_i32_0 = arith.constant 0 : i32
    %c0_i32_1 = arith.constant 0 : i32
    %c0_i32_2 = arith.constant 0 : i32
    return %c0_i32, %c0_i32_0, %c0_i32_1 : i32, i32, i32
  }
  func.func @transform_5(%arg0: i32, %arg1: i32) -> (i32, i32) {
    %c0_i32 = arith.constant 0 : i32
    %c0_i32_0 = arith.constant 0 : i32
    %c0_i32_1 = arith.constant 0 : i32
    return %c0_i32, %c0_i32_0 : i32, i32
  }
  func.func @transform_6(%arg0: i32, %arg1: i32) -> (i32, i32) {
    %c0_i32 = arith.constant 0 : i32
    %c0_i32_0 = arith.constant 0 : i32
    %c0_i32_1 = arith.constant 0 : i32
    return %c0_i32, %c0_i32_0 : i32, i32
  }
  func.func @transform_7(%arg0: i32, %arg1: i32) -> (i32, i32, i32, i32) {
    %c0_i32 = arith.constant 0 : i32
    %c0_i32_0 = arith.constant 0 : i32
    %c0_i32_1 = arith.constant 0 : i32
    return %arg0, %arg1, %c0_i32, %c0_i32_0 : i32, i32, i32, i32
  }
}

module attributes {stable_mosaic.version = 11 : i64} {
  func.func @_double_conv_kernel(%arg0: i32, %arg1: i32, %arg2: memref<1x16x16x4xbf16, #tpu.memory_space<vmem>>, %arg3: memref<3x12x128xbf16, #tpu.memory_space<vmem>>, %arg4: memref<1x128xf32, #tpu.memory_space<vmem>>, %arg5: memref<1x128xf32, #tpu.memory_space<vmem>>, %arg6: memref<3x384x128xbf16, #tpu.memory_space<vmem>>, %arg7: memref<1x128xf32, #tpu.memory_space<vmem>>, %arg8: memref<1x128xf32, #tpu.memory_space<vmem>>, %arg9: memref<1x8x16x128xbf16, #tpu.memory_space<vmem>>, %arg10: memref<12x48x4xbf16, #tpu.memory_space<vmem>>, %arg11: memref<10x48x128xbf16, #tpu.memory_space<vmem>>) attributes {dimension_semantics = [#tpu.dimension_semantics<parallel>, #tpu.dimension_semantics<parallel>], iteration_bounds = array<i64: 2, 2>, scalar_prefetch = 0 : i64, scratch_operands = 2 : i64, tpu.core_type = #tpu.core_type<tc>, window_params = [{transform_indices = @transform_0, window_bounds = array<i64: 1, 16, 16, 4>}, {pipeline_mode = #tpu.pipeline_mode<synchronous>, transform_indices = @transform_1, window_bounds = array<i64: 3, 12, 128>}, {pipeline_mode = #tpu.pipeline_mode<synchronous>, transform_indices = @transform_2, window_bounds = array<i64: 1, 128>}, {pipeline_mode = #tpu.pipeline_mode<synchronous>, transform_indices = @transform_3, window_bounds = array<i64: 1, 128>}, {pipeline_mode = #tpu.pipeline_mode<synchronous>, transform_indices = @transform_4, window_bounds = array<i64: 3, 384, 128>}, {pipeline_mode = #tpu.pipeline_mode<synchronous>, transform_indices = @transform_5, window_bounds = array<i64: 1, 128>}, {pipeline_mode = #tpu.pipeline_mode<synchronous>, transform_indices = @transform_6, window_bounds = array<i64: 1, 128>}, {transform_indices = @transform_7, window_bounds = array<i64: 1, 8, 16, 128>}]} {
    %c8_i32 = arith.constant 8 : i32
    %0 = arith.muli %arg1, %c8_i32 : i32
    %cst = arith.constant 0.000000e+00 : bf16
    %1 = vector.broadcast %cst : bf16 to vector<12x16x4xbf16>
    %c0 = arith.constant 0 : index
    %c0_0 = arith.constant 0 : index
    %c0_1 = arith.constant 0 : index
    %2 = vector.load %arg10[%c0, %c0_0, %c0_1] : memref<12x48x4xbf16, #tpu.memory_space<vmem>>, vector<12x16x4xbf16>
    tpu.vector_store %arg10[%c0, %c0_0, %c0_1], %1 {strides = array<i32>} : memref<12x48x4xbf16, #tpu.memory_space<vmem>>, vector<12x16x4xbf16>,
    %cst_2 = arith.constant 0.000000e+00 : bf16
    %3 = vector.broadcast %cst_2 : bf16 to vector<12x16x4xbf16>
    %c0_3 = arith.constant 0 : index
    %c32 = arith.constant 32 : index
    %c0_4 = arith.constant 0 : index
    %4 = vector.load %arg10[%c0_3, %c32, %c0_4] : memref<12x48x4xbf16, #tpu.memory_space<vmem>>, vector<12x16x4xbf16>
    tpu.vector_store %arg10[%c0_3, %c32, %c0_4], %3 {strides = array<i32>} : memref<12x48x4xbf16, #tpu.memory_space<vmem>>, vector<12x16x4xbf16>,
    %c0_5 = arith.constant 0 : index
    %5 = arith.index_cast %0 : i32 to index
    %c0_6 = arith.constant 0 : index
    %c0_7 = arith.constant 0 : index
    %6 = vector.load %arg2[%c0_5, %5, %c0_6, %c0_7] : memref<1x16x16x4xbf16, #tpu.memory_space<vmem>>, vector<1x8x16x4xbf16>
    %7 = vector.shape_cast %6 : vector<1x8x16x4xbf16> to vector<8x16x4xbf16>
    %c2 = arith.constant 2 : index
    %c16 = arith.constant 16 : index
    %c0_8 = arith.constant 0 : index
    %8 = vector.load %arg10[%c2, %c16, %c0_8] : memref<12x48x4xbf16, #tpu.memory_space<vmem>>, vector<8x16x4xbf16>
    tpu.vector_store %arg10[%c2, %c16, %c0_8], %7 {strides = array<i32>} : memref<12x48x4xbf16, #tpu.memory_space<vmem>>, vector<8x16x4xbf16>,
    %c0_i32 = arith.constant 0 : i32
    %9 = arith.cmpi sgt, %arg1, %c0_i32 : i32
    %10 = arith.extui %9 : i1 to i32
    %c0_i32_9 = arith.constant 0 : i32
    %11 = arith.cmpi ne, %10, %c0_i32_9 : i32
    scf.if %11 {
      %c2_i32 = arith.constant 2 : i32
      %111 = arith.subi %0, %c2_i32 : i32
      %c0_121 = arith.constant 0 : index
      %112 = arith.index_cast %111 : i32 to index
      %c0_122 = arith.constant 0 : index
      %c0_123 = arith.constant 0 : index
      %113 = vector.load %arg2[%c0_121, %112, %c0_122, %c0_123] : memref<1x16x16x4xbf16, #tpu.memory_space<vmem>>, vector<1x2x16x4xbf16>
      %114 = vector.shape_cast %113 : vector<1x2x16x4xbf16> to vector<2x16x4xbf16>
      %c0_124 = arith.constant 0 : index
      %c16_125 = arith.constant 16 : index
      %c0_126 = arith.constant 0 : index
      %115 = vector.load %arg10[%c0_124, %c16_125, %c0_126] : memref<12x48x4xbf16, #tpu.memory_space<vmem>>, vector<2x16x4xbf16>
      tpu.vector_store %arg10[%c0_124, %c16_125, %c0_126], %114 {strides = array<i32>} : memref<12x48x4xbf16, #tpu.memory_space<vmem>>, vector<2x16x4xbf16>,
    } else {
    }
    %c0_i32_10 = arith.constant 0 : i32
    %12 = arith.cmpi eq, %arg1, %c0_i32_10 : i32
    %13 = arith.extui %12 : i1 to i32
    %c0_i32_11 = arith.constant 0 : i32
    %14 = arith.cmpi ne, %13, %c0_i32_11 : i32
    scf.if %14 {
      %cst_121 = arith.constant 0.000000e+00 : bf16
      %111 = vector.broadcast %cst_121 : bf16 to vector<2x16x4xbf16>
      %c0_122 = arith.constant 0 : index
      %c16_123 = arith.constant 16 : index
      %c0_124 = arith.constant 0 : index
      %112 = vector.load %arg10[%c0_122, %c16_123, %c0_124] : memref<12x48x4xbf16, #tpu.memory_space<vmem>>, vector<2x16x4xbf16>
      tpu.vector_store %arg10[%c0_122, %c16_123, %c0_124], %111 {strides = array<i32>} : memref<12x48x4xbf16, #tpu.memory_space<vmem>>, vector<2x16x4xbf16>,
    } else {
    }
    %c1_i32 = arith.constant 1 : i32
    %15 = arith.cmpi slt, %arg1, %c1_i32 : i32
    %16 = arith.extui %15 : i1 to i32
    %c0_i32_12 = arith.constant 0 : i32
    %17 = arith.cmpi ne, %16, %c0_i32_12 : i32
    scf.if %17 {
      %c8_i32_121 = arith.constant 8 : i32
      %111 = arith.addi %0, %c8_i32_121 : i32
      %c0_122 = arith.constant 0 : index
      %112 = arith.index_cast %111 : i32 to index
      %c0_123 = arith.constant 0 : index
      %c0_124 = arith.constant 0 : index
      %113 = vector.load %arg2[%c0_122, %112, %c0_123, %c0_124] : memref<1x16x16x4xbf16, #tpu.memory_space<vmem>>, vector<1x2x16x4xbf16>
      %114 = vector.shape_cast %113 : vector<1x2x16x4xbf16> to vector<2x16x4xbf16>
      %c10 = arith.constant 10 : index
      %c16_125 = arith.constant 16 : index
      %c0_126 = arith.constant 0 : index
      %115 = vector.load %arg10[%c10, %c16_125, %c0_126] : memref<12x48x4xbf16, #tpu.memory_space<vmem>>, vector<2x16x4xbf16>
      tpu.vector_store %arg10[%c10, %c16_125, %c0_126], %114 {strides = array<i32>} : memref<12x48x4xbf16, #tpu.memory_space<vmem>>, vector<2x16x4xbf16>,
    } else {
    }
    %c1_i32_13 = arith.constant 1 : i32
    %18 = arith.cmpi eq, %arg1, %c1_i32_13 : i32
    %19 = arith.extui %18 : i1 to i32
    %c0_i32_14 = arith.constant 0 : i32
    %20 = arith.cmpi ne, %19, %c0_i32_14 : i32
    scf.if %20 {
      %cst_121 = arith.constant 0.000000e+00 : bf16
      %111 = vector.broadcast %cst_121 : bf16 to vector<2x16x4xbf16>
      %c10 = arith.constant 10 : index
      %c16_122 = arith.constant 16 : index
      %c0_123 = arith.constant 0 : index
      %112 = vector.load %arg10[%c10, %c16_122, %c0_123] : memref<12x48x4xbf16, #tpu.memory_space<vmem>>, vector<2x16x4xbf16>
      tpu.vector_store %arg10[%c10, %c16_122, %c0_123], %111 {strides = array<i32>} : memref<12x48x4xbf16, #tpu.memory_space<vmem>>, vector<2x16x4xbf16>,
    } else {
    }
    %cst_15 = arith.constant 0.000000e+00 : f32
    %21 = vector.broadcast %cst_15 : f32 to vector<160x128xf32>
    %c0_16 = arith.constant 0 : index
    %c15 = arith.constant 15 : index
    %c0_17 = arith.constant 0 : index
    %22 = vector.load %arg10[%c0_16, %c15, %c0_17] : memref<12x48x4xbf16, #tpu.memory_space<vmem>>, vector<10x16x4xbf16>
    %c1 = arith.constant 1 : index
    %c15_18 = arith.constant 15 : index
    %c0_19 = arith.constant 0 : index
    %23 = vector.load %arg10[%c1, %c15_18, %c0_19] : memref<12x48x4xbf16, #tpu.memory_space<vmem>>, vector<10x16x4xbf16>
    %c2_20 = arith.constant 2 : index
    %c15_21 = arith.constant 15 : index
    %c0_22 = arith.constant 0 : index
    %24 = vector.load %arg10[%c2_20, %c15_21, %c0_22] : memref<12x48x4xbf16, #tpu.memory_space<vmem>>, vector<10x16x4xbf16>
    %25 = tpu.concatenate %22, %23, %24 in 2 : vector<10x16x4xbf16>, vector<10x16x4xbf16>, vector<10x16x4xbf16> -> vector<10x16x12xbf16>
    %26 = vector.shape_cast %25 : vector<10x16x12xbf16> to vector<160x12xbf16>
    %c0_23 = arith.constant 0 : index
    %c0_24 = arith.constant 0 : index
    %c0_25 = arith.constant 0 : index
    %27 = vector.load %arg3[%c0_23, %c0_24, %c0_25] : memref<3x12x128xbf16, #tpu.memory_space<vmem>>, vector<1x12x128xbf16>
    %28 = vector.shape_cast %27 : vector<1x12x128xbf16> to vector<12x128xbf16>
    %cst_26 = arith.constant dense<0.000000e+00> : vector<160x128xf32>
    %29 = tpu.matmul %26, %28, %cst_26 {dimension_numbers = #tpu.dot_dimension_numbers<[1], [0], [0], [1], [0, 0, 1, 1], [], []>} : vector<160x12xbf16>, vector<12x128xbf16>, vector<160x128xf32> -> vector<160x128xf32>
    %30 = arith.addf %21, %29 : vector<160x128xf32>
    %c0_27 = arith.constant 0 : index
    %c16_28 = arith.constant 16 : index
    %c0_29 = arith.constant 0 : index
    %31 = vector.load %arg10[%c0_27, %c16_28, %c0_29] : memref<12x48x4xbf16, #tpu.memory_space<vmem>>, vector<10x16x4xbf16>
    %c1_30 = arith.constant 1 : index
    %c16_31 = arith.constant 16 : index
    %c0_32 = arith.constant 0 : index
    %32 = vector.load %arg10[%c1_30, %c16_31, %c0_32] : memref<12x48x4xbf16, #tpu.memory_space<vmem>>, vector<10x16x4xbf16>
    %c2_33 = arith.constant 2 : index
    %c16_34 = arith.constant 16 : index
    %c0_35 = arith.constant 0 : index
    %33 = vector.load %arg10[%c2_33, %c16_34, %c0_35] : memref<12x48x4xbf16, #tpu.memory_space<vmem>>, vector<10x16x4xbf16>
    %34 = tpu.concatenate %31, %32, %33 in 2 : vector<10x16x4xbf16>, vector<10x16x4xbf16>, vector<10x16x4xbf16> -> vector<10x16x12xbf16>
    %35 = vector.shape_cast %34 : vector<10x16x12xbf16> to vector<160x12xbf16>
    %c1_36 = arith.constant 1 : index
    %c0_37 = arith.constant 0 : index
    %c0_38 = arith.constant 0 : index
    %36 = vector.load %arg3[%c1_36, %c0_37, %c0_38] : memref<3x12x128xbf16, #tpu.memory_space<vmem>>, vector<1x12x128xbf16>
    %37 = vector.shape_cast %36 : vector<1x12x128xbf16> to vector<12x128xbf16>
    %cst_39 = arith.constant dense<0.000000e+00> : vector<160x128xf32>
    %38 = tpu.matmul %35, %37, %cst_39 {dimension_numbers = #tpu.dot_dimension_numbers<[1], [0], [0], [1], [0, 0, 1, 1], [], []>} : vector<160x12xbf16>, vector<12x128xbf16>, vector<160x128xf32> -> vector<160x128xf32>
    %39 = arith.addf %30, %38 : vector<160x128xf32>
    %c0_40 = arith.constant 0 : index
    %c17 = arith.constant 17 : index
    %c0_41 = arith.constant 0 : index
    %40 = vector.load %arg10[%c0_40, %c17, %c0_41] : memref<12x48x4xbf16, #tpu.memory_space<vmem>>, vector<10x16x4xbf16>
    %c1_42 = arith.constant 1 : index
    %c17_43 = arith.constant 17 : index
    %c0_44 = arith.constant 0 : index
    %41 = vector.load %arg10[%c1_42, %c17_43, %c0_44] : memref<12x48x4xbf16, #tpu.memory_space<vmem>>, vector<10x16x4xbf16>
    %c2_45 = arith.constant 2 : index
    %c17_46 = arith.constant 17 : index
    %c0_47 = arith.constant 0 : index
    %42 = vector.load %arg10[%c2_45, %c17_46, %c0_47] : memref<12x48x4xbf16, #tpu.memory_space<vmem>>, vector<10x16x4xbf16>
    %43 = tpu.concatenate %40, %41, %42 in 2 : vector<10x16x4xbf16>, vector<10x16x4xbf16>, vector<10x16x4xbf16> -> vector<10x16x12xbf16>
    %44 = vector.shape_cast %43 : vector<10x16x12xbf16> to vector<160x12xbf16>
    %c2_48 = arith.constant 2 : index
    %c0_49 = arith.constant 0 : index
    %c0_50 = arith.constant 0 : index
    %45 = vector.load %arg3[%c2_48, %c0_49, %c0_50] : memref<3x12x128xbf16, #tpu.memory_space<vmem>>, vector<1x12x128xbf16>
    %46 = vector.shape_cast %45 : vector<1x12x128xbf16> to vector<12x128xbf16>
    %cst_51 = arith.constant dense<0.000000e+00> : vector<160x128xf32>
    %47 = tpu.matmul %44, %46, %cst_51 {dimension_numbers = #tpu.dot_dimension_numbers<[1], [0], [0], [1], [0, 0, 1, 1], [], []>} : vector<160x12xbf16>, vector<12x128xbf16>, vector<160x128xf32> -> vector<160x128xf32>
    %48 = arith.addf %39, %47 : vector<160x128xf32>
    %c0_52 = arith.constant 0 : index
    %c0_53 = arith.constant 0 : index
    %49 = vector.load %arg4[%c0_52, %c0_53] : memref<1x128xf32, #tpu.memory_space<vmem>>, vector<1x128xf32>
    %50 = vector.broadcast %49 : vector<1x128xf32> to vector<160x128xf32>
    %51 = arith.mulf %48, %50 : vector<160x128xf32>
    %c0_54 = arith.constant 0 : index
    %c0_55 = arith.constant 0 : index
    %52 = vector.load %arg5[%c0_54, %c0_55] : memref<1x128xf32, #tpu.memory_space<vmem>>, vector<1x128xf32>
    %53 = vector.broadcast %52 : vector<1x128xf32> to vector<160x128xf32>
    %54 = arith.addf %51, %53 : vector<160x128xf32>
    %cst_56 = arith.constant 0.000000e+00 : f32
    %55 = vector.broadcast %cst_56 : f32 to vector<160x128xf32>
    %56 = arith.maximumf %54, %55 : vector<160x128xf32>
    %cst_57 = arith.constant 0.000000e+00 : bf16
    %57 = vector.broadcast %cst_57 : bf16 to vector<10x16x128xbf16>
    %c0_58 = arith.constant 0 : index
    %c0_59 = arith.constant 0 : index
    %c0_60 = arith.constant 0 : index
    %58 = vector.load %arg11[%c0_58, %c0_59, %c0_60] : memref<10x48x128xbf16, #tpu.memory_space<vmem>>, vector<10x16x128xbf16>
    tpu.vector_store %arg11[%c0_58, %c0_59, %c0_60], %57 {strides = array<i32>} : memref<10x48x128xbf16, #tpu.memory_space<vmem>>, vector<10x16x128xbf16>,
    %cst_61 = arith.constant 0.000000e+00 : bf16
    %59 = vector.broadcast %cst_61 : bf16 to vector<10x16x128xbf16>
    %c0_62 = arith.constant 0 : index
    %c32_63 = arith.constant 32 : index
    %c0_64 = arith.constant 0 : index
    %60 = vector.load %arg11[%c0_62, %c32_63, %c0_64] : memref<10x48x128xbf16, #tpu.memory_space<vmem>>, vector<10x16x128xbf16>
    tpu.vector_store %arg11[%c0_62, %c32_63, %c0_64], %59 {strides = array<i32>} : memref<10x48x128xbf16, #tpu.memory_space<vmem>>, vector<10x16x128xbf16>,
    %61 = vector.shape_cast %56 : vector<160x128xf32> to vector<10x16x128xf32>
    %62 = arith.truncf %61 : vector<10x16x128xf32> to vector<10x16x128xbf16>
    %c0_65 = arith.constant 0 : index
    %c16_66 = arith.constant 16 : index
    %c0_67 = arith.constant 0 : index
    %63 = vector.load %arg11[%c0_65, %c16_66, %c0_67] : memref<10x48x128xbf16, #tpu.memory_space<vmem>>, vector<10x16x128xbf16>
    tpu.vector_store %arg11[%c0_65, %c16_66, %c0_67], %62 {strides = array<i32>} : memref<10x48x128xbf16, #tpu.memory_space<vmem>>, vector<10x16x128xbf16>,
    %c0_i32_68 = arith.constant 0 : i32
    %64 = arith.cmpi eq, %arg1, %c0_i32_68 : i32
    %65 = arith.extui %64 : i1 to i32
    %c0_i32_69 = arith.constant 0 : i32
    %66 = arith.cmpi ne, %65, %c0_i32_69 : i32
    scf.if %66 {
      %cst_121 = arith.constant 0.000000e+00 : bf16
      %111 = vector.broadcast %cst_121 : bf16 to vector<1x16x128xbf16>
      %c0_122 = arith.constant 0 : index
      %c16_123 = arith.constant 16 : index
      %c0_124 = arith.constant 0 : index
      %112 = vector.load %arg11[%c0_122, %c16_123, %c0_124] : memref<10x48x128xbf16, #tpu.memory_space<vmem>>, vector<1x16x128xbf16>
      tpu.vector_store %arg11[%c0_122, %c16_123, %c0_124], %111 {strides = array<i32>} : memref<10x48x128xbf16, #tpu.memory_space<vmem>>, vector<1x16x128xbf16>,
    } else {
    }
    %c1_i32_70 = arith.constant 1 : i32
    %67 = arith.cmpi eq, %arg1, %c1_i32_70 : i32
    %68 = arith.extui %67 : i1 to i32
    %c0_i32_71 = arith.constant 0 : i32
    %69 = arith.cmpi ne, %68, %c0_i32_71 : i32
    scf.if %69 {
      %cst_121 = arith.constant 0.000000e+00 : bf16
      %111 = vector.broadcast %cst_121 : bf16 to vector<1x16x128xbf16>
      %c9 = arith.constant 9 : index
      %c16_122 = arith.constant 16 : index
      %c0_123 = arith.constant 0 : index
      %112 = vector.load %arg11[%c9, %c16_122, %c0_123] : memref<10x48x128xbf16, #tpu.memory_space<vmem>>, vector<1x16x128xbf16>
      tpu.vector_store %arg11[%c9, %c16_122, %c0_123], %111 {strides = array<i32>} : memref<10x48x128xbf16, #tpu.memory_space<vmem>>, vector<1x16x128xbf16>,
    } else {
    }
    %cst_72 = arith.constant 0.000000e+00 : f32
    %70 = vector.broadcast %cst_72 : f32 to vector<128x128xf32>
    %c0_73 = arith.constant 0 : index
    %c15_74 = arith.constant 15 : index
    %c0_75 = arith.constant 0 : index
    %71 = vector.load %arg11[%c0_73, %c15_74, %c0_75] : memref<10x48x128xbf16, #tpu.memory_space<vmem>>, vector<8x16x128xbf16>
    %c1_76 = arith.constant 1 : index
    %c15_77 = arith.constant 15 : index
    %c0_78 = arith.constant 0 : index
    %72 = vector.load %arg11[%c1_76, %c15_77, %c0_78] : memref<10x48x128xbf16, #tpu.memory_space<vmem>>, vector<8x16x128xbf16>
    %c2_79 = arith.constant 2 : index
    %c15_80 = arith.constant 15 : index
    %c0_81 = arith.constant 0 : index
    %73 = vector.load %arg11[%c2_79, %c15_80, %c0_81] : memref<10x48x128xbf16, #tpu.memory_space<vmem>>, vector<8x16x128xbf16>
    %74 = tpu.concatenate %71, %72, %73 in 2 : vector<8x16x128xbf16>, vector<8x16x128xbf16>, vector<8x16x128xbf16> -> vector<8x16x384xbf16>
    %75 = vector.shape_cast %74 : vector<8x16x384xbf16> to vector<128x384xbf16>
    %c0_82 = arith.constant 0 : index
    %c0_83 = arith.constant 0 : index
    %c0_84 = arith.constant 0 : index
    %76 = vector.load %arg6[%c0_82, %c0_83, %c0_84] : memref<3x384x128xbf16, #tpu.memory_space<vmem>>, vector<1x384x128xbf16>
    %77 = vector.shape_cast %76 : vector<1x384x128xbf16> to vector<384x128xbf16>
    %cst_85 = arith.constant dense<0.000000e+00> : vector<128x128xf32>
    %78 = tpu.matmul %75, %77, %cst_85 {dimension_numbers = #tpu.dot_dimension_numbers<[1], [0], [0], [1], [0, 0, 1, 1], [], []>} : vector<128x384xbf16>, vector<384x128xbf16>, vector<128x128xf32> -> vector<128x128xf32>
    %79 = arith.addf %70, %78 : vector<128x128xf32>
    %c0_86 = arith.constant 0 : index
    %c16_87 = arith.constant 16 : index
    %c0_88 = arith.constant 0 : index
    %80 = vector.load %arg11[%c0_86, %c16_87, %c0_88] : memref<10x48x128xbf16, #tpu.memory_space<vmem>>, vector<8x16x128xbf16>
    %c1_89 = arith.constant 1 : index
    %c16_90 = arith.constant 16 : index
    %c0_91 = arith.constant 0 : index
    %81 = vector.load %arg11[%c1_89, %c16_90, %c0_91] : memref<10x48x128xbf16, #tpu.memory_space<vmem>>, vector<8x16x128xbf16>
    %c2_92 = arith.constant 2 : index
    %c16_93 = arith.constant 16 : index
    %c0_94 = arith.constant 0 : index
    %82 = vector.load %arg11[%c2_92, %c16_93, %c0_94] : memref<10x48x128xbf16, #tpu.memory_space<vmem>>, vector<8x16x128xbf16>
    %83 = tpu.concatenate %80, %81, %82 in 2 : vector<8x16x128xbf16>, vector<8x16x128xbf16>, vector<8x16x128xbf16> -> vector<8x16x384xbf16>
    %84 = vector.shape_cast %83 : vector<8x16x384xbf16> to vector<128x384xbf16>
    %c1_95 = arith.constant 1 : index
    %c0_96 = arith.constant 0 : index
    %c0_97 = arith.constant 0 : index
    %85 = vector.load %arg6[%c1_95, %c0_96, %c0_97] : memref<3x384x128xbf16, #tpu.memory_space<vmem>>, vector<1x384x128xbf16>
    %86 = vector.shape_cast %85 : vector<1x384x128xbf16> to vector<384x128xbf16>
    %cst_98 = arith.constant dense<0.000000e+00> : vector<128x128xf32>
    %87 = tpu.matmul %84, %86, %cst_98 {dimension_numbers = #tpu.dot_dimension_numbers<[1], [0], [0], [1], [0, 0, 1, 1], [], []>} : vector<128x384xbf16>, vector<384x128xbf16>, vector<128x128xf32> -> vector<128x128xf32>
    %88 = arith.addf %79, %87 : vector<128x128xf32>
    %c0_99 = arith.constant 0 : index
    %c17_100 = arith.constant 17 : index
    %c0_101 = arith.constant 0 : index
    %89 = vector.load %arg11[%c0_99, %c17_100, %c0_101] : memref<10x48x128xbf16, #tpu.memory_space<vmem>>, vector<8x16x128xbf16>
    %c1_102 = arith.constant 1 : index
    %c17_103 = arith.constant 17 : index
    %c0_104 = arith.constant 0 : index
    %90 = vector.load %arg11[%c1_102, %c17_103, %c0_104] : memref<10x48x128xbf16, #tpu.memory_space<vmem>>, vector<8x16x128xbf16>
    %c2_105 = arith.constant 2 : index
    %c17_106 = arith.constant 17 : index
    %c0_107 = arith.constant 0 : index
    %91 = vector.load %arg11[%c2_105, %c17_106, %c0_107] : memref<10x48x128xbf16, #tpu.memory_space<vmem>>, vector<8x16x128xbf16>
    %92 = tpu.concatenate %89, %90, %91 in 2 : vector<8x16x128xbf16>, vector<8x16x128xbf16>, vector<8x16x128xbf16> -> vector<8x16x384xbf16>
    %93 = vector.shape_cast %92 : vector<8x16x384xbf16> to vector<128x384xbf16>
    %c2_108 = arith.constant 2 : index
    %c0_109 = arith.constant 0 : index
    %c0_110 = arith.constant 0 : index
    %94 = vector.load %arg6[%c2_108, %c0_109, %c0_110] : memref<3x384x128xbf16, #tpu.memory_space<vmem>>, vector<1x384x128xbf16>
    %95 = vector.shape_cast %94 : vector<1x384x128xbf16> to vector<384x128xbf16>
    %cst_111 = arith.constant dense<0.000000e+00> : vector<128x128xf32>
    %96 = tpu.matmul %93, %95, %cst_111 {dimension_numbers = #tpu.dot_dimension_numbers<[1], [0], [0], [1], [0, 0, 1, 1], [], []>} : vector<128x384xbf16>, vector<384x128xbf16>, vector<128x128xf32> -> vector<128x128xf32>
    %97 = arith.addf %88, %96 : vector<128x128xf32>
    %c0_112 = arith.constant 0 : index
    %c0_113 = arith.constant 0 : index
    %98 = vector.load %arg7[%c0_112, %c0_113] : memref<1x128xf32, #tpu.memory_space<vmem>>, vector<1x128xf32>
    %99 = vector.broadcast %98 : vector<1x128xf32> to vector<128x128xf32>
    %100 = arith.mulf %97, %99 : vector<128x128xf32>
    %c0_114 = arith.constant 0 : index
    %c0_115 = arith.constant 0 : index
    %101 = vector.load %arg8[%c0_114, %c0_115] : memref<1x128xf32, #tpu.memory_space<vmem>>, vector<1x128xf32>
    %102 = vector.broadcast %101 : vector<1x128xf32> to vector<128x128xf32>
    %103 = arith.addf %100, %102 : vector<128x128xf32>
    %cst_116 = arith.constant 0.000000e+00 : f32
    %104 = vector.broadcast %cst_116 : f32 to vector<128x128xf32>
    %105 = arith.maximumf %103, %104 : vector<128x128xf32>
    %106 = vector.shape_cast %105 : vector<128x128xf32> to vector<8x16x128xf32>
    %107 = arith.truncf %106 : vector<8x16x128xf32> to vector<8x16x128xbf16>
    %c0_117 = arith.constant 0 : index
    %c0_118 = arith.constant 0 : index
    %c0_119 = arith.constant 0 : index
    %c0_120 = arith.constant 0 : index
    %108 = vector.load %arg9[%c0_117, %c0_118, %c0_119, %c0_120] : memref<1x8x16x128xbf16, #tpu.memory_space<vmem>>, vector<1x8x16x128xbf16>
    %109 = vector.shape_cast %108 : vector<1x8x16x128xbf16> to vector<8x16x128xbf16>
    %110 = vector.shape_cast %107 : vector<8x16x128xbf16> to vector<1x8x16x128xbf16>
    tpu.vector_store %arg9[%c0_117, %c0_118, %c0_119, %c0_120], %110 {strides = array<i32>} : memref<1x8x16x128xbf16, #tpu.memory_space<vmem>>, vector<1x8x16x128xbf16>,
    return
  }
  func.func @transform_0(%arg0: i32, %arg1: i32) -> (i32, i32, i32, i32) {
    %c0_i32 = arith.constant 0 : i32
    %c0_i32_0 = arith.constant 0 : i32
    %c0_i32_1 = arith.constant 0 : i32
    %c0_i32_2 = arith.constant 0 : i32
    return %arg0, %c0_i32, %c0_i32_0, %c0_i32_1 : i32, i32, i32, i32
  }
  func.func @transform_1(%arg0: i32, %arg1: i32) -> (i32, i32, i32) {
    %c0_i32 = arith.constant 0 : i32
    %c0_i32_0 = arith.constant 0 : i32
    %c0_i32_1 = arith.constant 0 : i32
    %c0_i32_2 = arith.constant 0 : i32
    return %c0_i32, %c0_i32_0, %c0_i32_1 : i32, i32, i32
  }
  func.func @transform_2(%arg0: i32, %arg1: i32) -> (i32, i32) {
    %c0_i32 = arith.constant 0 : i32
    %c0_i32_0 = arith.constant 0 : i32
    %c0_i32_1 = arith.constant 0 : i32
    return %c0_i32, %c0_i32_0 : i32, i32
  }
  func.func @transform_3(%arg0: i32, %arg1: i32) -> (i32, i32) {
    %c0_i32 = arith.constant 0 : i32
    %c0_i32_0 = arith.constant 0 : i32
    %c0_i32_1 = arith.constant 0 : i32
    return %c0_i32, %c0_i32_0 : i32, i32
  }
  func.func @transform_4(%arg0: i32, %arg1: i32) -> (i32, i32, i32) {
    %c0_i32 = arith.constant 0 : i32
    %c0_i32_0 = arith.constant 0 : i32
    %c0_i32_1 = arith.constant 0 : i32
    %c0_i32_2 = arith.constant 0 : i32
    return %c0_i32, %c0_i32_0, %c0_i32_1 : i32, i32, i32
  }
  func.func @transform_5(%arg0: i32, %arg1: i32) -> (i32, i32) {
    %c0_i32 = arith.constant 0 : i32
    %c0_i32_0 = arith.constant 0 : i32
    %c0_i32_1 = arith.constant 0 : i32
    return %c0_i32, %c0_i32_0 : i32, i32
  }
  func.func @transform_6(%arg0: i32, %arg1: i32) -> (i32, i32) {
    %c0_i32 = arith.constant 0 : i32
    %c0_i32_0 = arith.constant 0 : i32
    %c0_i32_1 = arith.constant 0 : i32
    return %c0_i32, %c0_i32_0 : i32, i32
  }
  func.func @transform_7(%arg0: i32, %arg1: i32) -> (i32, i32, i32, i32) {
    %c0_i32 = arith.constant 0 : i32
    %c0_i32_0 = arith.constant 0 : i32
    %c0_i32_1 = arith.constant 0 : i32
    return %arg0, %arg1, %c0_i32, %c0_i32_0 : i32, i32, i32, i32
  }
}

</mosaic_0001>

<llo_original>
// kernel: tpu_custom_call.1
$region0: #{tpu_custom_call.1}
  #allocation0 [shape = 'u32[]', space=smem, size = 0x4, offset = 0x4, fixed_abs, tag = 'smem constant byte address 0x4 - core index']
  #allocation1 [shape = 'u32[72,128]{1,0:T(1,128)}', space=vmem, size = 0x9000, scoped, tag = 'internal scratch']
  #allocation2 [shape = 'bf16[12,48,4]{2,1,0:T(8,128)(2,1)}', space=vmem, size = 0x24000, scoped, tag = 'scratch operand']
  #allocation3 [shape = 'bf16[10,48,128]{2,1,0:T(8,128)(2,1)}', space=vmem, size = 0x1e000, scoped, tag = 'scratch operand']
  %s0 = inlined_call_operand.vmem [shape: bf16[2,16,16,4], index: 0, kind: input, shape index: {}]
  %s1 = inlined_call_operand.vmem [shape: bf16[3,12,128], index: 1, kind: input, shape index: {}]
  %s2 = inlined_call_operand.vmem [shape: f32[1,128], index: 2, kind: input, shape index: {}]
  %s3 = inlined_call_operand.vmem [shape: f32[1,128], index: 3, kind: input, shape index: {}]
  %s4 = inlined_call_operand.hbm [shape: bf16[3,384,128], index: 4, kind: input, shape index: {}]
  %s5 = inlined_call_operand.vmem [shape: f32[1,128], index: 5, kind: input, shape index: {}]
  %s6 = inlined_call_operand.vmem [shape: f32[1,128], index: 6, kind: input, shape index: {}]
  %s7 = inlined_call_operand.hbm [shape: bf16[2,16,16,128], index: 7, kind: output, shape index: {}]
  %s8 = sld [smem:[#allocation0]]
  $region89: #{tpu_custom_call.1} parent=0
    _
  %s10 = ssub.s32 1, %s8
  %s11 = scalar_select 0, %s10, %s8
  $region1: #{tpu_custom_call.1} parent=0
    #allocation4 [shape = 'u8[294912]{0}', space=vmem, size = 0x48000, scoped, tag = 'input window, operand 4, single buffered']
    #allocation5 [shape = 's32[2]{0}', space=sflag, size = 0x8, scoped, tag = 'scoped memory for tpu_custom_call.1']
    #allocation6 [shape = 's32[2]{0}', space=sflag, size = 0x8, scoped, tag = 'scoped memory for tpu_custom_call.1']
    #allocation7 [shape = 'u8[65536]{0}', space=vmem, size = 0x10000, scoped, tag = 'output window, operand 0']
    %12 = vsyncpa [#allocation5], 0
    %13 = vsyncpa [#allocation6], 0
    %s14 = scalar_lea.sflag [#allocation6], 1
    %15 = vsyncpa %s14, 0
    loop: start=0, step=1, limit=6
    $region2: #{tpu_custom_call.1} parent=1 // loop_pre_header
      _
    $region3: #{tpu_custom_call.1} parent=1 // loop_header
      %s17 = sphi 0, %s21
      %p18 = scmp.ge.s32.totalorder %s17, 6
      %s24 = sphi 0, %s36
      %s25 = sphi 0, %s32
      %s26 = sphi 0, %s24
      %s27 = sphi 0, %s25
      %s28 = sphi 0, %s26
      %s29 = sphi 0, %s27
      %s39 = sphi 0, %s41
      %s42 = sphi 0, %s39
      %s43 = sphi 0, %s42
      %s59 = sphi 0, %s43
      %s63 = sphi 0, %s63
      %s65 = sphi 0, %s63
      %s66 = sphi 0, %s65
      %s80 = sphi 0, %s66
      %s84 = sphi 0, %s84
      %s86 = sphi 0, %s84
      %s87 = sphi 0, %s86
      %s101 = sphi 0, %s87
      %s105 = sphi 0, %s105
      %s107 = sphi 0, %s105
      %s108 = sphi 0, %s107
      %s122 = sphi 0, %s108
      %s126 = sphi 0, %s126
      %s128 = sphi 0, %s126
      %s129 = sphi 0, %s128
      %s143 = sphi 0, %s129
      %s147 = sphi 0, %s147
      %s149 = sphi 0, %s147
      %s150 = sphi 0, %s149
      %s164 = sphi 0, %s150
      %s168 = sphi 0, %s168
      %s170 = sphi 0, %s168
      %s171 = sphi 0, %s170
      %s185 = sphi 0, %s171
      %s193 = sphi 0, %s195
      %s196 = sphi 0, %s193
      %s197 = sphi 0, %s196
      %s213 = sphi 0, %s197
    $region4: #{tpu_custom_call.1} parent=1 // loop_header_branch
      %20 = sbr.rel (%p18) target = $region8
    $region5: #{tpu_custom_call.1} parent=1 // loop_body
      %s22 = ssub.s32 %s17, 1
      %s23 = ssub.s32 %s17, 2
      %s30 = sadd.s32 1, %s25
      %p31 = scmp.ge.s32.totalorder %s30, 2
      %s32 = scalar_select %p31, 0, %s30
      %s33 = sadd.s32 1, %s24
      %s34 = scalar_select %p31, %s33, %s24
      %p35 = scmp.ge.s32.totalorder %s34, 2
      %s36 = scalar_select %p35, 0, %s34
      %s37 = ssub.s32 %s24, %s36
      %p38 = scmp.eq.s32.totalorder %s37, 0
      %s40 = sadd.s32 %s39, 1
      %s41 = scalar_select %p38, %s39, %s40
      %p44 = pneg %p38
      %p45 = scmp.eq.s32.totalorder %s17, 3
      %p46 = por %p44, %p45
      %p47 = scmp.ne.s32.totalorder %s39, %s42
      %p48 = scmp.eq.s32.totalorder %s17, 0
      %p49 = por %p47, %p48
      %p50 = scmp.ne.s32.totalorder %s39, %s42
      %p51 = scmp.eq.s32.totalorder %s22, 3
      %p52 = por %p50, %p51
      %p53 = scmp.ne.s32.totalorder %s42, %s43
      %p54 = scmp.eq.s32.totalorder %s22, 0
      %p55 = por %p53, %p54
      %p56 = scmp.ne.s32.totalorder %s42, %s43
      %p57 = scmp.eq.s32.totalorder %s23, 3
      %p58 = por %p56, %p57
      %p60 = scmp.ne.s32.totalorder %s43, %s59
      %p61 = scmp.eq.s32.totalorder %s23, 0
      %p62 = por %p60, %p61
      %s64 = sadd.s32 %s63, 1
      %p67 = scmp.eq.s32.totalorder %s17, 3
      %p68 = scmp.ne.s32.totalorder %s63, %s65
      %p69 = scmp.eq.s32.totalorder %s17, 0
      %p70 = por %p68, %p69
      %p71 = scmp.ne.s32.totalorder %s63, %s65
      %p72 = scmp.eq.s32.totalorder %s22, 3
      %p73 = por %p71, %p72
      %p74 = scmp.ne.s32.totalorder %s65, %s66
      %p75 = scmp.eq.s32.totalorder %s22, 0
      %p76 = por %p74, %p75
      %p77 = scmp.ne.s32.totalorder %s65, %s66
      %p78 = scmp.eq.s32.totalorder %s23, 3
      %p79 = por %p77, %p78
      %p81 = scmp.ne.s32.totalorder %s66, %s80
      %p82 = scmp.eq.s32.totalorder %s23, 0
      %p83 = por %p81, %p82
      %s85 = sadd.s32 %s84, 1
      %p88 = scmp.eq.s32.totalorder %s17, 3
      %p89 = scmp.ne.s32.totalorder %s84, %s86
      %p90 = scmp.eq.s32.totalorder %s17, 0
      %p91 = por %p89, %p90
      %p92 = scmp.ne.s32.totalorder %s84, %s86
      %p93 = scmp.eq.s32.totalorder %s22, 3
      %p94 = por %p92, %p93
      %p95 = scmp.ne.s32.totalorder %s86, %s87
      %p96 = scmp.eq.s32.totalorder %s22, 0
      %p97 = por %p95, %p96
      %p98 = scmp.ne.s32.totalorder %s86, %s87
      %p99 = scmp.eq.s32.totalorder %s23, 3
      %p100 = por %p98, %p99
      %p102 = scmp.ne.s32.totalorder %s87, %s101
      %p103 = scmp.eq.s32.totalorder %s23, 0
      %p104 = por %p102, %p103
      %s106 = sadd.s32 %s105, 1
      %p109 = scmp.eq.s32.totalorder %s17, 3
      %p110 = scmp.ne.s32.totalorder %s105, %s107
      %p111 = scmp.eq.s32.totalorder %s17, 0
      %p112 = por %p110, %p111
      %p113 = scmp.ne.s32.totalorder %s105, %s107
      %p114 = scmp.eq.s32.totalorder %s22, 3
      %p115 = por %p113, %p114
      %p116 = scmp.ne.s32.totalorder %s107, %s108
      %p117 = scmp.eq.s32.totalorder %s22, 0
      %p118 = por %p116, %p117
      %p119 = scmp.ne.s32.totalorder %s107, %s108
      %p120 = scmp.eq.s32.totalorder %s23, 3
      %p121 = por %p119, %p120
      %p123 = scmp.ne.s32.totalorder %s108, %s122
      %p124 = scmp.eq.s32.totalorder %s23, 0
      %p125 = por %p123, %p124
      %s127 = sadd.s32 %s126, 1
      %p130 = scmp.eq.s32.totalorder %s17, 3
      %p131 = scmp.ne.s32.totalorder %s126, %s128
      %p132 = scmp.eq.s32.totalorder %s17, 0
      %p133 = por %p131, %p132
      %p134 = scmp.ne.s32.totalorder %s126, %s128
      %p135 = scmp.eq.s32.totalorder %s22, 3
      %p136 = por %p134, %p135
      %p137 = scmp.ne.s32.totalorder %s128, %s129
      %p138 = scmp.eq.s32.totalorder %s22, 0
      %p139 = por %p137, %p138
      %p140 = scmp.ne.s32.totalorder %s128, %s129
      %p141 = scmp.eq.s32.totalorder %s23, 3
      %p142 = por %p140, %p141
      %p144 = scmp.ne.s32.totalorder %s129, %s143
      %p145 = scmp.eq.s32.totalorder %s23, 0
      %p146 = por %p144, %p145
      %s148 = sadd.s32 %s147, 1
      %p151 = scmp.eq.s32.totalorder %s17, 3
      %p152 = scmp.ne.s32.totalorder %s147, %s149
      %p153 = scmp.eq.s32.totalorder %s17, 0
      %p154 = por %p152, %p153
      %p155 = scmp.ne.s32.totalorder %s147, %s149
      %p156 = scmp.eq.s32.totalorder %s22, 3
      %p157 = por %p155, %p156
      %p158 = scmp.ne.s32.totalorder %s149, %s150
      %p159 = scmp.eq.s32.totalorder %s22, 0
      %p160 = por %p158, %p159
      %p161 = scmp.ne.s32.totalorder %s149, %s150
      %p162 = scmp.eq.s32.totalorder %s23, 3
      %p163 = por %p161, %p162
      %p165 = scmp.ne.s32.totalorder %s150, %s164
      %p166 = scmp.eq.s32.totalorder %s23, 0
      %p167 = por %p165, %p166
      %s169 = sadd.s32 %s168, 1
      %p172 = scmp.eq.s32.totalorder %s17, 3
      %p173 = scmp.ne.s32.totalorder %s168, %s170
      %p174 = scmp.eq.s32.totalorder %s17, 0
      %p175 = por %p173, %p174
      %p176 = scmp.ne.s32.totalorder %s168, %s170
      %p177 = scmp.eq.s32.totalorder %s22, 3
      %p178 = por %p176, %p177
      %p179 = scmp.ne.s32.totalorder %s170, %s171
      %p180 = scmp.eq.s32.totalorder %s22, 0
      %p181 = por %p179, %p180
      %p182 = scmp.ne.s32.totalorder %s170, %s171
      %p183 = scmp.eq.s32.totalorder %s23, 3
      %p184 = por %p182, %p183
      %p186 = scmp.ne.s32.totalorder %s171, %s185
      %p187 = scmp.eq.s32.totalorder %s23, 0
      %p188 = por %p186, %p187
      %s189 = ssub.s32 %s24, %s36
      %s190 = ssub.s32 %s25, %s32
      %s191 = sor.u32 %s189, %s190
      %p192 = scmp.eq.s32.totalorder %s191, 0
      %s194 = sadd.s32 %s193, 1
      %s195 = scalar_select %p192, %s193, %s194
      %p198 = pneg %p192
      %p199 = scmp.eq.s32.totalorder %s17, 3
      %p200 = por %p198, %p199
      %p201 = scmp.ne.s32.totalorder %s193, %s196
      %p202 = scmp.eq.s32.totalorder %s17, 0
      %p203 = por %p201, %p202
      %p204 = scmp.ne.s32.totalorder %s193, %s196
      %p205 = scmp.eq.s32.totalorder %s22, 3
      %p206 = por %p204, %p205
      %p207 = scmp.ne.s32.totalorder %s196, %s197
      %p208 = scmp.eq.s32.totalorder %s22, 0
      %p209 = por %p207, %p208
      %p210 = scmp.ne.s32.totalorder %s196, %s197
      %p211 = scmp.eq.s32.totalorder %s23, 3
      %p212 = por %p210, %p211
      %p214 = scmp.ne.s32.totalorder %s197, %s213
      %p215 = scmp.eq.s32.totalorder %s23, 0
      %p216 = por %p214, %p215
      %p217 = scmp.le.s32.totalorder 1, %s17
      %p218 = scmp.lt.s32.totalorder %s17, 5
      %p219 = pnand %p217, %p218
      %p220 = pneg %p219
      // Predicated region
      $region9: #{tpu_custom_call.1} parent=5 // pred_check
        _
      $region10: #{tpu_custom_call.1} parent=5 // pred_check_branch
        %222 = sbr.rel (%p219) target = $region12
      $region11: #{tpu_custom_call.1} parent=5 // pred_region
        %s223 = ssub.s32 %s17, 1
        // Predicated region
        $region13: #{tpu_custom_call.1} parent=11 // pred_check
          %p224 = pneg %p76
        $region14: #{tpu_custom_call.1} parent=11 // pred_check_branch
          %226 = sbr.rel (%p224) target = $region16
        $region15: #{tpu_custom_call.1} parent=11 // pred_region
          _
        $region16: #{tpu_custom_call.1} parent=11 // pred_fallthru
          _
        // Predicated region
        $region17: #{tpu_custom_call.1} parent=11 // pred_check
          %p227 = pneg %p97
        $region18: #{tpu_custom_call.1} parent=11 // pred_check_branch
          %229 = sbr.rel (%p227) target = $region20
        $region19: #{tpu_custom_call.1} parent=11 // pred_region
          _
        $region20: #{tpu_custom_call.1} parent=11 // pred_fallthru
          _
        // Predicated region
        $region21: #{tpu_custom_call.1} parent=11 // pred_check
          %p230 = pneg %p118
        $region22: #{tpu_custom_call.1} parent=11 // pred_check_branch
          %232 = sbr.rel (%p230) target = $region24
        $region23: #{tpu_custom_call.1} parent=11 // pred_region
          _
        $region24: #{tpu_custom_call.1} parent=11 // pred_fallthru
          _
        // Predicated region
        $region25: #{tpu_custom_call.1} parent=11 // pred_check
          %p233 = pneg %p139
        $region26: #{tpu_custom_call.1} parent=11 // pred_check_branch
          %235 = sbr.rel (%p233) target = $region28
        $region27: #{tpu_custom_call.1} parent=11 // pred_region
          %237 = vsyncadd [#allocation5], 0
          %s238 = sshll.u32 %s4, 4
          %s239 = int_to_ptr.hbm [resolvable:$true] %s238
          %s240 = sshll.u32 [#allocation4], 4
          %s241 = int_to_ptr.vmem [resolvable:$true] %s240
          %246 = dma.hbm_to_vmem [thread:$0]  %s239, 9216, %s241, [#allocation5], 64, 64, 4
        $region28: #{tpu_custom_call.1} parent=11 // pred_fallthru
          _
        // Predicated region
        $region29: #{tpu_custom_call.1} parent=11 // pred_check
          %p247 = pneg %p160
        $region30: #{tpu_custom_call.1} parent=11 // pred_check_branch
          %249 = sbr.rel (%p247) target = $region32
        $region31: #{tpu_custom_call.1} parent=11 // pred_region
          _
        $region32: #{tpu_custom_call.1} parent=11 // pred_fallthru
          _
        // Predicated region
        $region33: #{tpu_custom_call.1} parent=11 // pred_check
          %p250 = pneg %p181
        $region34: #{tpu_custom_call.1} parent=11 // pred_check_branch
          %252 = sbr.rel (%p250) target = $region36
        $region35: #{tpu_custom_call.1} parent=11 // pred_region
          _
        $region36: #{tpu_custom_call.1} parent=11 // pred_fallthru
          _
      $region12: #{tpu_custom_call.1} parent=5 // pred_fallthru
        _
      %p253 = scmp.lt.s32.totalorder %s17, 4
      // Predicated region
      $region37: #{tpu_custom_call.1} parent=5 // pred_check
        %p254 = pneg %p253
      $region38: #{tpu_custom_call.1} parent=5 // pred_check_branch
        %256 = sbr.rel (%p254) target = $region40
      $region39: #{tpu_custom_call.1} parent=5 // pred_region
        // Predicated region
        $region41: #{tpu_custom_call.1} parent=39 // pred_check
          %p257 = pneg %p49
        $region42: #{tpu_custom_call.1} parent=39 // pred_check_branch
          %259 = sbr.rel (%p257) target = $region44
        $region43: #{tpu_custom_call.1} parent=39 // pred_region
          %p260 = scmp.lt.s32.totalorder %s24, 1
          %s261 = scalar_select %p260, %s24, 1
          %s262 = smul.addr %s261, 32
          %s263 = smul.addr %s262, 4
          %s264 = scalar_lea.vmem %s0, %s263
        $region44: #{tpu_custom_call.1} parent=39 // pred_fallthru
          _
      $region40: #{tpu_custom_call.1} parent=5 // pred_fallthru
        _
      %p265 = scmp.le.s32.totalorder 1, %s17
      %p266 = scmp.lt.s32.totalorder %s17, 5
      %p267 = pnand %p265, %p266
      %p268 = pneg %p267
      // Predicated region
      $region45: #{tpu_custom_call.1} parent=5 // pred_check
        _
      $region46: #{tpu_custom_call.1} parent=5 // pred_check_branch
        %270 = sbr.rel (%p267) target = $region48
      $region47: #{tpu_custom_call.1} parent=5 // pred_region
        %s271 = ssub.s32 %s17, 1
        // Predicated region
        $region49: #{tpu_custom_call.1} parent=47 // pred_check
          %p272 = pneg %p139
        $region50: #{tpu_custom_call.1} parent=47 // pred_check_branch
          %274 = sbr.rel (%p272) target = $region52
        $region51: #{tpu_custom_call.1} parent=47 // pred_region
          %276 = dma.done [#allocation5], 9216
        $region52: #{tpu_custom_call.1} parent=47 // pred_fallthru
          _
        %p277 = scmp.lt.s32.totalorder %s26, 1
        %s278 = scalar_select %p277, %s26, 1
        %s279 = smul.addr %s278, 32
        %s280 = smul.addr %s279, 4
        %s281 = scalar_lea.vmem %s0, %s280
        %p282 = pneg %p55
        %p283 = pneg %p52
        %p284 = pneg %p76
        %p285 = pneg %p73
        %p286 = pneg %p97
        %p287 = pneg %p94
        %p288 = pneg %p118
        %p289 = pneg %p115
        %p290 = pneg %p139
        %p291 = pneg %p136
        %p292 = pneg %p160
        %p293 = pneg %p157
        %p294 = pneg %p181
        %p295 = pneg %p178
        %p296 = pneg %p209
        %p297 = pneg %p206
        %s298 = sand.u32 %s196, 1
        %s299 = scalar_lea.sflag [#allocation6], %s298
        %s300 = sand.u32 %s196, 1
        %s301 = smul.addr %s300, 64
        %s302 = scalar_lea.vmem [#allocation7], %s301
        %p303 = scmp.lt.s32.totalorder %s26, 1
        %s304 = scalar_select %p303, %s26, 1
        %s305 = smul.addr %s304, 32
        %s306 = smul.addr %s305, 4
        %s307 = scalar_lea.vmem %s0, %s306
        %s308 = smul.u32 8, %s27
        %s310 = smul.u32 %s27, 8
        %vm311 = vcmask 27648
        %312 = vst.msk [vmem:[#allocation2] sm:$0xf] %vm311, 0
        %313 = vst.msk [vmem:[#allocation2 + $0x4] sm:$0xf] %vm311, 0
        %314 = vst.msk [vmem:[#allocation2 + $0x18] sm:$0xf] %vm311, 0
        %315 = vst.msk [vmem:[#allocation2 + $0x1c] sm:$0xf] %vm311, 0
        %316 = vst.msk [vmem:[#allocation2 + $0x30] sm:$0xf] %vm311, 0
        %317 = vst.msk [vmem:[#allocation2 + $0x34] sm:$0xf] %vm311, 0
        %318 = vst.msk [vmem:[#allocation2 + $0x48] sm:$0xf] %vm311, 0
        %319 = vst.msk [vmem:[#allocation2 + $0x4c] sm:$0xf] %vm311, 0
        %320 = vst.msk [vmem:[#allocation2 + $0x60] sm:$0xf] %vm311, 0
        %321 = vst.msk [vmem:[#allocation2 + $0x64] sm:$0xf] %vm311, 0
        %322 = vst.msk [vmem:[#allocation2 + $0x78] sm:$0xf] %vm311, 0
        %323 = vst.msk [vmem:[#allocation2 + $0x7c] sm:$0xf] %vm311, 0
        %324 = vst.msk [vmem:[#allocation2 + $0x90] sm:$0xf] %vm311, 0
        %325 = vst.msk [vmem:[#allocation2 + $0x94] sm:$0xf] %vm311, 0
        %326 = vst.msk [vmem:[#allocation2 + $0xa8] sm:$0xf] %vm311, 0
        %327 = vst.msk [vmem:[#allocation2 + $0xac] sm:$0xf] %vm311, 0
        %328 = vst.msk [vmem:[#allocation2 + $0xc0] sm:$0xf] %vm311, 0
        %329 = vst.msk [vmem:[#allocation2 + $0xc4] sm:$0xf] %vm311, 0
        %330 = vst.msk [vmem:[#allocation2 + $0xd8] sm:$0xf] %vm311, 0
        %331 = vst.msk [vmem:[#allocation2 + $0xdc] sm:$0xf] %vm311, 0
        %332 = vst.msk [vmem:[#allocation2 + $0xf0] sm:$0xf] %vm311, 0
        %333 = vst.msk [vmem:[#allocation2 + $0xf4] sm:$0xf] %vm311, 0
        %334 = vst.msk [vmem:[#allocation2 + $0x108] sm:$0xf] %vm311, 0
        %335 = vst.msk [vmem:[#allocation2 + $0x10c] sm:$0xf] %vm311, 0
        %336 = vst.msk [vmem:[#allocation2 + $0x10] sm:$0xf] %vm311, 0
        %337 = vst.msk [vmem:[#allocation2 + $0x14] sm:$0xf] %vm311, 0
        %338 = vst.msk [vmem:[#allocation2 + $0x28] sm:$0xf] %vm311, 0
        %339 = vst.msk [vmem:[#allocation2 + $0x2c] sm:$0xf] %vm311, 0
        %340 = vst.msk [vmem:[#allocation2 + $0x40] sm:$0xf] %vm311, 0
        %341 = vst.msk [vmem:[#allocation2 + $0x44] sm:$0xf] %vm311, 0
        %342 = vst.msk [vmem:[#allocation2 + $0x58] sm:$0xf] %vm311, 0
        %343 = vst.msk [vmem:[#allocation2 + $0x5c] sm:$0xf] %vm311, 0
        %344 = vst.msk [vmem:[#allocation2 + $0x70] sm:$0xf] %vm311, 0
        %345 = vst.msk [vmem:[#allocation2 + $0x74] sm:$0xf] %vm311, 0
        %346 = vst.msk [vmem:[#allocation2 + $0x88] sm:$0xf] %vm311, 0
        %347 = vst.msk [vmem:[#allocation2 + $0x8c] sm:$0xf] %vm311, 0
        %348 = vst.msk [vmem:[#allocation2 + $0xa0] sm:$0xf] %vm311, 0
        %349 = vst.msk [vmem:[#allocation2 + $0xa4] sm:$0xf] %vm311, 0
        %350 = vst.msk [vmem:[#allocation2 + $0xb8] sm:$0xf] %vm311, 0
        %351 = vst.msk [vmem:[#allocation2 + $0xbc] sm:$0xf] %vm311, 0
        %352 = vst.msk [vmem:[#allocation2 + $0xd0] sm:$0xf] %vm311, 0
        %353 = vst.msk [vmem:[#allocation2 + $0xd4] sm:$0xf] %vm311, 0
        %354 = vst.msk [vmem:[#allocation2 + $0xe8] sm:$0xf] %vm311, 0
        %355 = vst.msk [vmem:[#allocation2 + $0xec] sm:$0xf] %vm311, 0
        %356 = vst.msk [vmem:[#allocation2 + $0x100] sm:$0xf] %vm311, 0
        %357 = vst.msk [vmem:[#allocation2 + $0x104] sm:$0xf] %vm311, 0
        %358 = vst.msk [vmem:[#allocation2 + $0x118] sm:$0xf] %vm311, 0
        %359 = vst.msk [vmem:[#allocation2 + $0x11c] sm:$0xf] %vm311, 0
        %s360 = smul.u32 %s310, 2
        %s361 = smul.addr %s360, 4
        %s362 = scalar_lea.vmem %s307, %s361
        %v363 = vld [vmem:[%s362] sm:$0xf]
        %v364 = vld [vmem:[%s362 + $0x4] sm:$0xf]
        %v365 = vld [vmem:[%s362 + $0x8] sm:$0xf]
        %v366 = vld [vmem:[%s362 + $0xc] sm:$0xf]
        %v367 = vld [vmem:[%s362 + $0x10] sm:$0xf]
        %v368 = vld [vmem:[%s362 + $0x14] sm:$0xf]
        %v369 = vld [vmem:[%s362 + $0x18] sm:$0xf]
        %v370 = vld [vmem:[%s362 + $0x1c] sm:$0xf]
        %v371 = vld [vmem:[%s362 + $0x20] sm:$0xf]
        %v372 = vld [vmem:[%s362 + $0x24] sm:$0xf]
        %v373 = vld [vmem:[%s362 + $0x28] sm:$0xf]
        %v374 = vld [vmem:[%s362 + $0x2c] sm:$0xf]
        %v375 = vld [vmem:[%s362 + $0x30] sm:$0xf]
        %v376 = vld [vmem:[%s362 + $0x34] sm:$0xf]
        %v377 = vld [vmem:[%s362 + $0x38] sm:$0xf]
        %v378 = vld [vmem:[%s362 + $0x3c] sm:$0xf]
        %s379 = scalar_lea.vmem [#allocation2], 48
        %380 = vst.msk [vmem:[%s379 + $0x8] sm:$0xf] %vm311, %v363
        %381 = vst.msk [vmem:[%s379 + $0xc] sm:$0xf] %vm311, %v364
        %382 = vst.msk [vmem:[%s379 + $0x20] sm:$0xf] %vm311, %v365
        %383 = vst.msk [vmem:[%s379 + $0x24] sm:$0xf] %vm311, %v366
        %384 = vst.msk [vmem:[%s379 + $0x38] sm:$0xf] %vm311, %v367
        %385 = vst.msk [vmem:[%s379 + $0x3c] sm:$0xf] %vm311, %v368
        %386 = vst.msk [vmem:[%s379 + $0x50] sm:$0xf] %vm311, %v369
        %387 = vst.msk [vmem:[%s379 + $0x54] sm:$0xf] %vm311, %v370
        %388 = vst.msk [vmem:[%s379 + $0x68] sm:$0xf] %vm311, %v371
        %389 = vst.msk [vmem:[%s379 + $0x6c] sm:$0xf] %vm311, %v372
        %390 = vst.msk [vmem:[%s379 + $0x80] sm:$0xf] %vm311, %v373
        %391 = vst.msk [vmem:[%s379 + $0x84] sm:$0xf] %vm311, %v374
        %392 = vst.msk [vmem:[%s379 + $0x98] sm:$0xf] %vm311, %v375
        %393 = vst.msk [vmem:[%s379 + $0x9c] sm:$0xf] %vm311, %v376
        %394 = vst.msk [vmem:[%s379 + $0xb0] sm:$0xf] %vm311, %v377
        %395 = vst.msk [vmem:[%s379 + $0xb4] sm:$0xf] %vm311, %v378
        %p396 = scmp.gt.s32.totalorder %s27, 0
        // Predicated region
        $region53: #{tpu_custom_call.1} parent=47 // pred_check
          %p397 = pneg %p396
        $region54: #{tpu_custom_call.1} parent=47 // pred_check_branch
          %399 = sbr.rel (%p397) target = $region56
        $region55: #{tpu_custom_call.1} parent=47 // pred_region
          %s400 = ssub.s32 %s310, 2
          %s401 = smul.u32 %s400, 2
          %s402 = smul.addr %s401, 4
          %s403 = scalar_lea.vmem %s307, %s402
          %v404 = vld [vmem:[%s403] sm:$0xf]
          %v405 = vld [vmem:[%s403 + $0x4] sm:$0xf]
          %v406 = vld [vmem:[%s403 + $0x8] sm:$0xf]
          %v407 = vld [vmem:[%s403 + $0xc] sm:$0xf]
          %408 = vst.msk [vmem:[#allocation2 + $0x8] sm:$0xf] %vm311, %v404
          %409 = vst.msk [vmem:[#allocation2 + $0xc] sm:$0xf] %vm311, %v405
          %410 = vst.msk [vmem:[#allocation2 + $0x20] sm:$0xf] %vm311, %v406
          %411 = vst.msk [vmem:[#allocation2 + $0x24] sm:$0xf] %vm311, %v407
        $region56: #{tpu_custom_call.1} parent=47 // pred_fallthru
          _
        %p412 = scmp.eq.s32.totalorder %s27, 0
        // Predicated region
        $region57: #{tpu_custom_call.1} parent=47 // pred_check
          %p413 = pneg %p412
        $region58: #{tpu_custom_call.1} parent=47 // pred_check_branch
          %415 = sbr.rel (%p413) target = $region60
        $region59: #{tpu_custom_call.1} parent=47 // pred_region
          %416 = vst.msk [vmem:[#allocation2 + $0x8] sm:$0xf] %vm311, 0
          %417 = vst.msk [vmem:[#allocation2 + $0xc] sm:$0xf] %vm311, 0
          %418 = vst.msk [vmem:[#allocation2 + $0x20] sm:$0xf] %vm311, 0
          %419 = vst.msk [vmem:[#allocation2 + $0x24] sm:$0xf] %vm311, 0
        $region60: #{tpu_custom_call.1} parent=47 // pred_fallthru
          _
        %p420 = scmp.lt.s32.totalorder %s27, 1
        // Predicated region
        $region61: #{tpu_custom_call.1} parent=47 // pred_check
          %p421 = pneg %p420
        $region62: #{tpu_custom_call.1} parent=47 // pred_check_branch
          %423 = sbr.rel (%p421) target = $region64
        $region63: #{tpu_custom_call.1} parent=47 // pred_region
          %s424 = sadd.s32 %s310, 8
          %s425 = smul.u32 %s424, 2
          %s426 = smul.addr %s425, 4
          %s427 = scalar_lea.vmem %s307, %s426
          %v428 = vld [vmem:[%s427] sm:$0xf]
          %v429 = vld [vmem:[%s427 + $0x4] sm:$0xf]
          %v430 = vld [vmem:[%s427 + $0x8] sm:$0xf]
          %v431 = vld [vmem:[%s427 + $0xc] sm:$0xf]
          %s432 = scalar_lea.vmem [#allocation2], 240
          %433 = vst.msk [vmem:[%s432 + $0x8] sm:$0xf] %vm311, %v428
          %434 = vst.msk [vmem:[%s432 + $0xc] sm:$0xf] %vm311, %v429
          %435 = vst.msk [vmem:[%s432 + $0x20] sm:$0xf] %vm311, %v430
          %436 = vst.msk [vmem:[%s432 + $0x24] sm:$0xf] %vm311, %v431
        $region64: #{tpu_custom_call.1} parent=47 // pred_fallthru
          _
        %p437 = scmp.eq.s32.totalorder %s27, 1
        // Predicated region
        $region65: #{tpu_custom_call.1} parent=47 // pred_check
          %p438 = pneg %p437
        $region66: #{tpu_custom_call.1} parent=47 // pred_check_branch
          %440 = sbr.rel (%p438) target = $region68
        $region67: #{tpu_custom_call.1} parent=47 // pred_region
          %s441 = scalar_lea.vmem [#allocation2], 240
          %442 = vst.msk [vmem:[%s441 + $0x8] sm:$0xf] %vm311, 0
          %443 = vst.msk [vmem:[%s441 + $0xc] sm:$0xf] %vm311, 0
          %444 = vst.msk [vmem:[%s441 + $0x20] sm:$0xf] %vm311, 0
          %445 = vst.msk [vmem:[%s441 + $0x24] sm:$0xf] %vm311, 0
        $region68: #{tpu_custom_call.1} parent=47 // pred_fallthru
          _
        %v446 = vld [vmem:[#allocation2 + $0x4] sm:$0x8]
        %v447 = vld [vmem:[#allocation2 + $0x8] sm:$0xf]
        %v448 = vld [vmem:[#allocation2 + $0xc] sm:$0xf]
        %v449 = vld [vmem:[#allocation2 + $0x1c] sm:$0x8]
        %v450 = vld [vmem:[#allocation2 + $0x20] sm:$0xf]
        %v451 = vld [vmem:[#allocation2 + $0x24] sm:$0xf]
        %v452 = vld [vmem:[#allocation2 + $0x34] sm:$0x8]
        %v453 = vld [vmem:[#allocation2 + $0x38] sm:$0xf]
        %v454 = vld [vmem:[#allocation2 + $0x3c] sm:$0xf]
        %v455 = vld [vmem:[#allocation2 + $0x4c] sm:$0x8]
        %v456 = vld [vmem:[#allocation2 + $0x50] sm:$0xf]
        %v457 = vld [vmem:[#allocation2 + $0x54] sm:$0xf]
        %v458 = vld [vmem:[#allocation2 + $0x64] sm:$0x8]
        %v459 = vld [vmem:[#allocation2 + $0x68] sm:$0xf]
        %v460 = vld [vmem:[#allocation2 + $0x6c] sm:$0xf]
        %v461 = vld [vmem:[#allocation2 + $0x7c] sm:$0x8]
        %v462 = vld [vmem:[#allocation2 + $0x80] sm:$0xf]
        %v463 = vld [vmem:[#allocation2 + $0x84] sm:$0xf]
        %v464 = vld [vmem:[#allocation2 + $0x94] sm:$0x8]
        %v465 = vld [vmem:[#allocation2 + $0x98] sm:$0xf]
        %v466 = vld [vmem:[#allocation2 + $0x9c] sm:$0xf]
        %v467 = vld [vmem:[#allocation2 + $0xac] sm:$0x8]
        %v468 = vld [vmem:[#allocation2 + $0xb0] sm:$0xf]
        %v469 = vld [vmem:[#allocation2 + $0xb4] sm:$0xf]
        %v470 = vld [vmem:[#allocation2 + $0xc4] sm:$0x8]
        %v471 = vld [vmem:[#allocation2 + $0xc8] sm:$0xf]
        %v472 = vld [vmem:[#allocation2 + $0xcc] sm:$0xf]
        %v473 = vld [vmem:[#allocation2 + $0xdc] sm:$0x8]
        %v474 = vld [vmem:[#allocation2 + $0xe0] sm:$0xf]
        %v475 = vld [vmem:[#allocation2 + $0xe4] sm:$0xf]
        %s476 = scalar_lea.vmem [#allocation2], 24
        %v477 = vld [vmem:[%s476 + $0x4] sm:$0x8]
        %v478 = vld [vmem:[%s476 + $0x8] sm:$0xf]
        %v479 = vld [vmem:[%s476 + $0xc] sm:$0xf]
        %v480 = vld [vmem:[%s476 + $0x1c] sm:$0x8]
        %v481 = vld [vmem:[%s476 + $0x20] sm:$0xf]
        %v482 = vld [vmem:[%s476 + $0x24] sm:$0xf]
        %v483 = vld [vmem:[%s476 + $0x34] sm:$0x8]
        %v484 = vld [vmem:[%s476 + $0x38] sm:$0xf]
        %v485 = vld [vmem:[%s476 + $0x3c] sm:$0xf]
        %v486 = vld [vmem:[%s476 + $0x4c] sm:$0x8]
        %v487 = vld [vmem:[%s476 + $0x50] sm:$0xf]
        %v488 = vld [vmem:[%s476 + $0x54] sm:$0xf]
        %v489 = vld [vmem:[%s476 + $0x64] sm:$0x8]
        %v490 = vld [vmem:[%s476 + $0x68] sm:$0xf]
        %v491 = vld [vmem:[%s476 + $0x6c] sm:$0xf]
        %v492 = vld [vmem:[%s476 + $0x7c] sm:$0x8]
        %v493 = vld [vmem:[%s476 + $0x80] sm:$0xf]
        %v494 = vld [vmem:[%s476 + $0x84] sm:$0xf]
        %v495 = vld [vmem:[%s476 + $0x94] sm:$0x8]
        %v496 = vld [vmem:[%s476 + $0x98] sm:$0xf]
        %v497 = vld [vmem:[%s476 + $0x9c] sm:$0xf]
        %v498 = vld [vmem:[%s476 + $0xac] sm:$0x8]
        %v499 = vld [vmem:[%s476 + $0xb0] sm:$0xf]
        %v500 = vld [vmem:[%s476 + $0xb4] sm:$0xf]
        %v501 = vld [vmem:[%s476 + $0xc4] sm:$0x8]
        %v502 = vld [vmem:[%s476 + $0xc8] sm:$0xf]
        %v503 = vld [vmem:[%s476 + $0xcc] sm:$0xf]
        %v504 = vld [vmem:[%s476 + $0xdc] sm:$0x8]
        %v505 = vld [vmem:[%s476 + $0xe0] sm:$0xf]
        %v506 = vld [vmem:[%s476 + $0xe4] sm:$0xf]
        %v507 = vld [vmem:[%s379 + $0x4] sm:$0x8]
        %v508 = vld [vmem:[%s379 + $0x8] sm:$0xf]
        %v509 = vld [vmem:[%s379 + $0xc] sm:$0xf]
        %v510 = vld [vmem:[%s379 + $0x1c] sm:$0x8]
        %v511 = vld [vmem:[%s379 + $0x20] sm:$0xf]
        %v512 = vld [vmem:[%s379 + $0x24] sm:$0xf]
        %v513 = vld [vmem:[%s379 + $0x34] sm:$0x8]
        %v514 = vld [vmem:[%s379 + $0x38] sm:$0xf]
        %v515 = vld [vmem:[%s379 + $0x3c] sm:$0xf]
        %v516 = vld [vmem:[%s379 + $0x4c] sm:$0x8]
        %v517 = vld [vmem:[%s379 + $0x50] sm:$0xf]
        %v518 = vld [vmem:[%s379 + $0x54] sm:$0xf]
        %v519 = vld [vmem:[%s379 + $0x64] sm:$0x8]
        %v520 = vld [vmem:[%s379 + $0x68] sm:$0xf]
        %v521 = vld [vmem:[%s379 + $0x6c] sm:$0xf]
        %v522 = vld [vmem:[%s379 + $0x7c] sm:$0x8]
        %v523 = vld [vmem:[%s379 + $0x80] sm:$0xf]
        %v524 = vld [vmem:[%s379 + $0x84] sm:$0xf]
        %v525 = vld [vmem:[%s379 + $0x94] sm:$0x8]
        %v526 = vld [vmem:[%s379 + $0x98] sm:$0xf]
        %v527 = vld [vmem:[%s379 + $0x9c] sm:$0xf]
        %v528 = vld [vmem:[%s379 + $0xac] sm:$0x8]
        %v529 = vld [vmem:[%s379 + $0xb0] sm:$0xf]
        %v530 = vld [vmem:[%s379 + $0xb4] sm:$0xf]
        %v531 = vld [vmem:[%s379 + $0xc4] sm:$0x8]
        %v532 = vld [vmem:[%s379 + $0xc8] sm:$0xf]
        %v533 = vld [vmem:[%s379 + $0xcc] sm:$0xf]
        %v534 = vld [vmem:[%s379 + $0xdc] sm:$0x8]
        %v535 = vld [vmem:[%s379 + $0xe0] sm:$0xf]
        %v536 = vld [vmem:[%s379 + $0xe4] sm:$0xf]
        %v567 = vunpack.c.l.b16 %v446
        %v568 = vunpack.c.l.b16 %v447
        %v569 = vunpack.c.l.b16 %v448
        %v570 = vunpack.c.l.b16 %v449
        %v571 = vunpack.c.l.b16 %v450
        %v572 = vunpack.c.l.b16 %v451
        %v573 = vunpack.c.l.b16 %v452
        %v574 = vunpack.c.l.b16 %v453
        %v575 = vunpack.c.l.b16 %v454
        %v576 = vunpack.c.l.b16 %v455
        %v577 = vunpack.c.l.b16 %v456
        %v578 = vunpack.c.l.b16 %v457
        %v579 = vunpack.c.l.b16 %v458
        %v580 = vunpack.c.l.b16 %v459
        %v581 = vunpack.c.l.b16 %v460
        %v582 = vunpack.c.l.b16 %v461
        %v583 = vunpack.c.l.b16 %v462
        %v584 = vunpack.c.l.b16 %v463
        %v585 = vunpack.c.l.b16 %v464
        %v586 = vunpack.c.l.b16 %v465
        %v587 = vunpack.c.l.b16 %v466
        %v588 = vunpack.c.l.b16 %v467
        %v589 = vunpack.c.l.b16 %v468
        %v590 = vunpack.c.l.b16 %v469
        %v591 = vunpack.c.l.b16 %v470
        %v592 = vunpack.c.l.b16 %v471
        %v593 = vunpack.c.l.b16 %v472
        %v594 = vunpack.c.l.b16 %v473
        %v595 = vunpack.c.l.b16 %v474
        %v596 = vunpack.c.l.b16 %v475
        %v597 = vpack.c.b16 %v568, %v567
        %v598 = vpack.c.b16 %v569, %v569
        %v599 = vpack.c.b16 %v571, %v570
        %v600 = vpack.c.b16 %v572, %v572
        %v601 = vpack.c.b16 %v574, %v573
        %v602 = vpack.c.b16 %v575, %v575
        %v603 = vpack.c.b16 %v577, %v576
        %v604 = vpack.c.b16 %v578, %v578
        %v605 = vpack.c.b16 %v580, %v579
        %v606 = vpack.c.b16 %v581, %v581
        %v607 = vpack.c.b16 %v583, %v582
        %v608 = vpack.c.b16 %v584, %v584
        %v609 = vpack.c.b16 %v586, %v585
        %v610 = vpack.c.b16 %v587, %v587
        %v611 = vpack.c.b16 %v589, %v588
        %v612 = vpack.c.b16 %v590, %v590
        %v613 = vpack.c.b16 %v592, %v591
        %v614 = vpack.c.b16 %v593, %v593
        %v615 = vpack.c.b16 %v595, %v594
        %v616 = vpack.c.b16 %v596, %v596
        %v647 = vunpack.c.l.b16 %v477
        %v648 = vunpack.c.l.b16 %v478
        %v649 = vunpack.c.l.b16 %v479
        %v650 = vunpack.c.l.b16 %v480
        %v651 = vunpack.c.l.b16 %v481
        %v652 = vunpack.c.l.b16 %v482
        %v653 = vunpack.c.l.b16 %v483
        %v654 = vunpack.c.l.b16 %v484
        %v655 = vunpack.c.l.b16 %v485
        %v656 = vunpack.c.l.b16 %v486
        %v657 = vunpack.c.l.b16 %v487
        %v658 = vunpack.c.l.b16 %v488
        %v659 = vunpack.c.l.b16 %v489
        %v660 = vunpack.c.l.b16 %v490
        %v661 = vunpack.c.l.b16 %v491
        %v662 = vunpack.c.l.b16 %v492
        %v663 = vunpack.c.l.b16 %v493
        %v664 = vunpack.c.l.b16 %v494
        %v665 = vunpack.c.l.b16 %v495
        %v666 = vunpack.c.l.b16 %v496
        %v667 = vunpack.c.l.b16 %v497
        %v668 = vunpack.c.l.b16 %v498
        %v669 = vunpack.c.l.b16 %v499
        %v670 = vunpack.c.l.b16 %v500
        %v671 = vunpack.c.l.b16 %v501
        %v672 = vunpack.c.l.b16 %v502
        %v673 = vunpack.c.l.b16 %v503
        %v674 = vunpack.c.l.b16 %v504
        %v675 = vunpack.c.l.b16 %v505
        %v676 = vunpack.c.l.b16 %v506
        %v677 = vpack.c.b16 %v648, %v647
        %v678 = vpack.c.b16 %v649, %v649
        %v679 = vpack.c.b16 %v651, %v650
        %v680 = vpack.c.b16 %v652, %v652
        %v681 = vpack.c.b16 %v654, %v653
        %v682 = vpack.c.b16 %v655, %v655
        %v683 = vpack.c.b16 %v657, %v656
        %v684 = vpack.c.b16 %v658, %v658
        %v685 = vpack.c.b16 %v660, %v659
        %v686 = vpack.c.b16 %v661, %v661
        %v687 = vpack.c.b16 %v663, %v662
        %v688 = vpack.c.b16 %v664, %v664
        %v689 = vpack.c.b16 %v666, %v665
        %v690 = vpack.c.b16 %v667, %v667
        %v691 = vpack.c.b16 %v669, %v668
        %v692 = vpack.c.b16 %v670, %v670
        %v693 = vpack.c.b16 %v672, %v671
        %v694 = vpack.c.b16 %v673, %v673
        %v695 = vpack.c.b16 %v675, %v674
        %v696 = vpack.c.b16 %v676, %v676
        %697 = vrot.lane.b32.xlu0 %v677, 4
        %v698 = vpop.permute.xlu0 %697
        %699 = vrot.lane.b32.xlu0 %v678, 4
        %v700 = vpop.permute.xlu0 %699
        %701 = vrot.lane.b32.xlu0 %v679, 4
        %v702 = vpop.permute.xlu0 %701
        %703 = vrot.lane.b32.xlu0 %v680, 4
        %v704 = vpop.permute.xlu0 %703
        %705 = vrot.lane.b32.xlu0 %v681, 4
        %v706 = vpop.permute.xlu0 %705
        %707 = vrot.lane.b32.xlu0 %v682, 4
        %v708 = vpop.permute.xlu0 %707
        %709 = vrot.lane.b32.xlu0 %v683, 4
        %v710 = vpop.permute.xlu0 %709
        %711 = vrot.lane.b32.xlu0 %v684, 4
        %v712 = vpop.permute.xlu0 %711
        %713 = vrot.lane.b32.xlu0 %v685, 4
        %v714 = vpop.permute.xlu0 %713
        %715 = vrot.lane.b32.xlu0 %v686, 4
        %v716 = vpop.permute.xlu0 %715
        %717 = vrot.lane.b32.xlu0 %v687, 4
        %v718 = vpop.permute.xlu0 %717
        %719 = vrot.lane.b32.xlu0 %v688, 4
        %v720 = vpop.permute.xlu0 %719
        %721 = vrot.lane.b32.xlu0 %v689, 4
        %v722 = vpop.permute.xlu0 %721
        %723 = vrot.lane.b32.xlu0 %v690, 4
        %v724 = vpop.permute.xlu0 %723
        %725 = vrot.lane.b32.xlu0 %v691, 4
        %v726 = vpop.permute.xlu0 %725
        %727 = vrot.lane.b32.xlu0 %v692, 4
        %v728 = vpop.permute.xlu0 %727
        %729 = vrot.lane.b32.xlu0 %v693, 4
        %v730 = vpop.permute.xlu0 %729
        %731 = vrot.lane.b32.xlu0 %v694, 4
        %v732 = vpop.permute.xlu0 %731
        %733 = vrot.lane.b32.xlu0 %v695, 4
        %v734 = vpop.permute.xlu0 %733
        %735 = vrot.lane.b32.xlu0 %v696, 4
        %v736 = vpop.permute.xlu0 %735
        %v767 = vunpack.c.l.b16 %v507
        %v768 = vunpack.c.l.b16 %v508
        %v769 = vunpack.c.l.b16 %v509
        %v770 = vunpack.c.l.b16 %v510
        %v771 = vunpack.c.l.b16 %v511
        %v772 = vunpack.c.l.b16 %v512
        %v773 = vunpack.c.l.b16 %v513
        %v774 = vunpack.c.l.b16 %v514
        %v775 = vunpack.c.l.b16 %v515
        %v776 = vunpack.c.l.b16 %v516
        %v777 = vunpack.c.l.b16 %v517
        %v778 = vunpack.c.l.b16 %v518
        %v779 = vunpack.c.l.b16 %v519
        %v780 = vunpack.c.l.b16 %v520
        %v781 = vunpack.c.l.b16 %v521
        %v782 = vunpack.c.l.b16 %v522
        %v783 = vunpack.c.l.b16 %v523
        %v784 = vunpack.c.l.b16 %v524
        %v785 = vunpack.c.l.b16 %v525
        %v786 = vunpack.c.l.b16 %v526
        %v787 = vunpack.c.l.b16 %v527
        %v788 = vunpack.c.l.b16 %v528
        %v789 = vunpack.c.l.b16 %v529
        %v790 = vunpack.c.l.b16 %v530
        %v791 = vunpack.c.l.b16 %v531
        %v792 = vunpack.c.l.b16 %v532
        %v793 = vunpack.c.l.b16 %v533
        %v794 = vunpack.c.l.b16 %v534
        %v795 = vunpack.c.l.b16 %v535
        %v796 = vunpack.c.l.b16 %v536
        %v797 = vpack.c.b16 %v768, %v767
        %v798 = vpack.c.b16 %v769, %v769
        %v799 = vpack.c.b16 %v771, %v770
        %v800 = vpack.c.b16 %v772, %v772
        %v801 = vpack.c.b16 %v774, %v773
        %v802 = vpack.c.b16 %v775, %v775
        %v803 = vpack.c.b16 %v777, %v776
        %v804 = vpack.c.b16 %v778, %v778
        %v805 = vpack.c.b16 %v780, %v779
        %v806 = vpack.c.b16 %v781, %v781
        %v807 = vpack.c.b16 %v783, %v782
        %v808 = vpack.c.b16 %v784, %v784
        %v809 = vpack.c.b16 %v786, %v785
        %v810 = vpack.c.b16 %v787, %v787
        %v811 = vpack.c.b16 %v789, %v788
        %v812 = vpack.c.b16 %v790, %v790
        %v813 = vpack.c.b16 %v792, %v791
        %v814 = vpack.c.b16 %v793, %v793
        %v815 = vpack.c.b16 %v795, %v794
        %v816 = vpack.c.b16 %v796, %v796
        %817 = vrot.lane.b32.xlu0 %v797, 8
        %v818 = vpop.permute.xlu0 %817
        %819 = vrot.lane.b32.xlu0 %v798, 8
        %v820 = vpop.permute.xlu0 %819
        %821 = vrot.lane.b32.xlu0 %v799, 8
        %v822 = vpop.permute.xlu0 %821
        %823 = vrot.lane.b32.xlu0 %v800, 8
        %v824 = vpop.permute.xlu0 %823
        %825 = vrot.lane.b32.xlu0 %v801, 8
        %v826 = vpop.permute.xlu0 %825
        %827 = vrot.lane.b32.xlu0 %v802, 8
        %v828 = vpop.permute.xlu0 %827
        %829 = vrot.lane.b32.xlu0 %v803, 8
        %v830 = vpop.permute.xlu0 %829
        %831 = vrot.lane.b32.xlu0 %v804, 8
        %v832 = vpop.permute.xlu0 %831
        %833 = vrot.lane.b32.xlu0 %v805, 8
        %v834 = vpop.permute.xlu0 %833
        %835 = vrot.lane.b32.xlu0 %v806, 8
        %v836 = vpop.permute.xlu0 %835
        %837 = vrot.lane.b32.xlu0 %v807, 8
        %v838 = vpop.permute.xlu0 %837
        %839 = vrot.lane.b32.xlu0 %v808, 8
        %v840 = vpop.permute.xlu0 %839
        %841 = vrot.lane.b32.xlu0 %v809, 8
        %v842 = vpop.permute.xlu0 %841
        %843 = vrot.lane.b32.xlu0 %v810, 8
        %v844 = vpop.permute.xlu0 %843
        %845 = vrot.lane.b32.xlu0 %v811, 8
        %v846 = vpop.permute.xlu0 %845
        %847 = vrot.lane.b32.xlu0 %v812, 8
        %v848 = vpop.permute.xlu0 %847
        %849 = vrot.lane.b32.xlu0 %v813, 8
        %v850 = vpop.permute.xlu0 %849
        %851 = vrot.lane.b32.xlu0 %v814, 8
        %v852 = vpop.permute.xlu0 %851
        %853 = vrot.lane.b32.xlu0 %v815, 8
        %v854 = vpop.permute.xlu0 %853
        %855 = vrot.lane.b32.xlu0 %v816, 8
        %v856 = vpop.permute.xlu0 %855
        %vm857 = vcmask 31744
        %v860 = vsel %vm857, %v597, %v698
        %v863 = vsel %vm857, %v598, %v700
        %v866 = vsel %vm857, %v599, %v702
        %v869 = vsel %vm857, %v600, %v704
        %v872 = vsel %vm857, %v601, %v706
        %v875 = vsel %vm857, %v602, %v708
        %v878 = vsel %vm857, %v603, %v710
        %v881 = vsel %vm857, %v604, %v712
        %v884 = vsel %vm857, %v605, %v714
        %v887 = vsel %vm857, %v606, %v716
        %v890 = vsel %vm857, %v607, %v718
        %v893 = vsel %vm857, %v608, %v720
        %v896 = vsel %vm857, %v609, %v722
        %v899 = vsel %vm857, %v610, %v724
        %v902 = vsel %vm857, %v611, %v726
        %v905 = vsel %vm857, %v612, %v728
        %v908 = vsel %vm857, %v613, %v730
        %v911 = vsel %vm857, %v614, %v732
        %v914 = vsel %vm857, %v615, %v734
        %v917 = vsel %vm857, %v616, %v736
        %vm918 = vcmask 64512
        %v920 = vsel %vm918, %v860, %v818
        %v922 = vsel %vm918, %v863, %v820
        %v924 = vsel %vm918, %v866, %v822
        %v926 = vsel %vm918, %v869, %v824
        %v928 = vsel %vm918, %v872, %v826
        %v930 = vsel %vm918, %v875, %v828
        %v932 = vsel %vm918, %v878, %v830
        %v934 = vsel %vm918, %v881, %v832
        %v936 = vsel %vm918, %v884, %v834
        %v938 = vsel %vm918, %v887, %v836
        %v940 = vsel %vm918, %v890, %v838
        %v942 = vsel %vm918, %v893, %v840
        %v944 = vsel %vm918, %v896, %v842
        %v946 = vsel %vm918, %v899, %v844
        %v948 = vsel %vm918, %v902, %v846
        %v950 = vsel %vm918, %v905, %v848
        %v952 = vsel %vm918, %v908, %v850
        %v954 = vsel %vm918, %v911, %v852
        %v956 = vsel %vm918, %v914, %v854
        %v958 = vsel %vm918, %v917, %v856
        %vm959 = vsmask.f32 4352
        %v960 = vshrl.u32 %v920, 16
        %v962 = vrot.slane %v960, 3
        %v963 = vshll.u32 %v920, 16
        %v965 = vrot.slane %v963, 4
        %v966 = vor.u32 %v962, %v965
        %v967 = vshrl.u32 %v922, 16
        %v969 = vrot.slane %v967, 3
        %v970 = vshll.u32 %v922, 16
        %v972 = vrot.slane %v970, 4
        %v973 = vor.u32 %v969, %v972
        %v974 = vsel %vm959, %v966, %v973
        %v975 = vshrl.u32 %v924, 16
        %v977 = vrot.slane %v975, 3
        %v978 = vshll.u32 %v924, 16
        %v980 = vrot.slane %v978, 4
        %v981 = vor.u32 %v977, %v980
        %v982 = vshrl.u32 %v926, 16
        %v984 = vrot.slane %v982, 3
        %v985 = vshll.u32 %v926, 16
        %v987 = vrot.slane %v985, 4
        %v988 = vor.u32 %v984, %v987
        %v989 = vsel %vm959, %v981, %v988
        %v990 = vshrl.u32 %v928, 16
        %v992 = vrot.slane %v990, 3
        %v993 = vshll.u32 %v928, 16
        %v995 = vrot.slane %v993, 4
        %v996 = vor.u32 %v992, %v995
        %v997 = vshrl.u32 %v930, 16
        %v999 = vrot.slane %v997, 3
        %v1000 = vshll.u32 %v930, 16
        %v1002 = vrot.slane %v1000, 4
        %v1003 = vor.u32 %v999, %v1002
        %v1004 = vsel %vm959, %v996, %v1003
        %v1005 = vshrl.u32 %v932, 16
        %v1007 = vrot.slane %v1005, 3
        %v1008 = vshll.u32 %v932, 16
        %v1010 = vrot.slane %v1008, 4
        %v1011 = vor.u32 %v1007, %v1010
        %v1012 = vshrl.u32 %v934, 16
        %v1014 = vrot.slane %v1012, 3
        %v1015 = vshll.u32 %v934, 16
        %v1017 = vrot.slane %v1015, 4
        %v1018 = vor.u32 %v1014, %v1017
        %v1019 = vsel %vm959, %v1011, %v1018
        %v1020 = vshrl.u32 %v936, 16
        %v1022 = vrot.slane %v1020, 3
        %v1023 = vshll.u32 %v936, 16
        %v1025 = vrot.slane %v1023, 4
        %v1026 = vor.u32 %v1022, %v1025
        %v1027 = vshrl.u32 %v938, 16
        %v1029 = vrot.slane %v1027, 3
        %v1030 = vshll.u32 %v938, 16
        %v1032 = vrot.slane %v1030, 4
        %v1033 = vor.u32 %v1029, %v1032
        %v1034 = vsel %vm959, %v1026, %v1033
        %v1035 = vshrl.u32 %v940, 16
        %v1037 = vrot.slane %v1035, 3
        %v1038 = vshll.u32 %v940, 16
        %v1040 = vrot.slane %v1038, 4
        %v1041 = vor.u32 %v1037, %v1040
        %v1042 = vshrl.u32 %v942, 16
        %v1044 = vrot.slane %v1042, 3
        %v1045 = vshll.u32 %v942, 16
        %v1047 = vrot.slane %v1045, 4
        %v1048 = vor.u32 %v1044, %v1047
        %v1049 = vsel %vm959, %v1041, %v1048
        %v1050 = vshrl.u32 %v944, 16
        %v1052 = vrot.slane %v1050, 3
        %v1053 = vshll.u32 %v944, 16
        %v1055 = vrot.slane %v1053, 4
        %v1056 = vor.u32 %v1052, %v1055
        %v1057 = vshrl.u32 %v946, 16
        %v1059 = vrot.slane %v1057, 3
        %v1060 = vshll.u32 %v946, 16
        %v1062 = vrot.slane %v1060, 4
        %v1063 = vor.u32 %v1059, %v1062
        %v1064 = vsel %vm959, %v1056, %v1063
        %v1065 = vshrl.u32 %v948, 16
        %v1067 = vrot.slane %v1065, 3
        %v1068 = vshll.u32 %v948, 16
        %v1070 = vrot.slane %v1068, 4
        %v1071 = vor.u32 %v1067, %v1070
        %v1072 = vshrl.u32 %v950, 16
        %v1074 = vrot.slane %v1072, 3
        %v1075 = vshll.u32 %v950, 16
        %v1077 = vrot.slane %v1075, 4
        %v1078 = vor.u32 %v1074, %v1077
        %v1079 = vsel %vm959, %v1071, %v1078
        %v1080 = vshrl.u32 %v952, 16
        %v1082 = vrot.slane %v1080, 3
        %v1083 = vshll.u32 %v952, 16
        %v1085 = vrot.slane %v1083, 4
        %v1086 = vor.u32 %v1082, %v1085
        %v1087 = vshrl.u32 %v954, 16
        %v1089 = vrot.slane %v1087, 3
        %v1090 = vshll.u32 %v954, 16
        %v1092 = vrot.slane %v1090, 4
        %v1093 = vor.u32 %v1089, %v1092
        %v1094 = vsel %vm959, %v1086, %v1093
        %v1095 = vshrl.u32 %v956, 16
        %v1097 = vrot.slane %v1095, 3
        %v1098 = vshll.u32 %v956, 16
        %v1100 = vrot.slane %v1098, 4
        %v1101 = vor.u32 %v1097, %v1100
        %v1102 = vshrl.u32 %v958, 16
        %v1104 = vrot.slane %v1102, 3
        %v1105 = vshll.u32 %v958, 16
        %v1107 = vrot.slane %v1105, 4
        %v1108 = vor.u32 %v1104, %v1107
        %v1109 = vsel %vm959, %v1101, %v1108
        %v1110 = vld [vmem:[%s1] sm:$0xf]
        %v1111 = vld [vmem:[%s1 + $0x4] sm:$0x3]
        %v1112 = vpack.c.b16 %v569, %v568
        %v1113 = vpack.c.b16 %v572, %v571
        %v1114 = vpack.c.b16 %v575, %v574
        %v1115 = vpack.c.b16 %v578, %v577
        %v1116 = vpack.c.b16 %v581, %v580
        %v1117 = vpack.c.b16 %v584, %v583
        %v1118 = vpack.c.b16 %v587, %v586
        %v1119 = vpack.c.b16 %v590, %v589
        %v1120 = vpack.c.b16 %v593, %v592
        %v1121 = vpack.c.b16 %v596, %v595
        %v1122 = vpack.c.b16 %v649, %v648
        %v1123 = vpack.c.b16 %v652, %v651
        %v1124 = vpack.c.b16 %v655, %v654
        %v1125 = vpack.c.b16 %v658, %v657
        %v1126 = vpack.c.b16 %v661, %v660
        %v1127 = vpack.c.b16 %v664, %v663
        %v1128 = vpack.c.b16 %v667, %v666
        %v1129 = vpack.c.b16 %v670, %v669
        %v1130 = vpack.c.b16 %v673, %v672
        %v1131 = vpack.c.b16 %v676, %v675
        %1132 = vrot.lane.b32.xlu0 %v1122, 4
        %v1133 = vpop.permute.xlu0 %1132
        %1134 = vrot.lane.b32.xlu0 %v1123, 4
        %v1135 = vpop.permute.xlu0 %1134
        %1136 = vrot.lane.b32.xlu0 %v1124, 4
        %v1137 = vpop.permute.xlu0 %1136
        %1138 = vrot.lane.b32.xlu0 %v1125, 4
        %v1139 = vpop.permute.xlu0 %1138
        %1140 = vrot.lane.b32.xlu0 %v1126, 4
        %v1141 = vpop.permute.xlu0 %1140
        %1142 = vrot.lane.b32.xlu0 %v1127, 4
        %v1143 = vpop.permute.xlu0 %1142
        %1144 = vrot.lane.b32.xlu0 %v1128, 4
        %v1145 = vpop.permute.xlu0 %1144
        %1146 = vrot.lane.b32.xlu0 %v1129, 4
        %v1147 = vpop.permute.xlu0 %1146
        %1148 = vrot.lane.b32.xlu0 %v1130, 4
        %v1149 = vpop.permute.xlu0 %1148
        %1150 = vrot.lane.b32.xlu0 %v1131, 4
        %v1151 = vpop.permute.xlu0 %1150
        %v1152 = vpack.c.b16 %v769, %v768
        %v1153 = vpack.c.b16 %v772, %v771
        %v1154 = vpack.c.b16 %v775, %v774
        %v1155 = vpack.c.b16 %v778, %v777
        %v1156 = vpack.c.b16 %v781, %v780
        %v1157 = vpack.c.b16 %v784, %v783
        %v1158 = vpack.c.b16 %v787, %v786
        %v1159 = vpack.c.b16 %v790, %v789
        %v1160 = vpack.c.b16 %v793, %v792
        %v1161 = vpack.c.b16 %v796, %v795
        %1162 = vrot.lane.b32.xlu0 %v1152, 8
        %v1163 = vpop.permute.xlu0 %1162
        %1164 = vrot.lane.b32.xlu0 %v1153, 8
        %v1165 = vpop.permute.xlu0 %1164
        %1166 = vrot.lane.b32.xlu0 %v1154, 8
        %v1167 = vpop.permute.xlu0 %1166
        %1168 = vrot.lane.b32.xlu0 %v1155, 8
        %v1169 = vpop.permute.xlu0 %1168
        %1170 = vrot.lane.b32.xlu0 %v1156, 8
        %v1171 = vpop.permute.xlu0 %1170
        %1172 = vrot.lane.b32.xlu0 %v1157, 8
        %v1173 = vpop.permute.xlu0 %1172
        %1174 = vrot.lane.b32.xlu0 %v1158, 8
        %v1175 = vpop.permute.xlu0 %1174
        %1176 = vrot.lane.b32.xlu0 %v1159, 8
        %v1177 = vpop.permute.xlu0 %1176
        %1178 = vrot.lane.b32.xlu0 %v1160, 8
        %v1179 = vpop.permute.xlu0 %1178
        %1180 = vrot.lane.b32.xlu0 %v1161, 8
        %v1181 = vpop.permute.xlu0 %1180
        %v1184 = vsel %vm857, %v1112, %v1133
        %v1187 = vsel %vm857, %v1113, %v1135
        %v1190 = vsel %vm857, %v1114, %v1137
        %v1193 = vsel %vm857, %v1115, %v1139
        %v1196 = vsel %vm857, %v1116, %v1141
        %v1199 = vsel %vm857, %v1117, %v1143
        %v1202 = vsel %vm857, %v1118, %v1145
        %v1205 = vsel %vm857, %v1119, %v1147
        %v1208 = vsel %vm857, %v1120, %v1149
        %v1211 = vsel %vm857, %v1121, %v1151
        %v1213 = vsel %vm918, %v1184, %v1163
        %v1215 = vsel %vm918, %v1187, %v1165
        %v1217 = vsel %vm918, %v1190, %v1167
        %v1219 = vsel %vm918, %v1193, %v1169
        %v1221 = vsel %vm918, %v1196, %v1171
        %v1223 = vsel %vm918, %v1199, %v1173
        %v1225 = vsel %vm918, %v1202, %v1175
        %v1227 = vsel %vm918, %v1205, %v1177
        %v1229 = vsel %vm918, %v1208, %v1179
        %v1231 = vsel %vm918, %v1211, %v1181
        %s1232 = scalar_lea.vmem %s1, 8
        %v1233 = vld [vmem:[%s1232] sm:$0xf]
        %v1234 = vld [vmem:[%s1232 + $0x4] sm:$0x3]
        %v1237 = vunpack.c.l.b16 %v1233
        %v1238 = vunpack.c.l.b16 %v1234
        %v1239 = vpack.c.b16 %v1238, %v1237
        %vm1240 = vcmask 97280
        %v1241 = vsel %vm1240, %v1213, 0
        %v1243 = vsel %vm1240, %v1215, 0
        %v1245 = vsel %vm1240, %v1217, 0
        %v1247 = vsel %vm1240, %v1219, 0
        %v1249 = vsel %vm1240, %v1221, 0
        %v1251 = vsel %vm1240, %v1223, 0
        %v1253 = vsel %vm1240, %v1225, 0
        %v1255 = vsel %vm1240, %v1227, 0
        %v1257 = vsel %vm1240, %v1229, 0
        %v1259 = vsel %vm1240, %v1231, 0
        %vm1261 = vcmask 1045504
        %v1263 = vsel %vm1261, %v1239, 0
        %1265 = vmatpush.bf16.msra.mxu0 0
        %1266 = vmatpush.bf16.msra.mxu0 0
        %1267 = vmatpush.bf16.msra.mxu0 0
        %1268 = vmatpush.bf16.msra.mxu0 0
        %1269 = vmatpush.bf16.msra.mxu0 0
        %1270 = vmatpush.bf16.msra.mxu0 0
        %1271 = vmatpush.bf16.msra.mxu0 0
        %1272 = vmatpush.bf16.msra.mxu0 %v1263
        %1273 = vmatmul.bf16.gmra.mxu0 %v1241
        %v1274 = vpop.f32.mrf.mxu0
        %v1275 = vadd.f32 0.0, %v1274
        %v1276 = vpop.f32.mrf.mxu0
        %v1277 = vadd.f32 0.0, %v1276
        %1278 = vmatmul.bf16.gmra.mxu0 %v1243
        %v1279 = vpop.f32.mrf.mxu0
        %v1280 = vadd.f32 0.0, %v1279
        %v1281 = vpop.f32.mrf.mxu0
        %v1282 = vadd.f32 0.0, %v1281
        %1283 = vmatmul.bf16.gmra.mxu0 %v1245
        %v1284 = vpop.f32.mrf.mxu0
        %v1285 = vadd.f32 0.0, %v1284
        %v1286 = vpop.f32.mrf.mxu0
        %v1287 = vadd.f32 0.0, %v1286
        %1288 = vmatmul.bf16.gmra.mxu0 %v1247
        %v1289 = vpop.f32.mrf.mxu0
        %v1290 = vadd.f32 0.0, %v1289
        %v1291 = vpop.f32.mrf.mxu0
        %v1292 = vadd.f32 0.0, %v1291
        %1293 = vmatmul.bf16.gmra.mxu0 %v1249
        %v1294 = vpop.f32.mrf.mxu0
        %v1295 = vadd.f32 0.0, %v1294
        %v1296 = vpop.f32.mrf.mxu0
        %v1297 = vadd.f32 0.0, %v1296
        %1298 = vmatmul.bf16.gmra.mxu0 %v1251
        %v1299 = vpop.f32.mrf.mxu0
        %v1300 = vadd.f32 0.0, %v1299
        %v1301 = vpop.f32.mrf.mxu0
        %v1302 = vadd.f32 0.0, %v1301
        %1303 = vmatmul.bf16.gmra.mxu0 %v1253
        %v1304 = vpop.f32.mrf.mxu0
        %v1305 = vadd.f32 0.0, %v1304
        %v1306 = vpop.f32.mrf.mxu0
        %v1307 = vadd.f32 0.0, %v1306
        %1308 = vmatmul.bf16.gmra.mxu0 %v1255
        %v1309 = vpop.f32.mrf.mxu0
        %v1310 = vadd.f32 0.0, %v1309
        %v1311 = vpop.f32.mrf.mxu0
        %v1312 = vadd.f32 0.0, %v1311
        %1313 = vmatmul.bf16.gmra.mxu0 %v1257
        %v1314 = vpop.f32.mrf.mxu0
        %v1315 = vadd.f32 0.0, %v1314
        %v1316 = vpop.f32.mrf.mxu0
        %v1317 = vadd.f32 0.0, %v1316
        %1318 = vmatmul.bf16.gmra.mxu0 %v1259
        %v1319 = vpop.f32.mrf.mxu0
        %v1320 = vadd.f32 0.0, %v1319
        %v1321 = vpop.f32.mrf.mxu0
        %v1322 = vadd.f32 0.0, %v1321
        %1323 = vdwg.mxu0
        %v1326 = vunpack.c.l.b16 %v1110
        %v1327 = vunpack.c.l.b16 %v1111
        %v1328 = vpack.c.b16 %v1327, %v1326
        %v1330 = vsel %vm1240, %v974, 0
        %v1333 = vsel %vm1240, %v989, 0
        %v1336 = vsel %vm1240, %v1004, 0
        %v1339 = vsel %vm1240, %v1019, 0
        %v1342 = vsel %vm1240, %v1034, 0
        %v1345 = vsel %vm1240, %v1049, 0
        %v1348 = vsel %vm1240, %v1064, 0
        %v1351 = vsel %vm1240, %v1079, 0
        %v1354 = vsel %vm1240, %v1094, 0
        %v1357 = vsel %vm1240, %v1109, 0
        %v1360 = vsel %vm1261, %v1328, 0
        %1362 = vmatpush.bf16.msra.mxu0 0
        %1363 = vmatpush.bf16.msra.mxu0 0
        %1364 = vmatpush.bf16.msra.mxu0 0
        %1365 = vmatpush.bf16.msra.mxu0 0
        %1366 = vmatpush.bf16.msra.mxu0 0
        %1367 = vmatpush.bf16.msra.mxu0 0
        %1368 = vmatpush.bf16.msra.mxu0 0
        %1369 = vmatpush.bf16.msra.mxu0 %v1360
        %1370 = vmatmul.bf16.gmra.mxu0 %v1330
        %v1371 = vpop.f32.mrf.mxu0
        %v1372 = vadd.f32 %v1275, %v1371
        %v1373 = vpop.f32.mrf.mxu0
        %v1374 = vadd.f32 %v1277, %v1373
        %1375 = vmatmul.bf16.gmra.mxu0 %v1333
        %v1376 = vpop.f32.mrf.mxu0
        %v1377 = vadd.f32 %v1280, %v1376
        %v1378 = vpop.f32.mrf.mxu0
        %v1379 = vadd.f32 %v1282, %v1378
        %1380 = vmatmul.bf16.gmra.mxu0 %v1336
        %v1381 = vpop.f32.mrf.mxu0
        %v1382 = vadd.f32 %v1285, %v1381
        %v1383 = vpop.f32.mrf.mxu0
        %v1384 = vadd.f32 %v1287, %v1383
        %1385 = vmatmul.bf16.gmra.mxu0 %v1339
        %v1386 = vpop.f32.mrf.mxu0
        %v1387 = vadd.f32 %v1290, %v1386
        %v1388 = vpop.f32.mrf.mxu0
        %v1389 = vadd.f32 %v1292, %v1388
        %1390 = vmatmul.bf16.gmra.mxu0 %v1342
        %v1391 = vpop.f32.mrf.mxu0
        %v1392 = vadd.f32 %v1295, %v1391
        %v1393 = vpop.f32.mrf.mxu0
        %v1394 = vadd.f32 %v1297, %v1393
        %1395 = vmatmul.bf16.gmra.mxu0 %v1345
        %v1396 = vpop.f32.mrf.mxu0
        %v1397 = vadd.f32 %v1300, %v1396
        %v1398 = vpop.f32.mrf.mxu0
        %v1399 = vadd.f32 %v1302, %v1398
        %1400 = vmatmul.bf16.gmra.mxu0 %v1348
        %v1401 = vpop.f32.mrf.mxu0
        %v1402 = vadd.f32 %v1305, %v1401
        %v1403 = vpop.f32.mrf.mxu0
        %v1404 = vadd.f32 %v1307, %v1403
        %1405 = vmatmul.bf16.gmra.mxu0 %v1351
        %v1406 = vpop.f32.mrf.mxu0
        %v1407 = vadd.f32 %v1310, %v1406
        %v1408 = vpop.f32.mrf.mxu0
        %v1409 = vadd.f32 %v1312, %v1408
        %1410 = vmatmul.bf16.gmra.mxu0 %v1354
        %v1411 = vpop.f32.mrf.mxu0
        %v1412 = vadd.f32 %v1315, %v1411
        %v1413 = vpop.f32.mrf.mxu0
        %v1414 = vadd.f32 %v1317, %v1413
        %1415 = vmatmul.bf16.gmra.mxu0 %v1357
        %v1416 = vpop.f32.mrf.mxu0
        %v1417 = vadd.f32 %v1320, %v1416
        %v1418 = vpop.f32.mrf.mxu0
        %v1419 = vadd.f32 %v1322, %v1418
        %1420 = vdwg.mxu0
        %v1421 = vld [vmem:[#allocation2 + $0x8] sm:$0xf]
        %v1422 = vld [vmem:[#allocation2 + $0xc] sm:$0xf]
        %v1423 = vld [vmem:[#allocation2 + $0x10] sm:$0x1]
        %v1424 = vld [vmem:[#allocation2 + $0x20] sm:$0xf]
        %v1425 = vld [vmem:[#allocation2 + $0x24] sm:$0xf]
        %v1426 = vld [vmem:[#allocation2 + $0x28] sm:$0x1]
        %v1427 = vld [vmem:[#allocation2 + $0x38] sm:$0xf]
        %v1428 = vld [vmem:[#allocation2 + $0x3c] sm:$0xf]
        %v1429 = vld [vmem:[#allocation2 + $0x40] sm:$0x1]
        %v1430 = vld [vmem:[#allocation2 + $0x50] sm:$0xf]
        %v1431 = vld [vmem:[#allocation2 + $0x54] sm:$0xf]
        %v1432 = vld [vmem:[#allocation2 + $0x58] sm:$0x1]
        %v1433 = vld [vmem:[#allocation2 + $0x68] sm:$0xf]
        %v1434 = vld [vmem:[#allocation2 + $0x6c] sm:$0xf]
        %v1435 = vld [vmem:[#allocation2 + $0x70] sm:$0x1]
        %v1436 = vld [vmem:[#allocation2 + $0x80] sm:$0xf]
        %v1437 = vld [vmem:[#allocation2 + $0x84] sm:$0xf]
        %v1438 = vld [vmem:[#allocation2 + $0x88] sm:$0x1]
        %v1439 = vld [vmem:[#allocation2 + $0x98] sm:$0xf]
        %v1440 = vld [vmem:[#allocation2 + $0x9c] sm:$0xf]
        %v1441 = vld [vmem:[#allocation2 + $0xa0] sm:$0x1]
        %v1442 = vld [vmem:[#allocation2 + $0xb0] sm:$0xf]
        %v1443 = vld [vmem:[#allocation2 + $0xb4] sm:$0xf]
        %v1444 = vld [vmem:[#allocation2 + $0xb8] sm:$0x1]
        %v1445 = vld [vmem:[#allocation2 + $0xc8] sm:$0xf]
        %v1446 = vld [vmem:[#allocation2 + $0xcc] sm:$0xf]
        %v1447 = vld [vmem:[#allocation2 + $0xd0] sm:$0x1]
        %v1448 = vld [vmem:[#allocation2 + $0xe0] sm:$0xf]
        %v1449 = vld [vmem:[#allocation2 + $0xe4] sm:$0xf]
        %v1450 = vld [vmem:[#allocation2 + $0xe8] sm:$0x1]
        %v1451 = vld [vmem:[%s476 + $0x8] sm:$0xf]
        %v1452 = vld [vmem:[%s476 + $0xc] sm:$0xf]
        %v1453 = vld [vmem:[%s476 + $0x10] sm:$0x1]
        %v1454 = vld [vmem:[%s476 + $0x20] sm:$0xf]
        %v1455 = vld [vmem:[%s476 + $0x24] sm:$0xf]
        %v1456 = vld [vmem:[%s476 + $0x28] sm:$0x1]
        %v1457 = vld [vmem:[%s476 + $0x38] sm:$0xf]
        %v1458 = vld [vmem:[%s476 + $0x3c] sm:$0xf]
        %v1459 = vld [vmem:[%s476 + $0x40] sm:$0x1]
        %v1460 = vld [vmem:[%s476 + $0x50] sm:$0xf]
        %v1461 = vld [vmem:[%s476 + $0x54] sm:$0xf]
        %v1462 = vld [vmem:[%s476 + $0x58] sm:$0x1]
        %v1463 = vld [vmem:[%s476 + $0x68] sm:$0xf]
        %v1464 = vld [vmem:[%s476 + $0x6c] sm:$0xf]
        %v1465 = vld [vmem:[%s476 + $0x70] sm:$0x1]
        %v1466 = vld [vmem:[%s476 + $0x80] sm:$0xf]
        %v1467 = vld [vmem:[%s476 + $0x84] sm:$0xf]
        %v1468 = vld [vmem:[%s476 + $0x88] sm:$0x1]
        %v1469 = vld [vmem:[%s476 + $0x98] sm:$0xf]
        %v1470 = vld [vmem:[%s476 + $0x9c] sm:$0xf]
        %v1471 = vld [vmem:[%s476 + $0xa0] sm:$0x1]
        %v1472 = vld [vmem:[%s476 + $0xb0] sm:$0xf]
        %v1473 = vld [vmem:[%s476 + $0xb4] sm:$0xf]
        %v1474 = vld [vmem:[%s476 + $0xb8] sm:$0x1]
        %v1475 = vld [vmem:[%s476 + $0xc8] sm:$0xf]
        %v1476 = vld [vmem:[%s476 + $0xcc] sm:$0xf]
        %v1477 = vld [vmem:[%s476 + $0xd0] sm:$0x1]
        %v1478 = vld [vmem:[%s476 + $0xe0] sm:$0xf]
        %v1479 = vld [vmem:[%s476 + $0xe4] sm:$0xf]
        %v1480 = vld [vmem:[%s476 + $0xe8] sm:$0x1]
        %v1481 = vld [vmem:[%s379 + $0x8] sm:$0xf]
        %v1482 = vld [vmem:[%s379 + $0xc] sm:$0xf]
        %v1483 = vld [vmem:[%s379 + $0x10] sm:$0x1]
        %v1484 = vld [vmem:[%s379 + $0x20] sm:$0xf]
        %v1485 = vld [vmem:[%s379 + $0x24] sm:$0xf]
        %v1486 = vld [vmem:[%s379 + $0x28] sm:$0x1]
        %v1487 = vld [vmem:[%s379 + $0x38] sm:$0xf]
        %v1488 = vld [vmem:[%s379 + $0x3c] sm:$0xf]
        %v1489 = vld [vmem:[%s379 + $0x40] sm:$0x1]
        %v1490 = vld [vmem:[%s379 + $0x50] sm:$0xf]
        %v1491 = vld [vmem:[%s379 + $0x54] sm:$0xf]
        %v1492 = vld [vmem:[%s379 + $0x58] sm:$0x1]
        %v1493 = vld [vmem:[%s379 + $0x68] sm:$0xf]
        %v1494 = vld [vmem:[%s379 + $0x6c] sm:$0xf]
        %v1495 = vld [vmem:[%s379 + $0x70] sm:$0x1]
        %v1496 = vld [vmem:[%s379 + $0x80] sm:$0xf]
        %v1497 = vld [vmem:[%s379 + $0x84] sm:$0xf]
        %v1498 = vld [vmem:[%s379 + $0x88] sm:$0x1]
        %v1499 = vld [vmem:[%s379 + $0x98] sm:$0xf]
        %v1500 = vld [vmem:[%s379 + $0x9c] sm:$0xf]
        %v1501 = vld [vmem:[%s379 + $0xa0] sm:$0x1]
        %v1502 = vld [vmem:[%s379 + $0xb0] sm:$0xf]
        %v1503 = vld [vmem:[%s379 + $0xb4] sm:$0xf]
        %v1504 = vld [vmem:[%s379 + $0xb8] sm:$0x1]
        %v1505 = vld [vmem:[%s379 + $0xc8] sm:$0xf]
        %v1506 = vld [vmem:[%s379 + $0xcc] sm:$0xf]
        %v1507 = vld [vmem:[%s379 + $0xd0] sm:$0x1]
        %v1508 = vld [vmem:[%s379 + $0xe0] sm:$0xf]
        %v1509 = vld [vmem:[%s379 + $0xe4] sm:$0xf]
        %v1510 = vld [vmem:[%s379 + $0xe8] sm:$0x1]
        %v1541 = vunpack.c.l.b16 %v1421
        %v1542 = vunpack.c.l.b16 %v1422
        %v1543 = vunpack.c.l.b16 %v1423
        %v1544 = vunpack.c.l.b16 %v1424
        %v1545 = vunpack.c.l.b16 %v1425
        %v1546 = vunpack.c.l.b16 %v1426
        %v1547 = vunpack.c.l.b16 %v1427
        %v1548 = vunpack.c.l.b16 %v1428
        %v1549 = vunpack.c.l.b16 %v1429
        %v1550 = vunpack.c.l.b16 %v1430
        %v1551 = vunpack.c.l.b16 %v1431
        %v1552 = vunpack.c.l.b16 %v1432
        %v1553 = vunpack.c.l.b16 %v1433
        %v1554 = vunpack.c.l.b16 %v1434
        %v1555 = vunpack.c.l.b16 %v1435
        %v1556 = vunpack.c.l.b16 %v1436
        %v1557 = vunpack.c.l.b16 %v1437
        %v1558 = vunpack.c.l.b16 %v1438
        %v1559 = vunpack.c.l.b16 %v1439
        %v1560 = vunpack.c.l.b16 %v1440
        %v1561 = vunpack.c.l.b16 %v1441
        %v1562 = vunpack.c.l.b16 %v1442
        %v1563 = vunpack.c.l.b16 %v1443
        %v1564 = vunpack.c.l.b16 %v1444
        %v1565 = vunpack.c.l.b16 %v1445
        %v1566 = vunpack.c.l.b16 %v1446
        %v1567 = vunpack.c.l.b16 %v1447
        %v1568 = vunpack.c.l.b16 %v1448
        %v1569 = vunpack.c.l.b16 %v1449
        %v1570 = vunpack.c.l.b16 %v1450
        %v1571 = vpack.c.b16 %v1542, %v1541
        %v1572 = vpack.c.b16 %v1543, %v1543
        %v1573 = vpack.c.b16 %v1545, %v1544
        %v1574 = vpack.c.b16 %v1546, %v1546
        %v1575 = vpack.c.b16 %v1548, %v1547
        %v1576 = vpack.c.b16 %v1549, %v1549
        %v1577 = vpack.c.b16 %v1551, %v1550
        %v1578 = vpack.c.b16 %v1552, %v1552
        %v1579 = vpack.c.b16 %v1554, %v1553
        %v1580 = vpack.c.b16 %v1555, %v1555
        %v1581 = vpack.c.b16 %v1557, %v1556
        %v1582 = vpack.c.b16 %v1558, %v1558
        %v1583 = vpack.c.b16 %v1560, %v1559
        %v1584 = vpack.c.b16 %v1561, %v1561
        %v1585 = vpack.c.b16 %v1563, %v1562
        %v1586 = vpack.c.b16 %v1564, %v1564
        %v1587 = vpack.c.b16 %v1566, %v1565
        %v1588 = vpack.c.b16 %v1567, %v1567
        %v1589 = vpack.c.b16 %v1569, %v1568
        %v1590 = vpack.c.b16 %v1570, %v1570
        %v1621 = vunpack.c.l.b16 %v1451
        %v1622 = vunpack.c.l.b16 %v1452
        %v1623 = vunpack.c.l.b16 %v1453
        %v1624 = vunpack.c.l.b16 %v1454
        %v1625 = vunpack.c.l.b16 %v1455
        %v1626 = vunpack.c.l.b16 %v1456
        %v1627 = vunpack.c.l.b16 %v1457
        %v1628 = vunpack.c.l.b16 %v1458
        %v1629 = vunpack.c.l.b16 %v1459
        %v1630 = vunpack.c.l.b16 %v1460
        %v1631 = vunpack.c.l.b16 %v1461
        %v1632 = vunpack.c.l.b16 %v1462
        %v1633 = vunpack.c.l.b16 %v1463
        %v1634 = vunpack.c.l.b16 %v1464
        %v1635 = vunpack.c.l.b16 %v1465
        %v1636 = vunpack.c.l.b16 %v1466
        %v1637 = vunpack.c.l.b16 %v1467
        %v1638 = vunpack.c.l.b16 %v1468
        %v1639 = vunpack.c.l.b16 %v1469
        %v1640 = vunpack.c.l.b16 %v1470
        %v1641 = vunpack.c.l.b16 %v1471
        %v1642 = vunpack.c.l.b16 %v1472
        %v1643 = vunpack.c.l.b16 %v1473
        %v1644 = vunpack.c.l.b16 %v1474
        %v1645 = vunpack.c.l.b16 %v1475
        %v1646 = vunpack.c.l.b16 %v1476
        %v1647 = vunpack.c.l.b16 %v1477
        %v1648 = vunpack.c.l.b16 %v1478
        %v1649 = vunpack.c.l.b16 %v1479
        %v1650 = vunpack.c.l.b16 %v1480
        %v1651 = vpack.c.b16 %v1622, %v1621
        %v1652 = vpack.c.b16 %v1623, %v1623
        %v1653 = vpack.c.b16 %v1625, %v1624
        %v1654 = vpack.c.b16 %v1626, %v1626
        %v1655 = vpack.c.b16 %v1628, %v1627
        %v1656 = vpack.c.b16 %v1629, %v1629
        %v1657 = vpack.c.b16 %v1631, %v1630
        %v1658 = vpack.c.b16 %v1632, %v1632
        %v1659 = vpack.c.b16 %v1634, %v1633
        %v1660 = vpack.c.b16 %v1635, %v1635
        %v1661 = vpack.c.b16 %v1637, %v1636
        %v1662 = vpack.c.b16 %v1638, %v1638
        %v1663 = vpack.c.b16 %v1640, %v1639
        %v1664 = vpack.c.b16 %v1641, %v1641
        %v1665 = vpack.c.b16 %v1643, %v1642
        %v1666 = vpack.c.b16 %v1644, %v1644
        %v1667 = vpack.c.b16 %v1646, %v1645
        %v1668 = vpack.c.b16 %v1647, %v1647
        %v1669 = vpack.c.b16 %v1649, %v1648
        %v1670 = vpack.c.b16 %v1650, %v1650
        %1671 = vrot.lane.b32.xlu0 %v1651, 4
        %v1672 = vpop.permute.xlu0 %1671
        %1673 = vrot.lane.b32.xlu0 %v1652, 4
        %v1674 = vpop.permute.xlu0 %1673
        %1675 = vrot.lane.b32.xlu0 %v1653, 4
        %v1676 = vpop.permute.xlu0 %1675
        %1677 = vrot.lane.b32.xlu0 %v1654, 4
        %v1678 = vpop.permute.xlu0 %1677
        %1679 = vrot.lane.b32.xlu0 %v1655, 4
        %v1680 = vpop.permute.xlu0 %1679
        %1681 = vrot.lane.b32.xlu0 %v1656, 4
        %v1682 = vpop.permute.xlu0 %1681
        %1683 = vrot.lane.b32.xlu0 %v1657, 4
        %v1684 = vpop.permute.xlu0 %1683
        %1685 = vrot.lane.b32.xlu0 %v1658, 4
        %v1686 = vpop.permute.xlu0 %1685
        %1687 = vrot.lane.b32.xlu0 %v1659, 4
        %v1688 = vpop.permute.xlu0 %1687
        %1689 = vrot.lane.b32.xlu0 %v1660, 4
        %v1690 = vpop.permute.xlu0 %1689
        %1691 = vrot.lane.b32.xlu0 %v1661, 4
        %v1692 = vpop.permute.xlu0 %1691
        %1693 = vrot.lane.b32.xlu0 %v1662, 4
        %v1694 = vpop.permute.xlu0 %1693
        %1695 = vrot.lane.b32.xlu0 %v1663, 4
        %v1696 = vpop.permute.xlu0 %1695
        %1697 = vrot.lane.b32.xlu0 %v1664, 4
        %v1698 = vpop.permute.xlu0 %1697
        %1699 = vrot.lane.b32.xlu0 %v1665, 4
        %v1700 = vpop.permute.xlu0 %1699
        %1701 = vrot.lane.b32.xlu0 %v1666, 4
        %v1702 = vpop.permute.xlu0 %1701
        %1703 = vrot.lane.b32.xlu0 %v1667, 4
        %v1704 = vpop.permute.xlu0 %1703
        %1705 = vrot.lane.b32.xlu0 %v1668, 4
        %v1706 = vpop.permute.xlu0 %1705
        %1707 = vrot.lane.b32.xlu0 %v1669, 4
        %v1708 = vpop.permute.xlu0 %1707
        %1709 = vrot.lane.b32.xlu0 %v1670, 4
        %v1710 = vpop.permute.xlu0 %1709
        %v1741 = vunpack.c.l.b16 %v1481
        %v1742 = vunpack.c.l.b16 %v1482
        %v1743 = vunpack.c.l.b16 %v1483
        %v1744 = vunpack.c.l.b16 %v1484
        %v1745 = vunpack.c.l.b16 %v1485
        %v1746 = vunpack.c.l.b16 %v1486
        %v1747 = vunpack.c.l.b16 %v1487
        %v1748 = vunpack.c.l.b16 %v1488
        %v1749 = vunpack.c.l.b16 %v1489
        %v1750 = vunpack.c.l.b16 %v1490
        %v1751 = vunpack.c.l.b16 %v1491
        %v1752 = vunpack.c.l.b16 %v1492
        %v1753 = vunpack.c.l.b16 %v1493
        %v1754 = vunpack.c.l.b16 %v1494
        %v1755 = vunpack.c.l.b16 %v1495
        %v1756 = vunpack.c.l.b16 %v1496
        %v1757 = vunpack.c.l.b16 %v1497
        %v1758 = vunpack.c.l.b16 %v1498
        %v1759 = vunpack.c.l.b16 %v1499
        %v1760 = vunpack.c.l.b16 %v1500
        %v1761 = vunpack.c.l.b16 %v1501
        %v1762 = vunpack.c.l.b16 %v1502
        %v1763 = vunpack.c.l.b16 %v1503
        %v1764 = vunpack.c.l.b16 %v1504
        %v1765 = vunpack.c.l.b16 %v1505
        %v1766 = vunpack.c.l.b16 %v1506
        %v1767 = vunpack.c.l.b16 %v1507
        %v1768 = vunpack.c.l.b16 %v1508
        %v1769 = vunpack.c.l.b16 %v1509
        %v1770 = vunpack.c.l.b16 %v1510
        %v1771 = vpack.c.b16 %v1742, %v1741
        %v1772 = vpack.c.b16 %v1743, %v1743
        %v1773 = vpack.c.b16 %v1745, %v1744
        %v1774 = vpack.c.b16 %v1746, %v1746
        %v1775 = vpack.c.b16 %v1748, %v1747
        %v1776 = vpack.c.b16 %v1749, %v1749
        %v1777 = vpack.c.b16 %v1751, %v1750
        %v1778 = vpack.c.b16 %v1752, %v1752
        %v1779 = vpack.c.b16 %v1754, %v1753
        %v1780 = vpack.c.b16 %v1755, %v1755
        %v1781 = vpack.c.b16 %v1757, %v1756
        %v1782 = vpack.c.b16 %v1758, %v1758
        %v1783 = vpack.c.b16 %v1760, %v1759
        %v1784 = vpack.c.b16 %v1761, %v1761
        %v1785 = vpack.c.b16 %v1763, %v1762
        %v1786 = vpack.c.b16 %v1764, %v1764
        %v1787 = vpack.c.b16 %v1766, %v1765
        %v1788 = vpack.c.b16 %v1767, %v1767
        %v1789 = vpack.c.b16 %v1769, %v1768
        %v1790 = vpack.c.b16 %v1770, %v1770
        %1791 = vrot.lane.b32.xlu0 %v1771, 8
        %v1792 = vpop.permute.xlu0 %1791
        %1793 = vrot.lane.b32.xlu0 %v1772, 8
        %v1794 = vpop.permute.xlu0 %1793
        %1795 = vrot.lane.b32.xlu0 %v1773, 8
        %v1796 = vpop.permute.xlu0 %1795
        %1797 = vrot.lane.b32.xlu0 %v1774, 8
        %v1798 = vpop.permute.xlu0 %1797
        %1799 = vrot.lane.b32.xlu0 %v1775, 8
        %v1800 = vpop.permute.xlu0 %1799
        %1801 = vrot.lane.b32.xlu0 %v1776, 8
        %v1802 = vpop.permute.xlu0 %1801
        %1803 = vrot.lane.b32.xlu0 %v1777, 8
        %v1804 = vpop.permute.xlu0 %1803
        %1805 = vrot.lane.b32.xlu0 %v1778, 8
        %v1806 = vpop.permute.xlu0 %1805
        %1807 = vrot.lane.b32.xlu0 %v1779, 8
        %v1808 = vpop.permute.xlu0 %1807
        %1809 = vrot.lane.b32.xlu0 %v1780, 8
        %v1810 = vpop.permute.xlu0 %1809
        %1811 = vrot.lane.b32.xlu0 %v1781, 8
        %v1812 = vpop.permute.xlu0 %1811
        %1813 = vrot.lane.b32.xlu0 %v1782, 8
        %v1814 = vpop.permute.xlu0 %1813
        %1815 = vrot.lane.b32.xlu0 %v1783, 8
        %v1816 = vpop.permute.xlu0 %1815
        %1817 = vrot.lane.b32.xlu0 %v1784, 8
        %v1818 = vpop.permute.xlu0 %1817
        %1819 = vrot.lane.b32.xlu0 %v1785, 8
        %v1820 = vpop.permute.xlu0 %1819
        %1821 = vrot.lane.b32.xlu0 %v1786, 8
        %v1822 = vpop.permute.xlu0 %1821
        %1823 = vrot.lane.b32.xlu0 %v1787, 8
        %v1824 = vpop.permute.xlu0 %1823
        %1825 = vrot.lane.b32.xlu0 %v1788, 8
        %v1826 = vpop.permute.xlu0 %1825
        %1827 = vrot.lane.b32.xlu0 %v1789, 8
        %v1828 = vpop.permute.xlu0 %1827
        %1829 = vrot.lane.b32.xlu0 %v1790, 8
        %v1830 = vpop.permute.xlu0 %1829
        %v1833 = vsel %vm857, %v1571, %v1672
        %v1836 = vsel %vm857, %v1572, %v1674
        %v1839 = vsel %vm857, %v1573, %v1676
        %v1842 = vsel %vm857, %v1574, %v1678
        %v1845 = vsel %vm857, %v1575, %v1680
        %v1848 = vsel %vm857, %v1576, %v1682
        %v1851 = vsel %vm857, %v1577, %v1684
        %v1854 = vsel %vm857, %v1578, %v1686
        %v1857 = vsel %vm857, %v1579, %v1688
        %v1860 = vsel %vm857, %v1580, %v1690
        %v1863 = vsel %vm857, %v1581, %v1692
        %v1866 = vsel %vm857, %v1582, %v1694
        %v1869 = vsel %vm857, %v1583, %v1696
        %v1872 = vsel %vm857, %v1584, %v1698
        %v1875 = vsel %vm857, %v1585, %v1700
        %v1878 = vsel %vm857, %v1586, %v1702
        %v1881 = vsel %vm857, %v1587, %v1704
        %v1884 = vsel %vm857, %v1588, %v1706
        %v1887 = vsel %vm857, %v1589, %v1708
        %v1890 = vsel %vm857, %v1590, %v1710
        %v1892 = vsel %vm918, %v1833, %v1792
        %v1894 = vsel %vm918, %v1836, %v1794
        %v1896 = vsel %vm918, %v1839, %v1796
        %v1898 = vsel %vm918, %v1842, %v1798
        %v1900 = vsel %vm918, %v1845, %v1800
        %v1902 = vsel %vm918, %v1848, %v1802
        %v1904 = vsel %vm918, %v1851, %v1804
        %v1906 = vsel %vm918, %v1854, %v1806
        %v1908 = vsel %vm918, %v1857, %v1808
        %v1910 = vsel %vm918, %v1860, %v1810
        %v1912 = vsel %vm918, %v1863, %v1812
        %v1914 = vsel %vm918, %v1866, %v1814
        %v1916 = vsel %vm918, %v1869, %v1816
        %v1918 = vsel %vm918, %v1872, %v1818
        %v1920 = vsel %vm918, %v1875, %v1820
        %v1922 = vsel %vm918, %v1878, %v1822
        %v1924 = vsel %vm918, %v1881, %v1824
        %v1926 = vsel %vm918, %v1884, %v1826
        %v1928 = vsel %vm918, %v1887, %v1828
        %v1930 = vsel %vm918, %v1890, %v1830
        %vm1931 = vsmask.f32 7424
        %v1932 = vshrl.u32 %v1892, 16
        %v1934 = vshll.u32 %v1892, 16
        %v1936 = vrot.slane %v1934, 1
        %v1937 = vor.u32 %v1932, %v1936
        %v1938 = vshll.u32 %v1894, 16
        %v1940 = vrot.slane %v1938, 1
        %v1941 = vsel %vm1931, %v1937, %v1940
        %v1942 = vshrl.u32 %v1896, 16
        %v1944 = vshll.u32 %v1896, 16
        %v1946 = vrot.slane %v1944, 1
        %v1947 = vor.u32 %v1942, %v1946
        %v1948 = vshll.u32 %v1898, 16
        %v1950 = vrot.slane %v1948, 1
        %v1951 = vsel %vm1931, %v1947, %v1950
        %v1952 = vshrl.u32 %v1900, 16
        %v1954 = vshll.u32 %v1900, 16
        %v1956 = vrot.slane %v1954, 1
        %v1957 = vor.u32 %v1952, %v1956
        %v1958 = vshll.u32 %v1902, 16
        %v1960 = vrot.slane %v1958, 1
        %v1961 = vsel %vm1931, %v1957, %v1960
        %v1962 = vshrl.u32 %v1904, 16
        %v1964 = vshll.u32 %v1904, 16
        %v1966 = vrot.slane %v1964, 1
        %v1967 = vor.u32 %v1962, %v1966
        %v1968 = vshll.u32 %v1906, 16
        %v1970 = vrot.slane %v1968, 1
        %v1971 = vsel %vm1931, %v1967, %v1970
        %v1972 = vshrl.u32 %v1908, 16
        %v1974 = vshll.u32 %v1908, 16
        %v1976 = vrot.slane %v1974, 1
        %v1977 = vor.u32 %v1972, %v1976
        %v1978 = vshll.u32 %v1910, 16
        %v1980 = vrot.slane %v1978, 1
        %v1981 = vsel %vm1931, %v1977, %v1980
        %v1982 = vshrl.u32 %v1912, 16
        %v1984 = vshll.u32 %v1912, 16
        %v1986 = vrot.slane %v1984, 1
        %v1987 = vor.u32 %v1982, %v1986
        %v1988 = vshll.u32 %v1914, 16
        %v1990 = vrot.slane %v1988, 1
        %v1991 = vsel %vm1931, %v1987, %v1990
        %v1992 = vshrl.u32 %v1916, 16
        %v1994 = vshll.u32 %v1916, 16
        %v1996 = vrot.slane %v1994, 1
        %v1997 = vor.u32 %v1992, %v1996
        %v1998 = vshll.u32 %v1918, 16
        %v2000 = vrot.slane %v1998, 1
        %v2001 = vsel %vm1931, %v1997, %v2000
        %v2002 = vshrl.u32 %v1920, 16
        %v2004 = vshll.u32 %v1920, 16
        %v2006 = vrot.slane %v2004, 1
        %v2007 = vor.u32 %v2002, %v2006
        %v2008 = vshll.u32 %v1922, 16
        %v2010 = vrot.slane %v2008, 1
        %v2011 = vsel %vm1931, %v2007, %v2010
        %v2012 = vshrl.u32 %v1924, 16
        %v2014 = vshll.u32 %v1924, 16
        %v2016 = vrot.slane %v2014, 1
        %v2017 = vor.u32 %v2012, %v2016
        %v2018 = vshll.u32 %v1926, 16
        %v2020 = vrot.slane %v2018, 1
        %v2021 = vsel %vm1931, %v2017, %v2020
        %v2022 = vshrl.u32 %v1928, 16
        %v2024 = vshll.u32 %v1928, 16
        %v2026 = vrot.slane %v2024, 1
        %v2027 = vor.u32 %v2022, %v2026
        %v2028 = vshll.u32 %v1930, 16
        %v2030 = vrot.slane %v2028, 1
        %v2031 = vsel %vm1931, %v2027, %v2030
        %s2032 = scalar_lea.vmem %s1, 16
        %v2033 = vld [vmem:[%s2032] sm:$0xf]
        %v2034 = vld [vmem:[%s2032 + $0x4] sm:$0x3]
        %v2037 = vunpack.c.l.b16 %v2033
        %v2038 = vunpack.c.l.b16 %v2034
        %v2039 = vpack.c.b16 %v2038, %v2037
        %v2041 = vsel %vm1240, %v1941, 0
        %v2044 = vsel %vm1240, %v1951, 0
        %v2047 = vsel %vm1240, %v1961, 0
        %v2050 = vsel %vm1240, %v1971, 0
        %v2053 = vsel %vm1240, %v1981, 0
        %v2056 = vsel %vm1240, %v1991, 0
        %v2059 = vsel %vm1240, %v2001, 0
        %v2062 = vsel %vm1240, %v2011, 0
        %v2065 = vsel %vm1240, %v2021, 0
        %v2068 = vsel %vm1240, %v2031, 0
        %v2071 = vsel %vm1261, %v2039, 0
        %2073 = vmatpush.bf16.msra.mxu0 0
        %2074 = vmatpush.bf16.msra.mxu0 0
        %2075 = vmatpush.bf16.msra.mxu0 0
        %2076 = vmatpush.bf16.msra.mxu0 0
        %2077 = vmatpush.bf16.msra.mxu0 0
        %2078 = vmatpush.bf16.msra.mxu0 0
        %2079 = vmatpush.bf16.msra.mxu0 0
        %2080 = vmatpush.bf16.msra.mxu0 %v2071
        %2081 = vmatmul.bf16.gmra.mxu0 %v2041
        %v2082 = vpop.f32.mrf.mxu0
        %v2083 = vadd.f32 0.0, %v2082
        %v2084 = vpop.f32.mrf.mxu0
        %v2085 = vadd.f32 0.0, %v2084
        %2086 = vmatmul.bf16.gmra.mxu0 %v2044
        %v2087 = vpop.f32.mrf.mxu0
        %v2088 = vadd.f32 0.0, %v2087
        %v2089 = vpop.f32.mrf.mxu0
        %v2090 = vadd.f32 0.0, %v2089
        %2091 = vmatmul.bf16.gmra.mxu0 %v2047
        %v2092 = vpop.f32.mrf.mxu0
        %v2093 = vadd.f32 0.0, %v2092
        %v2094 = vpop.f32.mrf.mxu0
        %v2095 = vadd.f32 0.0, %v2094
        %2096 = vmatmul.bf16.gmra.mxu0 %v2050
        %v2097 = vpop.f32.mrf.mxu0
        %v2098 = vadd.f32 0.0, %v2097
        %v2099 = vpop.f32.mrf.mxu0
        %v2100 = vadd.f32 0.0, %v2099
        %2101 = vmatmul.bf16.gmra.mxu0 %v2053
        %v2102 = vpop.f32.mrf.mxu0
        %v2103 = vadd.f32 0.0, %v2102
        %v2104 = vpop.f32.mrf.mxu0
        %v2105 = vadd.f32 0.0, %v2104
        %2106 = vmatmul.bf16.gmra.mxu0 %v2056
        %v2107 = vpop.f32.mrf.mxu0
        %v2108 = vadd.f32 0.0, %v2107
        %v2109 = vpop.f32.mrf.mxu0
        %v2110 = vadd.f32 0.0, %v2109
        %2111 = vmatmul.bf16.gmra.mxu0 %v2059
        %v2112 = vpop.f32.mrf.mxu0
        %v2113 = vadd.f32 0.0, %v2112
        %v2114 = vpop.f32.mrf.mxu0
        %v2115 = vadd.f32 0.0, %v2114
        %2116 = vmatmul.bf16.gmra.mxu0 %v2062
        %v2117 = vpop.f32.mrf.mxu0
        %v2118 = vadd.f32 0.0, %v2117
        %v2119 = vpop.f32.mrf.mxu0
        %v2120 = vadd.f32 0.0, %v2119
        %2121 = vmatmul.bf16.gmra.mxu0 %v2065
        %v2122 = vpop.f32.mrf.mxu0
        %v2123 = vadd.f32 0.0, %v2122
        %v2124 = vpop.f32.mrf.mxu0
        %v2125 = vadd.f32 0.0, %v2124
        %2126 = vmatmul.bf16.gmra.mxu0 %v2068
        %v2127 = vpop.f32.mrf.mxu0
        %v2128 = vadd.f32 0.0, %v2127
        %v2129 = vpop.f32.mrf.mxu0
        %v2130 = vadd.f32 0.0, %v2129
        %2131 = vdwg.mxu0
        %v2132 = vadd.f32 %v1372, %v2083
        %v2133 = vadd.f32 %v1374, %v2085
        %v2134 = vadd.f32 %v1377, %v2088
        %v2135 = vadd.f32 %v1379, %v2090
        %v2136 = vadd.f32 %v1382, %v2093
        %v2137 = vadd.f32 %v1384, %v2095
        %v2138 = vadd.f32 %v1387, %v2098
        %v2139 = vadd.f32 %v1389, %v2100
        %v2140 = vadd.f32 %v1392, %v2103
        %v2141 = vadd.f32 %v1394, %v2105
        %v2142 = vadd.f32 %v1397, %v2108
        %v2143 = vadd.f32 %v1399, %v2110
        %v2144 = vadd.f32 %v1402, %v2113
        %v2145 = vadd.f32 %v1404, %v2115
        %v2146 = vadd.f32 %v1407, %v2118
        %v2147 = vadd.f32 %v1409, %v2120
        %v2148 = vadd.f32 %v1412, %v2123
        %v2149 = vadd.f32 %v1414, %v2125
        %v2150 = vadd.f32 %v1417, %v2128
        %v2151 = vadd.f32 %v1419, %v2130
        %v2152 = vld [vmem:[%s2] sm:$0x1]
        %v2154 = vperm.slane %v2152, 0
        %v2156 = vmul.f32 %v2132, %v2154
        %v2157 = vmul.f32 %v2133, %v2154
        %v2158 = vmul.f32 %v2134, %v2154
        %v2159 = vmul.f32 %v2135, %v2154
        %v2160 = vmul.f32 %v2136, %v2154
        %v2161 = vmul.f32 %v2137, %v2154
        %v2162 = vmul.f32 %v2138, %v2154
        %v2163 = vmul.f32 %v2139, %v2154
        %v2164 = vmul.f32 %v2140, %v2154
        %v2165 = vmul.f32 %v2141, %v2154
        %v2166 = vmul.f32 %v2142, %v2154
        %v2167 = vmul.f32 %v2143, %v2154
        %v2168 = vmul.f32 %v2144, %v2154
        %v2169 = vmul.f32 %v2145, %v2154
        %v2170 = vmul.f32 %v2146, %v2154
        %v2171 = vmul.f32 %v2147, %v2154
        %v2172 = vmul.f32 %v2148, %v2154
        %v2173 = vmul.f32 %v2149, %v2154
        %v2174 = vmul.f32 %v2150, %v2154
        %v2175 = vmul.f32 %v2151, %v2154
        %v2176 = vld [vmem:[%s3] sm:$0x1]
        %v2178 = vperm.slane %v2176, 0
        %v2180 = vadd.f32 %v2156, %v2178
        %v2181 = vadd.f32 %v2157, %v2178
        %v2182 = vadd.f32 %v2158, %v2178
        %v2183 = vadd.f32 %v2159, %v2178
        %v2184 = vadd.f32 %v2160, %v2178
        %v2185 = vadd.f32 %v2161, %v2178
        %v2186 = vadd.f32 %v2162, %v2178
        %v2187 = vadd.f32 %v2163, %v2178
        %v2188 = vadd.f32 %v2164, %v2178
        %v2189 = vadd.f32 %v2165, %v2178
        %v2190 = vadd.f32 %v2166, %v2178
        %v2191 = vadd.f32 %v2167, %v2178
        %v2192 = vadd.f32 %v2168, %v2178
        %v2193 = vadd.f32 %v2169, %v2178
        %v2194 = vadd.f32 %v2170, %v2178
        %v2195 = vadd.f32 %v2171, %v2178
        %v2196 = vadd.f32 %v2172, %v2178
        %v2197 = vadd.f32 %v2173, %v2178
        %v2198 = vadd.f32 %v2174, %v2178
        %v2199 = vadd.f32 %v2175, %v2178
        %v2200 = vmax.f32 %v2180, 0.0
        %v2201 = vmax.f32 %v2181, 0.0
        %v2202 = vmax.f32 %v2182, 0.0
        %v2203 = vmax.f32 %v2183, 0.0
        %v2204 = vmax.f32 %v2184, 0.0
        %v2205 = vmax.f32 %v2185, 0.0
        %v2206 = vmax.f32 %v2186, 0.0
        %v2207 = vmax.f32 %v2187, 0.0
        %v2208 = vmax.f32 %v2188, 0.0
        %v2209 = vmax.f32 %v2189, 0.0
        %v2210 = vmax.f32 %v2190, 0.0
        %v2211 = vmax.f32 %v2191, 0.0
        %v2212 = vmax.f32 %v2192, 0.0
        %v2213 = vmax.f32 %v2193, 0.0
        %v2214 = vmax.f32 %v2194, 0.0
        %v2215 = vmax.f32 %v2195, 0.0
        %v2216 = vmax.f32 %v2196, 0.0
        %v2217 = vmax.f32 %v2197, 0.0
        %v2218 = vmax.f32 %v2198, 0.0
        %v2219 = vmax.f32 %v2199, 0.0
        %2220 = vst [vmem:[#allocation3] sm:$0xf] 0
        %2221 = vst [vmem:[#allocation3 + $0x4] sm:$0xf] 0
        %2222 = vst [vmem:[#allocation3 + $0x18] sm:$0xf] 0
        %2223 = vst [vmem:[#allocation3 + $0x1c] sm:$0xf] 0
        %2224 = vst [vmem:[#allocation3 + $0x30] sm:$0xf] 0
        %2225 = vst [vmem:[#allocation3 + $0x34] sm:$0xf] 0
        %2226 = vst [vmem:[#allocation3 + $0x48] sm:$0xf] 0
        %2227 = vst [vmem:[#allocation3 + $0x4c] sm:$0xf] 0
        %2228 = vst [vmem:[#allocation3 + $0x60] sm:$0xf] 0
        %2229 = vst [vmem:[#allocation3 + $0x64] sm:$0xf] 0
        %2230 = vst [vmem:[#allocation3 + $0x78] sm:$0xf] 0
        %2231 = vst [vmem:[#allocation3 + $0x7c] sm:$0xf] 0
        %2232 = vst [vmem:[#allocation3 + $0x90] sm:$0xf] 0
        %2233 = vst [vmem:[#allocation3 + $0x94] sm:$0xf] 0
        %2234 = vst [vmem:[#allocation3 + $0xa8] sm:$0xf] 0
        %2235 = vst [vmem:[#allocation3 + $0xac] sm:$0xf] 0
        %2236 = vst [vmem:[#allocation3 + $0xc0] sm:$0xf] 0
        %2237 = vst [vmem:[#allocation3 + $0xc4] sm:$0xf] 0
        %2238 = vst [vmem:[#allocation3 + $0xd8] sm:$0xf] 0
        %2239 = vst [vmem:[#allocation3 + $0xdc] sm:$0xf] 0
        %2240 = vst [vmem:[#allocation3 + $0x10] sm:$0xf] 0
        %2241 = vst [vmem:[#allocation3 + $0x14] sm:$0xf] 0
        %2242 = vst [vmem:[#allocation3 + $0x28] sm:$0xf] 0
        %2243 = vst [vmem:[#allocation3 + $0x2c] sm:$0xf] 0
        %2244 = vst [vmem:[#allocation3 + $0x40] sm:$0xf] 0
        %2245 = vst [vmem:[#allocation3 + $0x44] sm:$0xf] 0
        %2246 = vst [vmem:[#allocation3 + $0x58] sm:$0xf] 0
        %2247 = vst [vmem:[#allocation3 + $0x5c] sm:$0xf] 0
        %2248 = vst [vmem:[#allocation3 + $0x70] sm:$0xf] 0
        %2249 = vst [vmem:[#allocation3 + $0x74] sm:$0xf] 0
        %2250 = vst [vmem:[#allocation3 + $0x88] sm:$0xf] 0
        %2251 = vst [vmem:[#allocation3 + $0x8c] sm:$0xf] 0
        %2252 = vst [vmem:[#allocation3 + $0xa0] sm:$0xf] 0
        %2253 = vst [vmem:[#allocation3 + $0xa4] sm:$0xf] 0
        %2254 = vst [vmem:[#allocation3 + $0xb8] sm:$0xf] 0
        %2255 = vst [vmem:[#allocation3 + $0xbc] sm:$0xf] 0
        %2256 = vst [vmem:[#allocation3 + $0xd0] sm:$0xf] 0
        %2257 = vst [vmem:[#allocation3 + $0xd4] sm:$0xf] 0
        %2258 = vst [vmem:[#allocation3 + $0xe8] sm:$0xf] 0
        %2259 = vst [vmem:[#allocation3 + $0xec] sm:$0xf] 0
        %v2260 = vpack.c.bf16 %v2200, %v2200
        %v2261 = vpack.c.bf16 %v2201, %v2201
        %v2262 = vpack.c.bf16 %v2202, %v2202
        %v2263 = vpack.c.bf16 %v2203, %v2203
        %v2264 = vpack.c.bf16 %v2204, %v2204
        %v2265 = vpack.c.bf16 %v2205, %v2205
        %v2266 = vpack.c.bf16 %v2206, %v2206
        %v2267 = vpack.c.bf16 %v2207, %v2207
        %v2268 = vpack.c.bf16 %v2208, %v2208
        %v2269 = vpack.c.bf16 %v2209, %v2209
        %v2270 = vpack.c.bf16 %v2210, %v2210
        %v2271 = vpack.c.bf16 %v2211, %v2211
        %v2272 = vpack.c.bf16 %v2212, %v2212
        %v2273 = vpack.c.bf16 %v2213, %v2213
        %v2274 = vpack.c.bf16 %v2214, %v2214
        %v2275 = vpack.c.bf16 %v2215, %v2215
        %v2276 = vpack.c.bf16 %v2216, %v2216
        %v2277 = vpack.c.bf16 %v2217, %v2217
        %v2278 = vpack.c.bf16 %v2218, %v2218
        %v2279 = vpack.c.bf16 %v2219, %v2219
        %2280 = vst [vmem:[#allocation3 + $0x8] sm:$0xf] %v2260
        %2281 = vst [vmem:[#allocation3 + $0xc] sm:$0xf] %v2261
        %2282 = vst [vmem:[#allocation3 + $0x20] sm:$0xf] %v2262
        %2283 = vst [vmem:[#allocation3 + $0x24] sm:$0xf] %v2263
        %2284 = vst [vmem:[#allocation3 + $0x38] sm:$0xf] %v2264
        %2285 = vst [vmem:[#allocation3 + $0x3c] sm:$0xf] %v2265
        %2286 = vst [vmem:[#allocation3 + $0x50] sm:$0xf] %v2266
        %2287 = vst [vmem:[#allocation3 + $0x54] sm:$0xf] %v2267
        %2288 = vst [vmem:[#allocation3 + $0x68] sm:$0xf] %v2268
        %2289 = vst [vmem:[#allocation3 + $0x6c] sm:$0xf] %v2269
        %2290 = vst [vmem:[#allocation3 + $0x80] sm:$0xf] %v2270
        %2291 = vst [vmem:[#allocation3 + $0x84] sm:$0xf] %v2271
        %2292 = vst [vmem:[#allocation3 + $0x98] sm:$0xf] %v2272
        %2293 = vst [vmem:[#allocation3 + $0x9c] sm:$0xf] %v2273
        %2294 = vst [vmem:[#allocation3 + $0xb0] sm:$0xf] %v2274
        %2295 = vst [vmem:[#allocation3 + $0xb4] sm:$0xf] %v2275
        %2296 = vst [vmem:[#allocation3 + $0xc8] sm:$0xf] %v2276
        %2297 = vst [vmem:[#allocation3 + $0xcc] sm:$0xf] %v2277
        %2298 = vst [vmem:[#allocation3 + $0xe0] sm:$0xf] %v2278
        %2299 = vst [vmem:[#allocation3 + $0xe4] sm:$0xf] %v2279
        // Predicated region
        $region69: #{tpu_custom_call.1} parent=47 // pred_check
          %p2300 = pneg %p412
        $region70: #{tpu_custom_call.1} parent=47 // pred_check_branch
          %2302 = sbr.rel (%p2300) target = $region72
        $region71: #{tpu_custom_call.1} parent=47 // pred_region
          %2303 = vst [vmem:[#allocation3 + $0x8] sm:$0xf] 0
          %2304 = vst [vmem:[#allocation3 + $0xc] sm:$0xf] 0
        $region72: #{tpu_custom_call.1} parent=47 // pred_fallthru
          _
        // Predicated region
        $region73: #{tpu_custom_call.1} parent=47 // pred_check
          %p2305 = pneg %p437
        $region74: #{tpu_custom_call.1} parent=47 // pred_check_branch
          %2307 = sbr.rel (%p2305) target = $region76
        $region75: #{tpu_custom_call.1} parent=47 // pred_region
          %s2308 = scalar_lea.vmem [#allocation3], 216
          %2309 = vst [vmem:[%s2308 + $0x8] sm:$0xf] 0
          %2310 = vst [vmem:[%s2308 + $0xc] sm:$0xf] 0
        $region76: #{tpu_custom_call.1} parent=47 // pred_fallthru
          _
        %v2311 = vld [vmem:[#allocation3 + $0x4] sm:$0x8]
        %v2312 = vld [vmem:[#allocation3 + $0x8] sm:$0xf]
        %v2313 = vld [vmem:[#allocation3 + $0xc] sm:$0xf]
        %v2314 = vld [vmem:[#allocation3 + $0x1c] sm:$0x8]
        %v2315 = vld [vmem:[#allocation3 + $0x20] sm:$0xf]
        %v2316 = vld [vmem:[#allocation3 + $0x24] sm:$0xf]
        %v2317 = vld [vmem:[#allocation3 + $0x34] sm:$0x8]
        %v2318 = vld [vmem:[#allocation3 + $0x38] sm:$0xf]
        %v2319 = vld [vmem:[#allocation3 + $0x3c] sm:$0xf]
        %v2320 = vld [vmem:[#allocation3 + $0x4c] sm:$0x8]
        %v2321 = vld [vmem:[#allocation3 + $0x50] sm:$0xf]
        %v2322 = vld [vmem:[#allocation3 + $0x54] sm:$0xf]
        %v2323 = vld [vmem:[#allocation3 + $0x64] sm:$0x8]
        %v2324 = vld [vmem:[#allocation3 + $0x68] sm:$0xf]
        %v2325 = vld [vmem:[#allocation3 + $0x6c] sm:$0xf]
        %v2326 = vld [vmem:[#allocation3 + $0x7c] sm:$0x8]
        %v2327 = vld [vmem:[#allocation3 + $0x80] sm:$0xf]
        %v2328 = vld [vmem:[#allocation3 + $0x84] sm:$0xf]
        %v2329 = vld [vmem:[#allocation3 + $0x94] sm:$0x8]
        %v2330 = vld [vmem:[#allocation3 + $0x98] sm:$0xf]
        %v2331 = vld [vmem:[#allocation3 + $0x9c] sm:$0xf]
        %v2332 = vld [vmem:[#allocation3 + $0xac] sm:$0x8]
        %v2333 = vld [vmem:[#allocation3 + $0xb0] sm:$0xf]
        %v2334 = vld [vmem:[#allocation3 + $0xb4] sm:$0xf]
        %s2335 = scalar_lea.vmem [#allocation3], 24
        %v2336 = vld [vmem:[%s2335 + $0x4] sm:$0x8]
        %v2337 = vld [vmem:[%s2335 + $0x8] sm:$0xf]
        %v2338 = vld [vmem:[%s2335 + $0xc] sm:$0xf]
        %v2339 = vld [vmem:[%s2335 + $0x1c] sm:$0x8]
        %v2340 = vld [vmem:[%s2335 + $0x20] sm:$0xf]
        %v2341 = vld [vmem:[%s2335 + $0x24] sm:$0xf]
        %v2342 = vld [vmem:[%s2335 + $0x34] sm:$0x8]
        %v2343 = vld [vmem:[%s2335 + $0x38] sm:$0xf]
        %v2344 = vld [vmem:[%s2335 + $0x3c] sm:$0xf]
        %v2345 = vld [vmem:[%s2335 + $0x4c] sm:$0x8]
        %v2346 = vld [vmem:[%s2335 + $0x50] sm:$0xf]
        %v2347 = vld [vmem:[%s2335 + $0x54] sm:$0xf]
        %v2348 = vld [vmem:[%s2335 + $0x64] sm:$0x8]
        %v2349 = vld [vmem:[%s2335 + $0x68] sm:$0xf]
        %v2350 = vld [vmem:[%s2335 + $0x6c] sm:$0xf]
        %v2351 = vld [vmem:[%s2335 + $0x7c] sm:$0x8]
        %v2352 = vld [vmem:[%s2335 + $0x80] sm:$0xf]
        %v2353 = vld [vmem:[%s2335 + $0x84] sm:$0xf]
        %v2354 = vld [vmem:[%s2335 + $0x94] sm:$0x8]
        %v2355 = vld [vmem:[%s2335 + $0x98] sm:$0xf]
        %v2356 = vld [vmem:[%s2335 + $0x9c] sm:$0xf]
        %v2357 = vld [vmem:[%s2335 + $0xac] sm:$0x8]
        %v2358 = vld [vmem:[%s2335 + $0xb0] sm:$0xf]
        %v2359 = vld [vmem:[%s2335 + $0xb4] sm:$0xf]
        %s2360 = scalar_lea.vmem [#allocation3], 48
        %v2361 = vld [vmem:[%s2360 + $0x4] sm:$0x8]
        %v2362 = vld [vmem:[%s2360 + $0x8] sm:$0xf]
        %v2363 = vld [vmem:[%s2360 + $0xc] sm:$0xf]
        %v2364 = vld [vmem:[%s2360 + $0x1c] sm:$0x8]
        %v2365 = vld [vmem:[%s2360 + $0x20] sm:$0xf]
        %v2366 = vld [vmem:[%s2360 + $0x24] sm:$0xf]
        %v2367 = vld [vmem:[%s2360 + $0x34] sm:$0x8]
        %v2368 = vld [vmem:[%s2360 + $0x38] sm:$0xf]
        %v2369 = vld [vmem:[%s2360 + $0x3c] sm:$0xf]
        %v2370 = vld [vmem:[%s2360 + $0x4c] sm:$0x8]
        %v2371 = vld [vmem:[%s2360 + $0x50] sm:$0xf]
        %v2372 = vld [vmem:[%s2360 + $0x54] sm:$0xf]
        %v2373 = vld [vmem:[%s2360 + $0x64] sm:$0x8]
        %v2374 = vld [vmem:[%s2360 + $0x68] sm:$0xf]
        %v2375 = vld [vmem:[%s2360 + $0x6c] sm:$0xf]
        %v2376 = vld [vmem:[%s2360 + $0x7c] sm:$0x8]
        %v2377 = vld [vmem:[%s2360 + $0x80] sm:$0xf]
        %v2378 = vld [vmem:[%s2360 + $0x84] sm:$0xf]
        %v2379 = vld [vmem:[%s2360 + $0x94] sm:$0x8]
        %v2380 = vld [vmem:[%s2360 + $0x98] sm:$0xf]
        %v2381 = vld [vmem:[%s2360 + $0x9c] sm:$0xf]
        %v2382 = vld [vmem:[%s2360 + $0xac] sm:$0x8]
        %v2383 = vld [vmem:[%s2360 + $0xb0] sm:$0xf]
        %v2384 = vld [vmem:[%s2360 + $0xb4] sm:$0xf]
        %v2409 = vunpack.c.l.b16 %v2311
        %v2410 = vunpack.c.l.b16 %v2312
        %v2411 = vunpack.c.l.b16 %v2313
        %v2412 = vunpack.c.l.b16 %v2314
        %v2413 = vunpack.c.l.b16 %v2315
        %v2414 = vunpack.c.l.b16 %v2316
        %v2415 = vunpack.c.l.b16 %v2317
        %v2416 = vunpack.c.l.b16 %v2318
        %v2417 = vunpack.c.l.b16 %v2319
        %v2418 = vunpack.c.l.b16 %v2320
        %v2419 = vunpack.c.l.b16 %v2321
        %v2420 = vunpack.c.l.b16 %v2322
        %v2421 = vunpack.c.l.b16 %v2323
        %v2422 = vunpack.c.l.b16 %v2324
        %v2423 = vunpack.c.l.b16 %v2325
        %v2424 = vunpack.c.l.b16 %v2326
        %v2425 = vunpack.c.l.b16 %v2327
        %v2426 = vunpack.c.l.b16 %v2328
        %v2427 = vunpack.c.l.b16 %v2329
        %v2428 = vunpack.c.l.b16 %v2330
        %v2429 = vunpack.c.l.b16 %v2331
        %v2430 = vunpack.c.l.b16 %v2332
        %v2431 = vunpack.c.l.b16 %v2333
        %v2432 = vunpack.c.l.b16 %v2334
        %v2433 = vpack.c.b16 %v2410, %v2409
        %v2434 = vpack.c.b16 %v2411, %v2411
        %v2435 = vpack.c.b16 %v2413, %v2412
        %v2436 = vpack.c.b16 %v2414, %v2414
        %v2437 = vpack.c.b16 %v2416, %v2415
        %v2438 = vpack.c.b16 %v2417, %v2417
        %v2439 = vpack.c.b16 %v2419, %v2418
        %v2440 = vpack.c.b16 %v2420, %v2420
        %v2441 = vpack.c.b16 %v2422, %v2421
        %v2442 = vpack.c.b16 %v2423, %v2423
        %v2443 = vpack.c.b16 %v2425, %v2424
        %v2444 = vpack.c.b16 %v2426, %v2426
        %v2445 = vpack.c.b16 %v2428, %v2427
        %v2446 = vpack.c.b16 %v2429, %v2429
        %v2447 = vpack.c.b16 %v2431, %v2430
        %v2448 = vpack.c.b16 %v2432, %v2432
        %v2473 = vunpack.c.l.b16 %v2336
        %v2474 = vunpack.c.l.b16 %v2337
        %v2475 = vunpack.c.l.b16 %v2338
        %v2476 = vunpack.c.l.b16 %v2339
        %v2477 = vunpack.c.l.b16 %v2340
        %v2478 = vunpack.c.l.b16 %v2341
        %v2479 = vunpack.c.l.b16 %v2342
        %v2480 = vunpack.c.l.b16 %v2343
        %v2481 = vunpack.c.l.b16 %v2344
        %v2482 = vunpack.c.l.b16 %v2345
        %v2483 = vunpack.c.l.b16 %v2346
        %v2484 = vunpack.c.l.b16 %v2347
        %v2485 = vunpack.c.l.b16 %v2348
        %v2486 = vunpack.c.l.b16 %v2349
        %v2487 = vunpack.c.l.b16 %v2350
        %v2488 = vunpack.c.l.b16 %v2351
        %v2489 = vunpack.c.l.b16 %v2352
        %v2490 = vunpack.c.l.b16 %v2353
        %v2491 = vunpack.c.l.b16 %v2354
        %v2492 = vunpack.c.l.b16 %v2355
        %v2493 = vunpack.c.l.b16 %v2356
        %v2494 = vunpack.c.l.b16 %v2357
        %v2495 = vunpack.c.l.b16 %v2358
        %v2496 = vunpack.c.l.b16 %v2359
        %v2497 = vpack.c.b16 %v2474, %v2473
        %v2498 = vpack.c.b16 %v2475, %v2475
        %v2499 = vpack.c.b16 %v2477, %v2476
        %v2500 = vpack.c.b16 %v2478, %v2478
        %v2501 = vpack.c.b16 %v2480, %v2479
        %v2502 = vpack.c.b16 %v2481, %v2481
        %v2503 = vpack.c.b16 %v2483, %v2482
        %v2504 = vpack.c.b16 %v2484, %v2484
        %v2505 = vpack.c.b16 %v2486, %v2485
        %v2506 = vpack.c.b16 %v2487, %v2487
        %v2507 = vpack.c.b16 %v2489, %v2488
        %v2508 = vpack.c.b16 %v2490, %v2490
        %v2509 = vpack.c.b16 %v2492, %v2491
        %v2510 = vpack.c.b16 %v2493, %v2493
        %v2511 = vpack.c.b16 %v2495, %v2494
        %v2512 = vpack.c.b16 %v2496, %v2496
        %v2537 = vunpack.c.l.b16 %v2361
        %v2538 = vunpack.c.l.b16 %v2362
        %v2539 = vunpack.c.l.b16 %v2363
        %v2540 = vunpack.c.l.b16 %v2364
        %v2541 = vunpack.c.l.b16 %v2365
        %v2542 = vunpack.c.l.b16 %v2366
        %v2543 = vunpack.c.l.b16 %v2367
        %v2544 = vunpack.c.l.b16 %v2368
        %v2545 = vunpack.c.l.b16 %v2369
        %v2546 = vunpack.c.l.b16 %v2370
        %v2547 = vunpack.c.l.b16 %v2371
        %v2548 = vunpack.c.l.b16 %v2372
        %v2549 = vunpack.c.l.b16 %v2373
        %v2550 = vunpack.c.l.b16 %v2374
        %v2551 = vunpack.c.l.b16 %v2375
        %v2552 = vunpack.c.l.b16 %v2376
        %v2553 = vunpack.c.l.b16 %v2377
        %v2554 = vunpack.c.l.b16 %v2378
        %v2555 = vunpack.c.l.b16 %v2379
        %v2556 = vunpack.c.l.b16 %v2380
        %v2557 = vunpack.c.l.b16 %v2381
        %v2558 = vunpack.c.l.b16 %v2382
        %v2559 = vunpack.c.l.b16 %v2383
        %v2560 = vunpack.c.l.b16 %v2384
        %v2561 = vpack.c.b16 %v2538, %v2537
        %v2562 = vpack.c.b16 %v2539, %v2539
        %v2563 = vpack.c.b16 %v2541, %v2540
        %v2564 = vpack.c.b16 %v2542, %v2542
        %v2565 = vpack.c.b16 %v2544, %v2543
        %v2566 = vpack.c.b16 %v2545, %v2545
        %v2567 = vpack.c.b16 %v2547, %v2546
        %v2568 = vpack.c.b16 %v2548, %v2548
        %v2569 = vpack.c.b16 %v2550, %v2549
        %v2570 = vpack.c.b16 %v2551, %v2551
        %v2571 = vpack.c.b16 %v2553, %v2552
        %v2572 = vpack.c.b16 %v2554, %v2554
        %v2573 = vpack.c.b16 %v2556, %v2555
        %v2574 = vpack.c.b16 %v2557, %v2557
        %v2575 = vpack.c.b16 %v2559, %v2558
        %v2576 = vpack.c.b16 %v2560, %v2560
        %v2578 = vshrl.u32 %v2433, 16
        %v2580 = vrot.slane %v2578, 3
        %v2581 = vshll.u32 %v2433, 16
        %v2583 = vrot.slane %v2581, 4
        %v2584 = vor.u32 %v2580, %v2583
        %v2586 = vshrl.u32 %v2434, 16
        %v2588 = vrot.slane %v2586, 3
        %v2589 = vshll.u32 %v2434, 16
        %v2591 = vrot.slane %v2589, 4
        %v2592 = vor.u32 %v2588, %v2591
        %v2593 = vsel %vm959, %v2584, %v2592
        %v2595 = vshrl.u32 %v2497, 16
        %v2597 = vrot.slane %v2595, 3
        %v2598 = vshll.u32 %v2497, 16
        %v2600 = vrot.slane %v2598, 4
        %v2601 = vor.u32 %v2597, %v2600
        %v2603 = vshrl.u32 %v2498, 16
        %v2605 = vrot.slane %v2603, 3
        %v2606 = vshll.u32 %v2498, 16
        %v2608 = vrot.slane %v2606, 4
        %v2609 = vor.u32 %v2605, %v2608
        %v2610 = vsel %vm959, %v2601, %v2609
        %v2612 = vshrl.u32 %v2561, 16
        %v2614 = vrot.slane %v2612, 3
        %v2615 = vshll.u32 %v2561, 16
        %v2617 = vrot.slane %v2615, 4
        %v2618 = vor.u32 %v2614, %v2617
        %v2620 = vshrl.u32 %v2562, 16
        %v2622 = vrot.slane %v2620, 3
        %v2623 = vshll.u32 %v2562, 16
        %v2625 = vrot.slane %v2623, 4
        %v2626 = vor.u32 %v2622, %v2625
        %v2627 = vsel %vm959, %v2618, %v2626
        %v2629 = vshrl.u32 %v2435, 16
        %v2631 = vrot.slane %v2629, 3
        %v2632 = vshll.u32 %v2435, 16
        %v2634 = vrot.slane %v2632, 4
        %v2635 = vor.u32 %v2631, %v2634
        %v2637 = vshrl.u32 %v2436, 16
        %v2639 = vrot.slane %v2637, 3
        %v2640 = vshll.u32 %v2436, 16
        %v2642 = vrot.slane %v2640, 4
        %v2643 = vor.u32 %v2639, %v2642
        %v2644 = vsel %vm959, %v2635, %v2643
        %v2646 = vshrl.u32 %v2499, 16
        %v2648 = vrot.slane %v2646, 3
        %v2649 = vshll.u32 %v2499, 16
        %v2651 = vrot.slane %v2649, 4
        %v2652 = vor.u32 %v2648, %v2651
        %v2654 = vshrl.u32 %v2500, 16
        %v2656 = vrot.slane %v2654, 3
        %v2657 = vshll.u32 %v2500, 16
        %v2659 = vrot.slane %v2657, 4
        %v2660 = vor.u32 %v2656, %v2659
        %v2661 = vsel %vm959, %v2652, %v2660
        %v2663 = vshrl.u32 %v2563, 16
        %v2665 = vrot.slane %v2663, 3
        %v2666 = vshll.u32 %v2563, 16
        %v2668 = vrot.slane %v2666, 4
        %v2669 = vor.u32 %v2665, %v2668
        %v2671 = vshrl.u32 %v2564, 16
        %v2673 = vrot.slane %v2671, 3
        %v2674 = vshll.u32 %v2564, 16
        %v2676 = vrot.slane %v2674, 4
        %v2677 = vor.u32 %v2673, %v2676
        %v2678 = vsel %vm959, %v2669, %v2677
        %v2680 = vshrl.u32 %v2437, 16
        %v2682 = vrot.slane %v2680, 3
        %v2683 = vshll.u32 %v2437, 16
        %v2685 = vrot.slane %v2683, 4
        %v2686 = vor.u32 %v2682, %v2685
        %v2688 = vshrl.u32 %v2438, 16
        %v2690 = vrot.slane %v2688, 3
        %v2691 = vshll.u32 %v2438, 16
        %v2693 = vrot.slane %v2691, 4
        %v2694 = vor.u32 %v2690, %v2693
        %v2695 = vsel %vm959, %v2686, %v2694
        %v2697 = vshrl.u32 %v2501, 16
        %v2699 = vrot.slane %v2697, 3
        %v2700 = vshll.u32 %v2501, 16
        %v2702 = vrot.slane %v2700, 4
        %v2703 = vor.u32 %v2699, %v2702
        %v2705 = vshrl.u32 %v2502, 16
        %v2707 = vrot.slane %v2705, 3
        %v2708 = vshll.u32 %v2502, 16
        %v2710 = vrot.slane %v2708, 4
        %v2711 = vor.u32 %v2707, %v2710
        %v2712 = vsel %vm959, %v2703, %v2711
        %v2714 = vshrl.u32 %v2565, 16
        %v2716 = vrot.slane %v2714, 3
        %v2717 = vshll.u32 %v2565, 16
        %v2719 = vrot.slane %v2717, 4
        %v2720 = vor.u32 %v2716, %v2719
        %v2722 = vshrl.u32 %v2566, 16
        %v2724 = vrot.slane %v2722, 3
        %v2725 = vshll.u32 %v2566, 16
        %v2727 = vrot.slane %v2725, 4
        %v2728 = vor.u32 %v2724, %v2727
        %v2729 = vsel %vm959, %v2720, %v2728
        %v2731 = vshrl.u32 %v2439, 16
        %v2733 = vrot.slane %v2731, 3
        %v2734 = vshll.u32 %v2439, 16
        %v2736 = vrot.slane %v2734, 4
        %v2737 = vor.u32 %v2733, %v2736
        %v2739 = vshrl.u32 %v2440, 16
        %v2741 = vrot.slane %v2739, 3
        %v2742 = vshll.u32 %v2440, 16
        %v2744 = vrot.slane %v2742, 4
        %v2745 = vor.u32 %v2741, %v2744
        %v2746 = vsel %vm959, %v2737, %v2745
        %v2748 = vshrl.u32 %v2503, 16
        %v2750 = vrot.slane %v2748, 3
        %v2751 = vshll.u32 %v2503, 16
        %v2753 = vrot.slane %v2751, 4
        %v2754 = vor.u32 %v2750, %v2753
        %v2756 = vshrl.u32 %v2504, 16
        %v2758 = vrot.slane %v2756, 3
        %v2759 = vshll.u32 %v2504, 16
        %v2761 = vrot.slane %v2759, 4
        %v2762 = vor.u32 %v2758, %v2761
        %v2763 = vsel %vm959, %v2754, %v2762
        %v2765 = vshrl.u32 %v2567, 16
        %v2767 = vrot.slane %v2765, 3
        %v2768 = vshll.u32 %v2567, 16
        %v2770 = vrot.slane %v2768, 4
        %v2771 = vor.u32 %v2767, %v2770
        %v2773 = vshrl.u32 %v2568, 16
        %v2775 = vrot.slane %v2773, 3
        %v2776 = vshll.u32 %v2568, 16
        %v2778 = vrot.slane %v2776, 4
        %v2779 = vor.u32 %v2775, %v2778
        %v2780 = vsel %vm959, %v2771, %v2779
        %v2782 = vshrl.u32 %v2441, 16
        %v2784 = vrot.slane %v2782, 3
        %v2785 = vshll.u32 %v2441, 16
        %v2787 = vrot.slane %v2785, 4
        %v2788 = vor.u32 %v2784, %v2787
        %v2790 = vshrl.u32 %v2442, 16
        %v2792 = vrot.slane %v2790, 3
        %v2793 = vshll.u32 %v2442, 16
        %v2795 = vrot.slane %v2793, 4
        %v2796 = vor.u32 %v2792, %v2795
        %v2797 = vsel %vm959, %v2788, %v2796
        %v2799 = vshrl.u32 %v2505, 16
        %v2801 = vrot.slane %v2799, 3
        %v2802 = vshll.u32 %v2505, 16
        %v2804 = vrot.slane %v2802, 4
        %v2805 = vor.u32 %v2801, %v2804
        %v2807 = vshrl.u32 %v2506, 16
        %v2809 = vrot.slane %v2807, 3
        %v2810 = vshll.u32 %v2506, 16
        %v2812 = vrot.slane %v2810, 4
        %v2813 = vor.u32 %v2809, %v2812
        %v2814 = vsel %vm959, %v2805, %v2813
        %v2816 = vshrl.u32 %v2569, 16
        %v2818 = vrot.slane %v2816, 3
        %v2819 = vshll.u32 %v2569, 16
        %v2821 = vrot.slane %v2819, 4
        %v2822 = vor.u32 %v2818, %v2821
        %v2824 = vshrl.u32 %v2570, 16
        %v2826 = vrot.slane %v2824, 3
        %v2827 = vshll.u32 %v2570, 16
        %v2829 = vrot.slane %v2827, 4
        %v2830 = vor.u32 %v2826, %v2829
        %v2831 = vsel %vm959, %v2822, %v2830
        %v2833 = vshrl.u32 %v2443, 16
        %v2835 = vrot.slane %v2833, 3
        %v2836 = vshll.u32 %v2443, 16
        %v2838 = vrot.slane %v2836, 4
        %v2839 = vor.u32 %v2835, %v2838
        %v2841 = vshrl.u32 %v2444, 16
        %v2843 = vrot.slane %v2841, 3
        %v2844 = vshll.u32 %v2444, 16
        %v2846 = vrot.slane %v2844, 4
        %v2847 = vor.u32 %v2843, %v2846
        %v2848 = vsel %vm959, %v2839, %v2847
        %v2850 = vshrl.u32 %v2507, 16
        %v2852 = vrot.slane %v2850, 3
        %v2853 = vshll.u32 %v2507, 16
        %v2855 = vrot.slane %v2853, 4
        %v2856 = vor.u32 %v2852, %v2855
        %v2858 = vshrl.u32 %v2508, 16
        %v2860 = vrot.slane %v2858, 3
        %v2861 = vshll.u32 %v2508, 16
        %v2863 = vrot.slane %v2861, 4
        %v2864 = vor.u32 %v2860, %v2863
        %v2865 = vsel %vm959, %v2856, %v2864
        %v2867 = vshrl.u32 %v2571, 16
        %v2869 = vrot.slane %v2867, 3
        %v2870 = vshll.u32 %v2571, 16
        %v2872 = vrot.slane %v2870, 4
        %v2873 = vor.u32 %v2869, %v2872
        %v2875 = vshrl.u32 %v2572, 16
        %v2877 = vrot.slane %v2875, 3
        %v2878 = vshll.u32 %v2572, 16
        %v2880 = vrot.slane %v2878, 4
        %v2881 = vor.u32 %v2877, %v2880
        %v2882 = vsel %vm959, %v2873, %v2881
        %v2884 = vshrl.u32 %v2445, 16
        %v2886 = vrot.slane %v2884, 3
        %v2887 = vshll.u32 %v2445, 16
        %v2889 = vrot.slane %v2887, 4
        %v2890 = vor.u32 %v2886, %v2889
        %v2892 = vshrl.u32 %v2446, 16
        %v2894 = vrot.slane %v2892, 3
        %v2895 = vshll.u32 %v2446, 16
        %v2897 = vrot.slane %v2895, 4
        %v2898 = vor.u32 %v2894, %v2897
        %v2899 = vsel %vm959, %v2890, %v2898
        %v2901 = vshrl.u32 %v2509, 16
        %v2903 = vrot.slane %v2901, 3
        %v2904 = vshll.u32 %v2509, 16
        %v2906 = vrot.slane %v2904, 4
        %v2907 = vor.u32 %v2903, %v2906
        %v2909 = vshrl.u32 %v2510, 16
        %v2911 = vrot.slane %v2909, 3
        %v2912 = vshll.u32 %v2510, 16
        %v2914 = vrot.slane %v2912, 4
        %v2915 = vor.u32 %v2911, %v2914
        %v2916 = vsel %vm959, %v2907, %v2915
        %v2918 = vshrl.u32 %v2573, 16
        %v2920 = vrot.slane %v2918, 3
        %v2921 = vshll.u32 %v2573, 16
        %v2923 = vrot.slane %v2921, 4
        %v2924 = vor.u32 %v2920, %v2923
        %v2926 = vshrl.u32 %v2574, 16
        %v2928 = vrot.slane %v2926, 3
        %v2929 = vshll.u32 %v2574, 16
        %v2931 = vrot.slane %v2929, 4
        %v2932 = vor.u32 %v2928, %v2931
        %v2933 = vsel %vm959, %v2924, %v2932
        %v2935 = vshrl.u32 %v2447, 16
        %v2937 = vrot.slane %v2935, 3
        %v2938 = vshll.u32 %v2447, 16
        %v2940 = vrot.slane %v2938, 4
        %v2941 = vor.u32 %v2937, %v2940
        %v2943 = vshrl.u32 %v2448, 16
        %v2945 = vrot.slane %v2943, 3
        %v2946 = vshll.u32 %v2448, 16
        %v2948 = vrot.slane %v2946, 4
        %v2949 = vor.u32 %v2945, %v2948
        %v2950 = vsel %vm959, %v2941, %v2949
        %v2952 = vshrl.u32 %v2511, 16
        %v2954 = vrot.slane %v2952, 3
        %v2955 = vshll.u32 %v2511, 16
        %v2957 = vrot.slane %v2955, 4
        %v2958 = vor.u32 %v2954, %v2957
        %v2960 = vshrl.u32 %v2512, 16
        %v2962 = vrot.slane %v2960, 3
        %v2963 = vshll.u32 %v2512, 16
        %v2965 = vrot.slane %v2963, 4
        %v2966 = vor.u32 %v2962, %v2965
        %v2967 = vsel %vm959, %v2958, %v2966
        %v2969 = vshrl.u32 %v2575, 16
        %v2971 = vrot.slane %v2969, 3
        %v2972 = vshll.u32 %v2575, 16
        %v2974 = vrot.slane %v2972, 4
        %v2975 = vor.u32 %v2971, %v2974
        %v2977 = vshrl.u32 %v2576, 16
        %v2979 = vrot.slane %v2977, 3
        %v2980 = vshll.u32 %v2576, 16
        %v2982 = vrot.slane %v2980, 4
        %v2983 = vor.u32 %v2979, %v2982
        %v2984 = vsel %vm959, %v2975, %v2983
        %v3009 = vld [vmem:[#allocation4] sm:$0xf]
        %v3010 = vld [vmem:[#allocation4 + $0x4] sm:$0xf]
        %v3011 = vld [vmem:[#allocation4 + $0x8] sm:$0xf]
        %v3012 = vld [vmem:[#allocation4 + $0xc] sm:$0xf]
        %v3013 = vld [vmem:[#allocation4 + $0x10] sm:$0xf]
        %v3014 = vld [vmem:[#allocation4 + $0x14] sm:$0xf]
        %v3015 = vld [vmem:[#allocation4 + $0x18] sm:$0xf]
        %v3016 = vld [vmem:[#allocation4 + $0x1c] sm:$0xf]
        %v3017 = vld [vmem:[#allocation4 + $0x20] sm:$0xf]
        %v3018 = vld [vmem:[#allocation4 + $0x24] sm:$0xf]
        %v3019 = vld [vmem:[#allocation4 + $0x28] sm:$0xf]
        %v3020 = vld [vmem:[#allocation4 + $0x2c] sm:$0xf]
        %v3021 = vld [vmem:[#allocation4 + $0x30] sm:$0xf]
        %v3022 = vld [vmem:[#allocation4 + $0x34] sm:$0xf]
        %v3023 = vld [vmem:[#allocation4 + $0x38] sm:$0xf]
        %v3024 = vld [vmem:[#allocation4 + $0x3c] sm:$0xf]
        %v3025 = vld [vmem:[#allocation4 + $0x40] sm:$0xf]
        %v3026 = vld [vmem:[#allocation4 + $0x44] sm:$0xf]
        %v3027 = vld [vmem:[#allocation4 + $0x48] sm:$0xf]
        %v3028 = vld [vmem:[#allocation4 + $0x4c] sm:$0xf]
        %v3029 = vld [vmem:[#allocation4 + $0x50] sm:$0xf]
        %v3030 = vld [vmem:[#allocation4 + $0x54] sm:$0xf]
        %v3031 = vld [vmem:[#allocation4 + $0x58] sm:$0xf]
        %v3032 = vld [vmem:[#allocation4 + $0x5c] sm:$0xf]
        %v3033 = vld [vmem:[#allocation4 + $0x60] sm:$0xf]
        %v3034 = vld [vmem:[#allocation4 + $0x64] sm:$0xf]
        %v3035 = vld [vmem:[#allocation4 + $0x68] sm:$0xf]
        %v3036 = vld [vmem:[#allocation4 + $0x6c] sm:$0xf]
        %v3037 = vld [vmem:[#allocation4 + $0x70] sm:$0xf]
        %v3038 = vld [vmem:[#allocation4 + $0x74] sm:$0xf]
        %v3039 = vld [vmem:[#allocation4 + $0x78] sm:$0xf]
        %v3040 = vld [vmem:[#allocation4 + $0x7c] sm:$0xf]
        %v3041 = vld [vmem:[#allocation4 + $0x80] sm:$0xf]
        %v3042 = vld [vmem:[#allocation4 + $0x84] sm:$0xf]
        %v3043 = vld [vmem:[#allocation4 + $0x88] sm:$0xf]
        %v3044 = vld [vmem:[#allocation4 + $0x8c] sm:$0xf]
        %v3045 = vld [vmem:[#allocation4 + $0x90] sm:$0xf]
        %v3046 = vld [vmem:[#allocation4 + $0x94] sm:$0xf]
        %v3047 = vld [vmem:[#allocation4 + $0x98] sm:$0xf]
        %v3048 = vld [vmem:[#allocation4 + $0x9c] sm:$0xf]
        %v3049 = vld [vmem:[#allocation4 + $0xa0] sm:$0xf]
        %v3050 = vld [vmem:[#allocation4 + $0xa4] sm:$0xf]
        %v3051 = vld [vmem:[#allocation4 + $0xa8] sm:$0xf]
        %v3052 = vld [vmem:[#allocation4 + $0xac] sm:$0xf]
        %v3053 = vld [vmem:[#allocation4 + $0xb0] sm:$0xf]
        %v3054 = vld [vmem:[#allocation4 + $0xb4] sm:$0xf]
        %v3055 = vld [vmem:[#allocation4 + $0xb8] sm:$0xf]
        %v3056 = vld [vmem:[#allocation4 + $0xbc] sm:$0xf]
        %v3057 = vpack.c.b16 %v2411, %v2410
        %v3058 = vpack.c.b16 %v2414, %v2413
        %v3059 = vpack.c.b16 %v2417, %v2416
        %v3060 = vpack.c.b16 %v2420, %v2419
        %v3061 = vpack.c.b16 %v2423, %v2422
        %v3062 = vpack.c.b16 %v2426, %v2425
        %v3063 = vpack.c.b16 %v2429, %v2428
        %v3064 = vpack.c.b16 %v2432, %v2431
        %v3073 = vpack.c.b16 %v2475, %v2474
        %v3074 = vpack.c.b16 %v2478, %v2477
        %v3075 = vpack.c.b16 %v2481, %v2480
        %v3076 = vpack.c.b16 %v2484, %v2483
        %v3077 = vpack.c.b16 %v2487, %v2486
        %v3078 = vpack.c.b16 %v2490, %v2489
        %v3079 = vpack.c.b16 %v2493, %v2492
        %v3080 = vpack.c.b16 %v2496, %v2495
        %v3089 = vpack.c.b16 %v2539, %v2538
        %v3090 = vpack.c.b16 %v2542, %v2541
        %v3091 = vpack.c.b16 %v2545, %v2544
        %v3092 = vpack.c.b16 %v2548, %v2547
        %v3093 = vpack.c.b16 %v2551, %v2550
        %v3094 = vpack.c.b16 %v2554, %v2553
        %v3095 = vpack.c.b16 %v2557, %v2556
        %v3096 = vpack.c.b16 %v2560, %v2559
        %s3105 = scalar_lea.vmem [#allocation4], 192
        %v3106 = vld [vmem:[%s3105] sm:$0xf]
        %v3107 = vld [vmem:[%s3105 + $0x4] sm:$0xf]
        %v3108 = vld [vmem:[%s3105 + $0x8] sm:$0xf]
        %v3109 = vld [vmem:[%s3105 + $0xc] sm:$0xf]
        %v3110 = vld [vmem:[%s3105 + $0x10] sm:$0xf]
        %v3111 = vld [vmem:[%s3105 + $0x14] sm:$0xf]
        %v3112 = vld [vmem:[%s3105 + $0x18] sm:$0xf]
        %v3113 = vld [vmem:[%s3105 + $0x1c] sm:$0xf]
        %v3114 = vld [vmem:[%s3105 + $0x20] sm:$0xf]
        %v3115 = vld [vmem:[%s3105 + $0x24] sm:$0xf]
        %v3116 = vld [vmem:[%s3105 + $0x28] sm:$0xf]
        %v3117 = vld [vmem:[%s3105 + $0x2c] sm:$0xf]
        %v3118 = vld [vmem:[%s3105 + $0x30] sm:$0xf]
        %v3119 = vld [vmem:[%s3105 + $0x34] sm:$0xf]
        %v3120 = vld [vmem:[%s3105 + $0x38] sm:$0xf]
        %v3121 = vld [vmem:[%s3105 + $0x3c] sm:$0xf]
        %v3122 = vld [vmem:[%s3105 + $0x40] sm:$0xf]
        %v3123 = vld [vmem:[%s3105 + $0x44] sm:$0xf]
        %v3124 = vld [vmem:[%s3105 + $0x48] sm:$0xf]
        %v3125 = vld [vmem:[%s3105 + $0x4c] sm:$0xf]
        %v3126 = vld [vmem:[%s3105 + $0x50] sm:$0xf]
        %v3127 = vld [vmem:[%s3105 + $0x54] sm:$0xf]
        %v3128 = vld [vmem:[%s3105 + $0x58] sm:$0xf]
        %v3129 = vld [vmem:[%s3105 + $0x5c] sm:$0xf]
        %v3130 = vld [vmem:[%s3105 + $0x60] sm:$0xf]
        %v3131 = vld [vmem:[%s3105 + $0x64] sm:$0xf]
        %v3132 = vld [vmem:[%s3105 + $0x68] sm:$0xf]
        %v3133 = vld [vmem:[%s3105 + $0x6c] sm:$0xf]
        %v3134 = vld [vmem:[%s3105 + $0x70] sm:$0xf]
        %v3135 = vld [vmem:[%s3105 + $0x74] sm:$0xf]
        %v3136 = vld [vmem:[%s3105 + $0x78] sm:$0xf]
        %v3137 = vld [vmem:[%s3105 + $0x7c] sm:$0xf]
        %v3138 = vld [vmem:[%s3105 + $0x80] sm:$0xf]
        %v3139 = vld [vmem:[%s3105 + $0x84] sm:$0xf]
        %v3140 = vld [vmem:[%s3105 + $0x88] sm:$0xf]
        %v3141 = vld [vmem:[%s3105 + $0x8c] sm:$0xf]
        %v3142 = vld [vmem:[%s3105 + $0x90] sm:$0xf]
        %v3143 = vld [vmem:[%s3105 + $0x94] sm:$0xf]
        %v3144 = vld [vmem:[%s3105 + $0x98] sm:$0xf]
        %v3145 = vld [vmem:[%s3105 + $0x9c] sm:$0xf]
        %v3146 = vld [vmem:[%s3105 + $0xa0] sm:$0xf]
        %v3147 = vld [vmem:[%s3105 + $0xa4] sm:$0xf]
        %v3148 = vld [vmem:[%s3105 + $0xa8] sm:$0xf]
        %v3149 = vld [vmem:[%s3105 + $0xac] sm:$0xf]
        %v3150 = vld [vmem:[%s3105 + $0xb0] sm:$0xf]
        %v3151 = vld [vmem:[%s3105 + $0xb4] sm:$0xf]
        %v3152 = vld [vmem:[%s3105 + $0xb8] sm:$0xf]
        %v3153 = vld [vmem:[%s3105 + $0xbc] sm:$0xf]
        %v3202 = vunpack.c.l.b16 %v3106
        %v3203 = vunpack.c.l.b16 %v3107
        %v3204 = vunpack.c.l.b16 %v3108
        %v3205 = vunpack.c.l.b16 %v3109
        %v3206 = vunpack.c.l.b16 %v3110
        %v3207 = vunpack.c.l.b16 %v3111
        %v3208 = vunpack.c.l.b16 %v3112
        %v3209 = vunpack.c.l.b16 %v3113
        %v3210 = vunpack.c.l.b16 %v3114
        %v3211 = vunpack.c.l.b16 %v3115
        %v3212 = vunpack.c.l.b16 %v3116
        %v3213 = vunpack.c.l.b16 %v3117
        %v3214 = vunpack.c.l.b16 %v3118
        %v3215 = vunpack.c.l.b16 %v3119
        %v3216 = vunpack.c.l.b16 %v3120
        %v3217 = vunpack.c.l.b16 %v3121
        %v3218 = vunpack.c.l.b16 %v3122
        %v3219 = vunpack.c.l.b16 %v3123
        %v3220 = vunpack.c.l.b16 %v3124
        %v3221 = vunpack.c.l.b16 %v3125
        %v3222 = vunpack.c.l.b16 %v3126
        %v3223 = vunpack.c.l.b16 %v3127
        %v3224 = vunpack.c.l.b16 %v3128
        %v3225 = vunpack.c.l.b16 %v3129
        %v3226 = vunpack.c.l.b16 %v3130
        %v3227 = vunpack.c.l.b16 %v3131
        %v3228 = vunpack.c.l.b16 %v3132
        %v3229 = vunpack.c.l.b16 %v3133
        %v3230 = vunpack.c.l.b16 %v3134
        %v3231 = vunpack.c.l.b16 %v3135
        %v3232 = vunpack.c.l.b16 %v3136
        %v3233 = vunpack.c.l.b16 %v3137
        %v3234 = vunpack.c.l.b16 %v3138
        %v3235 = vunpack.c.l.b16 %v3139
        %v3236 = vunpack.c.l.b16 %v3140
        %v3237 = vunpack.c.l.b16 %v3141
        %v3238 = vunpack.c.l.b16 %v3142
        %v3239 = vunpack.c.l.b16 %v3143
        %v3240 = vunpack.c.l.b16 %v3144
        %v3241 = vunpack.c.l.b16 %v3145
        %v3242 = vunpack.c.l.b16 %v3146
        %v3243 = vunpack.c.l.b16 %v3147
        %v3244 = vunpack.c.l.b16 %v3148
        %v3245 = vunpack.c.l.b16 %v3149
        %v3246 = vunpack.c.l.b16 %v3150
        %v3247 = vunpack.c.l.b16 %v3151
        %v3248 = vunpack.c.l.b16 %v3152
        %v3249 = vunpack.c.l.b16 %v3153
        %v3250 = vpack.c.b16 %v3203, %v3202
        %v3251 = vpack.c.b16 %v3205, %v3204
        %v3252 = vpack.c.b16 %v3207, %v3206
        %v3253 = vpack.c.b16 %v3209, %v3208
        %v3254 = vpack.c.b16 %v3211, %v3210
        %v3255 = vpack.c.b16 %v3213, %v3212
        %v3256 = vpack.c.b16 %v3215, %v3214
        %v3257 = vpack.c.b16 %v3217, %v3216
        %v3258 = vpack.c.b16 %v3219, %v3218
        %v3259 = vpack.c.b16 %v3221, %v3220
        %v3260 = vpack.c.b16 %v3223, %v3222
        %v3261 = vpack.c.b16 %v3225, %v3224
        %v3262 = vpack.c.b16 %v3227, %v3226
        %v3263 = vpack.c.b16 %v3229, %v3228
        %v3264 = vpack.c.b16 %v3231, %v3230
        %v3265 = vpack.c.b16 %v3233, %v3232
        %v3266 = vpack.c.b16 %v3235, %v3234
        %v3267 = vpack.c.b16 %v3237, %v3236
        %v3268 = vpack.c.b16 %v3239, %v3238
        %v3269 = vpack.c.b16 %v3241, %v3240
        %v3270 = vpack.c.b16 %v3243, %v3242
        %v3271 = vpack.c.b16 %v3245, %v3244
        %v3272 = vpack.c.b16 %v3247, %v3246
        %v3273 = vpack.c.b16 %v3249, %v3248
        %3298 = vmatpush.bf16.msra.mxu0 %v3257
        %3299 = vmatpush.bf16.msra.mxu0 %v3256
        %3300 = vmatpush.bf16.msra.mxu0 %v3255
        %3301 = vmatpush.bf16.msra.mxu0 %v3254
        %3302 = vmatpush.bf16.msra.mxu0 %v3253
        %3303 = vmatpush.bf16.msra.mxu0 %v3252
        %3304 = vmatpush.bf16.msra.mxu0 %v3251
        %3305 = vmatpush.bf16.msra.mxu0 %v3250
        %3306 = vmatmul.bf16.gmra.mxu0 %v3057
        %v3307 = vpop.f32.mrf.mxu0
        %v3308 = vadd.f32 0.0, %v3307
        %v3309 = vpop.f32.mrf.mxu0
        %v3310 = vadd.f32 0.0, %v3309
        %3311 = vmatmul.bf16.gmra.mxu0 %v3058
        %v3312 = vpop.f32.mrf.mxu0
        %v3313 = vadd.f32 0.0, %v3312
        %v3314 = vpop.f32.mrf.mxu0
        %v3315 = vadd.f32 0.0, %v3314
        %3316 = vmatmul.bf16.gmra.mxu0 %v3059
        %v3317 = vpop.f32.mrf.mxu0
        %v3318 = vadd.f32 0.0, %v3317
        %v3319 = vpop.f32.mrf.mxu0
        %v3320 = vadd.f32 0.0, %v3319
        %3321 = vmatmul.bf16.gmra.mxu0 %v3060
        %v3322 = vpop.f32.mrf.mxu0
        %v3323 = vadd.f32 0.0, %v3322
        %v3324 = vpop.f32.mrf.mxu0
        %v3325 = vadd.f32 0.0, %v3324
        %3326 = vmatmul.bf16.gmra.mxu0 %v3061
        %v3327 = vpop.f32.mrf.mxu0
        %v3328 = vadd.f32 0.0, %v3327
        %v3329 = vpop.f32.mrf.mxu0
        %v3330 = vadd.f32 0.0, %v3329
        %3331 = vmatmul.bf16.gmra.mxu0 %v3062
        %v3332 = vpop.f32.mrf.mxu0
        %v3333 = vadd.f32 0.0, %v3332
        %v3334 = vpop.f32.mrf.mxu0
        %v3335 = vadd.f32 0.0, %v3334
        %3336 = vmatmul.bf16.gmra.mxu0 %v3063
        %v3337 = vpop.f32.mrf.mxu0
        %v3338 = vadd.f32 0.0, %v3337
        %v3339 = vpop.f32.mrf.mxu0
        %v3340 = vadd.f32 0.0, %v3339
        %3341 = vmatmul.bf16.gmra.mxu0 %v3064
        %v3342 = vpop.f32.mrf.mxu0
        %v3343 = vadd.f32 0.0, %v3342
        %v3344 = vpop.f32.mrf.mxu0
        %v3345 = vadd.f32 0.0, %v3344
        %3346 = vdwg.mxu0
        %3347 = vmatpush.bf16.msra.mxu0 %v3265
        %3348 = vmatpush.bf16.msra.mxu0 %v3264
        %3349 = vmatpush.bf16.msra.mxu0 %v3263
        %3350 = vmatpush.bf16.msra.mxu0 %v3262
        %3351 = vmatpush.bf16.msra.mxu0 %v3261
        %3352 = vmatpush.bf16.msra.mxu0 %v3260
        %3353 = vmatpush.bf16.msra.mxu0 %v3259
        %3354 = vmatpush.bf16.msra.mxu0 %v3258
        %3355 = vmatmul.bf16.gmra.mxu0 %v3073
        %v3356 = vpop.f32.mrf.mxu0
        %v3357 = vadd.f32 %v3308, %v3356
        %v3358 = vpop.f32.mrf.mxu0
        %v3359 = vadd.f32 %v3310, %v3358
        %3360 = vmatmul.bf16.gmra.mxu0 %v3074
        %v3361 = vpop.f32.mrf.mxu0
        %v3362 = vadd.f32 %v3313, %v3361
        %v3363 = vpop.f32.mrf.mxu0
        %v3364 = vadd.f32 %v3315, %v3363
        %3365 = vmatmul.bf16.gmra.mxu0 %v3075
        %v3366 = vpop.f32.mrf.mxu0
        %v3367 = vadd.f32 %v3318, %v3366
        %v3368 = vpop.f32.mrf.mxu0
        %v3369 = vadd.f32 %v3320, %v3368
        %3370 = vmatmul.bf16.gmra.mxu0 %v3076
        %v3371 = vpop.f32.mrf.mxu0
        %v3372 = vadd.f32 %v3323, %v3371
        %v3373 = vpop.f32.mrf.mxu0
        %v3374 = vadd.f32 %v3325, %v3373
        %3375 = vmatmul.bf16.gmra.mxu0 %v3077
        %v3376 = vpop.f32.mrf.mxu0
        %v3377 = vadd.f32 %v3328, %v3376
        %v3378 = vpop.f32.mrf.mxu0
        %v3379 = vadd.f32 %v3330, %v3378
        %3380 = vmatmul.bf16.gmra.mxu0 %v3078
        %v3381 = vpop.f32.mrf.mxu0
        %v3382 = vadd.f32 %v3333, %v3381
        %v3383 = vpop.f32.mrf.mxu0
        %v3384 = vadd.f32 %v3335, %v3383
        %3385 = vmatmul.bf16.gmra.mxu0 %v3079
        %v3386 = vpop.f32.mrf.mxu0
        %v3387 = vadd.f32 %v3338, %v3386
        %v3388 = vpop.f32.mrf.mxu0
        %v3389 = vadd.f32 %v3340, %v3388
        %3390 = vmatmul.bf16.gmra.mxu0 %v3080
        %v3391 = vpop.f32.mrf.mxu0
        %v3392 = vadd.f32 %v3343, %v3391
        %v3393 = vpop.f32.mrf.mxu0
        %v3394 = vadd.f32 %v3345, %v3393
        %3395 = vdwg.mxu0
        %3396 = vmatpush.bf16.msra.mxu0 %v3273
        %3397 = vmatpush.bf16.msra.mxu0 %v3272
        %3398 = vmatpush.bf16.msra.mxu0 %v3271
        %3399 = vmatpush.bf16.msra.mxu0 %v3270
        %3400 = vmatpush.bf16.msra.mxu0 %v3269
        %3401 = vmatpush.bf16.msra.mxu0 %v3268
        %3402 = vmatpush.bf16.msra.mxu0 %v3267
        %3403 = vmatpush.bf16.msra.mxu0 %v3266
        %3404 = vmatmul.bf16.gmra.mxu0 %v3089
        %v3405 = vpop.f32.mrf.mxu0
        %v3406 = vadd.f32 %v3357, %v3405
        %v3407 = vpop.f32.mrf.mxu0
        %v3408 = vadd.f32 %v3359, %v3407
        %3409 = vmatmul.bf16.gmra.mxu0 %v3090
        %v3410 = vpop.f32.mrf.mxu0
        %v3411 = vadd.f32 %v3362, %v3410
        %v3412 = vpop.f32.mrf.mxu0
        %v3413 = vadd.f32 %v3364, %v3412
        %3414 = vmatmul.bf16.gmra.mxu0 %v3091
        %v3415 = vpop.f32.mrf.mxu0
        %v3416 = vadd.f32 %v3367, %v3415
        %v3417 = vpop.f32.mrf.mxu0
        %v3418 = vadd.f32 %v3369, %v3417
        %3419 = vmatmul.bf16.gmra.mxu0 %v3092
        %v3420 = vpop.f32.mrf.mxu0
        %v3421 = vadd.f32 %v3372, %v3420
        %v3422 = vpop.f32.mrf.mxu0
        %v3423 = vadd.f32 %v3374, %v3422
        %3424 = vmatmul.bf16.gmra.mxu0 %v3093
        %v3425 = vpop.f32.mrf.mxu0
        %v3426 = vadd.f32 %v3377, %v3425
        %v3427 = vpop.f32.mrf.mxu0
        %v3428 = vadd.f32 %v3379, %v3427
        %3429 = vmatmul.bf16.gmra.mxu0 %v3094
        %v3430 = vpop.f32.mrf.mxu0
        %v3431 = vadd.f32 %v3382, %v3430
        %v3432 = vpop.f32.mrf.mxu0
        %v3433 = vadd.f32 %v3384, %v3432
        %3434 = vmatmul.bf16.gmra.mxu0 %v3095
        %v3435 = vpop.f32.mrf.mxu0
        %v3436 = vadd.f32 %v3387, %v3435
        %v3437 = vpop.f32.mrf.mxu0
        %v3438 = vadd.f32 %v3389, %v3437
        %3439 = vmatmul.bf16.gmra.mxu0 %v3096
        %v3440 = vpop.f32.mrf.mxu0
        %v3441 = vadd.f32 %v3392, %v3440
        %v3442 = vpop.f32.mrf.mxu0
        %v3443 = vadd.f32 %v3394, %v3442
        %3444 = vdwg.mxu0
        %v3493 = vunpack.c.l.b16 %v3009
        %v3494 = vunpack.c.l.b16 %v3010
        %v3495 = vunpack.c.l.b16 %v3011
        %v3496 = vunpack.c.l.b16 %v3012
        %v3497 = vunpack.c.l.b16 %v3013
        %v3498 = vunpack.c.l.b16 %v3014
        %v3499 = vunpack.c.l.b16 %v3015
        %v3500 = vunpack.c.l.b16 %v3016
        %v3501 = vunpack.c.l.b16 %v3017
        %v3502 = vunpack.c.l.b16 %v3018
        %v3503 = vunpack.c.l.b16 %v3019
        %v3504 = vunpack.c.l.b16 %v3020
        %v3505 = vunpack.c.l.b16 %v3021
        %v3506 = vunpack.c.l.b16 %v3022
        %v3507 = vunpack.c.l.b16 %v3023
        %v3508 = vunpack.c.l.b16 %v3024
        %v3509 = vunpack.c.l.b16 %v3025
        %v3510 = vunpack.c.l.b16 %v3026
        %v3511 = vunpack.c.l.b16 %v3027
        %v3512 = vunpack.c.l.b16 %v3028
        %v3513 = vunpack.c.l.b16 %v3029
        %v3514 = vunpack.c.l.b16 %v3030
        %v3515 = vunpack.c.l.b16 %v3031
        %v3516 = vunpack.c.l.b16 %v3032
        %v3517 = vunpack.c.l.b16 %v3033
        %v3518 = vunpack.c.l.b16 %v3034
        %v3519 = vunpack.c.l.b16 %v3035
        %v3520 = vunpack.c.l.b16 %v3036
        %v3521 = vunpack.c.l.b16 %v3037
        %v3522 = vunpack.c.l.b16 %v3038
        %v3523 = vunpack.c.l.b16 %v3039
        %v3524 = vunpack.c.l.b16 %v3040
        %v3525 = vunpack.c.l.b16 %v3041
        %v3526 = vunpack.c.l.b16 %v3042
        %v3527 = vunpack.c.l.b16 %v3043
        %v3528 = vunpack.c.l.b16 %v3044
        %v3529 = vunpack.c.l.b16 %v3045
        %v3530 = vunpack.c.l.b16 %v3046
        %v3531 = vunpack.c.l.b16 %v3047
        %v3532 = vunpack.c.l.b16 %v3048
        %v3533 = vunpack.c.l.b16 %v3049
        %v3534 = vunpack.c.l.b16 %v3050
        %v3535 = vunpack.c.l.b16 %v3051
        %v3536 = vunpack.c.l.b16 %v3052
        %v3537 = vunpack.c.l.b16 %v3053
        %v3538 = vunpack.c.l.b16 %v3054
        %v3539 = vunpack.c.l.b16 %v3055
        %v3540 = vunpack.c.l.b16 %v3056
        %v3541 = vpack.c.b16 %v3494, %v3493
        %v3542 = vpack.c.b16 %v3496, %v3495
        %v3543 = vpack.c.b16 %v3498, %v3497
        %v3544 = vpack.c.b16 %v3500, %v3499
        %v3545 = vpack.c.b16 %v3502, %v3501
        %v3546 = vpack.c.b16 %v3504, %v3503
        %v3547 = vpack.c.b16 %v3506, %v3505
        %v3548 = vpack.c.b16 %v3508, %v3507
        %v3549 = vpack.c.b16 %v3510, %v3509
        %v3550 = vpack.c.b16 %v3512, %v3511
        %v3551 = vpack.c.b16 %v3514, %v3513
        %v3552 = vpack.c.b16 %v3516, %v3515
        %v3553 = vpack.c.b16 %v3518, %v3517
        %v3554 = vpack.c.b16 %v3520, %v3519
        %v3555 = vpack.c.b16 %v3522, %v3521
        %v3556 = vpack.c.b16 %v3524, %v3523
        %v3557 = vpack.c.b16 %v3526, %v3525
        %v3558 = vpack.c.b16 %v3528, %v3527
        %v3559 = vpack.c.b16 %v3530, %v3529
        %v3560 = vpack.c.b16 %v3532, %v3531
        %v3561 = vpack.c.b16 %v3534, %v3533
        %v3562 = vpack.c.b16 %v3536, %v3535
        %v3563 = vpack.c.b16 %v3538, %v3537
        %v3564 = vpack.c.b16 %v3540, %v3539
        %3589 = vmatpush.bf16.msra.mxu0 %v3548
        %3590 = vmatpush.bf16.msra.mxu0 %v3547
        %3591 = vmatpush.bf16.msra.mxu0 %v3546
        %3592 = vmatpush.bf16.msra.mxu0 %v3545
        %3593 = vmatpush.bf16.msra.mxu0 %v3544
        %3594 = vmatpush.bf16.msra.mxu0 %v3543
        %3595 = vmatpush.bf16.msra.mxu0 %v3542
        %3596 = vmatpush.bf16.msra.mxu0 %v3541
        %3597 = vmatmul.bf16.gmra.mxu0 %v2593
        %v3598 = vpop.f32.mrf.mxu0
        %v3599 = vadd.f32 %v3406, %v3598
        %v3600 = vpop.f32.mrf.mxu0
        %v3601 = vadd.f32 %v3408, %v3600
        %3602 = vmatmul.bf16.gmra.mxu0 %v2644
        %v3603 = vpop.f32.mrf.mxu0
        %v3604 = vadd.f32 %v3411, %v3603
        %v3605 = vpop.f32.mrf.mxu0
        %v3606 = vadd.f32 %v3413, %v3605
        %3607 = vmatmul.bf16.gmra.mxu0 %v2695
        %v3608 = vpop.f32.mrf.mxu0
        %v3609 = vadd.f32 %v3416, %v3608
        %v3610 = vpop.f32.mrf.mxu0
        %v3611 = vadd.f32 %v3418, %v3610
        %3612 = vmatmul.bf16.gmra.mxu0 %v2746
        %v3613 = vpop.f32.mrf.mxu0
        %v3614 = vadd.f32 %v3421, %v3613
        %v3615 = vpop.f32.mrf.mxu0
        %v3616 = vadd.f32 %v3423, %v3615
        %3617 = vmatmul.bf16.gmra.mxu0 %v2797
        %v3618 = vpop.f32.mrf.mxu0
        %v3619 = vadd.f32 %v3426, %v3618
        %v3620 = vpop.f32.mrf.mxu0
        %v3621 = vadd.f32 %v3428, %v3620
        %3622 = vmatmul.bf16.gmra.mxu0 %v2848
        %v3623 = vpop.f32.mrf.mxu0
        %v3624 = vadd.f32 %v3431, %v3623
        %v3625 = vpop.f32.mrf.mxu0
        %v3626 = vadd.f32 %v3433, %v3625
        %3627 = vmatmul.bf16.gmra.mxu0 %v2899
        %v3628 = vpop.f32.mrf.mxu0
        %v3629 = vadd.f32 %v3436, %v3628
        %v3630 = vpop.f32.mrf.mxu0
        %v3631 = vadd.f32 %v3438, %v3630
        %3632 = vmatmul.bf16.gmra.mxu0 %v2950
        %v3633 = vpop.f32.mrf.mxu0
        %v3634 = vadd.f32 %v3441, %v3633
        %v3635 = vpop.f32.mrf.mxu0
        %v3636 = vadd.f32 %v3443, %v3635
        %3637 = vdwg.mxu0
        %3638 = vmatpush.bf16.msra.mxu0 %v3556
        %3639 = vmatpush.bf16.msra.mxu0 %v3555
        %3640 = vmatpush.bf16.msra.mxu0 %v3554
        %3641 = vmatpush.bf16.msra.mxu0 %v3553
        %3642 = vmatpush.bf16.msra.mxu0 %v3552
        %3643 = vmatpush.bf16.msra.mxu0 %v3551
        %3644 = vmatpush.bf16.msra.mxu0 %v3550
        %3645 = vmatpush.bf16.msra.mxu0 %v3549
        %3646 = vmatmul.bf16.gmra.mxu0 %v2610
        %v3647 = vpop.f32.mrf.mxu0
        %v3648 = vadd.f32 %v3599, %v3647
        %v3649 = vpop.f32.mrf.mxu0
        %v3650 = vadd.f32 %v3601, %v3649
        %3651 = vmatmul.bf16.gmra.mxu0 %v2661
        %v3652 = vpop.f32.mrf.mxu0
        %v3653 = vadd.f32 %v3604, %v3652
        %v3654 = vpop.f32.mrf.mxu0
        %v3655 = vadd.f32 %v3606, %v3654
        %3656 = vmatmul.bf16.gmra.mxu0 %v2712
        %v3657 = vpop.f32.mrf.mxu0
        %v3658 = vadd.f32 %v3609, %v3657
        %v3659 = vpop.f32.mrf.mxu0
        %v3660 = vadd.f32 %v3611, %v3659
        %3661 = vmatmul.bf16.gmra.mxu0 %v2763
        %v3662 = vpop.f32.mrf.mxu0
        %v3663 = vadd.f32 %v3614, %v3662
        %v3664 = vpop.f32.mrf.mxu0
        %v3665 = vadd.f32 %v3616, %v3664
        %3666 = vmatmul.bf16.gmra.mxu0 %v2814
        %v3667 = vpop.f32.mrf.mxu0
        %v3668 = vadd.f32 %v3619, %v3667
        %v3669 = vpop.f32.mrf.mxu0
        %v3670 = vadd.f32 %v3621, %v3669
        %3671 = vmatmul.bf16.gmra.mxu0 %v2865
        %v3672 = vpop.f32.mrf.mxu0
        %v3673 = vadd.f32 %v3624, %v3672
        %v3674 = vpop.f32.mrf.mxu0
        %v3675 = vadd.f32 %v3626, %v3674
        %3676 = vmatmul.bf16.gmra.mxu0 %v2916
        %v3677 = vpop.f32.mrf.mxu0
        %v3678 = vadd.f32 %v3629, %v3677
        %v3679 = vpop.f32.mrf.mxu0
        %v3680 = vadd.f32 %v3631, %v3679
        %3681 = vmatmul.bf16.gmra.mxu0 %v2967
        %v3682 = vpop.f32.mrf.mxu0
        %v3683 = vadd.f32 %v3634, %v3682
        %v3684 = vpop.f32.mrf.mxu0
        %v3685 = vadd.f32 %v3636, %v3684
        %3686 = vdwg.mxu0
        %3687 = vmatpush.bf16.msra.mxu0 %v3564
        %3688 = vmatpush.bf16.msra.mxu0 %v3563
        %3689 = vmatpush.bf16.msra.mxu0 %v3562
        %3690 = vmatpush.bf16.msra.mxu0 %v3561
        %3691 = vmatpush.bf16.msra.mxu0 %v3560
        %3692 = vmatpush.bf16.msra.mxu0 %v3559
        %3693 = vmatpush.bf16.msra.mxu0 %v3558
        %3694 = vmatpush.bf16.msra.mxu0 %v3557
        %3695 = vmatmul.bf16.gmra.mxu0 %v2627
        %v3696 = vpop.f32.mrf.mxu0
        %v3697 = vadd.f32 %v3648, %v3696
        %v3698 = vpop.f32.mrf.mxu0
        %v3699 = vadd.f32 %v3650, %v3698
        %3700 = vmatmul.bf16.gmra.mxu0 %v2678
        %v3701 = vpop.f32.mrf.mxu0
        %v3702 = vadd.f32 %v3653, %v3701
        %v3703 = vpop.f32.mrf.mxu0
        %v3704 = vadd.f32 %v3655, %v3703
        %3705 = vmatmul.bf16.gmra.mxu0 %v2729
        %v3706 = vpop.f32.mrf.mxu0
        %v3707 = vadd.f32 %v3658, %v3706
        %v3708 = vpop.f32.mrf.mxu0
        %v3709 = vadd.f32 %v3660, %v3708
        %3710 = vmatmul.bf16.gmra.mxu0 %v2780
        %v3711 = vpop.f32.mrf.mxu0
        %v3712 = vadd.f32 %v3663, %v3711
        %v3713 = vpop.f32.mrf.mxu0
        %v3714 = vadd.f32 %v3665, %v3713
        %3715 = vmatmul.bf16.gmra.mxu0 %v2831
        %v3716 = vpop.f32.mrf.mxu0
        %v3717 = vadd.f32 %v3668, %v3716
        %v3718 = vpop.f32.mrf.mxu0
        %v3719 = vadd.f32 %v3670, %v3718
        %3720 = vmatmul.bf16.gmra.mxu0 %v2882
        %v3721 = vpop.f32.mrf.mxu0
        %v3722 = vadd.f32 %v3673, %v3721
        %v3723 = vpop.f32.mrf.mxu0
        %v3724 = vadd.f32 %v3675, %v3723
        %3725 = vmatmul.bf16.gmra.mxu0 %v2933
        %v3726 = vpop.f32.mrf.mxu0
        %v3727 = vadd.f32 %v3678, %v3726
        %v3728 = vpop.f32.mrf.mxu0
        %v3729 = vadd.f32 %v3680, %v3728
        %3730 = vmatmul.bf16.gmra.mxu0 %v2984
        %v3731 = vpop.f32.mrf.mxu0
        %v3732 = vadd.f32 %v3683, %v3731
        %v3733 = vpop.f32.mrf.mxu0
        %v3734 = vadd.f32 %v3685, %v3733
        %3735 = vdwg.mxu0
        %v3736 = vld [vmem:[#allocation3 + $0x8] sm:$0xf]
        %v3737 = vld [vmem:[#allocation3 + $0xc] sm:$0xf]
        %v3738 = vld [vmem:[#allocation3 + $0x10] sm:$0x1]
        %v3739 = vld [vmem:[#allocation3 + $0x20] sm:$0xf]
        %v3740 = vld [vmem:[#allocation3 + $0x24] sm:$0xf]
        %v3741 = vld [vmem:[#allocation3 + $0x28] sm:$0x1]
        %v3742 = vld [vmem:[#allocation3 + $0x38] sm:$0xf]
        %v3743 = vld [vmem:[#allocation3 + $0x3c] sm:$0xf]
        %v3744 = vld [vmem:[#allocation3 + $0x40] sm:$0x1]
        %v3745 = vld [vmem:[#allocation3 + $0x50] sm:$0xf]
        %v3746 = vld [vmem:[#allocation3 + $0x54] sm:$0xf]
        %v3747 = vld [vmem:[#allocation3 + $0x58] sm:$0x1]
        %v3748 = vld [vmem:[#allocation3 + $0x68] sm:$0xf]
        %v3749 = vld [vmem:[#allocation3 + $0x6c] sm:$0xf]
        %v3750 = vld [vmem:[#allocation3 + $0x70] sm:$0x1]
        %v3751 = vld [vmem:[#allocation3 + $0x80] sm:$0xf]
        %v3752 = vld [vmem:[#allocation3 + $0x84] sm:$0xf]
        %v3753 = vld [vmem:[#allocation3 + $0x88] sm:$0x1]
        %v3754 = vld [vmem:[#allocation3 + $0x98] sm:$0xf]
        %v3755 = vld [vmem:[#allocation3 + $0x9c] sm:$0xf]
        %v3756 = vld [vmem:[#allocation3 + $0xa0] sm:$0x1]
        %v3757 = vld [vmem:[#allocation3 + $0xb0] sm:$0xf]
        %v3758 = vld [vmem:[#allocation3 + $0xb4] sm:$0xf]
        %v3759 = vld [vmem:[#allocation3 + $0xb8] sm:$0x1]
        %v3760 = vld [vmem:[%s2335 + $0x8] sm:$0xf]
        %v3761 = vld [vmem:[%s2335 + $0xc] sm:$0xf]
        %v3762 = vld [vmem:[%s2335 + $0x10] sm:$0x1]
        %v3763 = vld [vmem:[%s2335 + $0x20] sm:$0xf]
        %v3764 = vld [vmem:[%s2335 + $0x24] sm:$0xf]
        %v3765 = vld [vmem:[%s2335 + $0x28] sm:$0x1]
        %v3766 = vld [vmem:[%s2335 + $0x38] sm:$0xf]
        %v3767 = vld [vmem:[%s2335 + $0x3c] sm:$0xf]
        %v3768 = vld [vmem:[%s2335 + $0x40] sm:$0x1]
        %v3769 = vld [vmem:[%s2335 + $0x50] sm:$0xf]
        %v3770 = vld [vmem:[%s2335 + $0x54] sm:$0xf]
        %v3771 = vld [vmem:[%s2335 + $0x58] sm:$0x1]
        %v3772 = vld [vmem:[%s2335 + $0x68] sm:$0xf]
        %v3773 = vld [vmem:[%s2335 + $0x6c] sm:$0xf]
        %v3774 = vld [vmem:[%s2335 + $0x70] sm:$0x1]
        %v3775 = vld [vmem:[%s2335 + $0x80] sm:$0xf]
        %v3776 = vld [vmem:[%s2335 + $0x84] sm:$0xf]
        %v3777 = vld [vmem:[%s2335 + $0x88] sm:$0x1]
        %v3778 = vld [vmem:[%s2335 + $0x98] sm:$0xf]
        %v3779 = vld [vmem:[%s2335 + $0x9c] sm:$0xf]
        %v3780 = vld [vmem:[%s2335 + $0xa0] sm:$0x1]
        %v3781 = vld [vmem:[%s2335 + $0xb0] sm:$0xf]
        %v3782 = vld [vmem:[%s2335 + $0xb4] sm:$0xf]
        %v3783 = vld [vmem:[%s2335 + $0xb8] sm:$0x1]
        %v3784 = vld [vmem:[%s2360 + $0x8] sm:$0xf]
        %v3785 = vld [vmem:[%s2360 + $0xc] sm:$0xf]
        %v3786 = vld [vmem:[%s2360 + $0x10] sm:$0x1]
        %v3787 = vld [vmem:[%s2360 + $0x20] sm:$0xf]
        %v3788 = vld [vmem:[%s2360 + $0x24] sm:$0xf]
        %v3789 = vld [vmem:[%s2360 + $0x28] sm:$0x1]
        %v3790 = vld [vmem:[%s2360 + $0x38] sm:$0xf]
        %v3791 = vld [vmem:[%s2360 + $0x3c] sm:$0xf]
        %v3792 = vld [vmem:[%s2360 + $0x40] sm:$0x1]
        %v3793 = vld [vmem:[%s2360 + $0x50] sm:$0xf]
        %v3794 = vld [vmem:[%s2360 + $0x54] sm:$0xf]
        %v3795 = vld [vmem:[%s2360 + $0x58] sm:$0x1]
        %v3796 = vld [vmem:[%s2360 + $0x68] sm:$0xf]
        %v3797 = vld [vmem:[%s2360 + $0x6c] sm:$0xf]
        %v3798 = vld [vmem:[%s2360 + $0x70] sm:$0x1]
        %v3799 = vld [vmem:[%s2360 + $0x80] sm:$0xf]
        %v3800 = vld [vmem:[%s2360 + $0x84] sm:$0xf]
        %v3801 = vld [vmem:[%s2360 + $0x88] sm:$0x1]
        %v3802 = vld [vmem:[%s2360 + $0x98] sm:$0xf]
        %v3803 = vld [vmem:[%s2360 + $0x9c] sm:$0xf]
        %v3804 = vld [vmem:[%s2360 + $0xa0] sm:$0x1]
        %v3805 = vld [vmem:[%s2360 + $0xb0] sm:$0xf]
        %v3806 = vld [vmem:[%s2360 + $0xb4] sm:$0xf]
        %v3807 = vld [vmem:[%s2360 + $0xb8] sm:$0x1]
        %v3832 = vunpack.c.l.b16 %v3736
        %v3833 = vunpack.c.l.b16 %v3737
        %v3834 = vunpack.c.l.b16 %v3738
        %v3835 = vunpack.c.l.b16 %v3739
        %v3836 = vunpack.c.l.b16 %v3740
        %v3837 = vunpack.c.l.b16 %v3741
        %v3838 = vunpack.c.l.b16 %v3742
        %v3839 = vunpack.c.l.b16 %v3743
        %v3840 = vunpack.c.l.b16 %v3744
        %v3841 = vunpack.c.l.b16 %v3745
        %v3842 = vunpack.c.l.b16 %v3746
        %v3843 = vunpack.c.l.b16 %v3747
        %v3844 = vunpack.c.l.b16 %v3748
        %v3845 = vunpack.c.l.b16 %v3749
        %v3846 = vunpack.c.l.b16 %v3750
        %v3847 = vunpack.c.l.b16 %v3751
        %v3848 = vunpack.c.l.b16 %v3752
        %v3849 = vunpack.c.l.b16 %v3753
        %v3850 = vunpack.c.l.b16 %v3754
        %v3851 = vunpack.c.l.b16 %v3755
        %v3852 = vunpack.c.l.b16 %v3756
        %v3853 = vunpack.c.l.b16 %v3757
        %v3854 = vunpack.c.l.b16 %v3758
        %v3855 = vunpack.c.l.b16 %v3759
        %v3856 = vpack.c.b16 %v3833, %v3832
        %v3857 = vpack.c.b16 %v3834, %v3834
        %v3858 = vpack.c.b16 %v3836, %v3835
        %v3859 = vpack.c.b16 %v3837, %v3837
        %v3860 = vpack.c.b16 %v3839, %v3838
        %v3861 = vpack.c.b16 %v3840, %v3840
        %v3862 = vpack.c.b16 %v3842, %v3841
        %v3863 = vpack.c.b16 %v3843, %v3843
        %v3864 = vpack.c.b16 %v3845, %v3844
        %v3865 = vpack.c.b16 %v3846, %v3846
        %v3866 = vpack.c.b16 %v3848, %v3847
        %v3867 = vpack.c.b16 %v3849, %v3849
        %v3868 = vpack.c.b16 %v3851, %v3850
        %v3869 = vpack.c.b16 %v3852, %v3852
        %v3870 = vpack.c.b16 %v3854, %v3853
        %v3871 = vpack.c.b16 %v3855, %v3855
        %v3896 = vunpack.c.l.b16 %v3760
        %v3897 = vunpack.c.l.b16 %v3761
        %v3898 = vunpack.c.l.b16 %v3762
        %v3899 = vunpack.c.l.b16 %v3763
        %v3900 = vunpack.c.l.b16 %v3764
        %v3901 = vunpack.c.l.b16 %v3765
        %v3902 = vunpack.c.l.b16 %v3766
        %v3903 = vunpack.c.l.b16 %v3767
        %v3904 = vunpack.c.l.b16 %v3768
        %v3905 = vunpack.c.l.b16 %v3769
        %v3906 = vunpack.c.l.b16 %v3770
        %v3907 = vunpack.c.l.b16 %v3771
        %v3908 = vunpack.c.l.b16 %v3772
        %v3909 = vunpack.c.l.b16 %v3773
        %v3910 = vunpack.c.l.b16 %v3774
        %v3911 = vunpack.c.l.b16 %v3775
        %v3912 = vunpack.c.l.b16 %v3776
        %v3913 = vunpack.c.l.b16 %v3777
        %v3914 = vunpack.c.l.b16 %v3778
        %v3915 = vunpack.c.l.b16 %v3779
        %v3916 = vunpack.c.l.b16 %v3780
        %v3917 = vunpack.c.l.b16 %v3781
        %v3918 = vunpack.c.l.b16 %v3782
        %v3919 = vunpack.c.l.b16 %v3783
        %v3920 = vpack.c.b16 %v3897, %v3896
        %v3921 = vpack.c.b16 %v3898, %v3898
        %v3922 = vpack.c.b16 %v3900, %v3899
        %v3923 = vpack.c.b16 %v3901, %v3901
        %v3924 = vpack.c.b16 %v3903, %v3902
        %v3925 = vpack.c.b16 %v3904, %v3904
        %v3926 = vpack.c.b16 %v3906, %v3905
        %v3927 = vpack.c.b16 %v3907, %v3907
        %v3928 = vpack.c.b16 %v3909, %v3908
        %v3929 = vpack.c.b16 %v3910, %v3910
        %v3930 = vpack.c.b16 %v3912, %v3911
        %v3931 = vpack.c.b16 %v3913, %v3913
        %v3932 = vpack.c.b16 %v3915, %v3914
        %v3933 = vpack.c.b16 %v3916, %v3916
        %v3934 = vpack.c.b16 %v3918, %v3917
        %v3935 = vpack.c.b16 %v3919, %v3919
        %v3960 = vunpack.c.l.b16 %v3784
        %v3961 = vunpack.c.l.b16 %v3785
        %v3962 = vunpack.c.l.b16 %v3786
        %v3963 = vunpack.c.l.b16 %v3787
        %v3964 = vunpack.c.l.b16 %v3788
        %v3965 = vunpack.c.l.b16 %v3789
        %v3966 = vunpack.c.l.b16 %v3790
        %v3967 = vunpack.c.l.b16 %v3791
        %v3968 = vunpack.c.l.b16 %v3792
        %v3969 = vunpack.c.l.b16 %v3793
        %v3970 = vunpack.c.l.b16 %v3794
        %v3971 = vunpack.c.l.b16 %v3795
        %v3972 = vunpack.c.l.b16 %v3796
        %v3973 = vunpack.c.l.b16 %v3797
        %v3974 = vunpack.c.l.b16 %v3798
        %v3975 = vunpack.c.l.b16 %v3799
        %v3976 = vunpack.c.l.b16 %v3800
        %v3977 = vunpack.c.l.b16 %v3801
        %v3978 = vunpack.c.l.b16 %v3802
        %v3979 = vunpack.c.l.b16 %v3803
        %v3980 = vunpack.c.l.b16 %v3804
        %v3981 = vunpack.c.l.b16 %v3805
        %v3982 = vunpack.c.l.b16 %v3806
        %v3983 = vunpack.c.l.b16 %v3807
        %v3984 = vpack.c.b16 %v3961, %v3960
        %v3985 = vpack.c.b16 %v3962, %v3962
        %v3986 = vpack.c.b16 %v3964, %v3963
        %v3987 = vpack.c.b16 %v3965, %v3965
        %v3988 = vpack.c.b16 %v3967, %v3966
        %v3989 = vpack.c.b16 %v3968, %v3968
        %v3990 = vpack.c.b16 %v3970, %v3969
        %v3991 = vpack.c.b16 %v3971, %v3971
        %v3992 = vpack.c.b16 %v3973, %v3972
        %v3993 = vpack.c.b16 %v3974, %v3974
        %v3994 = vpack.c.b16 %v3976, %v3975
        %v3995 = vpack.c.b16 %v3977, %v3977
        %v3996 = vpack.c.b16 %v3979, %v3978
        %v3997 = vpack.c.b16 %v3980, %v3980
        %v3998 = vpack.c.b16 %v3982, %v3981
        %v3999 = vpack.c.b16 %v3983, %v3983
        %v4001 = vshrl.u32 %v3856, 16
        %v4003 = vshll.u32 %v3856, 16
        %v4005 = vrot.slane %v4003, 1
        %v4006 = vor.u32 %v4001, %v4005
        %v4008 = vshll.u32 %v3857, 16
        %v4010 = vrot.slane %v4008, 1
        %v4011 = vsel %vm1931, %v4006, %v4010
        %v4013 = vshrl.u32 %v3920, 16
        %v4015 = vshll.u32 %v3920, 16
        %v4017 = vrot.slane %v4015, 1
        %v4018 = vor.u32 %v4013, %v4017
        %v4020 = vshll.u32 %v3921, 16
        %v4022 = vrot.slane %v4020, 1
        %v4023 = vsel %vm1931, %v4018, %v4022
        %v4025 = vshrl.u32 %v3984, 16
        %v4027 = vshll.u32 %v3984, 16
        %v4029 = vrot.slane %v4027, 1
        %v4030 = vor.u32 %v4025, %v4029
        %v4032 = vshll.u32 %v3985, 16
        %v4034 = vrot.slane %v4032, 1
        %v4035 = vsel %vm1931, %v4030, %v4034
        %v4037 = vshrl.u32 %v3858, 16
        %v4039 = vshll.u32 %v3858, 16
        %v4041 = vrot.slane %v4039, 1
        %v4042 = vor.u32 %v4037, %v4041
        %v4044 = vshll.u32 %v3859, 16
        %v4046 = vrot.slane %v4044, 1
        %v4047 = vsel %vm1931, %v4042, %v4046
        %v4049 = vshrl.u32 %v3922, 16
        %v4051 = vshll.u32 %v3922, 16
        %v4053 = vrot.slane %v4051, 1
        %v4054 = vor.u32 %v4049, %v4053
        %v4056 = vshll.u32 %v3923, 16
        %v4058 = vrot.slane %v4056, 1
        %v4059 = vsel %vm1931, %v4054, %v4058
        %v4061 = vshrl.u32 %v3986, 16
        %v4063 = vshll.u32 %v3986, 16
        %v4065 = vrot.slane %v4063, 1
        %v4066 = vor.u32 %v4061, %v4065
        %v4068 = vshll.u32 %v3987, 16
        %v4070 = vrot.slane %v4068, 1
        %v4071 = vsel %vm1931, %v4066, %v4070
        %v4073 = vshrl.u32 %v3860, 16
        %v4075 = vshll.u32 %v3860, 16
        %v4077 = vrot.slane %v4075, 1
        %v4078 = vor.u32 %v4073, %v4077
        %v4080 = vshll.u32 %v3861, 16
        %v4082 = vrot.slane %v4080, 1
        %v4083 = vsel %vm1931, %v4078, %v4082
        %v4085 = vshrl.u32 %v3924, 16
        %v4087 = vshll.u32 %v3924, 16
        %v4089 = vrot.slane %v4087, 1
        %v4090 = vor.u32 %v4085, %v4089
        %v4092 = vshll.u32 %v3925, 16
        %v4094 = vrot.slane %v4092, 1
        %v4095 = vsel %vm1931, %v4090, %v4094
        %v4097 = vshrl.u32 %v3988, 16
        %v4099 = vshll.u32 %v3988, 16
        %v4101 = vrot.slane %v4099, 1
        %v4102 = vor.u32 %v4097, %v4101
        %v4104 = vshll.u32 %v3989, 16
        %v4106 = vrot.slane %v4104, 1
        %v4107 = vsel %vm1931, %v4102, %v4106
        %v4109 = vshrl.u32 %v3862, 16
        %v4111 = vshll.u32 %v3862, 16
        %v4113 = vrot.slane %v4111, 1
        %v4114 = vor.u32 %v4109, %v4113
        %v4116 = vshll.u32 %v3863, 16
        %v4118 = vrot.slane %v4116, 1
        %v4119 = vsel %vm1931, %v4114, %v4118
        %v4121 = vshrl.u32 %v3926, 16
        %v4123 = vshll.u32 %v3926, 16
        %v4125 = vrot.slane %v4123, 1
        %v4126 = vor.u32 %v4121, %v4125
        %v4128 = vshll.u32 %v3927, 16
        %v4130 = vrot.slane %v4128, 1
        %v4131 = vsel %vm1931, %v4126, %v4130
        %v4133 = vshrl.u32 %v3990, 16
        %v4135 = vshll.u32 %v3990, 16
        %v4137 = vrot.slane %v4135, 1
        %v4138 = vor.u32 %v4133, %v4137
        %v4140 = vshll.u32 %v3991, 16
        %v4142 = vrot.slane %v4140, 1
        %v4143 = vsel %vm1931, %v4138, %v4142
        %v4145 = vshrl.u32 %v3864, 16
        %v4147 = vshll.u32 %v3864, 16
        %v4149 = vrot.slane %v4147, 1
        %v4150 = vor.u32 %v4145, %v4149
        %v4152 = vshll.u32 %v3865, 16
        %v4154 = vrot.slane %v4152, 1
        %v4155 = vsel %vm1931, %v4150, %v4154
        %v4157 = vshrl.u32 %v3928, 16
        %v4159 = vshll.u32 %v3928, 16
        %v4161 = vrot.slane %v4159, 1
        %v4162 = vor.u32 %v4157, %v4161
        %v4164 = vshll.u32 %v3929, 16
        %v4166 = vrot.slane %v4164, 1
        %v4167 = vsel %vm1931, %v4162, %v4166
        %v4169 = vshrl.u32 %v3992, 16
        %v4171 = vshll.u32 %v3992, 16
        %v4173 = vrot.slane %v4171, 1
        %v4174 = vor.u32 %v4169, %v4173
        %v4176 = vshll.u32 %v3993, 16
        %v4178 = vrot.slane %v4176, 1
        %v4179 = vsel %vm1931, %v4174, %v4178
        %v4181 = vshrl.u32 %v3866, 16
        %v4183 = vshll.u32 %v3866, 16
        %v4185 = vrot.slane %v4183, 1
        %v4186 = vor.u32 %v4181, %v4185
        %v4188 = vshll.u32 %v3867, 16
        %v4190 = vrot.slane %v4188, 1
        %v4191 = vsel %vm1931, %v4186, %v4190
        %v4193 = vshrl.u32 %v3930, 16
        %v4195 = vshll.u32 %v3930, 16
        %v4197 = vrot.slane %v4195, 1
        %v4198 = vor.u32 %v4193, %v4197
        %v4200 = vshll.u32 %v3931, 16
        %v4202 = vrot.slane %v4200, 1
        %v4203 = vsel %vm1931, %v4198, %v4202
        %v4205 = vshrl.u32 %v3994, 16
        %v4207 = vshll.u32 %v3994, 16
        %v4209 = vrot.slane %v4207, 1
        %v4210 = vor.u32 %v4205, %v4209
        %v4212 = vshll.u32 %v3995, 16
        %v4214 = vrot.slane %v4212, 1
        %v4215 = vsel %vm1931, %v4210, %v4214
        %v4217 = vshrl.u32 %v3868, 16
        %v4219 = vshll.u32 %v3868, 16
        %v4221 = vrot.slane %v4219, 1
        %v4222 = vor.u32 %v4217, %v4221
        %v4224 = vshll.u32 %v3869, 16
        %v4226 = vrot.slane %v4224, 1
        %v4227 = vsel %vm1931, %v4222, %v4226
        %v4229 = vshrl.u32 %v3932, 16
        %v4231 = vshll.u32 %v3932, 16
        %v4233 = vrot.slane %v4231, 1
        %v4234 = vor.u32 %v4229, %v4233
        %v4236 = vshll.u32 %v3933, 16
        %v4238 = vrot.slane %v4236, 1
        %v4239 = vsel %vm1931, %v4234, %v4238
        %v4241 = vshrl.u32 %v3996, 16
        %v4243 = vshll.u32 %v3996, 16
        %v4245 = vrot.slane %v4243, 1
        %v4246 = vor.u32 %v4241, %v4245
        %v4248 = vshll.u32 %v3997, 16
        %v4250 = vrot.slane %v4248, 1
        %v4251 = vsel %vm1931, %v4246, %v4250
        %v4253 = vshrl.u32 %v3870, 16
        %v4255 = vshll.u32 %v3870, 16
        %v4257 = vrot.slane %v4255, 1
        %v4258 = vor.u32 %v4253, %v4257
        %v4260 = vshll.u32 %v3871, 16
        %v4262 = vrot.slane %v4260, 1
        %v4263 = vsel %vm1931, %v4258, %v4262
        %v4265 = vshrl.u32 %v3934, 16
        %v4267 = vshll.u32 %v3934, 16
        %v4269 = vrot.slane %v4267, 1
        %v4270 = vor.u32 %v4265, %v4269
        %v4272 = vshll.u32 %v3935, 16
        %v4274 = vrot.slane %v4272, 1
        %v4275 = vsel %vm1931, %v4270, %v4274
        %v4277 = vshrl.u32 %v3998, 16
        %v4279 = vshll.u32 %v3998, 16
        %v4281 = vrot.slane %v4279, 1
        %v4282 = vor.u32 %v4277, %v4281
        %v4284 = vshll.u32 %v3999, 16
        %v4286 = vrot.slane %v4284, 1
        %v4287 = vsel %vm1931, %v4282, %v4286
        %s4312 = scalar_lea.vmem [#allocation4], 384
        %v4313 = vld [vmem:[%s4312] sm:$0xf]
        %v4314 = vld [vmem:[%s4312 + $0x4] sm:$0xf]
        %v4315 = vld [vmem:[%s4312 + $0x8] sm:$0xf]
        %v4316 = vld [vmem:[%s4312 + $0xc] sm:$0xf]
        %v4317 = vld [vmem:[%s4312 + $0x10] sm:$0xf]
        %v4318 = vld [vmem:[%s4312 + $0x14] sm:$0xf]
        %v4319 = vld [vmem:[%s4312 + $0x18] sm:$0xf]
        %v4320 = vld [vmem:[%s4312 + $0x1c] sm:$0xf]
        %v4321 = vld [vmem:[%s4312 + $0x20] sm:$0xf]
        %v4322 = vld [vmem:[%s4312 + $0x24] sm:$0xf]
        %v4323 = vld [vmem:[%s4312 + $0x28] sm:$0xf]
        %v4324 = vld [vmem:[%s4312 + $0x2c] sm:$0xf]
        %v4325 = vld [vmem:[%s4312 + $0x30] sm:$0xf]
        %v4326 = vld [vmem:[%s4312 + $0x34] sm:$0xf]
        %v4327 = vld [vmem:[%s4312 + $0x38] sm:$0xf]
        %v4328 = vld [vmem:[%s4312 + $0x3c] sm:$0xf]
        %v4329 = vld [vmem:[%s4312 + $0x40] sm:$0xf]
        %v4330 = vld [vmem:[%s4312 + $0x44] sm:$0xf]
        %v4331 = vld [vmem:[%s4312 + $0x48] sm:$0xf]
        %v4332 = vld [vmem:[%s4312 + $0x4c] sm:$0xf]
        %v4333 = vld [vmem:[%s4312 + $0x50] sm:$0xf]
        %v4334 = vld [vmem:[%s4312 + $0x54] sm:$0xf]
        %v4335 = vld [vmem:[%s4312 + $0x58] sm:$0xf]
        %v4336 = vld [vmem:[%s4312 + $0x5c] sm:$0xf]
        %v4337 = vld [vmem:[%s4312 + $0x60] sm:$0xf]
        %v4338 = vld [vmem:[%s4312 + $0x64] sm:$0xf]
        %v4339 = vld [vmem:[%s4312 + $0x68] sm:$0xf]
        %v4340 = vld [vmem:[%s4312 + $0x6c] sm:$0xf]
        %v4341 = vld [vmem:[%s4312 + $0x70] sm:$0xf]
        %v4342 = vld [vmem:[%s4312 + $0x74] sm:$0xf]
        %v4343 = vld [vmem:[%s4312 + $0x78] sm:$0xf]
        %v4344 = vld [vmem:[%s4312 + $0x7c] sm:$0xf]
        %v4345 = vld [vmem:[%s4312 + $0x80] sm:$0xf]
        %v4346 = vld [vmem:[%s4312 + $0x84] sm:$0xf]
        %v4347 = vld [vmem:[%s4312 + $0x88] sm:$0xf]
        %v4348 = vld [vmem:[%s4312 + $0x8c] sm:$0xf]
        %v4349 = vld [vmem:[%s4312 + $0x90] sm:$0xf]
        %v4350 = vld [vmem:[%s4312 + $0x94] sm:$0xf]
        %v4351 = vld [vmem:[%s4312 + $0x98] sm:$0xf]
        %v4352 = vld [vmem:[%s4312 + $0x9c] sm:$0xf]
        %v4353 = vld [vmem:[%s4312 + $0xa0] sm:$0xf]
        %v4354 = vld [vmem:[%s4312 + $0xa4] sm:$0xf]
        %v4355 = vld [vmem:[%s4312 + $0xa8] sm:$0xf]
        %v4356 = vld [vmem:[%s4312 + $0xac] sm:$0xf]
        %v4357 = vld [vmem:[%s4312 + $0xb0] sm:$0xf]
        %v4358 = vld [vmem:[%s4312 + $0xb4] sm:$0xf]
        %v4359 = vld [vmem:[%s4312 + $0xb8] sm:$0xf]
        %v4360 = vld [vmem:[%s4312 + $0xbc] sm:$0xf]
        %v4409 = vunpack.c.l.b16 %v4313
        %v4410 = vunpack.c.l.b16 %v4314
        %v4411 = vunpack.c.l.b16 %v4315
        %v4412 = vunpack.c.l.b16 %v4316
        %v4413 = vunpack.c.l.b16 %v4317
        %v4414 = vunpack.c.l.b16 %v4318
        %v4415 = vunpack.c.l.b16 %v4319
        %v4416 = vunpack.c.l.b16 %v4320
        %v4417 = vunpack.c.l.b16 %v4321
        %v4418 = vunpack.c.l.b16 %v4322
        %v4419 = vunpack.c.l.b16 %v4323
        %v4420 = vunpack.c.l.b16 %v4324
        %v4421 = vunpack.c.l.b16 %v4325
        %v4422 = vunpack.c.l.b16 %v4326
        %v4423 = vunpack.c.l.b16 %v4327
        %v4424 = vunpack.c.l.b16 %v4328
        %v4425 = vunpack.c.l.b16 %v4329
        %v4426 = vunpack.c.l.b16 %v4330
        %v4427 = vunpack.c.l.b16 %v4331
        %v4428 = vunpack.c.l.b16 %v4332
        %v4429 = vunpack.c.l.b16 %v4333
        %v4430 = vunpack.c.l.b16 %v4334
        %v4431 = vunpack.c.l.b16 %v4335
        %v4432 = vunpack.c.l.b16 %v4336
        %v4433 = vunpack.c.l.b16 %v4337
        %v4434 = vunpack.c.l.b16 %v4338
        %v4435 = vunpack.c.l.b16 %v4339
        %v4436 = vunpack.c.l.b16 %v4340
        %v4437 = vunpack.c.l.b16 %v4341
        %v4438 = vunpack.c.l.b16 %v4342
        %v4439 = vunpack.c.l.b16 %v4343
        %v4440 = vunpack.c.l.b16 %v4344
        %v4441 = vunpack.c.l.b16 %v4345
        %v4442 = vunpack.c.l.b16 %v4346
        %v4443 = vunpack.c.l.b16 %v4347
        %v4444 = vunpack.c.l.b16 %v4348
        %v4445 = vunpack.c.l.b16 %v4349
        %v4446 = vunpack.c.l.b16 %v4350
        %v4447 = vunpack.c.l.b16 %v4351
        %v4448 = vunpack.c.l.b16 %v4352
        %v4449 = vunpack.c.l.b16 %v4353
        %v4450 = vunpack.c.l.b16 %v4354
        %v4451 = vunpack.c.l.b16 %v4355
        %v4452 = vunpack.c.l.b16 %v4356
        %v4453 = vunpack.c.l.b16 %v4357
        %v4454 = vunpack.c.l.b16 %v4358
        %v4455 = vunpack.c.l.b16 %v4359
        %v4456 = vunpack.c.l.b16 %v4360
        %v4457 = vpack.c.b16 %v4410, %v4409
        %v4458 = vpack.c.b16 %v4412, %v4411
        %v4459 = vpack.c.b16 %v4414, %v4413
        %v4460 = vpack.c.b16 %v4416, %v4415
        %v4461 = vpack.c.b16 %v4418, %v4417
        %v4462 = vpack.c.b16 %v4420, %v4419
        %v4463 = vpack.c.b16 %v4422, %v4421
        %v4464 = vpack.c.b16 %v4424, %v4423
        %v4465 = vpack.c.b16 %v4426, %v4425
        %v4466 = vpack.c.b16 %v4428, %v4427
        %v4467 = vpack.c.b16 %v4430, %v4429
        %v4468 = vpack.c.b16 %v4432, %v4431
        %v4469 = vpack.c.b16 %v4434, %v4433
        %v4470 = vpack.c.b16 %v4436, %v4435
        %v4471 = vpack.c.b16 %v4438, %v4437
        %v4472 = vpack.c.b16 %v4440, %v4439
        %v4473 = vpack.c.b16 %v4442, %v4441
        %v4474 = vpack.c.b16 %v4444, %v4443
        %v4475 = vpack.c.b16 %v4446, %v4445
        %v4476 = vpack.c.b16 %v4448, %v4447
        %v4477 = vpack.c.b16 %v4450, %v4449
        %v4478 = vpack.c.b16 %v4452, %v4451
        %v4479 = vpack.c.b16 %v4454, %v4453
        %v4480 = vpack.c.b16 %v4456, %v4455
        %4505 = vmatpush.bf16.msra.mxu0 %v4464
        %4506 = vmatpush.bf16.msra.mxu0 %v4463
        %4507 = vmatpush.bf16.msra.mxu0 %v4462
        %4508 = vmatpush.bf16.msra.mxu0 %v4461
        %4509 = vmatpush.bf16.msra.mxu0 %v4460
        %4510 = vmatpush.bf16.msra.mxu0 %v4459
        %4511 = vmatpush.bf16.msra.mxu0 %v4458
        %4512 = vmatpush.bf16.msra.mxu0 %v4457
        %4513 = vmatmul.bf16.gmra.mxu0 %v4011
        %v4514 = vpop.f32.mrf.mxu0
        %v4515 = vadd.f32 0.0, %v4514
        %v4516 = vpop.f32.mrf.mxu0
        %v4517 = vadd.f32 0.0, %v4516
        %4518 = vmatmul.bf16.gmra.mxu0 %v4047
        %v4519 = vpop.f32.mrf.mxu0
        %v4520 = vadd.f32 0.0, %v4519
        %v4521 = vpop.f32.mrf.mxu0
        %v4522 = vadd.f32 0.0, %v4521
        %4523 = vmatmul.bf16.gmra.mxu0 %v4083
        %v4524 = vpop.f32.mrf.mxu0
        %v4525 = vadd.f32 0.0, %v4524
        %v4526 = vpop.f32.mrf.mxu0
        %v4527 = vadd.f32 0.0, %v4526
        %4528 = vmatmul.bf16.gmra.mxu0 %v4119
        %v4529 = vpop.f32.mrf.mxu0
        %v4530 = vadd.f32 0.0, %v4529
        %v4531 = vpop.f32.mrf.mxu0
        %v4532 = vadd.f32 0.0, %v4531
        %4533 = vmatmul.bf16.gmra.mxu0 %v4155
        %v4534 = vpop.f32.mrf.mxu0
        %v4535 = vadd.f32 0.0, %v4534
        %v4536 = vpop.f32.mrf.mxu0
        %v4537 = vadd.f32 0.0, %v4536
        %4538 = vmatmul.bf16.gmra.mxu0 %v4191
        %v4539 = vpop.f32.mrf.mxu0
        %v4540 = vadd.f32 0.0, %v4539
        %v4541 = vpop.f32.mrf.mxu0
        %v4542 = vadd.f32 0.0, %v4541
        %4543 = vmatmul.bf16.gmra.mxu0 %v4227
        %v4544 = vpop.f32.mrf.mxu0
        %v4545 = vadd.f32 0.0, %v4544
        %v4546 = vpop.f32.mrf.mxu0
        %v4547 = vadd.f32 0.0, %v4546
        %4548 = vmatmul.bf16.gmra.mxu0 %v4263
        %v4549 = vpop.f32.mrf.mxu0
        %v4550 = vadd.f32 0.0, %v4549
        %v4551 = vpop.f32.mrf.mxu0
        %v4552 = vadd.f32 0.0, %v4551
        %4553 = vdwg.mxu0
        %4554 = vmatpush.bf16.msra.mxu0 %v4472
        %4555 = vmatpush.bf16.msra.mxu0 %v4471
        %4556 = vmatpush.bf16.msra.mxu0 %v4470
        %4557 = vmatpush.bf16.msra.mxu0 %v4469
        %4558 = vmatpush.bf16.msra.mxu0 %v4468
        %4559 = vmatpush.bf16.msra.mxu0 %v4467
        %4560 = vmatpush.bf16.msra.mxu0 %v4466
        %4561 = vmatpush.bf16.msra.mxu0 %v4465
        %4562 = vmatmul.bf16.gmra.mxu0 %v4023
        %v4563 = vpop.f32.mrf.mxu0
        %v4564 = vadd.f32 %v4515, %v4563
        %v4565 = vpop.f32.mrf.mxu0
        %v4566 = vadd.f32 %v4517, %v4565
        %4567 = vmatmul.bf16.gmra.mxu0 %v4059
        %v4568 = vpop.f32.mrf.mxu0
        %v4569 = vadd.f32 %v4520, %v4568
        %v4570 = vpop.f32.mrf.mxu0
        %v4571 = vadd.f32 %v4522, %v4570
        %4572 = vmatmul.bf16.gmra.mxu0 %v4095
        %v4573 = vpop.f32.mrf.mxu0
        %v4574 = vadd.f32 %v4525, %v4573
        %v4575 = vpop.f32.mrf.mxu0
        %v4576 = vadd.f32 %v4527, %v4575
        %4577 = vmatmul.bf16.gmra.mxu0 %v4131
        %v4578 = vpop.f32.mrf.mxu0
        %v4579 = vadd.f32 %v4530, %v4578
        %v4580 = vpop.f32.mrf.mxu0
        %v4581 = vadd.f32 %v4532, %v4580
        %4582 = vmatmul.bf16.gmra.mxu0 %v4167
        %v4583 = vpop.f32.mrf.mxu0
        %v4584 = vadd.f32 %v4535, %v4583
        %v4585 = vpop.f32.mrf.mxu0
        %v4586 = vadd.f32 %v4537, %v4585
        %4587 = vmatmul.bf16.gmra.mxu0 %v4203
        %v4588 = vpop.f32.mrf.mxu0
        %v4589 = vadd.f32 %v4540, %v4588
        %v4590 = vpop.f32.mrf.mxu0
        %v4591 = vadd.f32 %v4542, %v4590
        %4592 = vmatmul.bf16.gmra.mxu0 %v4239
        %v4593 = vpop.f32.mrf.mxu0
        %v4594 = vadd.f32 %v4545, %v4593
        %v4595 = vpop.f32.mrf.mxu0
        %v4596 = vadd.f32 %v4547, %v4595
        %4597 = vmatmul.bf16.gmra.mxu0 %v4275
        %v4598 = vpop.f32.mrf.mxu0
        %v4599 = vadd.f32 %v4550, %v4598
        %v4600 = vpop.f32.mrf.mxu0
        %v4601 = vadd.f32 %v4552, %v4600
        %4602 = vdwg.mxu0
        %4603 = vmatpush.bf16.msra.mxu0 %v4480
        %4604 = vmatpush.bf16.msra.mxu0 %v4479
        %4605 = vmatpush.bf16.msra.mxu0 %v4478
        %4606 = vmatpush.bf16.msra.mxu0 %v4477
        %4607 = vmatpush.bf16.msra.mxu0 %v4476
        %4608 = vmatpush.bf16.msra.mxu0 %v4475
        %4609 = vmatpush.bf16.msra.mxu0 %v4474
        %4610 = vmatpush.bf16.msra.mxu0 %v4473
        %4611 = vmatmul.bf16.gmra.mxu0 %v4035
        %v4612 = vpop.f32.mrf.mxu0
        %v4613 = vadd.f32 %v4564, %v4612
        %v4614 = vpop.f32.mrf.mxu0
        %v4615 = vadd.f32 %v4566, %v4614
        %4616 = vmatmul.bf16.gmra.mxu0 %v4071
        %v4617 = vpop.f32.mrf.mxu0
        %v4618 = vadd.f32 %v4569, %v4617
        %v4619 = vpop.f32.mrf.mxu0
        %v4620 = vadd.f32 %v4571, %v4619
        %4621 = vmatmul.bf16.gmra.mxu0 %v4107
        %v4622 = vpop.f32.mrf.mxu0
        %v4623 = vadd.f32 %v4574, %v4622
        %v4624 = vpop.f32.mrf.mxu0
        %v4625 = vadd.f32 %v4576, %v4624
        %4626 = vmatmul.bf16.gmra.mxu0 %v4143
        %v4627 = vpop.f32.mrf.mxu0
        %v4628 = vadd.f32 %v4579, %v4627
        %v4629 = vpop.f32.mrf.mxu0
        %v4630 = vadd.f32 %v4581, %v4629
        %4631 = vmatmul.bf16.gmra.mxu0 %v4179
        %v4632 = vpop.f32.mrf.mxu0
        %v4633 = vadd.f32 %v4584, %v4632
        %v4634 = vpop.f32.mrf.mxu0
        %v4635 = vadd.f32 %v4586, %v4634
        %4636 = vmatmul.bf16.gmra.mxu0 %v4215
        %v4637 = vpop.f32.mrf.mxu0
        %v4638 = vadd.f32 %v4589, %v4637
        %v4639 = vpop.f32.mrf.mxu0
        %v4640 = vadd.f32 %v4591, %v4639
        %4641 = vmatmul.bf16.gmra.mxu0 %v4251
        %v4642 = vpop.f32.mrf.mxu0
        %v4643 = vadd.f32 %v4594, %v4642
        %v4644 = vpop.f32.mrf.mxu0
        %v4645 = vadd.f32 %v4596, %v4644
        %4646 = vmatmul.bf16.gmra.mxu0 %v4287
        %v4647 = vpop.f32.mrf.mxu0
        %v4648 = vadd.f32 %v4599, %v4647
        %v4649 = vpop.f32.mrf.mxu0
        %v4650 = vadd.f32 %v4601, %v4649
        %4651 = vdwg.mxu0
        %v4652 = vadd.f32 %v3697, %v4613
        %v4653 = vadd.f32 %v3699, %v4615
        %v4654 = vadd.f32 %v3702, %v4618
        %v4655 = vadd.f32 %v3704, %v4620
        %v4656 = vadd.f32 %v3707, %v4623
        %v4657 = vadd.f32 %v3709, %v4625
        %v4658 = vadd.f32 %v3712, %v4628
        %v4659 = vadd.f32 %v3714, %v4630
        %v4660 = vadd.f32 %v3717, %v4633
        %v4661 = vadd.f32 %v3719, %v4635
        %v4662 = vadd.f32 %v3722, %v4638
        %v4663 = vadd.f32 %v3724, %v4640
        %v4664 = vadd.f32 %v3727, %v4643
        %v4665 = vadd.f32 %v3729, %v4645
        %v4666 = vadd.f32 %v3732, %v4648
        %v4667 = vadd.f32 %v3734, %v4650
        %v4668 = vld [vmem:[%s5] sm:$0x1]
        %v4670 = vperm.slane %v4668, 0
        %v4672 = vmul.f32 %v4652, %v4670
        %v4673 = vmul.f32 %v4653, %v4670
        %v4674 = vmul.f32 %v4654, %v4670
        %v4675 = vmul.f32 %v4655, %v4670
        %v4676 = vmul.f32 %v4656, %v4670
        %v4677 = vmul.f32 %v4657, %v4670
        %v4678 = vmul.f32 %v4658, %v4670
        %v4679 = vmul.f32 %v4659, %v4670
        %v4680 = vmul.f32 %v4660, %v4670
        %v4681 = vmul.f32 %v4661, %v4670
        %v4682 = vmul.f32 %v4662, %v4670
        %v4683 = vmul.f32 %v4663, %v4670
        %v4684 = vmul.f32 %v4664, %v4670
        %v4685 = vmul.f32 %v4665, %v4670
        %v4686 = vmul.f32 %v4666, %v4670
        %v4687 = vmul.f32 %v4667, %v4670
        %v4688 = vld [vmem:[%s6] sm:$0x1]
        %v4690 = vperm.slane %v4688, 0
        %v4692 = vadd.f32 %v4672, %v4690
        %v4693 = vadd.f32 %v4673, %v4690
        %v4694 = vadd.f32 %v4674, %v4690
        %v4695 = vadd.f32 %v4675, %v4690
        %v4696 = vadd.f32 %v4676, %v4690
        %v4697 = vadd.f32 %v4677, %v4690
        %v4698 = vadd.f32 %v4678, %v4690
        %v4699 = vadd.f32 %v4679, %v4690
        %v4700 = vadd.f32 %v4680, %v4690
        %v4701 = vadd.f32 %v4681, %v4690
        %v4702 = vadd.f32 %v4682, %v4690
        %v4703 = vadd.f32 %v4683, %v4690
        %v4704 = vadd.f32 %v4684, %v4690
        %v4705 = vadd.f32 %v4685, %v4690
        %v4706 = vadd.f32 %v4686, %v4690
        %v4707 = vadd.f32 %v4687, %v4690
        %v4708 = vmax.f32 %v4692, 0.0
        %v4709 = vmax.f32 %v4693, 0.0
        %v4710 = vmax.f32 %v4694, 0.0
        %v4711 = vmax.f32 %v4695, 0.0
        %v4712 = vmax.f32 %v4696, 0.0
        %v4713 = vmax.f32 %v4697, 0.0
        %v4714 = vmax.f32 %v4698, 0.0
        %v4715 = vmax.f32 %v4699, 0.0
        %v4716 = vmax.f32 %v4700, 0.0
        %v4717 = vmax.f32 %v4701, 0.0
        %v4718 = vmax.f32 %v4702, 0.0
        %v4719 = vmax.f32 %v4703, 0.0
        %v4720 = vmax.f32 %v4704, 0.0
        %v4721 = vmax.f32 %v4705, 0.0
        %v4722 = vmax.f32 %v4706, 0.0
        %v4723 = vmax.f32 %v4707, 0.0
        %v4724 = vpack.c.bf16 %v4708, %v4708
        %v4725 = vpack.c.bf16 %v4709, %v4709
        %v4726 = vpack.c.bf16 %v4710, %v4710
        %v4727 = vpack.c.bf16 %v4711, %v4711
        %v4728 = vpack.c.bf16 %v4712, %v4712
        %v4729 = vpack.c.bf16 %v4713, %v4713
        %v4730 = vpack.c.bf16 %v4714, %v4714
        %v4731 = vpack.c.bf16 %v4715, %v4715
        %v4732 = vpack.c.bf16 %v4716, %v4716
        %v4733 = vpack.c.bf16 %v4717, %v4717
        %v4734 = vpack.c.bf16 %v4718, %v4718
        %v4735 = vpack.c.bf16 %v4719, %v4719
        %v4736 = vpack.c.bf16 %v4720, %v4720
        %v4737 = vpack.c.bf16 %v4721, %v4721
        %v4738 = vpack.c.bf16 %v4722, %v4722
        %v4739 = vpack.c.bf16 %v4723, %v4723
        %4740 = vst [vmem:[%s302] sm:$0xf] %v4724
        %4741 = vst [vmem:[%s302 + $0x4] sm:$0xf] %v4725
        %4742 = vst [vmem:[%s302 + $0x8] sm:$0xf] %v4726
        %4743 = vst [vmem:[%s302 + $0xc] sm:$0xf] %v4727
        %4744 = vst [vmem:[%s302 + $0x10] sm:$0xf] %v4728
        %4745 = vst [vmem:[%s302 + $0x14] sm:$0xf] %v4729
        %4746 = vst [vmem:[%s302 + $0x18] sm:$0xf] %v4730
        %4747 = vst [vmem:[%s302 + $0x1c] sm:$0xf] %v4731
        %4748 = vst [vmem:[%s302 + $0x20] sm:$0xf] %v4732
        %4749 = vst [vmem:[%s302 + $0x24] sm:$0xf] %v4733
        %4750 = vst [vmem:[%s302 + $0x28] sm:$0xf] %v4734
        %4751 = vst [vmem:[%s302 + $0x2c] sm:$0xf] %v4735
        %4752 = vst [vmem:[%s302 + $0x30] sm:$0xf] %v4736
        %4753 = vst [vmem:[%s302 + $0x34] sm:$0xf] %v4737
        %4754 = vst [vmem:[%s302 + $0x38] sm:$0xf] %v4738
        %4755 = vst [vmem:[%s302 + $0x3c] sm:$0xf] %v4739
        %s4756 = sand.u32 %s196, 1
        %s4757 = scalar_lea.sflag [#allocation6], %s4756
        %s4758 = sand.u32 %s196, 1
        %s4759 = smul.addr %s4758, 64
        %s4760 = scalar_lea.vmem [#allocation7], %s4759
        // Predicated region
        $region77: #{tpu_custom_call.1} parent=47 // pred_check
          %p4761 = pneg %p206
        $region78: #{tpu_custom_call.1} parent=47 // pred_check_branch
          %4763 = sbr.rel (%p4761) target = $region80
        $region79: #{tpu_custom_call.1} parent=47 // pred_region
          %s4764 = smul.u32 8, %s27
          %4766 = vsyncadd %s4757, 0
          %s4767 = smul.addr %s4764, 2
          %s4768 = smul.addr %s26, 32
          %s4769 = sadd.s32 %s4767, %s4768
          %s4770 = smul.addr %s4769, 4
          %s4771 = scalar_lea.hbm %s7, %s4770
          %s4772 = sshll.u32 %s4760, 4
          %s4773 = int_to_ptr.vmem [resolvable:$true] %s4772
          %s4774 = sshll.u32 %s4771, 4
          %s4775 = int_to_ptr.hbm [resolvable:$true] %s4774
          %4780 = dma.vmem_to_hbm [thread:$0]  %s4773, 1024, %s4775, %s4757, 64, 64, 4
        $region80: #{tpu_custom_call.1} parent=47 // pred_fallthru
          _
      $region48: #{tpu_custom_call.1} parent=5 // pred_fallthru
        _
      %p4781 = scmp.le.s32.totalorder 2, %s17
      // Predicated region
      $region81: #{tpu_custom_call.1} parent=5 // pred_check
        %p4782 = pneg %p4781
      $region82: #{tpu_custom_call.1} parent=5 // pred_check_branch
        %4784 = sbr.rel (%p4782) target = $region84
      $region83: #{tpu_custom_call.1} parent=5 // pred_region
        %s4785 = ssub.s32 %s17, 2
        // Predicated region
        $region85: #{tpu_custom_call.1} parent=83 // pred_check
          %p4786 = pneg %p212
        $region86: #{tpu_custom_call.1} parent=83 // pred_check_branch
          %4788 = sbr.rel (%p4786) target = $region88
        $region87: #{tpu_custom_call.1} parent=83 // pred_region
          %s4789 = sand.u32 %s197, 1
          %s4790 = scalar_lea.sflag [#allocation6], %s4789
          %s4791 = sand.u32 %s197, 1
          %s4792 = smul.addr %s4791, 64
          %s4793 = scalar_lea.vmem [#allocation7], %s4792
          %4795 = dma.done %s4790, 1024
        $region88: #{tpu_custom_call.1} parent=83 // pred_fallthru
          _
      $region84: #{tpu_custom_call.1} parent=5 // pred_fallthru
        _
    $region6: #{tpu_custom_call.1} parent=1 // loop_footer
      %s21 = sadd.s32 1, %s17
    $region7: #{tpu_custom_call.1} parent=1 // loop_footer_branch
      %16 = sbr.rel target = $region3
    $region8: #{tpu_custom_call.1} parent=1 // loop_exit
      _
    %4796 = vsyncpa [#allocation5], 1
    %s4797 = scalar_lea.sflag [#allocation5], 1
    %4798 = vsyncpa %s4797, 1
    %4799 = vsyncpa [#allocation6], 1
    %s4800 = scalar_lea.sflag [#allocation6], 1
    %4801 = vsyncpa %s4800, 1

// kernel: tpu_custom_call.1
$region0: #{tpu_custom_call.1}
  #allocation0 [shape = 'u32[]', space=smem, size = 0x4, offset = 0x4, fixed_abs, tag = 'smem constant byte address 0x4 - core index']
  #allocation1 [shape = 'u32[72,128]{1,0:T(1,128)}', space=vmem, size = 0x9000, scoped, tag = 'internal scratch']
  #allocation2 [shape = 'bf16[12,48,4]{2,1,0:T(8,128)(2,1)}', space=vmem, size = 0x24000, scoped, tag = 'scratch operand']
  #allocation3 [shape = 'bf16[10,48,128]{2,1,0:T(8,128)(2,1)}', space=vmem, size = 0x1e000, scoped, tag = 'scratch operand']
  %s0 = inlined_call_operand.vmem [shape: bf16[2,16,16,4], index: 0, kind: input, shape index: {}]
  %s1 = inlined_call_operand.vmem [shape: bf16[3,12,128], index: 1, kind: input, shape index: {}]
  %s2 = inlined_call_operand.vmem [shape: f32[1,128], index: 2, kind: input, shape index: {}]
  %s3 = inlined_call_operand.vmem [shape: f32[1,128], index: 3, kind: input, shape index: {}]
  %s4 = inlined_call_operand.hbm [shape: bf16[3,384,128], index: 4, kind: input, shape index: {}]
  %s5 = inlined_call_operand.vmem [shape: f32[1,128], index: 5, kind: input, shape index: {}]
  %s6 = inlined_call_operand.vmem [shape: f32[1,128], index: 6, kind: input, shape index: {}]
  %s7 = inlined_call_operand.hbm [shape: bf16[2,16,16,128], index: 7, kind: output, shape index: {}]
  %s8 = sld [smem:[#allocation0]]
  $region89: #{tpu_custom_call.1} parent=0
    _
  %s10 = ssub.s32 1, %s8
  %s11 = scalar_select 0, %s10, %s8
  $region1: #{tpu_custom_call.1} parent=0
    #allocation4 [shape = 'u8[294912]{0}', space=vmem, size = 0x48000, scoped, tag = 'input window, operand 4, single buffered']
    #allocation5 [shape = 's32[2]{0}', space=sflag, size = 0x8, scoped, tag = 'scoped memory for tpu_custom_call.1']
    #allocation6 [shape = 's32[2]{0}', space=sflag, size = 0x8, scoped, tag = 'scoped memory for tpu_custom_call.1']
    #allocation7 [shape = 'u8[65536]{0}', space=vmem, size = 0x10000, scoped, tag = 'output window, operand 0']
    %12 = vsyncpa [#allocation5], 0
    %13 = vsyncpa [#allocation6], 0
    %s14 = scalar_lea.sflag [#allocation6], 1
    %15 = vsyncpa %s14, 0
    loop: start=0, step=1, limit=6
    $region2: #{tpu_custom_call.1} parent=1 // loop_pre_header
      _
    $region3: #{tpu_custom_call.1} parent=1 // loop_header
      %s17 = sphi 0, %s21
      %p18 = scmp.ge.s32.totalorder %s17, 6
      %s24 = sphi 0, %s36
      %s25 = sphi 0, %s32
      %s26 = sphi 0, %s24
      %s27 = sphi 0, %s25
      %s28 = sphi 0, %s26
      %s29 = sphi 0, %s27
      %s39 = sphi 0, %s41
      %s42 = sphi 0, %s39
      %s43 = sphi 0, %s42
      %s59 = sphi 0, %s43
      %s63 = sphi 0, %s63
      %s65 = sphi 0, %s63
      %s66 = sphi 0, %s65
      %s80 = sphi 0, %s66
      %s84 = sphi 0, %s84
      %s86 = sphi 0, %s84
      %s87 = sphi 0, %s86
      %s101 = sphi 0, %s87
      %s105 = sphi 0, %s105
      %s107 = sphi 0, %s105
      %s108 = sphi 0, %s107
      %s122 = sphi 0, %s108
      %s126 = sphi 0, %s126
      %s128 = sphi 0, %s126
      %s129 = sphi 0, %s128
      %s143 = sphi 0, %s129
      %s147 = sphi 0, %s147
      %s149 = sphi 0, %s147
      %s150 = sphi 0, %s149
      %s164 = sphi 0, %s150
      %s168 = sphi 0, %s168
      %s170 = sphi 0, %s168
      %s171 = sphi 0, %s170
      %s185 = sphi 0, %s171
      %s193 = sphi 0, %s195
      %s196 = sphi 0, %s193
      %s197 = sphi 0, %s196
      %s213 = sphi 0, %s197
    $region4: #{tpu_custom_call.1} parent=1 // loop_header_branch
      %20 = sbr.rel (%p18) target = $region8
    $region5: #{tpu_custom_call.1} parent=1 // loop_body
      %s22 = ssub.s32 %s17, 1
      %s23 = ssub.s32 %s17, 2
      %s30 = sadd.s32 1, %s25
      %p31 = scmp.ge.s32.totalorder %s30, 2
      %s32 = scalar_select %p31, 0, %s30
      %s33 = sadd.s32 1, %s24
      %s34 = scalar_select %p31, %s33, %s24
      %p35 = scmp.ge.s32.totalorder %s34, 2
      %s36 = scalar_select %p35, 0, %s34
      %s37 = ssub.s32 %s24, %s36
      %p38 = scmp.eq.s32.totalorder %s37, 0
      %s40 = sadd.s32 %s39, 1
      %s41 = scalar_select %p38, %s39, %s40
      %p44 = pneg %p38
      %p45 = scmp.eq.s32.totalorder %s17, 3
      %p46 = por %p44, %p45
      %p47 = scmp.ne.s32.totalorder %s39, %s42
      %p48 = scmp.eq.s32.totalorder %s17, 0
      %p49 = por %p47, %p48
      %p50 = scmp.ne.s32.totalorder %s39, %s42
      %p51 = scmp.eq.s32.totalorder %s22, 3
      %p52 = por %p50, %p51
      %p53 = scmp.ne.s32.totalorder %s42, %s43
      %p54 = scmp.eq.s32.totalorder %s22, 0
      %p55 = por %p53, %p54
      %p56 = scmp.ne.s32.totalorder %s42, %s43
      %p57 = scmp.eq.s32.totalorder %s23, 3
      %p58 = por %p56, %p57
      %p60 = scmp.ne.s32.totalorder %s43, %s59
      %p61 = scmp.eq.s32.totalorder %s23, 0
      %p62 = por %p60, %p61
      %s64 = sadd.s32 %s63, 1
      %p67 = scmp.eq.s32.totalorder %s17, 3
      %p68 = scmp.ne.s32.totalorder %s63, %s65
      %p69 = scmp.eq.s32.totalorder %s17, 0
      %p70 = por %p68, %p69
      %p71 = scmp.ne.s32.totalorder %s63, %s65
      %p72 = scmp.eq.s32.totalorder %s22, 3
      %p73 = por %p71, %p72
      %p74 = scmp.ne.s32.totalorder %s65, %s66
      %p75 = scmp.eq.s32.totalorder %s22, 0
      %p76 = por %p74, %p75
      %p77 = scmp.ne.s32.totalorder %s65, %s66
      %p78 = scmp.eq.s32.totalorder %s23, 3
      %p79 = por %p77, %p78
      %p81 = scmp.ne.s32.totalorder %s66, %s80
      %p82 = scmp.eq.s32.totalorder %s23, 0
      %p83 = por %p81, %p82
      %s85 = sadd.s32 %s84, 1
      %p88 = scmp.eq.s32.totalorder %s17, 3
      %p89 = scmp.ne.s32.totalorder %s84, %s86
      %p90 = scmp.eq.s32.totalorder %s17, 0
      %p91 = por %p89, %p90
      %p92 = scmp.ne.s32.totalorder %s84, %s86
      %p93 = scmp.eq.s32.totalorder %s22, 3
      %p94 = por %p92, %p93
      %p95 = scmp.ne.s32.totalorder %s86, %s87
      %p96 = scmp.eq.s32.totalorder %s22, 0
      %p97 = por %p95, %p96
      %p98 = scmp.ne.s32.totalorder %s86, %s87
      %p99 = scmp.eq.s32.totalorder %s23, 3
      %p100 = por %p98, %p99
      %p102 = scmp.ne.s32.totalorder %s87, %s101
      %p103 = scmp.eq.s32.totalorder %s23, 0
      %p104 = por %p102, %p103
      %s106 = sadd.s32 %s105, 1
      %p109 = scmp.eq.s32.totalorder %s17, 3
      %p110 = scmp.ne.s32.totalorder %s105, %s107
      %p111 = scmp.eq.s32.totalorder %s17, 0
      %p112 = por %p110, %p111
      %p113 = scmp.ne.s32.totalorder %s105, %s107
      %p114 = scmp.eq.s32.totalorder %s22, 3
      %p115 = por %p113, %p114
      %p116 = scmp.ne.s32.totalorder %s107, %s108
      %p117 = scmp.eq.s32.totalorder %s22, 0
      %p118 = por %p116, %p117
      %p119 = scmp.ne.s32.totalorder %s107, %s108
      %p120 = scmp.eq.s32.totalorder %s23, 3
      %p121 = por %p119, %p120
      %p123 = scmp.ne.s32.totalorder %s108, %s122
      %p124 = scmp.eq.s32.totalorder %s23, 0
      %p125 = por %p123, %p124
      %s127 = sadd.s32 %s126, 1
      %p130 = scmp.eq.s32.totalorder %s17, 3
      %p131 = scmp.ne.s32.totalorder %s126, %s128
      %p132 = scmp.eq.s32.totalorder %s17, 0
      %p133 = por %p131, %p132
      %p134 = scmp.ne.s32.totalorder %s126, %s128
      %p135 = scmp.eq.s32.totalorder %s22, 3
      %p136 = por %p134, %p135
      %p137 = scmp.ne.s32.totalorder %s128, %s129
      %p138 = scmp.eq.s32.totalorder %s22, 0
      %p139 = por %p137, %p138
      %p140 = scmp.ne.s32.totalorder %s128, %s129
      %p141 = scmp.eq.s32.totalorder %s23, 3
      %p142 = por %p140, %p141
      %p144 = scmp.ne.s32.totalorder %s129, %s143
      %p145 = scmp.eq.s32.totalorder %s23, 0
      %p146 = por %p144, %p145
      %s148 = sadd.s32 %s147, 1
      %p151 = scmp.eq.s32.totalorder %s17, 3
      %p152 = scmp.ne.s32.totalorder %s147, %s149
      %p153 = scmp.eq.s32.totalorder %s17, 0
      %p154 = por %p152, %p153
      %p155 = scmp.ne.s32.totalorder %s147, %s149
      %p156 = scmp.eq.s32.totalorder %s22, 3
      %p157 = por %p155, %p156
      %p158 = scmp.ne.s32.totalorder %s149, %s150
      %p159 = scmp.eq.s32.totalorder %s22, 0
      %p160 = por %p158, %p159
      %p161 = scmp.ne.s32.totalorder %s149, %s150
      %p162 = scmp.eq.s32.totalorder %s23, 3
      %p163 = por %p161, %p162
      %p165 = scmp.ne.s32.totalorder %s150, %s164
      %p166 = scmp.eq.s32.totalorder %s23, 0
      %p167 = por %p165, %p166
      %s169 = sadd.s32 %s168, 1
      %p172 = scmp.eq.s32.totalorder %s17, 3
      %p173 = scmp.ne.s32.totalorder %s168, %s170
      %p174 = scmp.eq.s32.totalorder %s17, 0
      %p175 = por %p173, %p174
      %p176 = scmp.ne.s32.totalorder %s168, %s170
      %p177 = scmp.eq.s32.totalorder %s22, 3
      %p178 = por %p176, %p177
      %p179 = scmp.ne.s32.totalorder %s170, %s171
      %p180 = scmp.eq.s32.totalorder %s22, 0
      %p181 = por %p179, %p180
      %p182 = scmp.ne.s32.totalorder %s170, %s171
      %p183 = scmp.eq.s32.totalorder %s23, 3
      %p184 = por %p182, %p183
      %p186 = scmp.ne.s32.totalorder %s171, %s185
      %p187 = scmp.eq.s32.totalorder %s23, 0
      %p188 = por %p186, %p187
      %s189 = ssub.s32 %s24, %s36
      %s190 = ssub.s32 %s25, %s32
      %s191 = sor.u32 %s189, %s190
      %p192 = scmp.eq.s32.totalorder %s191, 0
      %s194 = sadd.s32 %s193, 1
      %s195 = scalar_select %p192, %s193, %s194
      %p198 = pneg %p192
      %p199 = scmp.eq.s32.totalorder %s17, 3
      %p200 = por %p198, %p199
      %p201 = scmp.ne.s32.totalorder %s193, %s196
      %p202 = scmp.eq.s32.totalorder %s17, 0
      %p203 = por %p201, %p202
      %p204 = scmp.ne.s32.totalorder %s193, %s196
      %p205 = scmp.eq.s32.totalorder %s22, 3
      %p206 = por %p204, %p205
      %p207 = scmp.ne.s32.totalorder %s196, %s197
      %p208 = scmp.eq.s32.totalorder %s22, 0
      %p209 = por %p207, %p208
      %p210 = scmp.ne.s32.totalorder %s196, %s197
      %p211 = scmp.eq.s32.totalorder %s23, 3
      %p212 = por %p210, %p211
      %p214 = scmp.ne.s32.totalorder %s197, %s213
      %p215 = scmp.eq.s32.totalorder %s23, 0
      %p216 = por %p214, %p215
      %p217 = scmp.le.s32.totalorder 1, %s17
      %p218 = scmp.lt.s32.totalorder %s17, 5
      %p219 = pnand %p217, %p218
      %p220 = pneg %p219
      // Predicated region
      $region9: #{tpu_custom_call.1} parent=5 // pred_check
        _
      $region10: #{tpu_custom_call.1} parent=5 // pred_check_branch
        %222 = sbr.rel (%p219) target = $region12
      $region11: #{tpu_custom_call.1} parent=5 // pred_region
        %s223 = ssub.s32 %s17, 1
        // Predicated region
        $region13: #{tpu_custom_call.1} parent=11 // pred_check
          %p224 = pneg %p76
        $region14: #{tpu_custom_call.1} parent=11 // pred_check_branch
          %226 = sbr.rel (%p224) target = $region16
        $region15: #{tpu_custom_call.1} parent=11 // pred_region
          _
        $region16: #{tpu_custom_call.1} parent=11 // pred_fallthru
          _
        // Predicated region
        $region17: #{tpu_custom_call.1} parent=11 // pred_check
          %p227 = pneg %p97
        $region18: #{tpu_custom_call.1} parent=11 // pred_check_branch
          %229 = sbr.rel (%p227) target = $region20
        $region19: #{tpu_custom_call.1} parent=11 // pred_region
          _
        $region20: #{tpu_custom_call.1} parent=11 // pred_fallthru
          _
        // Predicated region
        $region21: #{tpu_custom_call.1} parent=11 // pred_check
          %p230 = pneg %p118
        $region22: #{tpu_custom_call.1} parent=11 // pred_check_branch
          %232 = sbr.rel (%p230) target = $region24
        $region23: #{tpu_custom_call.1} parent=11 // pred_region
          _
        $region24: #{tpu_custom_call.1} parent=11 // pred_fallthru
          _
        // Predicated region
        $region25: #{tpu_custom_call.1} parent=11 // pred_check
          %p233 = pneg %p139
        $region26: #{tpu_custom_call.1} parent=11 // pred_check_branch
          %235 = sbr.rel (%p233) target = $region28
        $region27: #{tpu_custom_call.1} parent=11 // pred_region
          %237 = vsyncadd [#allocation5], 0
          %s238 = sshll.u32 %s4, 4
          %s239 = int_to_ptr.hbm [resolvable:$true] %s238
          %s240 = sshll.u32 [#allocation4], 4
          %s241 = int_to_ptr.vmem [resolvable:$true] %s240
          %246 = dma.hbm_to_vmem [thread:$0]  %s239, 9216, %s241, [#allocation5], 64, 64, 4
        $region28: #{tpu_custom_call.1} parent=11 // pred_fallthru
          _
        // Predicated region
        $region29: #{tpu_custom_call.1} parent=11 // pred_check
          %p247 = pneg %p160
        $region30: #{tpu_custom_call.1} parent=11 // pred_check_branch
          %249 = sbr.rel (%p247) target = $region32
        $region31: #{tpu_custom_call.1} parent=11 // pred_region
          _
        $region32: #{tpu_custom_call.1} parent=11 // pred_fallthru
          _
        // Predicated region
        $region33: #{tpu_custom_call.1} parent=11 // pred_check
          %p250 = pneg %p181
        $region34: #{tpu_custom_call.1} parent=11 // pred_check_branch
          %252 = sbr.rel (%p250) target = $region36
        $region35: #{tpu_custom_call.1} parent=11 // pred_region
          _
        $region36: #{tpu_custom_call.1} parent=11 // pred_fallthru
          _
      $region12: #{tpu_custom_call.1} parent=5 // pred_fallthru
        _
      %p253 = scmp.lt.s32.totalorder %s17, 4
      // Predicated region
      $region37: #{tpu_custom_call.1} parent=5 // pred_check
        %p254 = pneg %p253
      $region38: #{tpu_custom_call.1} parent=5 // pred_check_branch
        %256 = sbr.rel (%p254) target = $region40
      $region39: #{tpu_custom_call.1} parent=5 // pred_region
        // Predicated region
        $region41: #{tpu_custom_call.1} parent=39 // pred_check
          %p257 = pneg %p49
        $region42: #{tpu_custom_call.1} parent=39 // pred_check_branch
          %259 = sbr.rel (%p257) target = $region44
        $region43: #{tpu_custom_call.1} parent=39 // pred_region
          %p260 = scmp.lt.s32.totalorder %s24, 1
          %s261 = scalar_select %p260, %s24, 1
          %s262 = smul.addr %s261, 32
          %s263 = smul.addr %s262, 4
          %s264 = scalar_lea.vmem %s0, %s263
        $region44: #{tpu_custom_call.1} parent=39 // pred_fallthru
          _
      $region40: #{tpu_custom_call.1} parent=5 // pred_fallthru
        _
      %p265 = scmp.le.s32.totalorder 1, %s17
      %p266 = scmp.lt.s32.totalorder %s17, 5
      %p267 = pnand %p265, %p266
      %p268 = pneg %p267
      // Predicated region
      $region45: #{tpu_custom_call.1} parent=5 // pred_check
        _
      $region46: #{tpu_custom_call.1} parent=5 // pred_check_branch
        %270 = sbr.rel (%p267) target = $region48
      $region47: #{tpu_custom_call.1} parent=5 // pred_region
        %s271 = ssub.s32 %s17, 1
        // Predicated region
        $region49: #{tpu_custom_call.1} parent=47 // pred_check
          %p272 = pneg %p139
        $region50: #{tpu_custom_call.1} parent=47 // pred_check_branch
          %274 = sbr.rel (%p272) target = $region52
        $region51: #{tpu_custom_call.1} parent=47 // pred_region
          %276 = dma.done [#allocation5], 9216
        $region52: #{tpu_custom_call.1} parent=47 // pred_fallthru
          _
        %p277 = scmp.lt.s32.totalorder %s26, 1
        %s278 = scalar_select %p277, %s26, 1
        %s279 = smul.addr %s278, 32
        %s280 = smul.addr %s279, 4
        %s281 = scalar_lea.vmem %s0, %s280
        %p282 = pneg %p55
        %p283 = pneg %p52
        %p284 = pneg %p76
        %p285 = pneg %p73
        %p286 = pneg %p97
        %p287 = pneg %p94
        %p288 = pneg %p118
        %p289 = pneg %p115
        %p290 = pneg %p139
        %p291 = pneg %p136
        %p292 = pneg %p160
        %p293 = pneg %p157
        %p294 = pneg %p181
        %p295 = pneg %p178
        %p296 = pneg %p209
        %p297 = pneg %p206
        %s298 = sand.u32 %s196, 1
        %s299 = scalar_lea.sflag [#allocation6], %s298
        %s300 = sand.u32 %s196, 1
        %s301 = smul.addr %s300, 64
        %s302 = scalar_lea.vmem [#allocation7], %s301
        %p303 = scmp.lt.s32.totalorder %s26, 1
        %s304 = scalar_select %p303, %s26, 1
        %s305 = smul.addr %s304, 32
        %s306 = smul.addr %s305, 4
        %s307 = scalar_lea.vmem %s0, %s306
        %s308 = smul.u32 8, %s27
        %s310 = smul.u32 %s27, 8
        %vm311 = vcmask 27648
        %312 = vst.msk [vmem:[#allocation2] sm:$0xf] %vm311, 0
        %313 = vst.msk [vmem:[#allocation2 + $0x4] sm:$0xf] %vm311, 0
        %314 = vst.msk [vmem:[#allocation2 + $0x18] sm:$0xf] %vm311, 0
        %315 = vst.msk [vmem:[#allocation2 + $0x1c] sm:$0xf] %vm311, 0
        %316 = vst.msk [vmem:[#allocation2 + $0x30] sm:$0xf] %vm311, 0
        %317 = vst.msk [vmem:[#allocation2 + $0x34] sm:$0xf] %vm311, 0
        %318 = vst.msk [vmem:[#allocation2 + $0x48] sm:$0xf] %vm311, 0
        %319 = vst.msk [vmem:[#allocation2 + $0x4c] sm:$0xf] %vm311, 0
        %320 = vst.msk [vmem:[#allocation2 + $0x60] sm:$0xf] %vm311, 0
        %321 = vst.msk [vmem:[#allocation2 + $0x64] sm:$0xf] %vm311, 0
        %322 = vst.msk [vmem:[#allocation2 + $0x78] sm:$0xf] %vm311, 0
        %323 = vst.msk [vmem:[#allocation2 + $0x7c] sm:$0xf] %vm311, 0
        %324 = vst.msk [vmem:[#allocation2 + $0x90] sm:$0xf] %vm311, 0
        %325 = vst.msk [vmem:[#allocation2 + $0x94] sm:$0xf] %vm311, 0
        %326 = vst.msk [vmem:[#allocation2 + $0xa8] sm:$0xf] %vm311, 0
        %327 = vst.msk [vmem:[#allocation2 + $0xac] sm:$0xf] %vm311, 0
        %328 = vst.msk [vmem:[#allocation2 + $0xc0] sm:$0xf] %vm311, 0
        %329 = vst.msk [vmem:[#allocation2 + $0xc4] sm:$0xf] %vm311, 0
        %330 = vst.msk [vmem:[#allocation2 + $0xd8] sm:$0xf] %vm311, 0
        %331 = vst.msk [vmem:[#allocation2 + $0xdc] sm:$0xf] %vm311, 0
        %332 = vst.msk [vmem:[#allocation2 + $0xf0] sm:$0xf] %vm311, 0
        %333 = vst.msk [vmem:[#allocation2 + $0xf4] sm:$0xf] %vm311, 0
        %334 = vst.msk [vmem:[#allocation2 + $0x108] sm:$0xf] %vm311, 0
        %335 = vst.msk [vmem:[#allocation2 + $0x10c] sm:$0xf] %vm311, 0
        %336 = vst.msk [vmem:[#allocation2 + $0x10] sm:$0xf] %vm311, 0
        %337 = vst.msk [vmem:[#allocation2 + $0x14] sm:$0xf] %vm311, 0
        %338 = vst.msk [vmem:[#allocation2 + $0x28] sm:$0xf] %vm311, 0
        %339 = vst.msk [vmem:[#allocation2 + $0x2c] sm:$0xf] %vm311, 0
        %340 = vst.msk [vmem:[#allocation2 + $0x40] sm:$0xf] %vm311, 0
        %341 = vst.msk [vmem:[#allocation2 + $0x44] sm:$0xf] %vm311, 0
        %342 = vst.msk [vmem:[#allocation2 + $0x58] sm:$0xf] %vm311, 0
        %343 = vst.msk [vmem:[#allocation2 + $0x5c] sm:$0xf] %vm311, 0
        %344 = vst.msk [vmem:[#allocation2 + $0x70] sm:$0xf] %vm311, 0
        %345 = vst.msk [vmem:[#allocation2 + $0x74] sm:$0xf] %vm311, 0
        %346 = vst.msk [vmem:[#allocation2 + $0x88] sm:$0xf] %vm311, 0
        %347 = vst.msk [vmem:[#allocation2 + $0x8c] sm:$0xf] %vm311, 0
        %348 = vst.msk [vmem:[#allocation2 + $0xa0] sm:$0xf] %vm311, 0
        %349 = vst.msk [vmem:[#allocation2 + $0xa4] sm:$0xf] %vm311, 0
        %350 = vst.msk [vmem:[#allocation2 + $0xb8] sm:$0xf] %vm311, 0
        %351 = vst.msk [vmem:[#allocation2 + $0xbc] sm:$0xf] %vm311, 0
        %352 = vst.msk [vmem:[#allocation2 + $0xd0] sm:$0xf] %vm311, 0
        %353 = vst.msk [vmem:[#allocation2 + $0xd4] sm:$0xf] %vm311, 0
        %354 = vst.msk [vmem:[#allocation2 + $0xe8] sm:$0xf] %vm311, 0
        %355 = vst.msk [vmem:[#allocation2 + $0xec] sm:$0xf] %vm311, 0
        %356 = vst.msk [vmem:[#allocation2 + $0x100] sm:$0xf] %vm311, 0
        %357 = vst.msk [vmem:[#allocation2 + $0x104] sm:$0xf] %vm311, 0
        %358 = vst.msk [vmem:[#allocation2 + $0x118] sm:$0xf] %vm311, 0
        %359 = vst.msk [vmem:[#allocation2 + $0x11c] sm:$0xf] %vm311, 0
        %s360 = smul.u32 %s310, 2
        %s361 = smul.addr %s360, 4
        %s362 = scalar_lea.vmem %s307, %s361
        %v363 = vld [vmem:[%s362] sm:$0xf]
        %v364 = vld [vmem:[%s362 + $0x4] sm:$0xf]
        %v365 = vld [vmem:[%s362 + $0x8] sm:$0xf]
        %v366 = vld [vmem:[%s362 + $0xc] sm:$0xf]
        %v367 = vld [vmem:[%s362 + $0x10] sm:$0xf]
        %v368 = vld [vmem:[%s362 + $0x14] sm:$0xf]
        %v369 = vld [vmem:[%s362 + $0x18] sm:$0xf]
        %v370 = vld [vmem:[%s362 + $0x1c] sm:$0xf]
        %v371 = vld [vmem:[%s362 + $0x20] sm:$0xf]
        %v372 = vld [vmem:[%s362 + $0x24] sm:$0xf]
        %v373 = vld [vmem:[%s362 + $0x28] sm:$0xf]
        %v374 = vld [vmem:[%s362 + $0x2c] sm:$0xf]
        %v375 = vld [vmem:[%s362 + $0x30] sm:$0xf]
        %v376 = vld [vmem:[%s362 + $0x34] sm:$0xf]
        %v377 = vld [vmem:[%s362 + $0x38] sm:$0xf]
        %v378 = vld [vmem:[%s362 + $0x3c] sm:$0xf]
        %s379 = scalar_lea.vmem [#allocation2], 48
        %380 = vst.msk [vmem:[%s379 + $0x8] sm:$0xf] %vm311, %v363
        %381 = vst.msk [vmem:[%s379 + $0xc] sm:$0xf] %vm311, %v364
        %382 = vst.msk [vmem:[%s379 + $0x20] sm:$0xf] %vm311, %v365
        %383 = vst.msk [vmem:[%s379 + $0x24] sm:$0xf] %vm311, %v366
        %384 = vst.msk [vmem:[%s379 + $0x38] sm:$0xf] %vm311, %v367
        %385 = vst.msk [vmem:[%s379 + $0x3c] sm:$0xf] %vm311, %v368
        %386 = vst.msk [vmem:[%s379 + $0x50] sm:$0xf] %vm311, %v369
        %387 = vst.msk [vmem:[%s379 + $0x54] sm:$0xf] %vm311, %v370
        %388 = vst.msk [vmem:[%s379 + $0x68] sm:$0xf] %vm311, %v371
        %389 = vst.msk [vmem:[%s379 + $0x6c] sm:$0xf] %vm311, %v372
        %390 = vst.msk [vmem:[%s379 + $0x80] sm:$0xf] %vm311, %v373
        %391 = vst.msk [vmem:[%s379 + $0x84] sm:$0xf] %vm311, %v374
        %392 = vst.msk [vmem:[%s379 + $0x98] sm:$0xf] %vm311, %v375
        %393 = vst.msk [vmem:[%s379 + $0x9c] sm:$0xf] %vm311, %v376
        %394 = vst.msk [vmem:[%s379 + $0xb0] sm:$0xf] %vm311, %v377
        %395 = vst.msk [vmem:[%s379 + $0xb4] sm:$0xf] %vm311, %v378
        %p396 = scmp.gt.s32.totalorder %s27, 0
        // Predicated region
        $region53: #{tpu_custom_call.1} parent=47 // pred_check
          %p397 = pneg %p396
        $region54: #{tpu_custom_call.1} parent=47 // pred_check_branch
          %399 = sbr.rel (%p397) target = $region56
        $region55: #{tpu_custom_call.1} parent=47 // pred_region
          %s400 = ssub.s32 %s310, 2
          %s401 = smul.u32 %s400, 2
          %s402 = smul.addr %s401, 4
          %s403 = scalar_lea.vmem %s307, %s402
          %v404 = vld [vmem:[%s403] sm:$0xf]
          %v405 = vld [vmem:[%s403 + $0x4] sm:$0xf]
          %v406 = vld [vmem:[%s403 + $0x8] sm:$0xf]
          %v407 = vld [vmem:[%s403 + $0xc] sm:$0xf]
          %408 = vst.msk [vmem:[#allocation2 + $0x8] sm:$0xf] %vm311, %v404
          %409 = vst.msk [vmem:[#allocation2 + $0xc] sm:$0xf] %vm311, %v405
          %410 = vst.msk [vmem:[#allocation2 + $0x20] sm:$0xf] %vm311, %v406
          %411 = vst.msk [vmem:[#allocation2 + $0x24] sm:$0xf] %vm311, %v407
        $region56: #{tpu_custom_call.1} parent=47 // pred_fallthru
          _
        %p412 = scmp.eq.s32.totalorder %s27, 0
        // Predicated region
        $region57: #{tpu_custom_call.1} parent=47 // pred_check
          %p413 = pneg %p412
        $region58: #{tpu_custom_call.1} parent=47 // pred_check_branch
          %415 = sbr.rel (%p413) target = $region60
        $region59: #{tpu_custom_call.1} parent=47 // pred_region
          %416 = vst.msk [vmem:[#allocation2 + $0x8] sm:$0xf] %vm311, 0
          %417 = vst.msk [vmem:[#allocation2 + $0xc] sm:$0xf] %vm311, 0
          %418 = vst.msk [vmem:[#allocation2 + $0x20] sm:$0xf] %vm311, 0
          %419 = vst.msk [vmem:[#allocation2 + $0x24] sm:$0xf] %vm311, 0
        $region60: #{tpu_custom_call.1} parent=47 // pred_fallthru
          _
        %p420 = scmp.lt.s32.totalorder %s27, 1
        // Predicated region
        $region61: #{tpu_custom_call.1} parent=47 // pred_check
          %p421 = pneg %p420
        $region62: #{tpu_custom_call.1} parent=47 // pred_check_branch
          %423 = sbr.rel (%p421) target = $region64
        $region63: #{tpu_custom_call.1} parent=47 // pred_region
          %s424 = sadd.s32 %s310, 8
          %s425 = smul.u32 %s424, 2
          %s426 = smul.addr %s425, 4
          %s427 = scalar_lea.vmem %s307, %s426
          %v428 = vld [vmem:[%s427] sm:$0xf]
          %v429 = vld [vmem:[%s427 + $0x4] sm:$0xf]
          %v430 = vld [vmem:[%s427 + $0x8] sm:$0xf]
          %v431 = vld [vmem:[%s427 + $0xc] sm:$0xf]
          %s432 = scalar_lea.vmem [#allocation2], 240
          %433 = vst.msk [vmem:[%s432 + $0x8] sm:$0xf] %vm311, %v428
          %434 = vst.msk [vmem:[%s432 + $0xc] sm:$0xf] %vm311, %v429
          %435 = vst.msk [vmem:[%s432 + $0x20] sm:$0xf] %vm311, %v430
          %436 = vst.msk [vmem:[%s432 + $0x24] sm:$0xf] %vm311, %v431
        $region64: #{tpu_custom_call.1} parent=47 // pred_fallthru
          _
        %p437 = scmp.eq.s32.totalorder %s27, 1
        // Predicated region
        $region65: #{tpu_custom_call.1} parent=47 // pred_check
          %p438 = pneg %p437
        $region66: #{tpu_custom_call.1} parent=47 // pred_check_branch
          %440 = sbr.rel (%p438) target = $region68
        $region67: #{tpu_custom_call.1} parent=47 // pred_region
          %s441 = scalar_lea.vmem [#allocation2], 240
          %442 = vst.msk [vmem:[%s441 + $0x8] sm:$0xf] %vm311, 0
          %443 = vst.msk [vmem:[%s441 + $0xc] sm:$0xf] %vm311, 0
          %444 = vst.msk [vmem:[%s441 + $0x20] sm:$0xf] %vm311, 0
          %445 = vst.msk [vmem:[%s441 + $0x24] sm:$0xf] %vm311, 0
        $region68: #{tpu_custom_call.1} parent=47 // pred_fallthru
          _
        %v446 = vld [vmem:[#allocation2 + $0x4] sm:$0x8]
        %v447 = vld [vmem:[#allocation2 + $0x8] sm:$0xf]
        %v448 = vld [vmem:[#allocation2 + $0xc] sm:$0xf]
        %v449 = vld [vmem:[#allocation2 + $0x1c] sm:$0x8]
        %v450 = vld [vmem:[#allocation2 + $0x20] sm:$0xf]
        %v451 = vld [vmem:[#allocation2 + $0x24] sm:$0xf]
        %v452 = vld [vmem:[#allocation2 + $0x34] sm:$0x8]
        %v453 = vld [vmem:[#allocation2 + $0x38] sm:$0xf]
        %v454 = vld [vmem:[#allocation2 + $0x3c] sm:$0xf]
        %v455 = vld [vmem:[#allocation2 + $0x4c] sm:$0x8]
        %v456 = vld [vmem:[#allocation2 + $0x50] sm:$0xf]
        %v457 = vld [vmem:[#allocation2 + $0x54] sm:$0xf]
        %v458 = vld [vmem:[#allocation2 + $0x64] sm:$0x8]
        %v459 = vld [vmem:[#allocation2 + $0x68] sm:$0xf]
        %v460 = vld [vmem:[#allocation2 + $0x6c] sm:$0xf]
        %v461 = vld [vmem:[#allocation2 + $0x7c] sm:$0x8]
        %v462 = vld [vmem:[#allocation2 + $0x80] sm:$0xf]
        %v463 = vld [vmem:[#allocation2 + $0x84] sm:$0xf]
        %v464 = vld [vmem:[#allocation2 + $0x94] sm:$0x8]
        %v465 = vld [vmem:[#allocation2 + $0x98] sm:$0xf]
        %v466 = vld [vmem:[#allocation2 + $0x9c] sm:$0xf]
        %v467 = vld [vmem:[#allocation2 + $0xac] sm:$0x8]
        %v468 = vld [vmem:[#allocation2 + $0xb0] sm:$0xf]
        %v469 = vld [vmem:[#allocation2 + $0xb4] sm:$0xf]
        %v470 = vld [vmem:[#allocation2 + $0xc4] sm:$0x8]
        %v471 = vld [vmem:[#allocation2 + $0xc8] sm:$0xf]
        %v472 = vld [vmem:[#allocation2 + $0xcc] sm:$0xf]
        %v473 = vld [vmem:[#allocation2 + $0xdc] sm:$0x8]
        %v474 = vld [vmem:[#allocation2 + $0xe0] sm:$0xf]
        %v475 = vld [vmem:[#allocation2 + $0xe4] sm:$0xf]
        %s476 = scalar_lea.vmem [#allocation2], 24
        %v477 = vld [vmem:[%s476 + $0x4] sm:$0x8]
        %v478 = vld [vmem:[%s476 + $0x8] sm:$0xf]
        %v479 = vld [vmem:[%s476 + $0xc] sm:$0xf]
        %v480 = vld [vmem:[%s476 + $0x1c] sm:$0x8]
        %v481 = vld [vmem:[%s476 + $0x20] sm:$0xf]
        %v482 = vld [vmem:[%s476 + $0x24] sm:$0xf]
        %v483 = vld [vmem:[%s476 + $0x34] sm:$0x8]
        %v484 = vld [vmem:[%s476 + $0x38] sm:$0xf]
        %v485 = vld [vmem:[%s476 + $0x3c] sm:$0xf]
        %v486 = vld [vmem:[%s476 + $0x4c] sm:$0x8]
        %v487 = vld [vmem:[%s476 + $0x50] sm:$0xf]
        %v488 = vld [vmem:[%s476 + $0x54] sm:$0xf]
        %v489 = vld [vmem:[%s476 + $0x64] sm:$0x8]
        %v490 = vld [vmem:[%s476 + $0x68] sm:$0xf]
        %v491 = vld [vmem:[%s476 + $0x6c] sm:$0xf]
        %v492 = vld [vmem:[%s476 + $0x7c] sm:$0x8]
        %v493 = vld [vmem:[%s476 + $0x80] sm:$0xf]
        %v494 = vld [vmem:[%s476 + $0x84] sm:$0xf]
        %v495 = vld [vmem:[%s476 + $0x94] sm:$0x8]
        %v496 = vld [vmem:[%s476 + $0x98] sm:$0xf]
        %v497 = vld [vmem:[%s476 + $0x9c] sm:$0xf]
        %v498 = vld [vmem:[%s476 + $0xac] sm:$0x8]
        %v499 = vld [vmem:[%s476 + $0xb0] sm:$0xf]
        %v500 = vld [vmem:[%s476 + $0xb4] sm:$0xf]
        %v501 = vld [vmem:[%s476 + $0xc4] sm:$0x8]
        %v502 = vld [vmem:[%s476 + $0xc8] sm:$0xf]
        %v503 = vld [vmem:[%s476 + $0xcc] sm:$0xf]
        %v504 = vld [vmem:[%s476 + $0xdc] sm:$0x8]
        %v505 = vld [vmem:[%s476 + $0xe0] sm:$0xf]
        %v506 = vld [vmem:[%s476 + $0xe4] sm:$0xf]
        %v507 = vld [vmem:[%s379 + $0x4] sm:$0x8]
        %v508 = vld [vmem:[%s379 + $0x8] sm:$0xf]
        %v509 = vld [vmem:[%s379 + $0xc] sm:$0xf]
        %v510 = vld [vmem:[%s379 + $0x1c] sm:$0x8]
        %v511 = vld [vmem:[%s379 + $0x20] sm:$0xf]
        %v512 = vld [vmem:[%s379 + $0x24] sm:$0xf]
        %v513 = vld [vmem:[%s379 + $0x34] sm:$0x8]
        %v514 = vld [vmem:[%s379 + $0x38] sm:$0xf]
        %v515 = vld [vmem:[%s379 + $0x3c] sm:$0xf]
        %v516 = vld [vmem:[%s379 + $0x4c] sm:$0x8]
        %v517 = vld [vmem:[%s379 + $0x50] sm:$0xf]
        %v518 = vld [vmem:[%s379 + $0x54] sm:$0xf]
        %v519 = vld [vmem:[%s379 + $0x64] sm:$0x8]
        %v520 = vld [vmem:[%s379 + $0x68] sm:$0xf]
        %v521 = vld [vmem:[%s379 + $0x6c] sm:$0xf]
        %v522 = vld [vmem:[%s379 + $0x7c] sm:$0x8]
        %v523 = vld [vmem:[%s379 + $0x80] sm:$0xf]
        %v524 = vld [vmem:[%s379 + $0x84] sm:$0xf]
        %v525 = vld [vmem:[%s379 + $0x94] sm:$0x8]
        %v526 = vld [vmem:[%s379 + $0x98] sm:$0xf]
        %v527 = vld [vmem:[%s379 + $0x9c] sm:$0xf]
        %v528 = vld [vmem:[%s379 + $0xac] sm:$0x8]
        %v529 = vld [vmem:[%s379 + $0xb0] sm:$0xf]
        %v530 = vld [vmem:[%s379 + $0xb4] sm:$0xf]
        %v531 = vld [vmem:[%s379 + $0xc4] sm:$0x8]
        %v532 = vld [vmem:[%s379 + $0xc8] sm:$0xf]
        %v533 = vld [vmem:[%s379 + $0xcc] sm:$0xf]
        %v534 = vld [vmem:[%s379 + $0xdc] sm:$0x8]
        %v535 = vld [vmem:[%s379 + $0xe0] sm:$0xf]
        %v536 = vld [vmem:[%s379 + $0xe4] sm:$0xf]
        %v567 = vunpack.c.l.b16 %v446
        %v568 = vunpack.c.l.b16 %v447
        %v569 = vunpack.c.l.b16 %v448
        %v570 = vunpack.c.l.b16 %v449
        %v571 = vunpack.c.l.b16 %v450
        %v572 = vunpack.c.l.b16 %v451
        %v573 = vunpack.c.l.b16 %v452
        %v574 = vunpack.c.l.b16 %v453
        %v575 = vunpack.c.l.b16 %v454
        %v576 = vunpack.c.l.b16 %v455
        %v577 = vunpack.c.l.b16 %v456
        %v578 = vunpack.c.l.b16 %v457
        %v579 = vunpack.c.l.b16 %v458
        %v580 = vunpack.c.l.b16 %v459
        %v581 = vunpack.c.l.b16 %v460
        %v582 = vunpack.c.l.b16 %v461
        %v583 = vunpack.c.l.b16 %v462
        %v584 = vunpack.c.l.b16 %v463
        %v585 = vunpack.c.l.b16 %v464
        %v586 = vunpack.c.l.b16 %v465
        %v587 = vunpack.c.l.b16 %v466
        %v588 = vunpack.c.l.b16 %v467
        %v589 = vunpack.c.l.b16 %v468
        %v590 = vunpack.c.l.b16 %v469
        %v591 = vunpack.c.l.b16 %v470
        %v592 = vunpack.c.l.b16 %v471
        %v593 = vunpack.c.l.b16 %v472
        %v594 = vunpack.c.l.b16 %v473
        %v595 = vunpack.c.l.b16 %v474
        %v596 = vunpack.c.l.b16 %v475
        %v597 = vpack.c.b16 %v568, %v567
        %v598 = vpack.c.b16 %v569, %v569
        %v599 = vpack.c.b16 %v571, %v570
        %v600 = vpack.c.b16 %v572, %v572
        %v601 = vpack.c.b16 %v574, %v573
        %v602 = vpack.c.b16 %v575, %v575
        %v603 = vpack.c.b16 %v577, %v576
        %v604 = vpack.c.b16 %v578, %v578
        %v605 = vpack.c.b16 %v580, %v579
        %v606 = vpack.c.b16 %v581, %v581
        %v607 = vpack.c.b16 %v583, %v582
        %v608 = vpack.c.b16 %v584, %v584
        %v609 = vpack.c.b16 %v586, %v585
        %v610 = vpack.c.b16 %v587, %v587
        %v611 = vpack.c.b16 %v589, %v588
        %v612 = vpack.c.b16 %v590, %v590
        %v613 = vpack.c.b16 %v592, %v591
        %v614 = vpack.c.b16 %v593, %v593
        %v615 = vpack.c.b16 %v595, %v594
        %v616 = vpack.c.b16 %v596, %v596
        %v647 = vunpack.c.l.b16 %v477
        %v648 = vunpack.c.l.b16 %v478
        %v649 = vunpack.c.l.b16 %v479
        %v650 = vunpack.c.l.b16 %v480
        %v651 = vunpack.c.l.b16 %v481
        %v652 = vunpack.c.l.b16 %v482
        %v653 = vunpack.c.l.b16 %v483
        %v654 = vunpack.c.l.b16 %v484
        %v655 = vunpack.c.l.b16 %v485
        %v656 = vunpack.c.l.b16 %v486
        %v657 = vunpack.c.l.b16 %v487
        %v658 = vunpack.c.l.b16 %v488
        %v659 = vunpack.c.l.b16 %v489
        %v660 = vunpack.c.l.b16 %v490
        %v661 = vunpack.c.l.b16 %v491
        %v662 = vunpack.c.l.b16 %v492
        %v663 = vunpack.c.l.b16 %v493
        %v664 = vunpack.c.l.b16 %v494
        %v665 = vunpack.c.l.b16 %v495
        %v666 = vunpack.c.l.b16 %v496
        %v667 = vunpack.c.l.b16 %v497
        %v668 = vunpack.c.l.b16 %v498
        %v669 = vunpack.c.l.b16 %v499
        %v670 = vunpack.c.l.b16 %v500
        %v671 = vunpack.c.l.b16 %v501
        %v672 = vunpack.c.l.b16 %v502
        %v673 = vunpack.c.l.b16 %v503
        %v674 = vunpack.c.l.b16 %v504
        %v675 = vunpack.c.l.b16 %v505
        %v676 = vunpack.c.l.b16 %v506
        %v677 = vpack.c.b16 %v648, %v647
        %v678 = vpack.c.b16 %v649, %v649
        %v679 = vpack.c.b16 %v651, %v650
        %v680 = vpack.c.b16 %v652, %v652
        %v681 = vpack.c.b16 %v654, %v653
        %v682 = vpack.c.b16 %v655, %v655
        %v683 = vpack.c.b16 %v657, %v656
        %v684 = vpack.c.b16 %v658, %v658
        %v685 = vpack.c.b16 %v660, %v659
        %v686 = vpack.c.b16 %v661, %v661
        %v687 = vpack.c.b16 %v663, %v662
        %v688 = vpack.c.b16 %v664, %v664
        %v689 = vpack.c.b16 %v666, %v665
        %v690 = vpack.c.b16 %v667, %v667
        %v691 = vpack.c.b16 %v669, %v668
        %v692 = vpack.c.b16 %v670, %v670
        %v693 = vpack.c.b16 %v672, %v671
        %v694 = vpack.c.b16 %v673, %v673
        %v695 = vpack.c.b16 %v675, %v674
        %v696 = vpack.c.b16 %v676, %v676
        %697 = vrot.lane.b32.xlu0 %v677, 4
        %v698 = vpop.permute.xlu0 %697
        %699 = vrot.lane.b32.xlu0 %v678, 4
        %v700 = vpop.permute.xlu0 %699
        %701 = vrot.lane.b32.xlu0 %v679, 4
        %v702 = vpop.permute.xlu0 %701
        %703 = vrot.lane.b32.xlu0 %v680, 4
        %v704 = vpop.permute.xlu0 %703
        %705 = vrot.lane.b32.xlu0 %v681, 4
        %v706 = vpop.permute.xlu0 %705
        %707 = vrot.lane.b32.xlu0 %v682, 4
        %v708 = vpop.permute.xlu0 %707
        %709 = vrot.lane.b32.xlu0 %v683, 4
        %v710 = vpop.permute.xlu0 %709
        %711 = vrot.lane.b32.xlu0 %v684, 4
        %v712 = vpop.permute.xlu0 %711
        %713 = vrot.lane.b32.xlu0 %v685, 4
        %v714 = vpop.permute.xlu0 %713
        %715 = vrot.lane.b32.xlu0 %v686, 4
        %v716 = vpop.permute.xlu0 %715
        %717 = vrot.lane.b32.xlu0 %v687, 4
        %v718 = vpop.permute.xlu0 %717
        %719 = vrot.lane.b32.xlu0 %v688, 4
        %v720 = vpop.permute.xlu0 %719
        %721 = vrot.lane.b32.xlu0 %v689, 4
        %v722 = vpop.permute.xlu0 %721
        %723 = vrot.lane.b32.xlu0 %v690, 4
        %v724 = vpop.permute.xlu0 %723
        %725 = vrot.lane.b32.xlu0 %v691, 4
        %v726 = vpop.permute.xlu0 %725
        %727 = vrot.lane.b32.xlu0 %v692, 4
        %v728 = vpop.permute.xlu0 %727
        %729 = vrot.lane.b32.xlu0 %v693, 4
        %v730 = vpop.permute.xlu0 %729
        %731 = vrot.lane.b32.xlu0 %v694, 4
        %v732 = vpop.permute.xlu0 %731
        %733 = vrot.lane.b32.xlu0 %v695, 4
        %v734 = vpop.permute.xlu0 %733
        %735 = vrot.lane.b32.xlu0 %v696, 4
        %v736 = vpop.permute.xlu0 %735
        %v767 = vunpack.c.l.b16 %v507
        %v768 = vunpack.c.l.b16 %v508
        %v769 = vunpack.c.l.b16 %v509
        %v770 = vunpack.c.l.b16 %v510
        %v771 = vunpack.c.l.b16 %v511
        %v772 = vunpack.c.l.b16 %v512
        %v773 = vunpack.c.l.b16 %v513
        %v774 = vunpack.c.l.b16 %v514
        %v775 = vunpack.c.l.b16 %v515
        %v776 = vunpack.c.l.b16 %v516
        %v777 = vunpack.c.l.b16 %v517
        %v778 = vunpack.c.l.b16 %v518
        %v779 = vunpack.c.l.b16 %v519
        %v780 = vunpack.c.l.b16 %v520
        %v781 = vunpack.c.l.b16 %v521
        %v782 = vunpack.c.l.b16 %v522
        %v783 = vunpack.c.l.b16 %v523
        %v784 = vunpack.c.l.b16 %v524
        %v785 = vunpack.c.l.b16 %v525
        %v786 = vunpack.c.l.b16 %v526
        %v787 = vunpack.c.l.b16 %v527
        %v788 = vunpack.c.l.b16 %v528
        %v789 = vunpack.c.l.b16 %v529
        %v790 = vunpack.c.l.b16 %v530
        %v791 = vunpack.c.l.b16 %v531
        %v792 = vunpack.c.l.b16 %v532
        %v793 = vunpack.c.l.b16 %v533
        %v794 = vunpack.c.l.b16 %v534
        %v795 = vunpack.c.l.b16 %v535
        %v796 = vunpack.c.l.b16 %v536
        %v797 = vpack.c.b16 %v768, %v767
        %v798 = vpack.c.b16 %v769, %v769
        %v799 = vpack.c.b16 %v771, %v770
        %v800 = vpack.c.b16 %v772, %v772
        %v801 = vpack.c.b16 %v774, %v773
        %v802 = vpack.c.b16 %v775, %v775
        %v803 = vpack.c.b16 %v777, %v776
        %v804 = vpack.c.b16 %v778, %v778
        %v805 = vpack.c.b16 %v780, %v779
        %v806 = vpack.c.b16 %v781, %v781
        %v807 = vpack.c.b16 %v783, %v782
        %v808 = vpack.c.b16 %v784, %v784
        %v809 = vpack.c.b16 %v786, %v785
        %v810 = vpack.c.b16 %v787, %v787
        %v811 = vpack.c.b16 %v789, %v788
        %v812 = vpack.c.b16 %v790, %v790
        %v813 = vpack.c.b16 %v792, %v791
        %v814 = vpack.c.b16 %v793, %v793
        %v815 = vpack.c.b16 %v795, %v794
        %v816 = vpack.c.b16 %v796, %v796
        %817 = vrot.lane.b32.xlu0 %v797, 8
        %v818 = vpop.permute.xlu0 %817
        %819 = vrot.lane.b32.xlu0 %v798, 8
        %v820 = vpop.permute.xlu0 %819
        %821 = vrot.lane.b32.xlu0 %v799, 8
        %v822 = vpop.permute.xlu0 %821
        %823 = vrot.lane.b32.xlu0 %v800, 8
        %v824 = vpop.permute.xlu0 %823
        %825 = vrot.lane.b32.xlu0 %v801, 8
        %v826 = vpop.permute.xlu0 %825
        %827 = vrot.lane.b32.xlu0 %v802, 8
        %v828 = vpop.permute.xlu0 %827
        %829 = vrot.lane.b32.xlu0 %v803, 8
        %v830 = vpop.permute.xlu0 %829
        %831 = vrot.lane.b32.xlu0 %v804, 8
        %v832 = vpop.permute.xlu0 %831
        %833 = vrot.lane.b32.xlu0 %v805, 8
        %v834 = vpop.permute.xlu0 %833
        %835 = vrot.lane.b32.xlu0 %v806, 8
        %v836 = vpop.permute.xlu0 %835
        %837 = vrot.lane.b32.xlu0 %v807, 8
        %v838 = vpop.permute.xlu0 %837
        %839 = vrot.lane.b32.xlu0 %v808, 8
        %v840 = vpop.permute.xlu0 %839
        %841 = vrot.lane.b32.xlu0 %v809, 8
        %v842 = vpop.permute.xlu0 %841
        %843 = vrot.lane.b32.xlu0 %v810, 8
        %v844 = vpop.permute.xlu0 %843
        %845 = vrot.lane.b32.xlu0 %v811, 8
        %v846 = vpop.permute.xlu0 %845
        %847 = vrot.lane.b32.xlu0 %v812, 8
        %v848 = vpop.permute.xlu0 %847
        %849 = vrot.lane.b32.xlu0 %v813, 8
        %v850 = vpop.permute.xlu0 %849
        %851 = vrot.lane.b32.xlu0 %v814, 8
        %v852 = vpop.permute.xlu0 %851
        %853 = vrot.lane.b32.xlu0 %v815, 8
        %v854 = vpop.permute.xlu0 %853
        %855 = vrot.lane.b32.xlu0 %v816, 8
        %v856 = vpop.permute.xlu0 %855
        %vm857 = vcmask 31744
        %v860 = vsel %vm857, %v597, %v698
        %v863 = vsel %vm857, %v598, %v700
        %v866 = vsel %vm857, %v599, %v702
        %v869 = vsel %vm857, %v600, %v704
        %v872 = vsel %vm857, %v601, %v706
        %v875 = vsel %vm857, %v602, %v708
        %v878 = vsel %vm857, %v603, %v710
        %v881 = vsel %vm857, %v604, %v712
        %v884 = vsel %vm857, %v605, %v714
        %v887 = vsel %vm857, %v606, %v716
        %v890 = vsel %vm857, %v607, %v718
        %v893 = vsel %vm857, %v608, %v720
        %v896 = vsel %vm857, %v609, %v722
        %v899 = vsel %vm857, %v610, %v724
        %v902 = vsel %vm857, %v611, %v726
        %v905 = vsel %vm857, %v612, %v728
        %v908 = vsel %vm857, %v613, %v730
        %v911 = vsel %vm857, %v614, %v732
        %v914 = vsel %vm857, %v615, %v734
        %v917 = vsel %vm857, %v616, %v736
        %vm918 = vcmask 64512
        %v920 = vsel %vm918, %v860, %v818
        %v922 = vsel %vm918, %v863, %v820
        %v924 = vsel %vm918, %v866, %v822
        %v926 = vsel %vm918, %v869, %v824
        %v928 = vsel %vm918, %v872, %v826
        %v930 = vsel %vm918, %v875, %v828
        %v932 = vsel %vm918, %v878, %v830
        %v934 = vsel %vm918, %v881, %v832
        %v936 = vsel %vm918, %v884, %v834
        %v938 = vsel %vm918, %v887, %v836
        %v940 = vsel %vm918, %v890, %v838
        %v942 = vsel %vm918, %v893, %v840
        %v944 = vsel %vm918, %v896, %v842
        %v946 = vsel %vm918, %v899, %v844
        %v948 = vsel %vm918, %v902, %v846
        %v950 = vsel %vm918, %v905, %v848
        %v952 = vsel %vm918, %v908, %v850
        %v954 = vsel %vm918, %v911, %v852
        %v956 = vsel %vm918, %v914, %v854
        %v958 = vsel %vm918, %v917, %v856
        %vm959 = vsmask.f32 4352
        %v960 = vshrl.u32 %v920, 16
        %v962 = vrot.slane %v960, 3
        %v963 = vshll.u32 %v920, 16
        %v965 = vrot.slane %v963, 4
        %v966 = vor.u32 %v962, %v965
        %v967 = vshrl.u32 %v922, 16
        %v969 = vrot.slane %v967, 3
        %v970 = vshll.u32 %v922, 16
        %v972 = vrot.slane %v970, 4
        %v973 = vor.u32 %v969, %v972
        %v974 = vsel %vm959, %v966, %v973
        %v975 = vshrl.u32 %v924, 16
        %v977 = vrot.slane %v975, 3
        %v978 = vshll.u32 %v924, 16
        %v980 = vrot.slane %v978, 4
        %v981 = vor.u32 %v977, %v980
        %v982 = vshrl.u32 %v926, 16
        %v984 = vrot.slane %v982, 3
        %v985 = vshll.u32 %v926, 16
        %v987 = vrot.slane %v985, 4
        %v988 = vor.u32 %v984, %v987
        %v989 = vsel %vm959, %v981, %v988
        %v990 = vshrl.u32 %v928, 16
        %v992 = vrot.slane %v990, 3
        %v993 = vshll.u32 %v928, 16
        %v995 = vrot.slane %v993, 4
        %v996 = vor.u32 %v992, %v995
        %v997 = vshrl.u32 %v930, 16
        %v999 = vrot.slane %v997, 3
        %v1000 = vshll.u32 %v930, 16
        %v1002 = vrot.slane %v1000, 4
        %v1003 = vor.u32 %v999, %v1002
        %v1004 = vsel %vm959, %v996, %v1003
        %v1005 = vshrl.u32 %v932, 16
        %v1007 = vrot.slane %v1005, 3
        %v1008 = vshll.u32 %v932, 16
        %v1010 = vrot.slane %v1008, 4
        %v1011 = vor.u32 %v1007, %v1010
        %v1012 = vshrl.u32 %v934, 16
        %v1014 = vrot.slane %v1012, 3
        %v1015 = vshll.u32 %v934, 16
        %v1017 = vrot.slane %v1015, 4
        %v1018 = vor.u32 %v1014, %v1017
        %v1019 = vsel %vm959, %v1011, %v1018
        %v1020 = vshrl.u32 %v936, 16
        %v1022 = vrot.slane %v1020, 3
        %v1023 = vshll.u32 %v936, 16
        %v1025 = vrot.slane %v1023, 4
        %v1026 = vor.u32 %v1022, %v1025
        %v1027 = vshrl.u32 %v938, 16
        %v1029 = vrot.slane %v1027, 3
        %v1030 = vshll.u32 %v938, 16
        %v1032 = vrot.slane %v1030, 4
        %v1033 = vor.u32 %v1029, %v1032
        %v1034 = vsel %vm959, %v1026, %v1033
        %v1035 = vshrl.u32 %v940, 16
        %v1037 = vrot.slane %v1035, 3
        %v1038 = vshll.u32 %v940, 16
        %v1040 = vrot.slane %v1038, 4
        %v1041 = vor.u32 %v1037, %v1040
        %v1042 = vshrl.u32 %v942, 16
        %v1044 = vrot.slane %v1042, 3
        %v1045 = vshll.u32 %v942, 16
        %v1047 = vrot.slane %v1045, 4
        %v1048 = vor.u32 %v1044, %v1047
        %v1049 = vsel %vm959, %v1041, %v1048
        %v1050 = vshrl.u32 %v944, 16
        %v1052 = vrot.slane %v1050, 3
        %v1053 = vshll.u32 %v944, 16
        %v1055 = vrot.slane %v1053, 4
        %v1056 = vor.u32 %v1052, %v1055
        %v1057 = vshrl.u32 %v946, 16
        %v1059 = vrot.slane %v1057, 3
        %v1060 = vshll.u32 %v946, 16
        %v1062 = vrot.slane %v1060, 4
        %v1063 = vor.u32 %v1059, %v1062
        %v1064 = vsel %vm959, %v1056, %v1063
        %v1065 = vshrl.u32 %v948, 16
        %v1067 = vrot.slane %v1065, 3
        %v1068 = vshll.u32 %v948, 16
        %v1070 = vrot.slane %v1068, 4
        %v1071 = vor.u32 %v1067, %v1070
        %v1072 = vshrl.u32 %v950, 16
        %v1074 = vrot.slane %v1072, 3
        %v1075 = vshll.u32 %v950, 16
        %v1077 = vrot.slane %v1075, 4
        %v1078 = vor.u32 %v1074, %v1077
        %v1079 = vsel %vm959, %v1071, %v1078
        %v1080 = vshrl.u32 %v952, 16
        %v1082 = vrot.slane %v1080, 3
        %v1083 = vshll.u32 %v952, 16
        %v1085 = vrot.slane %v1083, 4
        %v1086 = vor.u32 %v1082, %v1085
        %v1087 = vshrl.u32 %v954, 16
        %v1089 = vrot.slane %v1087, 3
        %v1090 = vshll.u32 %v954, 16
        %v1092 = vrot.slane %v1090, 4
        %v1093 = vor.u32 %v1089, %v1092
        %v1094 = vsel %vm959, %v1086, %v1093
        %v1095 = vshrl.u32 %v956, 16
        %v1097 = vrot.slane %v1095, 3
        %v1098 = vshll.u32 %v956, 16
        %v1100 = vrot.slane %v1098, 4
        %v1101 = vor.u32 %v1097, %v1100
        %v1102 = vshrl.u32 %v958, 16
        %v1104 = vrot.slane %v1102, 3
        %v1105 = vshll.u32 %v958, 16
        %v1107 = vrot.slane %v1105, 4
        %v1108 = vor.u32 %v1104, %v1107
        %v1109 = vsel %vm959, %v1101, %v1108
        %v1110 = vld [vmem:[%s1] sm:$0xf]
        %v1111 = vld [vmem:[%s1 + $0x4] sm:$0x3]
        %v1112 = vpack.c.b16 %v569, %v568
        %v1113 = vpack.c.b16 %v572, %v571
        %v1114 = vpack.c.b16 %v575, %v574
        %v1115 = vpack.c.b16 %v578, %v577
        %v1116 = vpack.c.b16 %v581, %v580
        %v1117 = vpack.c.b16 %v584, %v583
        %v1118 = vpack.c.b16 %v587, %v586
        %v1119 = vpack.c.b16 %v590, %v589
        %v1120 = vpack.c.b16 %v593, %v592
        %v1121 = vpack.c.b16 %v596, %v595
        %v1122 = vpack.c.b16 %v649, %v648
        %v1123 = vpack.c.b16 %v652, %v651
        %v1124 = vpack.c.b16 %v655, %v654
        %v1125 = vpack.c.b16 %v658, %v657
        %v1126 = vpack.c.b16 %v661, %v660
        %v1127 = vpack.c.b16 %v664, %v663
        %v1128 = vpack.c.b16 %v667, %v666
        %v1129 = vpack.c.b16 %v670, %v669
        %v1130 = vpack.c.b16 %v673, %v672
        %v1131 = vpack.c.b16 %v676, %v675
        %1132 = vrot.lane.b32.xlu0 %v1122, 4
        %v1133 = vpop.permute.xlu0 %1132
        %1134 = vrot.lane.b32.xlu0 %v1123, 4
        %v1135 = vpop.permute.xlu0 %1134
        %1136 = vrot.lane.b32.xlu0 %v1124, 4
        %v1137 = vpop.permute.xlu0 %1136
        %1138 = vrot.lane.b32.xlu0 %v1125, 4
        %v1139 = vpop.permute.xlu0 %1138
        %1140 = vrot.lane.b32.xlu0 %v1126, 4
        %v1141 = vpop.permute.xlu0 %1140
        %1142 = vrot.lane.b32.xlu0 %v1127, 4
        %v1143 = vpop.permute.xlu0 %1142
        %1144 = vrot.lane.b32.xlu0 %v1128, 4
        %v1145 = vpop.permute.xlu0 %1144
        %1146 = vrot.lane.b32.xlu0 %v1129, 4
        %v1147 = vpop.permute.xlu0 %1146
        %1148 = vrot.lane.b32.xlu0 %v1130, 4
        %v1149 = vpop.permute.xlu0 %1148
        %1150 = vrot.lane.b32.xlu0 %v1131, 4
        %v1151 = vpop.permute.xlu0 %1150
        %v1152 = vpack.c.b16 %v769, %v768
        %v1153 = vpack.c.b16 %v772, %v771
        %v1154 = vpack.c.b16 %v775, %v774
        %v1155 = vpack.c.b16 %v778, %v777
        %v1156 = vpack.c.b16 %v781, %v780
        %v1157 = vpack.c.b16 %v784, %v783
        %v1158 = vpack.c.b16 %v787, %v786
        %v1159 = vpack.c.b16 %v790, %v789
        %v1160 = vpack.c.b16 %v793, %v792
        %v1161 = vpack.c.b16 %v796, %v795
        %1162 = vrot.lane.b32.xlu0 %v1152, 8
        %v1163 = vpop.permute.xlu0 %1162
        %1164 = vrot.lane.b32.xlu0 %v1153, 8
        %v1165 = vpop.permute.xlu0 %1164
        %1166 = vrot.lane.b32.xlu0 %v1154, 8
        %v1167 = vpop.permute.xlu0 %1166
        %1168 = vrot.lane.b32.xlu0 %v1155, 8
        %v1169 = vpop.permute.xlu0 %1168
        %1170 = vrot.lane.b32.xlu0 %v1156, 8
        %v1171 = vpop.permute.xlu0 %1170
        %1172 = vrot.lane.b32.xlu0 %v1157, 8
        %v1173 = vpop.permute.xlu0 %1172
        %1174 = vrot.lane.b32.xlu0 %v1158, 8
        %v1175 = vpop.permute.xlu0 %1174
        %1176 = vrot.lane.b32.xlu0 %v1159, 8
        %v1177 = vpop.permute.xlu0 %1176
        %1178 = vrot.lane.b32.xlu0 %v1160, 8
        %v1179 = vpop.permute.xlu0 %1178
        %1180 = vrot.lane.b32.xlu0 %v1161, 8
        %v1181 = vpop.permute.xlu0 %1180
        %v1184 = vsel %vm857, %v1112, %v1133
        %v1187 = vsel %vm857, %v1113, %v1135
        %v1190 = vsel %vm857, %v1114, %v1137
        %v1193 = vsel %vm857, %v1115, %v1139
        %v1196 = vsel %vm857, %v1116, %v1141
        %v1199 = vsel %vm857, %v1117, %v1143
        %v1202 = vsel %vm857, %v1118, %v1145
        %v1205 = vsel %vm857, %v1119, %v1147
        %v1208 = vsel %vm857, %v1120, %v1149
        %v1211 = vsel %vm857, %v1121, %v1151
        %v1213 = vsel %vm918, %v1184, %v1163
        %v1215 = vsel %vm918, %v1187, %v1165
        %v1217 = vsel %vm918, %v1190, %v1167
        %v1219 = vsel %vm918, %v1193, %v1169
        %v1221 = vsel %vm918, %v1196, %v1171
        %v1223 = vsel %vm918, %v1199, %v1173
        %v1225 = vsel %vm918, %v1202, %v1175
        %v1227 = vsel %vm918, %v1205, %v1177
        %v1229 = vsel %vm918, %v1208, %v1179
        %v1231 = vsel %vm918, %v1211, %v1181
        %s1232 = scalar_lea.vmem %s1, 8
        %v1233 = vld [vmem:[%s1232] sm:$0xf]
        %v1234 = vld [vmem:[%s1232 + $0x4] sm:$0x3]
        %v1237 = vunpack.c.l.b16 %v1233
        %v1238 = vunpack.c.l.b16 %v1234
        %v1239 = vpack.c.b16 %v1238, %v1237
        %vm1240 = vcmask 97280
        %v1241 = vsel %vm1240, %v1213, 0
        %v1243 = vsel %vm1240, %v1215, 0
        %v1245 = vsel %vm1240, %v1217, 0
        %v1247 = vsel %vm1240, %v1219, 0
        %v1249 = vsel %vm1240, %v1221, 0
        %v1251 = vsel %vm1240, %v1223, 0
        %v1253 = vsel %vm1240, %v1225, 0
        %v1255 = vsel %vm1240, %v1227, 0
        %v1257 = vsel %vm1240, %v1229, 0
        %v1259 = vsel %vm1240, %v1231, 0
        %vm1261 = vcmask 1045504
        %v1263 = vsel %vm1261, %v1239, 0
        %1265 = vmatpush.bf16.msra.mxu0 0
        %1266 = vmatpush.bf16.msra.mxu0 0
        %1267 = vmatpush.bf16.msra.mxu0 0
        %1268 = vmatpush.bf16.msra.mxu0 0
        %1269 = vmatpush.bf16.msra.mxu0 0
        %1270 = vmatpush.bf16.msra.mxu0 0
        %1271 = vmatpush.bf16.msra.mxu0 0
        %1272 = vmatpush.bf16.msra.mxu0 %v1263
        %1273 = vmatmul.bf16.gmra.mxu0 %v1241
        %v1274 = vpop.f32.mrf.mxu0
        %v1275 = vadd.f32 0.0, %v1274
        %v1276 = vpop.f32.mrf.mxu0
        %v1277 = vadd.f32 0.0, %v1276
        %1278 = vmatmul.bf16.gmra.mxu0 %v1243
        %v1279 = vpop.f32.mrf.mxu0
        %v1280 = vadd.f32 0.0, %v1279
        %v1281 = vpop.f32.mrf.mxu0
        %v1282 = vadd.f32 0.0, %v1281
        %1283 = vmatmul.bf16.gmra.mxu0 %v1245
        %v1284 = vpop.f32.mrf.mxu0
        %v1285 = vadd.f32 0.0, %v1284
        %v1286 = vpop.f32.mrf.mxu0
        %v1287 = vadd.f32 0.0, %v1286
        %1288 = vmatmul.bf16.gmra.mxu0 %v1247
        %v1289 = vpop.f32.mrf.mxu0
        %v1290 = vadd.f32 0.0, %v1289
        %v1291 = vpop.f32.mrf.mxu0
        %v1292 = vadd.f32 0.0, %v1291
        %1293 = vmatmul.bf16.gmra.mxu0 %v1249
        %v1294 = vpop.f32.mrf.mxu0
        %v1295 = vadd.f32 0.0, %v1294
        %v1296 = vpop.f32.mrf.mxu0
        %v1297 = vadd.f32 0.0, %v1296
        %1298 = vmatmul.bf16.gmra.mxu0 %v1251
        %v1299 = vpop.f32.mrf.mxu0
        %v1300 = vadd.f32 0.0, %v1299
        %v1301 = vpop.f32.mrf.mxu0
        %v1302 = vadd.f32 0.0, %v1301
        %1303 = vmatmul.bf16.gmra.mxu0 %v1253
        %v1304 = vpop.f32.mrf.mxu0
        %v1305 = vadd.f32 0.0, %v1304
        %v1306 = vpop.f32.mrf.mxu0
        %v1307 = vadd.f32 0.0, %v1306
        %1308 = vmatmul.bf16.gmra.mxu0 %v1255
        %v1309 = vpop.f32.mrf.mxu0
        %v1310 = vadd.f32 0.0, %v1309
        %v1311 = vpop.f32.mrf.mxu0
        %v1312 = vadd.f32 0.0, %v1311
        %1313 = vmatmul.bf16.gmra.mxu0 %v1257
        %v1314 = vpop.f32.mrf.mxu0
        %v1315 = vadd.f32 0.0, %v1314
        %v1316 = vpop.f32.mrf.mxu0
        %v1317 = vadd.f32 0.0, %v1316
        %1318 = vmatmul.bf16.gmra.mxu0 %v1259
        %v1319 = vpop.f32.mrf.mxu0
        %v1320 = vadd.f32 0.0, %v1319
        %v1321 = vpop.f32.mrf.mxu0
        %v1322 = vadd.f32 0.0, %v1321
        %1323 = vdwg.mxu0
        %v1326 = vunpack.c.l.b16 %v1110
        %v1327 = vunpack.c.l.b16 %v1111
        %v1328 = vpack.c.b16 %v1327, %v1326
        %v1330 = vsel %vm1240, %v974, 0
        %v1333 = vsel %vm1240, %v989, 0
        %v1336 = vsel %vm1240, %v1004, 0
        %v1339 = vsel %vm1240, %v1019, 0
        %v1342 = vsel %vm1240, %v1034, 0
        %v1345 = vsel %vm1240, %v1049, 0
        %v1348 = vsel %vm1240, %v1064, 0
        %v1351 = vsel %vm1240, %v1079, 0
        %v1354 = vsel %vm1240, %v1094, 0
        %v1357 = vsel %vm1240, %v1109, 0
        %v1360 = vsel %vm1261, %v1328, 0
        %1362 = vmatpush.bf16.msra.mxu0 0
        %1363 = vmatpush.bf16.msra.mxu0 0
        %1364 = vmatpush.bf16.msra.mxu0 0
        %1365 = vmatpush.bf16.msra.mxu0 0
        %1366 = vmatpush.bf16.msra.mxu0 0
        %1367 = vmatpush.bf16.msra.mxu0 0
        %1368 = vmatpush.bf16.msra.mxu0 0
        %1369 = vmatpush.bf16.msra.mxu0 %v1360
        %1370 = vmatmul.bf16.gmra.mxu0 %v1330
        %v1371 = vpop.f32.mrf.mxu0
        %v1372 = vadd.f32 %v1275, %v1371
        %v1373 = vpop.f32.mrf.mxu0
        %v1374 = vadd.f32 %v1277, %v1373
        %1375 = vmatmul.bf16.gmra.mxu0 %v1333
        %v1376 = vpop.f32.mrf.mxu0
        %v1377 = vadd.f32 %v1280, %v1376
        %v1378 = vpop.f32.mrf.mxu0
        %v1379 = vadd.f32 %v1282, %v1378
        %1380 = vmatmul.bf16.gmra.mxu0 %v1336
        %v1381 = vpop.f32.mrf.mxu0
        %v1382 = vadd.f32 %v1285, %v1381
        %v1383 = vpop.f32.mrf.mxu0
        %v1384 = vadd.f32 %v1287, %v1383
        %1385 = vmatmul.bf16.gmra.mxu0 %v1339
        %v1386 = vpop.f32.mrf.mxu0
        %v1387 = vadd.f32 %v1290, %v1386
        %v1388 = vpop.f32.mrf.mxu0
        %v1389 = vadd.f32 %v1292, %v1388
        %1390 = vmatmul.bf16.gmra.mxu0 %v1342
        %v1391 = vpop.f32.mrf.mxu0
        %v1392 = vadd.f32 %v1295, %v1391
        %v1393 = vpop.f32.mrf.mxu0
        %v1394 = vadd.f32 %v1297, %v1393
        %1395 = vmatmul.bf16.gmra.mxu0 %v1345
        %v1396 = vpop.f32.mrf.mxu0
        %v1397 = vadd.f32 %v1300, %v1396
        %v1398 = vpop.f32.mrf.mxu0
        %v1399 = vadd.f32 %v1302, %v1398
        %1400 = vmatmul.bf16.gmra.mxu0 %v1348
        %v1401 = vpop.f32.mrf.mxu0
        %v1402 = vadd.f32 %v1305, %v1401
        %v1403 = vpop.f32.mrf.mxu0
        %v1404 = vadd.f32 %v1307, %v1403
        %1405 = vmatmul.bf16.gmra.mxu0 %v1351
        %v1406 = vpop.f32.mrf.mxu0
        %v1407 = vadd.f32 %v1310, %v1406
        %v1408 = vpop.f32.mrf.mxu0
        %v1409 = vadd.f32 %v1312, %v1408
        %1410 = vmatmul.bf16.gmra.mxu0 %v1354
        %v1411 = vpop.f32.mrf.mxu0
        %v1412 = vadd.f32 %v1315, %v1411
        %v1413 = vpop.f32.mrf.mxu0
        %v1414 = vadd.f32 %v1317, %v1413
        %1415 = vmatmul.bf16.gmra.mxu0 %v1357
        %v1416 = vpop.f32.mrf.mxu0
        %v1417 = vadd.f32 %v1320, %v1416
        %v1418 = vpop.f32.mrf.mxu0
        %v1419 = vadd.f32 %v1322, %v1418
        %1420 = vdwg.mxu0
        %v1421 = vld [vmem:[#allocation2 + $0x8] sm:$0xf]
        %v1422 = vld [vmem:[#allocation2 + $0xc] sm:$0xf]
        %v1423 = vld [vmem:[#allocation2 + $0x10] sm:$0x1]
        %v1424 = vld [vmem:[#allocation2 + $0x20] sm:$0xf]
        %v1425 = vld [vmem:[#allocation2 + $0x24] sm:$0xf]
        %v1426 = vld [vmem:[#allocation2 + $0x28] sm:$0x1]
        %v1427 = vld [vmem:[#allocation2 + $0x38] sm:$0xf]
        %v1428 = vld [vmem:[#allocation2 + $0x3c] sm:$0xf]
        %v1429 = vld [vmem:[#allocation2 + $0x40] sm:$0x1]
        %v1430 = vld [vmem:[#allocation2 + $0x50] sm:$0xf]
        %v1431 = vld [vmem:[#allocation2 + $0x54] sm:$0xf]
        %v1432 = vld [vmem:[#allocation2 + $0x58] sm:$0x1]
        %v1433 = vld [vmem:[#allocation2 + $0x68] sm:$0xf]
        %v1434 = vld [vmem:[#allocation2 + $0x6c] sm:$0xf]
        %v1435 = vld [vmem:[#allocation2 + $0x70] sm:$0x1]
        %v1436 = vld [vmem:[#allocation2 + $0x80] sm:$0xf]
        %v1437 = vld [vmem:[#allocation2 + $0x84] sm:$0xf]
        %v1438 = vld [vmem:[#allocation2 + $0x88] sm:$0x1]
        %v1439 = vld [vmem:[#allocation2 + $0x98] sm:$0xf]
        %v1440 = vld [vmem:[#allocation2 + $0x9c] sm:$0xf]
        %v1441 = vld [vmem:[#allocation2 + $0xa0] sm:$0x1]
        %v1442 = vld [vmem:[#allocation2 + $0xb0] sm:$0xf]
        %v1443 = vld [vmem:[#allocation2 + $0xb4] sm:$0xf]
        %v1444 = vld [vmem:[#allocation2 + $0xb8] sm:$0x1]
        %v1445 = vld [vmem:[#allocation2 + $0xc8] sm:$0xf]
        %v1446 = vld [vmem:[#allocation2 + $0xcc] sm:$0xf]
        %v1447 = vld [vmem:[#allocation2 + $0xd0] sm:$0x1]
        %v1448 = vld [vmem:[#allocation2 + $0xe0] sm:$0xf]
        %v1449 = vld [vmem:[#allocation2 + $0xe4] sm:$0xf]
        %v1450 = vld [vmem:[#allocation2 + $0xe8] sm:$0x1]
        %v1451 = vld [vmem:[%s476 + $0x8] sm:$0xf]
        %v1452 = vld [vmem:[%s476 + $0xc] sm:$0xf]
        %v1453 = vld [vmem:[%s476 + $0x10] sm:$0x1]
        %v1454 = vld [vmem:[%s476 + $0x20] sm:$0xf]
        %v1455 = vld [vmem:[%s476 + $0x24] sm:$0xf]
        %v1456 = vld [vmem:[%s476 + $0x28] sm:$0x1]
        %v1457 = vld [vmem:[%s476 + $0x38] sm:$0xf]
        %v1458 = vld [vmem:[%s476 + $0x3c] sm:$0xf]
        %v1459 = vld [vmem:[%s476 + $0x40] sm:$0x1]
        %v1460 = vld [vmem:[%s476 + $0x50] sm:$0xf]
        %v1461 = vld [vmem:[%s476 + $0x54] sm:$0xf]
        %v1462 = vld [vmem:[%s476 + $0x58] sm:$0x1]
        %v1463 = vld [vmem:[%s476 + $0x68] sm:$0xf]
        %v1464 = vld [vmem:[%s476 + $0x6c] sm:$0xf]
        %v1465 = vld [vmem:[%s476 + $0x70] sm:$0x1]
        %v1466 = vld [vmem:[%s476 + $0x80] sm:$0xf]
        %v1467 = vld [vmem:[%s476 + $0x84] sm:$0xf]
        %v1468 = vld [vmem:[%s476 + $0x88] sm:$0x1]
        %v1469 = vld [vmem:[%s476 + $0x98] sm:$0xf]
        %v1470 = vld [vmem:[%s476 + $0x9c] sm:$0xf]
        %v1471 = vld [vmem:[%s476 + $0xa0] sm:$0x1]
        %v1472 = vld [vmem:[%s476 + $0xb0] sm:$0xf]
        %v1473 = vld [vmem:[%s476 + $0xb4] sm:$0xf]
        %v1474 = vld [vmem:[%s476 + $0xb8] sm:$0x1]
        %v1475 = vld [vmem:[%s476 + $0xc8] sm:$0xf]
        %v1476 = vld [vmem:[%s476 + $0xcc] sm:$0xf]
        %v1477 = vld [vmem:[%s476 + $0xd0] sm:$0x1]
        %v1478 = vld [vmem:[%s476 + $0xe0] sm:$0xf]
        %v1479 = vld [vmem:[%s476 + $0xe4] sm:$0xf]
        %v1480 = vld [vmem:[%s476 + $0xe8] sm:$0x1]
        %v1481 = vld [vmem:[%s379 + $0x8] sm:$0xf]
        %v1482 = vld [vmem:[%s379 + $0xc] sm:$0xf]
        %v1483 = vld [vmem:[%s379 + $0x10] sm:$0x1]
        %v1484 = vld [vmem:[%s379 + $0x20] sm:$0xf]
        %v1485 = vld [vmem:[%s379 + $0x24] sm:$0xf]
        %v1486 = vld [vmem:[%s379 + $0x28] sm:$0x1]
        %v1487 = vld [vmem:[%s379 + $0x38] sm:$0xf]
        %v1488 = vld [vmem:[%s379 + $0x3c] sm:$0xf]
        %v1489 = vld [vmem:[%s379 + $0x40] sm:$0x1]
        %v1490 = vld [vmem:[%s379 + $0x50] sm:$0xf]
        %v1491 = vld [vmem:[%s379 + $0x54] sm:$0xf]
        %v1492 = vld [vmem:[%s379 + $0x58] sm:$0x1]
        %v1493 = vld [vmem:[%s379 + $0x68] sm:$0xf]
        %v1494 = vld [vmem:[%s379 + $0x6c] sm:$0xf]
        %v1495 = vld [vmem:[%s379 + $0x70] sm:$0x1]
        %v1496 = vld [vmem:[%s379 + $0x80] sm:$0xf]
        %v1497 = vld [vmem:[%s379 + $0x84] sm:$0xf]
        %v1498 = vld [vmem:[%s379 + $0x88] sm:$0x1]
        %v1499 = vld [vmem:[%s379 + $0x98] sm:$0xf]
        %v1500 = vld [vmem:[%s379 + $0x9c] sm:$0xf]
        %v1501 = vld [vmem:[%s379 + $0xa0] sm:$0x1]
        %v1502 = vld [vmem:[%s379 + $0xb0] sm:$0xf]
        %v1503 = vld [vmem:[%s379 + $0xb4] sm:$0xf]
        %v1504 = vld [vmem:[%s379 + $0xb8] sm:$0x1]
        %v1505 = vld [vmem:[%s379 + $0xc8] sm:$0xf]
        %v1506 = vld [vmem:[%s379 + $0xcc] sm:$0xf]
        %v1507 = vld [vmem:[%s379 + $0xd0] sm:$0x1]
        %v1508 = vld [vmem:[%s379 + $0xe0] sm:$0xf]
        %v1509 = vld [vmem:[%s379 + $0xe4] sm:$0xf]
        %v1510 = vld [vmem:[%s379 + $0xe8] sm:$0x1]
        %v1541 = vunpack.c.l.b16 %v1421
        %v1542 = vunpack.c.l.b16 %v1422
        %v1543 = vunpack.c.l.b16 %v1423
        %v1544 = vunpack.c.l.b16 %v1424
        %v1545 = vunpack.c.l.b16 %v1425
        %v1546 = vunpack.c.l.b16 %v1426
        %v1547 = vunpack.c.l.b16 %v1427
        %v1548 = vunpack.c.l.b16 %v1428
        %v1549 = vunpack.c.l.b16 %v1429
        %v1550 = vunpack.c.l.b16 %v1430
        %v1551 = vunpack.c.l.b16 %v1431
        %v1552 = vunpack.c.l.b16 %v1432
        %v1553 = vunpack.c.l.b16 %v1433
        %v1554 = vunpack.c.l.b16 %v1434
        %v1555 = vunpack.c.l.b16 %v1435
        %v1556 = vunpack.c.l.b16 %v1436
        %v1557 = vunpack.c.l.b16 %v1437
        %v1558 = vunpack.c.l.b16 %v1438
        %v1559 = vunpack.c.l.b16 %v1439
        %v1560 = vunpack.c.l.b16 %v1440
        %v1561 = vunpack.c.l.b16 %v1441
        %v1562 = vunpack.c.l.b16 %v1442
        %v1563 = vunpack.c.l.b16 %v1443
        %v1564 = vunpack.c.l.b16 %v1444
        %v1565 = vunpack.c.l.b16 %v1445
        %v1566 = vunpack.c.l.b16 %v1446
        %v1567 = vunpack.c.l.b16 %v1447
        %v1568 = vunpack.c.l.b16 %v1448
        %v1569 = vunpack.c.l.b16 %v1449
        %v1570 = vunpack.c.l.b16 %v1450
        %v1571 = vpack.c.b16 %v1542, %v1541
        %v1572 = vpack.c.b16 %v1543, %v1543
        %v1573 = vpack.c.b16 %v1545, %v1544
        %v1574 = vpack.c.b16 %v1546, %v1546
        %v1575 = vpack.c.b16 %v1548, %v1547
        %v1576 = vpack.c.b16 %v1549, %v1549
        %v1577 = vpack.c.b16 %v1551, %v1550
        %v1578 = vpack.c.b16 %v1552, %v1552
        %v1579 = vpack.c.b16 %v1554, %v1553
        %v1580 = vpack.c.b16 %v1555, %v1555
        %v1581 = vpack.c.b16 %v1557, %v1556
        %v1582 = vpack.c.b16 %v1558, %v1558
        %v1583 = vpack.c.b16 %v1560, %v1559
        %v1584 = vpack.c.b16 %v1561, %v1561
        %v1585 = vpack.c.b16 %v1563, %v1562
        %v1586 = vpack.c.b16 %v1564, %v1564
        %v1587 = vpack.c.b16 %v1566, %v1565
        %v1588 = vpack.c.b16 %v1567, %v1567
        %v1589 = vpack.c.b16 %v1569, %v1568
        %v1590 = vpack.c.b16 %v1570, %v1570
        %v1621 = vunpack.c.l.b16 %v1451
        %v1622 = vunpack.c.l.b16 %v1452
        %v1623 = vunpack.c.l.b16 %v1453
        %v1624 = vunpack.c.l.b16 %v1454
        %v1625 = vunpack.c.l.b16 %v1455
        %v1626 = vunpack.c.l.b16 %v1456
        %v1627 = vunpack.c.l.b16 %v1457
        %v1628 = vunpack.c.l.b16 %v1458
        %v1629 = vunpack.c.l.b16 %v1459
        %v1630 = vunpack.c.l.b16 %v1460
        %v1631 = vunpack.c.l.b16 %v1461
        %v1632 = vunpack.c.l.b16 %v1462
        %v1633 = vunpack.c.l.b16 %v1463
        %v1634 = vunpack.c.l.b16 %v1464
        %v1635 = vunpack.c.l.b16 %v1465
        %v1636 = vunpack.c.l.b16 %v1466
        %v1637 = vunpack.c.l.b16 %v1467
        %v1638 = vunpack.c.l.b16 %v1468
        %v1639 = vunpack.c.l.b16 %v1469
        %v1640 = vunpack.c.l.b16 %v1470
        %v1641 = vunpack.c.l.b16 %v1471
        %v1642 = vunpack.c.l.b16 %v1472
        %v1643 = vunpack.c.l.b16 %v1473
        %v1644 = vunpack.c.l.b16 %v1474
        %v1645 = vunpack.c.l.b16 %v1475
        %v1646 = vunpack.c.l.b16 %v1476
        %v1647 = vunpack.c.l.b16 %v1477
        %v1648 = vunpack.c.l.b16 %v1478
        %v1649 = vunpack.c.l.b16 %v1479
        %v1650 = vunpack.c.l.b16 %v1480
        %v1651 = vpack.c.b16 %v1622, %v1621
        %v1652 = vpack.c.b16 %v1623, %v1623
        %v1653 = vpack.c.b16 %v1625, %v1624
        %v1654 = vpack.c.b16 %v1626, %v1626
        %v1655 = vpack.c.b16 %v1628, %v1627
        %v1656 = vpack.c.b16 %v1629, %v1629
        %v1657 = vpack.c.b16 %v1631, %v1630
        %v1658 = vpack.c.b16 %v1632, %v1632
        %v1659 = vpack.c.b16 %v1634, %v1633
        %v1660 = vpack.c.b16 %v1635, %v1635
        %v1661 = vpack.c.b16 %v1637, %v1636
        %v1662 = vpack.c.b16 %v1638, %v1638
        %v1663 = vpack.c.b16 %v1640, %v1639
        %v1664 = vpack.c.b16 %v1641, %v1641
        %v1665 = vpack.c.b16 %v1643, %v1642
        %v1666 = vpack.c.b16 %v1644, %v1644
        %v1667 = vpack.c.b16 %v1646, %v1645
        %v1668 = vpack.c.b16 %v1647, %v1647
        %v1669 = vpack.c.b16 %v1649, %v1648
        %v1670 = vpack.c.b16 %v1650, %v1650
        %1671 = vrot.lane.b32.xlu0 %v1651, 4
        %v1672 = vpop.permute.xlu0 %1671
        %1673 = vrot.lane.b32.xlu0 %v1652, 4
        %v1674 = vpop.permute.xlu0 %1673
        %1675 = vrot.lane.b32.xlu0 %v1653, 4
        %v1676 = vpop.permute.xlu0 %1675
        %1677 = vrot.lane.b32.xlu0 %v1654, 4
        %v1678 = vpop.permute.xlu0 %1677
        %1679 = vrot.lane.b32.xlu0 %v1655, 4
        %v1680 = vpop.permute.xlu0 %1679
        %1681 = vrot.lane.b32.xlu0 %v1656, 4
        %v1682 = vpop.permute.xlu0 %1681
        %1683 = vrot.lane.b32.xlu0 %v1657, 4
        %v1684 = vpop.permute.xlu0 %1683
        %1685 = vrot.lane.b32.xlu0 %v1658, 4
        %v1686 = vpop.permute.xlu0 %1685
        %1687 = vrot.lane.b32.xlu0 %v1659, 4
        %v1688 = vpop.permute.xlu0 %1687
        %1689 = vrot.lane.b32.xlu0 %v1660, 4
        %v1690 = vpop.permute.xlu0 %1689
        %1691 = vrot.lane.b32.xlu0 %v1661, 4
        %v1692 = vpop.permute.xlu0 %1691
        %1693 = vrot.lane.b32.xlu0 %v1662, 4
        %v1694 = vpop.permute.xlu0 %1693
        %1695 = vrot.lane.b32.xlu0 %v1663, 4
        %v1696 = vpop.permute.xlu0 %1695
        %1697 = vrot.lane.b32.xlu0 %v1664, 4
        %v1698 = vpop.permute.xlu0 %1697
        %1699 = vrot.lane.b32.xlu0 %v1665, 4
        %v1700 = vpop.permute.xlu0 %1699
        %1701 = vrot.lane.b32.xlu0 %v1666, 4
        %v1702 = vpop.permute.xlu0 %1701
        %1703 = vrot.lane.b32.xlu0 %v1667, 4
        %v1704 = vpop.permute.xlu0 %1703
        %1705 = vrot.lane.b32.xlu0 %v1668, 4
        %v1706 = vpop.permute.xlu0 %1705
        %1707 = vrot.lane.b32.xlu0 %v1669, 4
        %v1708 = vpop.permute.xlu0 %1707
        %1709 = vrot.lane.b32.xlu0 %v1670, 4
        %v1710 = vpop.permute.xlu0 %1709
        %v1741 = vunpack.c.l.b16 %v1481
        %v1742 = vunpack.c.l.b16 %v1482
        %v1743 = vunpack.c.l.b16 %v1483
        %v1744 = vunpack.c.l.b16 %v1484
        %v1745 = vunpack.c.l.b16 %v1485
        %v1746 = vunpack.c.l.b16 %v1486
        %v1747 = vunpack.c.l.b16 %v1487
        %v1748 = vunpack.c.l.b16 %v1488
        %v1749 = vunpack.c.l.b16 %v1489
        %v1750 = vunpack.c.l.b16 %v1490
        %v1751 = vunpack.c.l.b16 %v1491
        %v1752 = vunpack.c.l.b16 %v1492
        %v1753 = vunpack.c.l.b16 %v1493
        %v1754 = vunpack.c.l.b16 %v1494
        %v1755 = vunpack.c.l.b16 %v1495
        %v1756 = vunpack.c.l.b16 %v1496
        %v1757 = vunpack.c.l.b16 %v1497
        %v1758 = vunpack.c.l.b16 %v1498
        %v1759 = vunpack.c.l.b16 %v1499
        %v1760 = vunpack.c.l.b16 %v1500
        %v1761 = vunpack.c.l.b16 %v1501
        %v1762 = vunpack.c.l.b16 %v1502
        %v1763 = vunpack.c.l.b16 %v1503
        %v1764 = vunpack.c.l.b16 %v1504
        %v1765 = vunpack.c.l.b16 %v1505
        %v1766 = vunpack.c.l.b16 %v1506
        %v1767 = vunpack.c.l.b16 %v1507
        %v1768 = vunpack.c.l.b16 %v1508
        %v1769 = vunpack.c.l.b16 %v1509
        %v1770 = vunpack.c.l.b16 %v1510
        %v1771 = vpack.c.b16 %v1742, %v1741
        %v1772 = vpack.c.b16 %v1743, %v1743
        %v1773 = vpack.c.b16 %v1745, %v1744
        %v1774 = vpack.c.b16 %v1746, %v1746
        %v1775 = vpack.c.b16 %v1748, %v1747
        %v1776 = vpack.c.b16 %v1749, %v1749
        %v1777 = vpack.c.b16 %v1751, %v1750
        %v1778 = vpack.c.b16 %v1752, %v1752
        %v1779 = vpack.c.b16 %v1754, %v1753
        %v1780 = vpack.c.b16 %v1755, %v1755
        %v1781 = vpack.c.b16 %v1757, %v1756
        %v1782 = vpack.c.b16 %v1758, %v1758
        %v1783 = vpack.c.b16 %v1760, %v1759
        %v1784 = vpack.c.b16 %v1761, %v1761
        %v1785 = vpack.c.b16 %v1763, %v1762
        %v1786 = vpack.c.b16 %v1764, %v1764
        %v1787 = vpack.c.b16 %v1766, %v1765
        %v1788 = vpack.c.b16 %v1767, %v1767
        %v1789 = vpack.c.b16 %v1769, %v1768
        %v1790 = vpack.c.b16 %v1770, %v1770
        %1791 = vrot.lane.b32.xlu0 %v1771, 8
        %v1792 = vpop.permute.xlu0 %1791
        %1793 = vrot.lane.b32.xlu0 %v1772, 8
        %v1794 = vpop.permute.xlu0 %1793
        %1795 = vrot.lane.b32.xlu0 %v1773, 8
        %v1796 = vpop.permute.xlu0 %1795
        %1797 = vrot.lane.b32.xlu0 %v1774, 8
        %v1798 = vpop.permute.xlu0 %1797
        %1799 = vrot.lane.b32.xlu0 %v1775, 8
        %v1800 = vpop.permute.xlu0 %1799
        %1801 = vrot.lane.b32.xlu0 %v1776, 8
        %v1802 = vpop.permute.xlu0 %1801
        %1803 = vrot.lane.b32.xlu0 %v1777, 8
        %v1804 = vpop.permute.xlu0 %1803
        %1805 = vrot.lane.b32.xlu0 %v1778, 8
        %v1806 = vpop.permute.xlu0 %1805
        %1807 = vrot.lane.b32.xlu0 %v1779, 8
        %v1808 = vpop.permute.xlu0 %1807
        %1809 = vrot.lane.b32.xlu0 %v1780, 8
        %v1810 = vpop.permute.xlu0 %1809
        %1811 = vrot.lane.b32.xlu0 %v1781, 8
        %v1812 = vpop.permute.xlu0 %1811
        %1813 = vrot.lane.b32.xlu0 %v1782, 8
        %v1814 = vpop.permute.xlu0 %1813
        %1815 = vrot.lane.b32.xlu0 %v1783, 8
        %v1816 = vpop.permute.xlu0 %1815
        %1817 = vrot.lane.b32.xlu0 %v1784, 8
        %v1818 = vpop.permute.xlu0 %1817
        %1819 = vrot.lane.b32.xlu0 %v1785, 8
        %v1820 = vpop.permute.xlu0 %1819
        %1821 = vrot.lane.b32.xlu0 %v1786, 8
        %v1822 = vpop.permute.xlu0 %1821
        %1823 = vrot.lane.b32.xlu0 %v1787, 8
        %v1824 = vpop.permute.xlu0 %1823
        %1825 = vrot.lane.b32.xlu0 %v1788, 8
        %v1826 = vpop.permute.xlu0 %1825
        %1827 = vrot.lane.b32.xlu0 %v1789, 8
        %v1828 = vpop.permute.xlu0 %1827
        %1829 = vrot.lane.b32.xlu0 %v1790, 8
        %v1830 = vpop.permute.xlu0 %1829
        %v1833 = vsel %vm857, %v1571, %v1672
        %v1836 = vsel %vm857, %v1572, %v1674
        %v1839 = vsel %vm857, %v1573, %v1676
        %v1842 = vsel %vm857, %v1574, %v1678
        %v1845 = vsel %vm857, %v1575, %v1680
        %v1848 = vsel %vm857, %v1576, %v1682
        %v1851 = vsel %vm857, %v1577, %v1684
        %v1854 = vsel %vm857, %v1578, %v1686
        %v1857 = vsel %vm857, %v1579, %v1688
        %v1860 = vsel %vm857, %v1580, %v1690
        %v1863 = vsel %vm857, %v1581, %v1692
        %v1866 = vsel %vm857, %v1582, %v1694
        %v1869 = vsel %vm857, %v1583, %v1696
        %v1872 = vsel %vm857, %v1584, %v1698
        %v1875 = vsel %vm857, %v1585, %v1700
        %v1878 = vsel %vm857, %v1586, %v1702
        %v1881 = vsel %vm857, %v1587, %v1704
        %v1884 = vsel %vm857, %v1588, %v1706
        %v1887 = vsel %vm857, %v1589, %v1708
        %v1890 = vsel %vm857, %v1590, %v1710
        %v1892 = vsel %vm918, %v1833, %v1792
        %v1894 = vsel %vm918, %v1836, %v1794
        %v1896 = vsel %vm918, %v1839, %v1796
        %v1898 = vsel %vm918, %v1842, %v1798
        %v1900 = vsel %vm918, %v1845, %v1800
        %v1902 = vsel %vm918, %v1848, %v1802
        %v1904 = vsel %vm918, %v1851, %v1804
        %v1906 = vsel %vm918, %v1854, %v1806
        %v1908 = vsel %vm918, %v1857, %v1808
        %v1910 = vsel %vm918, %v1860, %v1810
        %v1912 = vsel %vm918, %v1863, %v1812
        %v1914 = vsel %vm918, %v1866, %v1814
        %v1916 = vsel %vm918, %v1869, %v1816
        %v1918 = vsel %vm918, %v1872, %v1818
        %v1920 = vsel %vm918, %v1875, %v1820
        %v1922 = vsel %vm918, %v1878, %v1822
        %v1924 = vsel %vm918, %v1881, %v1824
        %v1926 = vsel %vm918, %v1884, %v1826
        %v1928 = vsel %vm918, %v1887, %v1828
        %v1930 = vsel %vm918, %v1890, %v1830
        %vm1931 = vsmask.f32 7424
        %v1932 = vshrl.u32 %v1892, 16
        %v1934 = vshll.u32 %v1892, 16
        %v1936 = vrot.slane %v1934, 1
        %v1937 = vor.u32 %v1932, %v1936
        %v1938 = vshll.u32 %v1894, 16
        %v1940 = vrot.slane %v1938, 1
        %v1941 = vsel %vm1931, %v1937, %v1940
        %v1942 = vshrl.u32 %v1896, 16
        %v1944 = vshll.u32 %v1896, 16
        %v1946 = vrot.slane %v1944, 1
        %v1947 = vor.u32 %v1942, %v1946
        %v1948 = vshll.u32 %v1898, 16
        %v1950 = vrot.slane %v1948, 1
        %v1951 = vsel %vm1931, %v1947, %v1950
        %v1952 = vshrl.u32 %v1900, 16
        %v1954 = vshll.u32 %v1900, 16
        %v1956 = vrot.slane %v1954, 1
        %v1957 = vor.u32 %v1952, %v1956
        %v1958 = vshll.u32 %v1902, 16
        %v1960 = vrot.slane %v1958, 1
        %v1961 = vsel %vm1931, %v1957, %v1960
        %v1962 = vshrl.u32 %v1904, 16
        %v1964 = vshll.u32 %v1904, 16
        %v1966 = vrot.slane %v1964, 1
        %v1967 = vor.u32 %v1962, %v1966
        %v1968 = vshll.u32 %v1906, 16
        %v1970 = vrot.slane %v1968, 1
        %v1971 = vsel %vm1931, %v1967, %v1970
        %v1972 = vshrl.u32 %v1908, 16
        %v1974 = vshll.u32 %v1908, 16
        %v1976 = vrot.slane %v1974, 1
        %v1977 = vor.u32 %v1972, %v1976
        %v1978 = vshll.u32 %v1910, 16
        %v1980 = vrot.slane %v1978, 1
        %v1981 = vsel %vm1931, %v1977, %v1980
        %v1982 = vshrl.u32 %v1912, 16
        %v1984 = vshll.u32 %v1912, 16
        %v1986 = vrot.slane %v1984, 1
        %v1987 = vor.u32 %v1982, %v1986
        %v1988 = vshll.u32 %v1914, 16
        %v1990 = vrot.slane %v1988, 1
        %v1991 = vsel %vm1931, %v1987, %v1990
        %v1992 = vshrl.u32 %v1916, 16
        %v1994 = vshll.u32 %v1916, 16
        %v1996 = vrot.slane %v1994, 1
        %v1997 = vor.u32 %v1992, %v1996
        %v1998 = vshll.u32 %v1918, 16
        %v2000 = vrot.slane %v1998, 1
        %v2001 = vsel %vm1931, %v1997, %v2000
        %v2002 = vshrl.u32 %v1920, 16
        %v2004 = vshll.u32 %v1920, 16
        %v2006 = vrot.slane %v2004, 1
        %v2007 = vor.u32 %v2002, %v2006
        %v2008 = vshll.u32 %v1922, 16
        %v2010 = vrot.slane %v2008, 1
        %v2011 = vsel %vm1931, %v2007, %v2010
        %v2012 = vshrl.u32 %v1924, 16
        %v2014 = vshll.u32 %v1924, 16
        %v2016 = vrot.slane %v2014, 1
        %v2017 = vor.u32 %v2012, %v2016
        %v2018 = vshll.u32 %v1926, 16
        %v2020 = vrot.slane %v2018, 1
        %v2021 = vsel %vm1931, %v2017, %v2020
        %v2022 = vshrl.u32 %v1928, 16
        %v2024 = vshll.u32 %v1928, 16
        %v2026 = vrot.slane %v2024, 1
        %v2027 = vor.u32 %v2022, %v2026
        %v2028 = vshll.u32 %v1930, 16
        %v2030 = vrot.slane %v2028, 1
        %v2031 = vsel %vm1931, %v2027, %v2030
        %s2032 = scalar_lea.vmem %s1, 16
        %v2033 = vld [vmem:[%s2032] sm:$0xf]
        %v2034 = vld [vmem:[%s2032 + $0x4] sm:$0x3]
        %v2037 = vunpack.c.l.b16 %v2033
        %v2038 = vunpack.c.l.b16 %v2034
        %v2039 = vpack.c.b16 %v2038, %v2037
        %v2041 = vsel %vm1240, %v1941, 0
        %v2044 = vsel %vm1240, %v1951, 0
        %v2047 = vsel %vm1240, %v1961, 0
        %v2050 = vsel %vm1240, %v1971, 0
        %v2053 = vsel %vm1240, %v1981, 0
        %v2056 = vsel %vm1240, %v1991, 0
        %v2059 = vsel %vm1240, %v2001, 0
        %v2062 = vsel %vm1240, %v2011, 0
        %v2065 = vsel %vm1240, %v2021, 0
        %v2068 = vsel %vm1240, %v2031, 0
        %v2071 = vsel %vm1261, %v2039, 0
        %2073 = vmatpush.bf16.msra.mxu0 0
        %2074 = vmatpush.bf16.msra.mxu0 0
        %2075 = vmatpush.bf16.msra.mxu0 0
        %2076 = vmatpush.bf16.msra.mxu0 0
        %2077 = vmatpush.bf16.msra.mxu0 0
        %2078 = vmatpush.bf16.msra.mxu0 0
        %2079 = vmatpush.bf16.msra.mxu0 0
        %2080 = vmatpush.bf16.msra.mxu0 %v2071
        %2081 = vmatmul.bf16.gmra.mxu0 %v2041
        %v2082 = vpop.f32.mrf.mxu0
        %v2083 = vadd.f32 0.0, %v2082
        %v2084 = vpop.f32.mrf.mxu0
        %v2085 = vadd.f32 0.0, %v2084
        %2086 = vmatmul.bf16.gmra.mxu0 %v2044
        %v2087 = vpop.f32.mrf.mxu0
        %v2088 = vadd.f32 0.0, %v2087
        %v2089 = vpop.f32.mrf.mxu0
        %v2090 = vadd.f32 0.0, %v2089
        %2091 = vmatmul.bf16.gmra.mxu0 %v2047
        %v2092 = vpop.f32.mrf.mxu0
        %v2093 = vadd.f32 0.0, %v2092
        %v2094 = vpop.f32.mrf.mxu0
        %v2095 = vadd.f32 0.0, %v2094
        %2096 = vmatmul.bf16.gmra.mxu0 %v2050
        %v2097 = vpop.f32.mrf.mxu0
        %v2098 = vadd.f32 0.0, %v2097
        %v2099 = vpop.f32.mrf.mxu0
        %v2100 = vadd.f32 0.0, %v2099
        %2101 = vmatmul.bf16.gmra.mxu0 %v2053
        %v2102 = vpop.f32.mrf.mxu0
        %v2103 = vadd.f32 0.0, %v2102
        %v2104 = vpop.f32.mrf.mxu0
        %v2105 = vadd.f32 0.0, %v2104
        %2106 = vmatmul.bf16.gmra.mxu0 %v2056
        %v2107 = vpop.f32.mrf.mxu0
        %v2108 = vadd.f32 0.0, %v2107
        %v2109 = vpop.f32.mrf.mxu0
        %v2110 = vadd.f32 0.0, %v2109
        %2111 = vmatmul.bf16.gmra.mxu0 %v2059
        %v2112 = vpop.f32.mrf.mxu0
        %v2113 = vadd.f32 0.0, %v2112
        %v2114 = vpop.f32.mrf.mxu0
        %v2115 = vadd.f32 0.0, %v2114
        %2116 = vmatmul.bf16.gmra.mxu0 %v2062
        %v2117 = vpop.f32.mrf.mxu0
        %v2118 = vadd.f32 0.0, %v2117
        %v2119 = vpop.f32.mrf.mxu0
        %v2120 = vadd.f32 0.0, %v2119
        %2121 = vmatmul.bf16.gmra.mxu0 %v2065
        %v2122 = vpop.f32.mrf.mxu0
        %v2123 = vadd.f32 0.0, %v2122
        %v2124 = vpop.f32.mrf.mxu0
        %v2125 = vadd.f32 0.0, %v2124
        %2126 = vmatmul.bf16.gmra.mxu0 %v2068
        %v2127 = vpop.f32.mrf.mxu0
        %v2128 = vadd.f32 0.0, %v2127
        %v2129 = vpop.f32.mrf.mxu0
        %v2130 = vadd.f32 0.0, %v2129
        %2131 = vdwg.mxu0
        %v2132 = vadd.f32 %v1372, %v2083
        %v2133 = vadd.f32 %v1374, %v2085
        %v2134 = vadd.f32 %v1377, %v2088
        %v2135 = vadd.f32 %v1379, %v2090
        %v2136 = vadd.f32 %v1382, %v2093
        %v2137 = vadd.f32 %v1384, %v2095
        %v2138 = vadd.f32 %v1387, %v2098
        %v2139 = vadd.f32 %v1389, %v2100
        %v2140 = vadd.f32 %v1392, %v2103
        %v2141 = vadd.f32 %v1394, %v2105
        %v2142 = vadd.f32 %v1397, %v2108
        %v2143 = vadd.f32 %v1399, %v2110
        %v2144 = vadd.f32 %v1402, %v2113
        %v2145 = vadd.f32 %v1404, %v2115
        %v2146 = vadd.f32 %v1407, %v2118
        %v2147 = vadd.f32 %v1409, %v2120
        %v2148 = vadd.f32 %v1412, %v2123
        %v2149 = vadd.f32 %v1414, %v2125
        %v2150 = vadd.f32 %v1417, %v2128
        %v2151 = vadd.f32 %v1419, %v2130
        %v2152 = vld [vmem:[%s2] sm:$0x1]
        %v2154 = vperm.slane %v2152, 0
        %v2156 = vmul.f32 %v2132, %v2154
        %v2157 = vmul.f32 %v2133, %v2154
        %v2158 = vmul.f32 %v2134, %v2154
        %v2159 = vmul.f32 %v2135, %v2154
        %v2160 = vmul.f32 %v2136, %v2154
        %v2161 = vmul.f32 %v2137, %v2154
        %v2162 = vmul.f32 %v2138, %v2154
        %v2163 = vmul.f32 %v2139, %v2154
        %v2164 = vmul.f32 %v2140, %v2154
        %v2165 = vmul.f32 %v2141, %v2154
        %v2166 = vmul.f32 %v2142, %v2154
        %v2167 = vmul.f32 %v2143, %v2154
        %v2168 = vmul.f32 %v2144, %v2154
        %v2169 = vmul.f32 %v2145, %v2154
        %v2170 = vmul.f32 %v2146, %v2154
        %v2171 = vmul.f32 %v2147, %v2154
        %v2172 = vmul.f32 %v2148, %v2154
        %v2173 = vmul.f32 %v2149, %v2154
        %v2174 = vmul.f32 %v2150, %v2154
        %v2175 = vmul.f32 %v2151, %v2154
        %v2176 = vld [vmem:[%s3] sm:$0x1]
        %v2178 = vperm.slane %v2176, 0
        %v2180 = vadd.f32 %v2156, %v2178
        %v2181 = vadd.f32 %v2157, %v2178
        %v2182 = vadd.f32 %v2158, %v2178
        %v2183 = vadd.f32 %v2159, %v2178
        %v2184 = vadd.f32 %v2160, %v2178
        %v2185 = vadd.f32 %v2161, %v2178
        %v2186 = vadd.f32 %v2162, %v2178
        %v2187 = vadd.f32 %v2163, %v2178
        %v2188 = vadd.f32 %v2164, %v2178
        %v2189 = vadd.f32 %v2165, %v2178
        %v2190 = vadd.f32 %v2166, %v2178
        %v2191 = vadd.f32 %v2167, %v2178
        %v2192 = vadd.f32 %v2168, %v2178
        %v2193 = vadd.f32 %v2169, %v2178
        %v2194 = vadd.f32 %v2170, %v2178
        %v2195 = vadd.f32 %v2171, %v2178
        %v2196 = vadd.f32 %v2172, %v2178
        %v2197 = vadd.f32 %v2173, %v2178
        %v2198 = vadd.f32 %v2174, %v2178
        %v2199 = vadd.f32 %v2175, %v2178
        %v2200 = vmax.f32 %v2180, 0.0
        %v2201 = vmax.f32 %v2181, 0.0
        %v2202 = vmax.f32 %v2182, 0.0
        %v2203 = vmax.f32 %v2183, 0.0
        %v2204 = vmax.f32 %v2184, 0.0
        %v2205 = vmax.f32 %v2185, 0.0
        %v2206 = vmax.f32 %v2186, 0.0
        %v2207 = vmax.f32 %v2187, 0.0
        %v2208 = vmax.f32 %v2188, 0.0
        %v2209 = vmax.f32 %v2189, 0.0
        %v2210 = vmax.f32 %v2190, 0.0
        %v2211 = vmax.f32 %v2191, 0.0
        %v2212 = vmax.f32 %v2192, 0.0
        %v2213 = vmax.f32 %v2193, 0.0
        %v2214 = vmax.f32 %v2194, 0.0
        %v2215 = vmax.f32 %v2195, 0.0
        %v2216 = vmax.f32 %v2196, 0.0
        %v2217 = vmax.f32 %v2197, 0.0
        %v2218 = vmax.f32 %v2198, 0.0
        %v2219 = vmax.f32 %v2199, 0.0
        %2220 = vst [vmem:[#allocation3] sm:$0xf] 0
        %2221 = vst [vmem:[#allocation3 + $0x4] sm:$0xf] 0
        %2222 = vst [vmem:[#allocation3 + $0x18] sm:$0xf] 0
        %2223 = vst [vmem:[#allocation3 + $0x1c] sm:$0xf] 0
        %2224 = vst [vmem:[#allocation3 + $0x30] sm:$0xf] 0
        %2225 = vst [vmem:[#allocation3 + $0x34] sm:$0xf] 0
        %2226 = vst [vmem:[#allocation3 + $0x48] sm:$0xf] 0
        %2227 = vst [vmem:[#allocation3 + $0x4c] sm:$0xf] 0
        %2228 = vst [vmem:[#allocation3 + $0x60] sm:$0xf] 0
        %2229 = vst [vmem:[#allocation3 + $0x64] sm:$0xf] 0
        %2230 = vst [vmem:[#allocation3 + $0x78] sm:$0xf] 0
        %2231 = vst [vmem:[#allocation3 + $0x7c] sm:$0xf] 0
        %2232 = vst [vmem:[#allocation3 + $0x90] sm:$0xf] 0
        %2233 = vst [vmem:[#allocation3 + $0x94] sm:$0xf] 0
        %2234 = vst [vmem:[#allocation3 + $0xa8] sm:$0xf] 0
        %2235 = vst [vmem:[#allocation3 + $0xac] sm:$0xf] 0
        %2236 = vst [vmem:[#allocation3 + $0xc0] sm:$0xf] 0
        %2237 = vst [vmem:[#allocation3 + $0xc4] sm:$0xf] 0
        %2238 = vst [vmem:[#allocation3 + $0xd8] sm:$0xf] 0
        %2239 = vst [vmem:[#allocation3 + $0xdc] sm:$0xf] 0
        %2240 = vst [vmem:[#allocation3 + $0x10] sm:$0xf] 0
        %2241 = vst [vmem:[#allocation3 + $0x14] sm:$0xf] 0
        %2242 = vst [vmem:[#allocation3 + $0x28] sm:$0xf] 0
        %2243 = vst [vmem:[#allocation3 + $0x2c] sm:$0xf] 0
        %2244 = vst [vmem:[#allocation3 + $0x40] sm:$0xf] 0
        %2245 = vst [vmem:[#allocation3 + $0x44] sm:$0xf] 0
        %2246 = vst [vmem:[#allocation3 + $0x58] sm:$0xf] 0
        %2247 = vst [vmem:[#allocation3 + $0x5c] sm:$0xf] 0
        %2248 = vst [vmem:[#allocation3 + $0x70] sm:$0xf] 0
        %2249 = vst [vmem:[#allocation3 + $0x74] sm:$0xf] 0
        %2250 = vst [vmem:[#allocation3 + $0x88] sm:$0xf] 0
        %2251 = vst [vmem:[#allocation3 + $0x8c] sm:$0xf] 0
        %2252 = vst [vmem:[#allocation3 + $0xa0] sm:$0xf] 0
        %2253 = vst [vmem:[#allocation3 + $0xa4] sm:$0xf] 0
        %2254 = vst [vmem:[#allocation3 + $0xb8] sm:$0xf] 0
        %2255 = vst [vmem:[#allocation3 + $0xbc] sm:$0xf] 0
        %2256 = vst [vmem:[#allocation3 + $0xd0] sm:$0xf] 0
        %2257 = vst [vmem:[#allocation3 + $0xd4] sm:$0xf] 0
        %2258 = vst [vmem:[#allocation3 + $0xe8] sm:$0xf] 0
        %2259 = vst [vmem:[#allocation3 + $0xec] sm:$0xf] 0
        %v2260 = vpack.c.bf16 %v2200, %v2200
        %v2261 = vpack.c.bf16 %v2201, %v2201
        %v2262 = vpack.c.bf16 %v2202, %v2202
        %v2263 = vpack.c.bf16 %v2203, %v2203
        %v2264 = vpack.c.bf16 %v2204, %v2204
        %v2265 = vpack.c.bf16 %v2205, %v2205
        %v2266 = vpack.c.bf16 %v2206, %v2206
        %v2267 = vpack.c.bf16 %v2207, %v2207
        %v2268 = vpack.c.bf16 %v2208, %v2208
        %v2269 = vpack.c.bf16 %v2209, %v2209
        %v2270 = vpack.c.bf16 %v2210, %v2210
        %v2271 = vpack.c.bf16 %v2211, %v2211
        %v2272 = vpack.c.bf16 %v2212, %v2212
        %v2273 = vpack.c.bf16 %v2213, %v2213
        %v2274 = vpack.c.bf16 %v2214, %v2214
        %v2275 = vpack.c.bf16 %v2215, %v2215
        %v2276 = vpack.c.bf16 %v2216, %v2216
        %v2277 = vpack.c.bf16 %v2217, %v2217
        %v2278 = vpack.c.bf16 %v2218, %v2218
        %v2279 = vpack.c.bf16 %v2219, %v2219
        %2280 = vst [vmem:[#allocation3 + $0x8] sm:$0xf] %v2260
        %2281 = vst [vmem:[#allocation3 + $0xc] sm:$0xf] %v2261
        %2282 = vst [vmem:[#allocation3 + $0x20] sm:$0xf] %v2262
        %2283 = vst [vmem:[#allocation3 + $0x24] sm:$0xf] %v2263
        %2284 = vst [vmem:[#allocation3 + $0x38] sm:$0xf] %v2264
        %2285 = vst [vmem:[#allocation3 + $0x3c] sm:$0xf] %v2265
        %2286 = vst [vmem:[#allocation3 + $0x50] sm:$0xf] %v2266
        %2287 = vst [vmem:[#allocation3 + $0x54] sm:$0xf] %v2267
        %2288 = vst [vmem:[#allocation3 + $0x68] sm:$0xf] %v2268
        %2289 = vst [vmem:[#allocation3 + $0x6c] sm:$0xf] %v2269
        %2290 = vst [vmem:[#allocation3 + $0x80] sm:$0xf] %v2270
        %2291 = vst [vmem:[#allocation3 + $0x84] sm:$0xf] %v2271
        %2292 = vst [vmem:[#allocation3 + $0x98] sm:$0xf] %v2272
        %2293 = vst [vmem:[#allocation3 + $0x9c] sm:$0xf] %v2273
        %2294 = vst [vmem:[#allocation3 + $0xb0] sm:$0xf] %v2274
        %2295 = vst [vmem:[#allocation3 + $0xb4] sm:$0xf] %v2275
        %2296 = vst [vmem:[#allocation3 + $0xc8] sm:$0xf] %v2276
        %2297 = vst [vmem:[#allocation3 + $0xcc] sm:$0xf] %v2277
        %2298 = vst [vmem:[#allocation3 + $0xe0] sm:$0xf] %v2278
        %2299 = vst [vmem:[#allocation3 + $0xe4] sm:$0xf] %v2279
        // Predicated region
        $region69: #{tpu_custom_call.1} parent=47 // pred_check
          %p2300 = pneg %p412
        $region70: #{tpu_custom_call.1} parent=47 // pred_check_branch
          %2302 = sbr.rel (%p2300) target = $region72
        $region71: #{tpu_custom_call.1} parent=47 // pred_region
          %2303 = vst [vmem:[#allocation3 + $0x8] sm:$0xf] 0
          %2304 = vst [vmem:[#allocation3 + $0xc] sm:$0xf] 0
        $region72: #{tpu_custom_call.1} parent=47 // pred_fallthru
          _
        // Predicated region
        $region73: #{tpu_custom_call.1} parent=47 // pred_check
          %p2305 = pneg %p437
        $region74: #{tpu_custom_call.1} parent=47 // pred_check_branch
          %2307 = sbr.rel (%p2305) target = $region76
        $region75: #{tpu_custom_call.1} parent=47 // pred_region
          %s2308 = scalar_lea.vmem [#allocation3], 216
          %2309 = vst [vmem:[%s2308 + $0x8] sm:$0xf] 0
          %2310 = vst [vmem:[%s2308 + $0xc] sm:$0xf] 0
        $region76: #{tpu_custom_call.1} parent=47 // pred_fallthru
          _
        %v2311 = vld [vmem:[#allocation3 + $0x4] sm:$0x8]
        %v2312 = vld [vmem:[#allocation3 + $0x8] sm:$0xf]
        %v2313 = vld [vmem:[#allocation3 + $0xc] sm:$0xf]
        %v2314 = vld [vmem:[#allocation3 + $0x1c] sm:$0x8]
        %v2315 = vld [vmem:[#allocation3 + $0x20] sm:$0xf]
        %v2316 = vld [vmem:[#allocation3 + $0x24] sm:$0xf]
        %v2317 = vld [vmem:[#allocation3 + $0x34] sm:$0x8]
        %v2318 = vld [vmem:[#allocation3 + $0x38] sm:$0xf]
        %v2319 = vld [vmem:[#allocation3 + $0x3c] sm:$0xf]
        %v2320 = vld [vmem:[#allocation3 + $0x4c] sm:$0x8]
        %v2321 = vld [vmem:[#allocation3 + $0x50] sm:$0xf]
        %v2322 = vld [vmem:[#allocation3 + $0x54] sm:$0xf]
        %v2323 = vld [vmem:[#allocation3 + $0x64] sm:$0x8]
        %v2324 = vld [vmem:[#allocation3 + $0x68] sm:$0xf]
        %v2325 = vld [vmem:[#allocation3 + $0x6c] sm:$0xf]
        %v2326 = vld [vmem:[#allocation3 + $0x7c] sm:$0x8]
        %v2327 = vld [vmem:[#allocation3 + $0x80] sm:$0xf]
        %v2328 = vld [vmem:[#allocation3 + $0x84] sm:$0xf]
        %v2329 = vld [vmem:[#allocation3 + $0x94] sm:$0x8]
        %v2330 = vld [vmem:[#allocation3 + $0x98] sm:$0xf]
        %v2331 = vld [vmem:[#allocation3 + $0x9c] sm:$0xf]
        %v2332 = vld [vmem:[#allocation3 + $0xac] sm:$0x8]
        %v2333 = vld [vmem:[#allocation3 + $0xb0] sm:$0xf]
        %v2334 = vld [vmem:[#allocation3 + $0xb4] sm:$0xf]
        %s2335 = scalar_lea.vmem [#allocation3], 24
        %v2336 = vld [vmem:[%s2335 + $0x4] sm:$0x8]
        %v2337 = vld [vmem:[%s2335 + $0x8] sm:$0xf]
        %v2338 = vld [vmem:[%s2335 + $0xc] sm:$0xf]
        %v2339 = vld [vmem:[%s2335 + $0x1c] sm:$0x8]
        %v2340 = vld [vmem:[%s2335 + $0x20] sm:$0xf]
        %v2341 = vld [vmem:[%s2335 + $0x24] sm:$0xf]
        %v2342 = vld [vmem:[%s2335 + $0x34] sm:$0x8]
        %v2343 = vld [vmem:[%s2335 + $0x38] sm:$0xf]
        %v2344 = vld [vmem:[%s2335 + $0x3c] sm:$0xf]
        %v2345 = vld [vmem:[%s2335 + $0x4c] sm:$0x8]
        %v2346 = vld [vmem:[%s2335 + $0x50] sm:$0xf]
        %v2347 = vld [vmem:[%s2335 + $0x54] sm:$0xf]
        %v2348 = vld [vmem:[%s2335 + $0x64] sm:$0x8]
        %v2349 = vld [vmem:[%s2335 + $0x68] sm:$0xf]
        %v2350 = vld [vmem:[%s2335 + $0x6c] sm:$0xf]
        %v2351 = vld [vmem:[%s2335 + $0x7c] sm:$0x8]
        %v2352 = vld [vmem:[%s2335 + $0x80] sm:$0xf]
        %v2353 = vld [vmem:[%s2335 + $0x84] sm:$0xf]
        %v2354 = vld [vmem:[%s2335 + $0x94] sm:$0x8]
        %v2355 = vld [vmem:[%s2335 + $0x98] sm:$0xf]
        %v2356 = vld [vmem:[%s2335 + $0x9c] sm:$0xf]
        %v2357 = vld [vmem:[%s2335 + $0xac] sm:$0x8]
        %v2358 = vld [vmem:[%s2335 + $0xb0] sm:$0xf]
        %v2359 = vld [vmem:[%s2335 + $0xb4] sm:$0xf]
        %s2360 = scalar_lea.vmem [#allocation3], 48
        %v2361 = vld [vmem:[%s2360 + $0x4] sm:$0x8]
        %v2362 = vld [vmem:[%s2360 + $0x8] sm:$0xf]
        %v2363 = vld [vmem:[%s2360 + $0xc] sm:$0xf]
        %v2364 = vld [vmem:[%s2360 + $0x1c] sm:$0x8]
        %v2365 = vld [vmem:[%s2360 + $0x20] sm:$0xf]
        %v2366 = vld [vmem:[%s2360 + $0x24] sm:$0xf]
        %v2367 = vld [vmem:[%s2360 + $0x34] sm:$0x8]
        %v2368 = vld [vmem:[%s2360 + $0x38] sm:$0xf]
        %v2369 = vld [vmem:[%s2360 + $0x3c] sm:$0xf]
        %v2370 = vld [vmem:[%s2360 + $0x4c] sm:$0x8]
        %v2371 = vld [vmem:[%s2360 + $0x50] sm:$0xf]
        %v2372 = vld [vmem:[%s2360 + $0x54] sm:$0xf]
        %v2373 = vld [vmem:[%s2360 + $0x64] sm:$0x8]
        %v2374 = vld [vmem:[%s2360 + $0x68] sm:$0xf]
        %v2375 = vld [vmem:[%s2360 + $0x6c] sm:$0xf]
        %v2376 = vld [vmem:[%s2360 + $0x7c] sm:$0x8]
        %v2377 = vld [vmem:[%s2360 + $0x80] sm:$0xf]
        %v2378 = vld [vmem:[%s2360 + $0x84] sm:$0xf]
        %v2379 = vld [vmem:[%s2360 + $0x94] sm:$0x8]
        %v2380 = vld [vmem:[%s2360 + $0x98] sm:$0xf]
        %v2381 = vld [vmem:[%s2360 + $0x9c] sm:$0xf]
        %v2382 = vld [vmem:[%s2360 + $0xac] sm:$0x8]
        %v2383 = vld [vmem:[%s2360 + $0xb0] sm:$0xf]
        %v2384 = vld [vmem:[%s2360 + $0xb4] sm:$0xf]
        %v2409 = vunpack.c.l.b16 %v2311
        %v2410 = vunpack.c.l.b16 %v2312
        %v2411 = vunpack.c.l.b16 %v2313
        %v2412 = vunpack.c.l.b16 %v2314
        %v2413 = vunpack.c.l.b16 %v2315
        %v2414 = vunpack.c.l.b16 %v2316
        %v2415 = vunpack.c.l.b16 %v2317
        %v2416 = vunpack.c.l.b16 %v2318
        %v2417 = vunpack.c.l.b16 %v2319
        %v2418 = vunpack.c.l.b16 %v2320
        %v2419 = vunpack.c.l.b16 %v2321
        %v2420 = vunpack.c.l.b16 %v2322
        %v2421 = vunpack.c.l.b16 %v2323
        %v2422 = vunpack.c.l.b16 %v2324
        %v2423 = vunpack.c.l.b16 %v2325
        %v2424 = vunpack.c.l.b16 %v2326
        %v2425 = vunpack.c.l.b16 %v2327
        %v2426 = vunpack.c.l.b16 %v2328
        %v2427 = vunpack.c.l.b16 %v2329
        %v2428 = vunpack.c.l.b16 %v2330
        %v2429 = vunpack.c.l.b16 %v2331
        %v2430 = vunpack.c.l.b16 %v2332
        %v2431 = vunpack.c.l.b16 %v2333
        %v2432 = vunpack.c.l.b16 %v2334
        %v2433 = vpack.c.b16 %v2410, %v2409
        %v2434 = vpack.c.b16 %v2411, %v2411
        %v2435 = vpack.c.b16 %v2413, %v2412
        %v2436 = vpack.c.b16 %v2414, %v2414
        %v2437 = vpack.c.b16 %v2416, %v2415
        %v2438 = vpack.c.b16 %v2417, %v2417
        %v2439 = vpack.c.b16 %v2419, %v2418
        %v2440 = vpack.c.b16 %v2420, %v2420
        %v2441 = vpack.c.b16 %v2422, %v2421
        %v2442 = vpack.c.b16 %v2423, %v2423
        %v2443 = vpack.c.b16 %v2425, %v2424
        %v2444 = vpack.c.b16 %v2426, %v2426
        %v2445 = vpack.c.b16 %v2428, %v2427
        %v2446 = vpack.c.b16 %v2429, %v2429
        %v2447 = vpack.c.b16 %v2431, %v2430
        %v2448 = vpack.c.b16 %v2432, %v2432
        %v2473 = vunpack.c.l.b16 %v2336
        %v2474 = vunpack.c.l.b16 %v2337
        %v2475 = vunpack.c.l.b16 %v2338
        %v2476 = vunpack.c.l.b16 %v2339
        %v2477 = vunpack.c.l.b16 %v2340
        %v2478 = vunpack.c.l.b16 %v2341
        %v2479 = vunpack.c.l.b16 %v2342
        %v2480 = vunpack.c.l.b16 %v2343
        %v2481 = vunpack.c.l.b16 %v2344
        %v2482 = vunpack.c.l.b16 %v2345
        %v2483 = vunpack.c.l.b16 %v2346
        %v2484 = vunpack.c.l.b16 %v2347
        %v2485 = vunpack.c.l.b16 %v2348
        %v2486 = vunpack.c.l.b16 %v2349
        %v2487 = vunpack.c.l.b16 %v2350
        %v2488 = vunpack.c.l.b16 %v2351
        %v2489 = vunpack.c.l.b16 %v2352
        %v2490 = vunpack.c.l.b16 %v2353
        %v2491 = vunpack.c.l.b16 %v2354
        %v2492 = vunpack.c.l.b16 %v2355
        %v2493 = vunpack.c.l.b16 %v2356
        %v2494 = vunpack.c.l.b16 %v2357
        %v2495 = vunpack.c.l.b16 %v2358
        %v2496 = vunpack.c.l.b16 %v2359
        %v2497 = vpack.c.b16 %v2474, %v2473
        %v2498 = vpack.c.b16 %v2475, %v2475
        %v2499 = vpack.c.b16 %v2477, %v2476
        %v2500 = vpack.c.b16 %v2478, %v2478
        %v2501 = vpack.c.b16 %v2480, %v2479
        %v2502 = vpack.c.b16 %v2481, %v2481
        %v2503 = vpack.c.b16 %v2483, %v2482
        %v2504 = vpack.c.b16 %v2484, %v2484
        %v2505 = vpack.c.b16 %v2486, %v2485
        %v2506 = vpack.c.b16 %v2487, %v2487
        %v2507 = vpack.c.b16 %v2489, %v2488
        %v2508 = vpack.c.b16 %v2490, %v2490
        %v2509 = vpack.c.b16 %v2492, %v2491
        %v2510 = vpack.c.b16 %v2493, %v2493
        %v2511 = vpack.c.b16 %v2495, %v2494
        %v2512 = vpack.c.b16 %v2496, %v2496
        %v2537 = vunpack.c.l.b16 %v2361
        %v2538 = vunpack.c.l.b16 %v2362
        %v2539 = vunpack.c.l.b16 %v2363
        %v2540 = vunpack.c.l.b16 %v2364
        %v2541 = vunpack.c.l.b16 %v2365
        %v2542 = vunpack.c.l.b16 %v2366
        %v2543 = vunpack.c.l.b16 %v2367
        %v2544 = vunpack.c.l.b16 %v2368
        %v2545 = vunpack.c.l.b16 %v2369
        %v2546 = vunpack.c.l.b16 %v2370
        %v2547 = vunpack.c.l.b16 %v2371
        %v2548 = vunpack.c.l.b16 %v2372
        %v2549 = vunpack.c.l.b16 %v2373
        %v2550 = vunpack.c.l.b16 %v2374
        %v2551 = vunpack.c.l.b16 %v2375
        %v2552 = vunpack.c.l.b16 %v2376
        %v2553 = vunpack.c.l.b16 %v2377
        %v2554 = vunpack.c.l.b16 %v2378
        %v2555 = vunpack.c.l.b16 %v2379
        %v2556 = vunpack.c.l.b16 %v2380
        %v2557 = vunpack.c.l.b16 %v2381
        %v2558 = vunpack.c.l.b16 %v2382
        %v2559 = vunpack.c.l.b16 %v2383
        %v2560 = vunpack.c.l.b16 %v2384
        %v2561 = vpack.c.b16 %v2538, %v2537
        %v2562 = vpack.c.b16 %v2539, %v2539
        %v2563 = vpack.c.b16 %v2541, %v2540
        %v2564 = vpack.c.b16 %v2542, %v2542
        %v2565 = vpack.c.b16 %v2544, %v2543
        %v2566 = vpack.c.b16 %v2545, %v2545
        %v2567 = vpack.c.b16 %v2547, %v2546
        %v2568 = vpack.c.b16 %v2548, %v2548
        %v2569 = vpack.c.b16 %v2550, %v2549
        %v2570 = vpack.c.b16 %v2551, %v2551
        %v2571 = vpack.c.b16 %v2553, %v2552
        %v2572 = vpack.c.b16 %v2554, %v2554
        %v2573 = vpack.c.b16 %v2556, %v2555
        %v2574 = vpack.c.b16 %v2557, %v2557
        %v2575 = vpack.c.b16 %v2559, %v2558
        %v2576 = vpack.c.b16 %v2560, %v2560
        %v2578 = vshrl.u32 %v2433, 16
        %v2580 = vrot.slane %v2578, 3
        %v2581 = vshll.u32 %v2433, 16
        %v2583 = vrot.slane %v2581, 4
        %v2584 = vor.u32 %v2580, %v2583
        %v2586 = vshrl.u32 %v2434, 16
        %v2588 = vrot.slane %v2586, 3
        %v2589 = vshll.u32 %v2434, 16
        %v2591 = vrot.slane %v2589, 4
        %v2592 = vor.u32 %v2588, %v2591
        %v2593 = vsel %vm959, %v2584, %v2592
        %v2595 = vshrl.u32 %v2497, 16
        %v2597 = vrot.slane %v2595, 3
        %v2598 = vshll.u32 %v2497, 16
        %v2600 = vrot.slane %v2598, 4
        %v2601 = vor.u32 %v2597, %v2600
        %v2603 = vshrl.u32 %v2498, 16
        %v2605 = vrot.slane %v2603, 3
        %v2606 = vshll.u32 %v2498, 16
        %v2608 = vrot.slane %v2606, 4
        %v2609 = vor.u32 %v2605, %v2608
        %v2610 = vsel %vm959, %v2601, %v2609
        %v2612 = vshrl.u32 %v2561, 16
        %v2614 = vrot.slane %v2612, 3
        %v2615 = vshll.u32 %v2561, 16
        %v2617 = vrot.slane %v2615, 4
        %v2618 = vor.u32 %v2614, %v2617
        %v2620 = vshrl.u32 %v2562, 16
        %v2622 = vrot.slane %v2620, 3
        %v2623 = vshll.u32 %v2562, 16
        %v2625 = vrot.slane %v2623, 4
        %v2626 = vor.u32 %v2622, %v2625
        %v2627 = vsel %vm959, %v2618, %v2626
        %v2629 = vshrl.u32 %v2435, 16
        %v2631 = vrot.slane %v2629, 3
        %v2632 = vshll.u32 %v2435, 16
        %v2634 = vrot.slane %v2632, 4
        %v2635 = vor.u32 %v2631, %v2634
        %v2637 = vshrl.u32 %v2436, 16
        %v2639 = vrot.slane %v2637, 3
        %v2640 = vshll.u32 %v2436, 16
        %v2642 = vrot.slane %v2640, 4
        %v2643 = vor.u32 %v2639, %v2642
        %v2644 = vsel %vm959, %v2635, %v2643
        %v2646 = vshrl.u32 %v2499, 16
        %v2648 = vrot.slane %v2646, 3
        %v2649 = vshll.u32 %v2499, 16
        %v2651 = vrot.slane %v2649, 4
        %v2652 = vor.u32 %v2648, %v2651
        %v2654 = vshrl.u32 %v2500, 16
        %v2656 = vrot.slane %v2654, 3
        %v2657 = vshll.u32 %v2500, 16
        %v2659 = vrot.slane %v2657, 4
        %v2660 = vor.u32 %v2656, %v2659
        %v2661 = vsel %vm959, %v2652, %v2660
        %v2663 = vshrl.u32 %v2563, 16
        %v2665 = vrot.slane %v2663, 3
        %v2666 = vshll.u32 %v2563, 16
        %v2668 = vrot.slane %v2666, 4
        %v2669 = vor.u32 %v2665, %v2668
        %v2671 = vshrl.u32 %v2564, 16
        %v2673 = vrot.slane %v2671, 3
        %v2674 = vshll.u32 %v2564, 16
        %v2676 = vrot.slane %v2674, 4
        %v2677 = vor.u32 %v2673, %v2676
        %v2678 = vsel %vm959, %v2669, %v2677
        %v2680 = vshrl.u32 %v2437, 16
        %v2682 = vrot.slane %v2680, 3
        %v2683 = vshll.u32 %v2437, 16
        %v2685 = vrot.slane %v2683, 4
        %v2686 = vor.u32 %v2682, %v2685
        %v2688 = vshrl.u32 %v2438, 16
        %v2690 = vrot.slane %v2688, 3
        %v2691 = vshll.u32 %v2438, 16
        %v2693 = vrot.slane %v2691, 4
        %v2694 = vor.u32 %v2690, %v2693
        %v2695 = vsel %vm959, %v2686, %v2694
        %v2697 = vshrl.u32 %v2501, 16
        %v2699 = vrot.slane %v2697, 3
        %v2700 = vshll.u32 %v2501, 16
        %v2702 = vrot.slane %v2700, 4
        %v2703 = vor.u32 %v2699, %v2702
        %v2705 = vshrl.u32 %v2502, 16
        %v2707 = vrot.slane %v2705, 3
        %v2708 = vshll.u32 %v2502, 16
        %v2710 = vrot.slane %v2708, 4
        %v2711 = vor.u32 %v2707, %v2710
        %v2712 = vsel %vm959, %v2703, %v2711
        %v2714 = vshrl.u32 %v2565, 16
        %v2716 = vrot.slane %v2714, 3
        %v2717 = vshll.u32 %v2565, 16
        %v2719 = vrot.slane %v2717, 4
        %v2720 = vor.u32 %v2716, %v2719
        %v2722 = vshrl.u32 %v2566, 16
        %v2724 = vrot.slane %v2722, 3
        %v2725 = vshll.u32 %v2566, 16
        %v2727 = vrot.slane %v2725, 4
        %v2728 = vor.u32 %v2724, %v2727
        %v2729 = vsel %vm959, %v2720, %v2728
        %v2731 = vshrl.u32 %v2439, 16
        %v2733 = vrot.slane %v2731, 3
        %v2734 = vshll.u32 %v2439, 16
        %v2736 = vrot.slane %v2734, 4
        %v2737 = vor.u32 %v2733, %v2736
        %v2739 = vshrl.u32 %v2440, 16
        %v2741 = vrot.slane %v2739, 3
        %v2742 = vshll.u32 %v2440, 16
        %v2744 = vrot.slane %v2742, 4
        %v2745 = vor.u32 %v2741, %v2744
        %v2746 = vsel %vm959, %v2737, %v2745
        %v2748 = vshrl.u32 %v2503, 16
        %v2750 = vrot.slane %v2748, 3
        %v2751 = vshll.u32 %v2503, 16
        %v2753 = vrot.slane %v2751, 4
        %v2754 = vor.u32 %v2750, %v2753
        %v2756 = vshrl.u32 %v2504, 16
        %v2758 = vrot.slane %v2756, 3
        %v2759 = vshll.u32 %v2504, 16
        %v2761 = vrot.slane %v2759, 4
        %v2762 = vor.u32 %v2758, %v2761
        %v2763 = vsel %vm959, %v2754, %v2762
        %v2765 = vshrl.u32 %v2567, 16
        %v2767 = vrot.slane %v2765, 3
        %v2768 = vshll.u32 %v2567, 16
        %v2770 = vrot.slane %v2768, 4
        %v2771 = vor.u32 %v2767, %v2770
        %v2773 = vshrl.u32 %v2568, 16
        %v2775 = vrot.slane %v2773, 3
        %v2776 = vshll.u32 %v2568, 16
        %v2778 = vrot.slane %v2776, 4
        %v2779 = vor.u32 %v2775, %v2778
        %v2780 = vsel %vm959, %v2771, %v2779
        %v2782 = vshrl.u32 %v2441, 16
        %v2784 = vrot.slane %v2782, 3
        %v2785 = vshll.u32 %v2441, 16
        %v2787 = vrot.slane %v2785, 4
        %v2788 = vor.u32 %v2784, %v2787
        %v2790 = vshrl.u32 %v2442, 16
        %v2792 = vrot.slane %v2790, 3
        %v2793 = vshll.u32 %v2442, 16
        %v2795 = vrot.slane %v2793, 4
        %v2796 = vor.u32 %v2792, %v2795
        %v2797 = vsel %vm959, %v2788, %v2796
        %v2799 = vshrl.u32 %v2505, 16
        %v2801 = vrot.slane %v2799, 3
        %v2802 = vshll.u32 %v2505, 16
        %v2804 = vrot.slane %v2802, 4
        %v2805 = vor.u32 %v2801, %v2804
        %v2807 = vshrl.u32 %v2506, 16
        %v2809 = vrot.slane %v2807, 3
        %v2810 = vshll.u32 %v2506, 16
        %v2812 = vrot.slane %v2810, 4
        %v2813 = vor.u32 %v2809, %v2812
        %v2814 = vsel %vm959, %v2805, %v2813
        %v2816 = vshrl.u32 %v2569, 16
        %v2818 = vrot.slane %v2816, 3
        %v2819 = vshll.u32 %v2569, 16
        %v2821 = vrot.slane %v2819, 4
        %v2822 = vor.u32 %v2818, %v2821
        %v2824 = vshrl.u32 %v2570, 16
        %v2826 = vrot.slane %v2824, 3
        %v2827 = vshll.u32 %v2570, 16
        %v2829 = vrot.slane %v2827, 4
        %v2830 = vor.u32 %v2826, %v2829
        %v2831 = vsel %vm959, %v2822, %v2830
        %v2833 = vshrl.u32 %v2443, 16
        %v2835 = vrot.slane %v2833, 3
        %v2836 = vshll.u32 %v2443, 16
        %v2838 = vrot.slane %v2836, 4
        %v2839 = vor.u32 %v2835, %v2838
        %v2841 = vshrl.u32 %v2444, 16
        %v2843 = vrot.slane %v2841, 3
        %v2844 = vshll.u32 %v2444, 16
        %v2846 = vrot.slane %v2844, 4
        %v2847 = vor.u32 %v2843, %v2846
        %v2848 = vsel %vm959, %v2839, %v2847
        %v2850 = vshrl.u32 %v2507, 16
        %v2852 = vrot.slane %v2850, 3
        %v2853 = vshll.u32 %v2507, 16
        %v2855 = vrot.slane %v2853, 4
        %v2856 = vor.u32 %v2852, %v2855
        %v2858 = vshrl.u32 %v2508, 16
        %v2860 = vrot.slane %v2858, 3
        %v2861 = vshll.u32 %v2508, 16
        %v2863 = vrot.slane %v2861, 4
        %v2864 = vor.u32 %v2860, %v2863
        %v2865 = vsel %vm959, %v2856, %v2864
        %v2867 = vshrl.u32 %v2571, 16
        %v2869 = vrot.slane %v2867, 3
        %v2870 = vshll.u32 %v2571, 16
        %v2872 = vrot.slane %v2870, 4
        %v2873 = vor.u32 %v2869, %v2872
        %v2875 = vshrl.u32 %v2572, 16
        %v2877 = vrot.slane %v2875, 3
        %v2878 = vshll.u32 %v2572, 16
        %v2880 = vrot.slane %v2878, 4
        %v2881 = vor.u32 %v2877, %v2880
        %v2882 = vsel %vm959, %v2873, %v2881
        %v2884 = vshrl.u32 %v2445, 16
        %v2886 = vrot.slane %v2884, 3
        %v2887 = vshll.u32 %v2445, 16
        %v2889 = vrot.slane %v2887, 4
        %v2890 = vor.u32 %v2886, %v2889
        %v2892 = vshrl.u32 %v2446, 16
        %v2894 = vrot.slane %v2892, 3
        %v2895 = vshll.u32 %v2446, 16
        %v2897 = vrot.slane %v2895, 4
        %v2898 = vor.u32 %v2894, %v2897
        %v2899 = vsel %vm959, %v2890, %v2898
        %v2901 = vshrl.u32 %v2509, 16
        %v2903 = vrot.slane %v2901, 3
        %v2904 = vshll.u32 %v2509, 16
        %v2906 = vrot.slane %v2904, 4
        %v2907 = vor.u32 %v2903, %v2906
        %v2909 = vshrl.u32 %v2510, 16
        %v2911 = vrot.slane %v2909, 3
        %v2912 = vshll.u32 %v2510, 16
        %v2914 = vrot.slane %v2912, 4
        %v2915 = vor.u32 %v2911, %v2914
        %v2916 = vsel %vm959, %v2907, %v2915
        %v2918 = vshrl.u32 %v2573, 16
        %v2920 = vrot.slane %v2918, 3
        %v2921 = vshll.u32 %v2573, 16
        %v2923 = vrot.slane %v2921, 4
        %v2924 = vor.u32 %v2920, %v2923
        %v2926 = vshrl.u32 %v2574, 16
        %v2928 = vrot.slane %v2926, 3
        %v2929 = vshll.u32 %v2574, 16
        %v2931 = vrot.slane %v2929, 4
        %v2932 = vor.u32 %v2928, %v2931
        %v2933 = vsel %vm959, %v2924, %v2932
        %v2935 = vshrl.u32 %v2447, 16
        %v2937 = vrot.slane %v2935, 3
        %v2938 = vshll.u32 %v2447, 16
        %v2940 = vrot.slane %v2938, 4
        %v2941 = vor.u32 %v2937, %v2940
        %v2943 = vshrl.u32 %v2448, 16
        %v2945 = vrot.slane %v2943, 3
        %v2946 = vshll.u32 %v2448, 16
        %v2948 = vrot.slane %v2946, 4
        %v2949 = vor.u32 %v2945, %v2948
        %v2950 = vsel %vm959, %v2941, %v2949
        %v2952 = vshrl.u32 %v2511, 16
        %v2954 = vrot.slane %v2952, 3
        %v2955 = vshll.u32 %v2511, 16
        %v2957 = vrot.slane %v2955, 4
        %v2958 = vor.u32 %v2954, %v2957
        %v2960 = vshrl.u32 %v2512, 16
        %v2962 = vrot.slane %v2960, 3
        %v2963 = vshll.u32 %v2512, 16
        %v2965 = vrot.slane %v2963, 4
        %v2966 = vor.u32 %v2962, %v2965
        %v2967 = vsel %vm959, %v2958, %v2966
        %v2969 = vshrl.u32 %v2575, 16
        %v2971 = vrot.slane %v2969, 3
        %v2972 = vshll.u32 %v2575, 16
        %v2974 = vrot.slane %v2972, 4
        %v2975 = vor.u32 %v2971, %v2974
        %v2977 = vshrl.u32 %v2576, 16
        %v2979 = vrot.slane %v2977, 3
        %v2980 = vshll.u32 %v2576, 16
        %v2982 = vrot.slane %v2980, 4
        %v2983 = vor.u32 %v2979, %v2982
        %v2984 = vsel %vm959, %v2975, %v2983
        %v3009 = vld [vmem:[#allocation4] sm:$0xf]
        %v3010 = vld [vmem:[#allocation4 + $0x4] sm:$0xf]
        %v3011 = vld [vmem:[#allocation4 + $0x8] sm:$0xf]
        %v3012 = vld [vmem:[#allocation4 + $0xc] sm:$0xf]
        %v3013 = vld [vmem:[#allocation4 + $0x10] sm:$0xf]
        %v3014 = vld [vmem:[#allocation4 + $0x14] sm:$0xf]
        %v3015 = vld [vmem:[#allocation4 + $0x18] sm:$0xf]
        %v3016 = vld [vmem:[#allocation4 + $0x1c] sm:$0xf]
        %v3017 = vld [vmem:[#allocation4 + $0x20] sm:$0xf]
        %v3018 = vld [vmem:[#allocation4 + $0x24] sm:$0xf]
        %v3019 = vld [vmem:[#allocation4 + $0x28] sm:$0xf]
        %v3020 = vld [vmem:[#allocation4 + $0x2c] sm:$0xf]
        %v3021 = vld [vmem:[#allocation4 + $0x30] sm:$0xf]
        %v3022 = vld [vmem:[#allocation4 + $0x34] sm:$0xf]
        %v3023 = vld [vmem:[#allocation4 + $0x38] sm:$0xf]
        %v3024 = vld [vmem:[#allocation4 + $0x3c] sm:$0xf]
        %v3025 = vld [vmem:[#allocation4 + $0x40] sm:$0xf]
        %v3026 = vld [vmem:[#allocation4 + $0x44] sm:$0xf]
        %v3027 = vld [vmem:[#allocation4 + $0x48] sm:$0xf]
        %v3028 = vld [vmem:[#allocation4 + $0x4c] sm:$0xf]
        %v3029 = vld [vmem:[#allocation4 + $0x50] sm:$0xf]
        %v3030 = vld [vmem:[#allocation4 + $0x54] sm:$0xf]
        %v3031 = vld [vmem:[#allocation4 + $0x58] sm:$0xf]
        %v3032 = vld [vmem:[#allocation4 + $0x5c] sm:$0xf]
        %v3033 = vld [vmem:[#allocation4 + $0x60] sm:$0xf]
        %v3034 = vld [vmem:[#allocation4 + $0x64] sm:$0xf]
        %v3035 = vld [vmem:[#allocation4 + $0x68] sm:$0xf]
        %v3036 = vld [vmem:[#allocation4 + $0x6c] sm:$0xf]
        %v3037 = vld [vmem:[#allocation4 + $0x70] sm:$0xf]
        %v3038 = vld [vmem:[#allocation4 + $0x74] sm:$0xf]
        %v3039 = vld [vmem:[#allocation4 + $0x78] sm:$0xf]
        %v3040 = vld [vmem:[#allocation4 + $0x7c] sm:$0xf]
        %v3041 = vld [vmem:[#allocation4 + $0x80] sm:$0xf]
        %v3042 = vld [vmem:[#allocation4 + $0x84] sm:$0xf]
        %v3043 = vld [vmem:[#allocation4 + $0x88] sm:$0xf]
        %v3044 = vld [vmem:[#allocation4 + $0x8c] sm:$0xf]
        %v3045 = vld [vmem:[#allocation4 + $0x90] sm:$0xf]
        %v3046 = vld [vmem:[#allocation4 + $0x94] sm:$0xf]
        %v3047 = vld [vmem:[#allocation4 + $0x98] sm:$0xf]
        %v3048 = vld [vmem:[#allocation4 + $0x9c] sm:$0xf]
        %v3049 = vld [vmem:[#allocation4 + $0xa0] sm:$0xf]
        %v3050 = vld [vmem:[#allocation4 + $0xa4] sm:$0xf]
        %v3051 = vld [vmem:[#allocation4 + $0xa8] sm:$0xf]
        %v3052 = vld [vmem:[#allocation4 + $0xac] sm:$0xf]
        %v3053 = vld [vmem:[#allocation4 + $0xb0] sm:$0xf]
        %v3054 = vld [vmem:[#allocation4 + $0xb4] sm:$0xf]
        %v3055 = vld [vmem:[#allocation4 + $0xb8] sm:$0xf]
        %v3056 = vld [vmem:[#allocation4 + $0xbc] sm:$0xf]
        %v3057 = vpack.c.b16 %v2411, %v2410
        %v3058 = vpack.c.b16 %v2414, %v2413
        %v3059 = vpack.c.b16 %v2417, %v2416
        %v3060 = vpack.c.b16 %v2420, %v2419
        %v3061 = vpack.c.b16 %v2423, %v2422
        %v3062 = vpack.c.b16 %v2426, %v2425
        %v3063 = vpack.c.b16 %v2429, %v2428
        %v3064 = vpack.c.b16 %v2432, %v2431
        %v3073 = vpack.c.b16 %v2475, %v2474
        %v3074 = vpack.c.b16 %v2478, %v2477
        %v3075 = vpack.c.b16 %v2481, %v2480
        %v3076 = vpack.c.b16 %v2484, %v2483
        %v3077 = vpack.c.b16 %v2487, %v2486
        %v3078 = vpack.c.b16 %v2490, %v2489
        %v3079 = vpack.c.b16 %v2493, %v2492
        %v3080 = vpack.c.b16 %v2496, %v2495
        %v3089 = vpack.c.b16 %v2539, %v2538
        %v3090 = vpack.c.b16 %v2542, %v2541
        %v3091 = vpack.c.b16 %v2545, %v2544
        %v3092 = vpack.c.b16 %v2548, %v2547
        %v3093 = vpack.c.b16 %v2551, %v2550
        %v3094 = vpack.c.b16 %v2554, %v2553
        %v3095 = vpack.c.b16 %v2557, %v2556
        %v3096 = vpack.c.b16 %v2560, %v2559
        %s3105 = scalar_lea.vmem [#allocation4], 192
        %v3106 = vld [vmem:[%s3105] sm:$0xf]
        %v3107 = vld [vmem:[%s3105 + $0x4] sm:$0xf]
        %v3108 = vld [vmem:[%s3105 + $0x8] sm:$0xf]
        %v3109 = vld [vmem:[%s3105 + $0xc] sm:$0xf]
        %v3110 = vld [vmem:[%s3105 + $0x10] sm:$0xf]
        %v3111 = vld [vmem:[%s3105 + $0x14] sm:$0xf]
        %v3112 = vld [vmem:[%s3105 + $0x18] sm:$0xf]
        %v3113 = vld [vmem:[%s3105 + $0x1c] sm:$0xf]
        %v3114 = vld [vmem:[%s3105 + $0x20] sm:$0xf]
        %v3115 = vld [vmem:[%s3105 + $0x24] sm:$0xf]
        %v3116 = vld [vmem:[%s3105 + $0x28] sm:$0xf]
        %v3117 = vld [vmem:[%s3105 + $0x2c] sm:$0xf]
        %v3118 = vld [vmem:[%s3105 + $0x30] sm:$0xf]
        %v3119 = vld [vmem:[%s3105 + $0x34] sm:$0xf]
        %v3120 = vld [vmem:[%s3105 + $0x38] sm:$0xf]
        %v3121 = vld [vmem:[%s3105 + $0x3c] sm:$0xf]
        %v3122 = vld [vmem:[%s3105 + $0x40] sm:$0xf]
        %v3123 = vld [vmem:[%s3105 + $0x44] sm:$0xf]
        %v3124 = vld [vmem:[%s3105 + $0x48] sm:$0xf]
        %v3125 = vld [vmem:[%s3105 + $0x4c] sm:$0xf]
        %v3126 = vld [vmem:[%s3105 + $0x50] sm:$0xf]
        %v3127 = vld [vmem:[%s3105 + $0x54] sm:$0xf]
        %v3128 = vld [vmem:[%s3105 + $0x58] sm:$0xf]
        %v3129 = vld [vmem:[%s3105 + $0x5c] sm:$0xf]
        %v3130 = vld [vmem:[%s3105 + $0x60] sm:$0xf]
        %v3131 = vld [vmem:[%s3105 + $0x64] sm:$0xf]
        %v3132 = vld [vmem:[%s3105 + $0x68] sm:$0xf]
        %v3133 = vld [vmem:[%s3105 + $0x6c] sm:$0xf]
        %v3134 = vld [vmem:[%s3105 + $0x70] sm:$0xf]
        %v3135 = vld [vmem:[%s3105 + $0x74] sm:$0xf]
        %v3136 = vld [vmem:[%s3105 + $0x78] sm:$0xf]
        %v3137 = vld [vmem:[%s3105 + $0x7c] sm:$0xf]
        %v3138 = vld [vmem:[%s3105 + $0x80] sm:$0xf]
        %v3139 = vld [vmem:[%s3105 + $0x84] sm:$0xf]
        %v3140 = vld [vmem:[%s3105 + $0x88] sm:$0xf]
        %v3141 = vld [vmem:[%s3105 + $0x8c] sm:$0xf]
        %v3142 = vld [vmem:[%s3105 + $0x90] sm:$0xf]
        %v3143 = vld [vmem:[%s3105 + $0x94] sm:$0xf]
        %v3144 = vld [vmem:[%s3105 + $0x98] sm:$0xf]
        %v3145 = vld [vmem:[%s3105 + $0x9c] sm:$0xf]
        %v3146 = vld [vmem:[%s3105 + $0xa0] sm:$0xf]
        %v3147 = vld [vmem:[%s3105 + $0xa4] sm:$0xf]
        %v3148 = vld [vmem:[%s3105 + $0xa8] sm:$0xf]
        %v3149 = vld [vmem:[%s3105 + $0xac] sm:$0xf]
        %v3150 = vld [vmem:[%s3105 + $0xb0] sm:$0xf]
        %v3151 = vld [vmem:[%s3105 + $0xb4] sm:$0xf]
        %v3152 = vld [vmem:[%s3105 + $0xb8] sm:$0xf]
        %v3153 = vld [vmem:[%s3105 + $0xbc] sm:$0xf]
        %v3202 = vunpack.c.l.b16 %v3106
        %v3203 = vunpack.c.l.b16 %v3107
        %v3204 = vunpack.c.l.b16 %v3108
        %v3205 = vunpack.c.l.b16 %v3109
        %v3206 = vunpack.c.l.b16 %v3110
        %v3207 = vunpack.c.l.b16 %v3111
        %v3208 = vunpack.c.l.b16 %v3112
        %v3209 = vunpack.c.l.b16 %v3113
        %v3210 = vunpack.c.l.b16 %v3114
        %v3211 = vunpack.c.l.b16 %v3115
        %v3212 = vunpack.c.l.b16 %v3116
        %v3213 = vunpack.c.l.b16 %v3117
        %v3214 = vunpack.c.l.b16 %v3118
        %v3215 = vunpack.c.l.b16 %v3119
        %v3216 = vunpack.c.l.b16 %v3120
        %v3217 = vunpack.c.l.b16 %v3121
        %v3218 = vunpack.c.l.b16 %v3122
        %v3219 = vunpack.c.l.b16 %v3123
        %v3220 = vunpack.c.l.b16 %v3124
        %v3221 = vunpack.c.l.b16 %v3125
        %v3222 = vunpack.c.l.b16 %v3126
        %v3223 = vunpack.c.l.b16 %v3127
        %v3224 = vunpack.c.l.b16 %v3128
        %v3225 = vunpack.c.l.b16 %v3129
        %v3226 = vunpack.c.l.b16 %v3130
        %v3227 = vunpack.c.l.b16 %v3131
        %v3228 = vunpack.c.l.b16 %v3132
        %v3229 = vunpack.c.l.b16 %v3133
        %v3230 = vunpack.c.l.b16 %v3134
        %v3231 = vunpack.c.l.b16 %v3135
        %v3232 = vunpack.c.l.b16 %v3136
        %v3233 = vunpack.c.l.b16 %v3137
        %v3234 = vunpack.c.l.b16 %v3138
        %v3235 = vunpack.c.l.b16 %v3139
        %v3236 = vunpack.c.l.b16 %v3140
        %v3237 = vunpack.c.l.b16 %v3141
        %v3238 = vunpack.c.l.b16 %v3142
        %v3239 = vunpack.c.l.b16 %v3143
        %v3240 = vunpack.c.l.b16 %v3144
        %v3241 = vunpack.c.l.b16 %v3145
        %v3242 = vunpack.c.l.b16 %v3146
        %v3243 = vunpack.c.l.b16 %v3147
        %v3244 = vunpack.c.l.b16 %v3148
        %v3245 = vunpack.c.l.b16 %v3149
        %v3246 = vunpack.c.l.b16 %v3150
        %v3247 = vunpack.c.l.b16 %v3151
        %v3248 = vunpack.c.l.b16 %v3152
        %v3249 = vunpack.c.l.b16 %v3153
        %v3250 = vpack.c.b16 %v3203, %v3202
        %v3251 = vpack.c.b16 %v3205, %v3204
        %v3252 = vpack.c.b16 %v3207, %v3206
        %v3253 = vpack.c.b16 %v3209, %v3208
        %v3254 = vpack.c.b16 %v3211, %v3210
        %v3255 = vpack.c.b16 %v3213, %v3212
        %v3256 = vpack.c.b16 %v3215, %v3214
        %v3257 = vpack.c.b16 %v3217, %v3216
        %v3258 = vpack.c.b16 %v3219, %v3218
        %v3259 = vpack.c.b16 %v3221, %v3220
        %v3260 = vpack.c.b16 %v3223, %v3222
        %v3261 = vpack.c.b16 %v3225, %v3224
        %v3262 = vpack.c.b16 %v3227, %v3226
        %v3263 = vpack.c.b16 %v3229, %v3228
        %v3264 = vpack.c.b16 %v3231, %v3230
        %v3265 = vpack.c.b16 %v3233, %v3232
        %v3266 = vpack.c.b16 %v3235, %v3234
        %v3267 = vpack.c.b16 %v3237, %v3236
        %v3268 = vpack.c.b16 %v3239, %v3238
        %v3269 = vpack.c.b16 %v3241, %v3240
        %v3270 = vpack.c.b16 %v3243, %v3242
        %v3271 = vpack.c.b16 %v3245, %v3244
        %v3272 = vpack.c.b16 %v3247, %v3246
        %v3273 = vpack.c.b16 %v3249, %v3248
        %3298 = vmatpush.bf16.msra.mxu0 %v3257
        %3299 = vmatpush.bf16.msra.mxu0 %v3256
        %3300 = vmatpush.bf16.msra.mxu0 %v3255
        %3301 = vmatpush.bf16.msra.mxu0 %v3254
        %3302 = vmatpush.bf16.msra.mxu0 %v3253
        %3303 = vmatpush.bf16.msra.mxu0 %v3252
        %3304 = vmatpush.bf16.msra.mxu0 %v3251
        %3305 = vmatpush.bf16.msra.mxu0 %v3250
        %3306 = vmatmul.bf16.gmra.mxu0 %v3057
        %v3307 = vpop.f32.mrf.mxu0
        %v3308 = vadd.f32 0.0, %v3307
        %v3309 = vpop.f32.mrf.mxu0
        %v3310 = vadd.f32 0.0, %v3309
        %3311 = vmatmul.bf16.gmra.mxu0 %v3058
        %v3312 = vpop.f32.mrf.mxu0
        %v3313 = vadd.f32 0.0, %v3312
        %v3314 = vpop.f32.mrf.mxu0
        %v3315 = vadd.f32 0.0, %v3314
        %3316 = vmatmul.bf16.gmra.mxu0 %v3059
        %v3317 = vpop.f32.mrf.mxu0
        %v3318 = vadd.f32 0.0, %v3317
        %v3319 = vpop.f32.mrf.mxu0
        %v3320 = vadd.f32 0.0, %v3319
        %3321 = vmatmul.bf16.gmra.mxu0 %v3060
        %v3322 = vpop.f32.mrf.mxu0
        %v3323 = vadd.f32 0.0, %v3322
        %v3324 = vpop.f32.mrf.mxu0
        %v3325 = vadd.f32 0.0, %v3324
        %3326 = vmatmul.bf16.gmra.mxu0 %v3061
        %v3327 = vpop.f32.mrf.mxu0
        %v3328 = vadd.f32 0.0, %v3327
        %v3329 = vpop.f32.mrf.mxu0
        %v3330 = vadd.f32 0.0, %v3329
        %3331 = vmatmul.bf16.gmra.mxu0 %v3062
        %v3332 = vpop.f32.mrf.mxu0
        %v3333 = vadd.f32 0.0, %v3332
        %v3334 = vpop.f32.mrf.mxu0
        %v3335 = vadd.f32 0.0, %v3334
        %3336 = vmatmul.bf16.gmra.mxu0 %v3063
        %v3337 = vpop.f32.mrf.mxu0
        %v3338 = vadd.f32 0.0, %v3337
        %v3339 = vpop.f32.mrf.mxu0
        %v3340 = vadd.f32 0.0, %v3339
        %3341 = vmatmul.bf16.gmra.mxu0 %v3064
        %v3342 = vpop.f32.mrf.mxu0
        %v3343 = vadd.f32 0.0, %v3342
        %v3344 = vpop.f32.mrf.mxu0
        %v3345 = vadd.f32 0.0, %v3344
        %3346 = vdwg.mxu0
        %3347 = vmatpush.bf16.msra.mxu0 %v3265
        %3348 = vmatpush.bf16.msra.mxu0 %v3264
        %3349 = vmatpush.bf16.msra.mxu0 %v3263
        %3350 = vmatpush.bf16.msra.mxu0 %v3262
        %3351 = vmatpush.bf16.msra.mxu0 %v3261
        %3352 = vmatpush.bf16.msra.mxu0 %v3260
        %3353 = vmatpush.bf16.msra.mxu0 %v3259
        %3354 = vmatpush.bf16.msra.mxu0 %v3258
        %3355 = vmatmul.bf16.gmra.mxu0 %v3073
        %v3356 = vpop.f32.mrf.mxu0
        %v3357 = vadd.f32 %v3308, %v3356
        %v3358 = vpop.f32.mrf.mxu0
        %v3359 = vadd.f32 %v3310, %v3358
        %3360 = vmatmul.bf16.gmra.mxu0 %v3074
        %v3361 = vpop.f32.mrf.mxu0
        %v3362 = vadd.f32 %v3313, %v3361
        %v3363 = vpop.f32.mrf.mxu0
        %v3364 = vadd.f32 %v3315, %v3363
        %3365 = vmatmul.bf16.gmra.mxu0 %v3075
        %v3366 = vpop.f32.mrf.mxu0
        %v3367 = vadd.f32 %v3318, %v3366
        %v3368 = vpop.f32.mrf.mxu0
        %v3369 = vadd.f32 %v3320, %v3368
        %3370 = vmatmul.bf16.gmra.mxu0 %v3076
        %v3371 = vpop.f32.mrf.mxu0
        %v3372 = vadd.f32 %v3323, %v3371
        %v3373 = vpop.f32.mrf.mxu0
        %v3374 = vadd.f32 %v3325, %v3373
        %3375 = vmatmul.bf16.gmra.mxu0 %v3077
        %v3376 = vpop.f32.mrf.mxu0
        %v3377 = vadd.f32 %v3328, %v3376
        %v3378 = vpop.f32.mrf.mxu0
        %v3379 = vadd.f32 %v3330, %v3378
        %3380 = vmatmul.bf16.gmra.mxu0 %v3078
        %v3381 = vpop.f32.mrf.mxu0
        %v3382 = vadd.f32 %v3333, %v3381
        %v3383 = vpop.f32.mrf.mxu0
        %v3384 = vadd.f32 %v3335, %v3383
        %3385 = vmatmul.bf16.gmra.mxu0 %v3079
        %v3386 = vpop.f32.mrf.mxu0
        %v3387 = vadd.f32 %v3338, %v3386
        %v3388 = vpop.f32.mrf.mxu0
        %v3389 = vadd.f32 %v3340, %v3388
        %3390 = vmatmul.bf16.gmra.mxu0 %v3080
        %v3391 = vpop.f32.mrf.mxu0
        %v3392 = vadd.f32 %v3343, %v3391
        %v3393 = vpop.f32.mrf.mxu0
        %v3394 = vadd.f32 %v3345, %v3393
        %3395 = vdwg.mxu0
        %3396 = vmatpush.bf16.msra.mxu0 %v3273
        %3397 = vmatpush.bf16.msra.mxu0 %v3272
        %3398 = vmatpush.bf16.msra.mxu0 %v3271
        %3399 = vmatpush.bf16.msra.mxu0 %v3270
        %3400 = vmatpush.bf16.msra.mxu0 %v3269
        %3401 = vmatpush.bf16.msra.mxu0 %v3268
        %3402 = vmatpush.bf16.msra.mxu0 %v3267
        %3403 = vmatpush.bf16.msra.mxu0 %v3266
        %3404 = vmatmul.bf16.gmra.mxu0 %v3089
        %v3405 = vpop.f32.mrf.mxu0
        %v3406 = vadd.f32 %v3357, %v3405
        %v3407 = vpop.f32.mrf.mxu0
        %v3408 = vadd.f32 %v3359, %v3407
        %3409 = vmatmul.bf16.gmra.mxu0 %v3090
        %v3410 = vpop.f32.mrf.mxu0
        %v3411 = vadd.f32 %v3362, %v3410
        %v3412 = vpop.f32.mrf.mxu0
        %v3413 = vadd.f32 %v3364, %v3412
        %3414 = vmatmul.bf16.gmra.mxu0 %v3091
        %v3415 = vpop.f32.mrf.mxu0
        %v3416 = vadd.f32 %v3367, %v3415
        %v3417 = vpop.f32.mrf.mxu0
        %v3418 = vadd.f32 %v3369, %v3417
        %3419 = vmatmul.bf16.gmra.mxu0 %v3092
        %v3420 = vpop.f32.mrf.mxu0
        %v3421 = vadd.f32 %v3372, %v3420
        %v3422 = vpop.f32.mrf.mxu0
        %v3423 = vadd.f32 %v3374, %v3422
        %3424 = vmatmul.bf16.gmra.mxu0 %v3093
        %v3425 = vpop.f32.mrf.mxu0
        %v3426 = vadd.f32 %v3377, %v3425
        %v3427 = vpop.f32.mrf.mxu0
        %v3428 = vadd.f32 %v3379, %v3427
        %3429 = vmatmul.bf16.gmra.mxu0 %v3094
        %v3430 = vpop.f32.mrf.mxu0
        %v3431 = vadd.f32 %v3382, %v3430
        %v3432 = vpop.f32.mrf.mxu0
        %v3433 = vadd.f32 %v3384, %v3432
        %3434 = vmatmul.bf16.gmra.mxu0 %v3095
        %v3435 = vpop.f32.mrf.mxu0
        %v3436 = vadd.f32 %v3387, %v3435
        %v3437 = vpop.f32.mrf.mxu0
        %v3438 = vadd.f32 %v3389, %v3437
        %3439 = vmatmul.bf16.gmra.mxu0 %v3096
        %v3440 = vpop.f32.mrf.mxu0
        %v3441 = vadd.f32 %v3392, %v3440
        %v3442 = vpop.f32.mrf.mxu0
        %v3443 = vadd.f32 %v3394, %v3442
        %3444 = vdwg.mxu0
        %v3493 = vunpack.c.l.b16 %v3009
        %v3494 = vunpack.c.l.b16 %v3010
        %v3495 = vunpack.c.l.b16 %v3011
        %v3496 = vunpack.c.l.b16 %v3012
        %v3497 = vunpack.c.l.b16 %v3013
        %v3498 = vunpack.c.l.b16 %v3014
        %v3499 = vunpack.c.l.b16 %v3015
        %v3500 = vunpack.c.l.b16 %v3016
        %v3501 = vunpack.c.l.b16 %v3017
        %v3502 = vunpack.c.l.b16 %v3018
        %v3503 = vunpack.c.l.b16 %v3019
        %v3504 = vunpack.c.l.b16 %v3020
        %v3505 = vunpack.c.l.b16 %v3021
        %v3506 = vunpack.c.l.b16 %v3022
        %v3507 = vunpack.c.l.b16 %v3023
        %v3508 = vunpack.c.l.b16 %v3024
        %v3509 = vunpack.c.l.b16 %v3025
        %v3510 = vunpack.c.l.b16 %v3026
        %v3511 = vunpack.c.l.b16 %v3027
        %v3512 = vunpack.c.l.b16 %v3028
        %v3513 = vunpack.c.l.b16 %v3029
        %v3514 = vunpack.c.l.b16 %v3030
        %v3515 = vunpack.c.l.b16 %v3031
        %v3516 = vunpack.c.l.b16 %v3032
        %v3517 = vunpack.c.l.b16 %v3033
        %v3518 = vunpack.c.l.b16 %v3034
        %v3519 = vunpack.c.l.b16 %v3035
        %v3520 = vunpack.c.l.b16 %v3036
        %v3521 = vunpack.c.l.b16 %v3037
        %v3522 = vunpack.c.l.b16 %v3038
        %v3523 = vunpack.c.l.b16 %v3039
        %v3524 = vunpack.c.l.b16 %v3040
        %v3525 = vunpack.c.l.b16 %v3041
        %v3526 = vunpack.c.l.b16 %v3042
        %v3527 = vunpack.c.l.b16 %v3043
        %v3528 = vunpack.c.l.b16 %v3044
        %v3529 = vunpack.c.l.b16 %v3045
        %v3530 = vunpack.c.l.b16 %v3046
        %v3531 = vunpack.c.l.b16 %v3047
        %v3532 = vunpack.c.l.b16 %v3048
        %v3533 = vunpack.c.l.b16 %v3049
        %v3534 = vunpack.c.l.b16 %v3050
        %v3535 = vunpack.c.l.b16 %v3051
        %v3536 = vunpack.c.l.b16 %v3052
        %v3537 = vunpack.c.l.b16 %v3053
        %v3538 = vunpack.c.l.b16 %v3054
        %v3539 = vunpack.c.l.b16 %v3055
        %v3540 = vunpack.c.l.b16 %v3056
        %v3541 = vpack.c.b16 %v3494, %v3493
        %v3542 = vpack.c.b16 %v3496, %v3495
        %v3543 = vpack.c.b16 %v3498, %v3497
        %v3544 = vpack.c.b16 %v3500, %v3499
        %v3545 = vpack.c.b16 %v3502, %v3501
        %v3546 = vpack.c.b16 %v3504, %v3503
        %v3547 = vpack.c.b16 %v3506, %v3505
        %v3548 = vpack.c.b16 %v3508, %v3507
        %v3549 = vpack.c.b16 %v3510, %v3509
        %v3550 = vpack.c.b16 %v3512, %v3511
        %v3551 = vpack.c.b16 %v3514, %v3513
        %v3552 = vpack.c.b16 %v3516, %v3515
        %v3553 = vpack.c.b16 %v3518, %v3517
        %v3554 = vpack.c.b16 %v3520, %v3519
        %v3555 = vpack.c.b16 %v3522, %v3521
        %v3556 = vpack.c.b16 %v3524, %v3523
        %v3557 = vpack.c.b16 %v3526, %v3525
        %v3558 = vpack.c.b16 %v3528, %v3527
        %v3559 = vpack.c.b16 %v3530, %v3529
        %v3560 = vpack.c.b16 %v3532, %v3531
        %v3561 = vpack.c.b16 %v3534, %v3533
        %v3562 = vpack.c.b16 %v3536, %v3535
        %v3563 = vpack.c.b16 %v3538, %v3537
        %v3564 = vpack.c.b16 %v3540, %v3539
        %3589 = vmatpush.bf16.msra.mxu0 %v3548
        %3590 = vmatpush.bf16.msra.mxu0 %v3547
        %3591 = vmatpush.bf16.msra.mxu0 %v3546
        %3592 = vmatpush.bf16.msra.mxu0 %v3545
        %3593 = vmatpush.bf16.msra.mxu0 %v3544
        %3594 = vmatpush.bf16.msra.mxu0 %v3543
        %3595 = vmatpush.bf16.msra.mxu0 %v3542
        %3596 = vmatpush.bf16.msra.mxu0 %v3541
        %3597 = vmatmul.bf16.gmra.mxu0 %v2593
        %v3598 = vpop.f32.mrf.mxu0
        %v3599 = vadd.f32 %v3406, %v3598
        %v3600 = vpop.f32.mrf.mxu0
        %v3601 = vadd.f32 %v3408, %v3600
        %3602 = vmatmul.bf16.gmra.mxu0 %v2644
        %v3603 = vpop.f32.mrf.mxu0
        %v3604 = vadd.f32 %v3411, %v3603
        %v3605 = vpop.f32.mrf.mxu0
        %v3606 = vadd.f32 %v3413, %v3605
        %3607 = vmatmul.bf16.gmra.mxu0 %v2695
        %v3608 = vpop.f32.mrf.mxu0
        %v3609 = vadd.f32 %v3416, %v3608
        %v3610 = vpop.f32.mrf.mxu0
        %v3611 = vadd.f32 %v3418, %v3610
        %3612 = vmatmul.bf16.gmra.mxu0 %v2746
        %v3613 = vpop.f32.mrf.mxu0
        %v3614 = vadd.f32 %v3421, %v3613
        %v3615 = vpop.f32.mrf.mxu0
        %v3616 = vadd.f32 %v3423, %v3615
        %3617 = vmatmul.bf16.gmra.mxu0 %v2797
        %v3618 = vpop.f32.mrf.mxu0
        %v3619 = vadd.f32 %v3426, %v3618
        %v3620 = vpop.f32.mrf.mxu0
        %v3621 = vadd.f32 %v3428, %v3620
        %3622 = vmatmul.bf16.gmra.mxu0 %v2848
        %v3623 = vpop.f32.mrf.mxu0
        %v3624 = vadd.f32 %v3431, %v3623
        %v3625 = vpop.f32.mrf.mxu0
        %v3626 = vadd.f32 %v3433, %v3625
        %3627 = vmatmul.bf16.gmra.mxu0 %v2899
        %v3628 = vpop.f32.mrf.mxu0
        %v3629 = vadd.f32 %v3436, %v3628
        %v3630 = vpop.f32.mrf.mxu0
        %v3631 = vadd.f32 %v3438, %v3630
        %3632 = vmatmul.bf16.gmra.mxu0 %v2950
        %v3633 = vpop.f32.mrf.mxu0
        %v3634 = vadd.f32 %v3441, %v3633
        %v3635 = vpop.f32.mrf.mxu0
        %v3636 = vadd.f32 %v3443, %v3635
        %3637 = vdwg.mxu0
        %3638 = vmatpush.bf16.msra.mxu0 %v3556
        %3639 = vmatpush.bf16.msra.mxu0 %v3555
        %3640 = vmatpush.bf16.msra.mxu0 %v3554
        %3641 = vmatpush.bf16.msra.mxu0 %v3553
        %3642 = vmatpush.bf16.msra.mxu0 %v3552
        %3643 = vmatpush.bf16.msra.mxu0 %v3551
        %3644 = vmatpush.bf16.msra.mxu0 %v3550
        %3645 = vmatpush.bf16.msra.mxu0 %v3549
        %3646 = vmatmul.bf16.gmra.mxu0 %v2610
        %v3647 = vpop.f32.mrf.mxu0
        %v3648 = vadd.f32 %v3599, %v3647
        %v3649 = vpop.f32.mrf.mxu0
        %v3650 = vadd.f32 %v3601, %v3649
        %3651 = vmatmul.bf16.gmra.mxu0 %v2661
        %v3652 = vpop.f32.mrf.mxu0
        %v3653 = vadd.f32 %v3604, %v3652
        %v3654 = vpop.f32.mrf.mxu0
        %v3655 = vadd.f32 %v3606, %v3654
        %3656 = vmatmul.bf16.gmra.mxu0 %v2712
        %v3657 = vpop.f32.mrf.mxu0
        %v3658 = vadd.f32 %v3609, %v3657
        %v3659 = vpop.f32.mrf.mxu0
        %v3660 = vadd.f32 %v3611, %v3659
        %3661 = vmatmul.bf16.gmra.mxu0 %v2763
        %v3662 = vpop.f32.mrf.mxu0
        %v3663 = vadd.f32 %v3614, %v3662
        %v3664 = vpop.f32.mrf.mxu0
        %v3665 = vadd.f32 %v3616, %v3664
        %3666 = vmatmul.bf16.gmra.mxu0 %v2814
        %v3667 = vpop.f32.mrf.mxu0
        %v3668 = vadd.f32 %v3619, %v3667
        %v3669 = vpop.f32.mrf.mxu0
        %v3670 = vadd.f32 %v3621, %v3669
        %3671 = vmatmul.bf16.gmra.mxu0 %v2865
        %v3672 = vpop.f32.mrf.mxu0
        %v3673 = vadd.f32 %v3624, %v3672
        %v3674 = vpop.f32.mrf.mxu0
        %v3675 = vadd.f32 %v3626, %v3674
        %3676 = vmatmul.bf16.gmra.mxu0 %v2916
        %v3677 = vpop.f32.mrf.mxu0
        %v3678 = vadd.f32 %v3629, %v3677
        %v3679 = vpop.f32.mrf.mxu0
        %v3680 = vadd.f32 %v3631, %v3679
        %3681 = vmatmul.bf16.gmra.mxu0 %v2967
        %v3682 = vpop.f32.mrf.mxu0
        %v3683 = vadd.f32 %v3634, %v3682
        %v3684 = vpop.f32.mrf.mxu0
        %v3685 = vadd.f32 %v3636, %v3684
        %3686 = vdwg.mxu0
        %3687 = vmatpush.bf16.msra.mxu0 %v3564
        %3688 = vmatpush.bf16.msra.mxu0 %v3563
        %3689 = vmatpush.bf16.msra.mxu0 %v3562
        %3690 = vmatpush.bf16.msra.mxu0 %v3561
        %3691 = vmatpush.bf16.msra.mxu0 %v3560
        %3692 = vmatpush.bf16.msra.mxu0 %v3559
        %3693 = vmatpush.bf16.msra.mxu0 %v3558
        %3694 = vmatpush.bf16.msra.mxu0 %v3557
        %3695 = vmatmul.bf16.gmra.mxu0 %v2627
        %v3696 = vpop.f32.mrf.mxu0
        %v3697 = vadd.f32 %v3648, %v3696
        %v3698 = vpop.f32.mrf.mxu0
        %v3699 = vadd.f32 %v3650, %v3698
        %3700 = vmatmul.bf16.gmra.mxu0 %v2678
        %v3701 = vpop.f32.mrf.mxu0
        %v3702 = vadd.f32 %v3653, %v3701
        %v3703 = vpop.f32.mrf.mxu0
        %v3704 = vadd.f32 %v3655, %v3703
        %3705 = vmatmul.bf16.gmra.mxu0 %v2729
        %v3706 = vpop.f32.mrf.mxu0
        %v3707 = vadd.f32 %v3658, %v3706
        %v3708 = vpop.f32.mrf.mxu0
        %v3709 = vadd.f32 %v3660, %v3708
        %3710 = vmatmul.bf16.gmra.mxu0 %v2780
        %v3711 = vpop.f32.mrf.mxu0
        %v3712 = vadd.f32 %v3663, %v3711
        %v3713 = vpop.f32.mrf.mxu0
        %v3714 = vadd.f32 %v3665, %v3713
        %3715 = vmatmul.bf16.gmra.mxu0 %v2831
        %v3716 = vpop.f32.mrf.mxu0
        %v3717 = vadd.f32 %v3668, %v3716
        %v3718 = vpop.f32.mrf.mxu0
        %v3719 = vadd.f32 %v3670, %v3718
        %3720 = vmatmul.bf16.gmra.mxu0 %v2882
        %v3721 = vpop.f32.mrf.mxu0
        %v3722 = vadd.f32 %v3673, %v3721
        %v3723 = vpop.f32.mrf.mxu0
        %v3724 = vadd.f32 %v3675, %v3723
        %3725 = vmatmul.bf16.gmra.mxu0 %v2933
        %v3726 = vpop.f32.mrf.mxu0
        %v3727 = vadd.f32 %v3678, %v3726
        %v3728 = vpop.f32.mrf.mxu0
        %v3729 = vadd.f32 %v3680, %v3728
        %3730 = vmatmul.bf16.gmra.mxu0 %v2984
        %v3731 = vpop.f32.mrf.mxu0
        %v3732 = vadd.f32 %v3683, %v3731
        %v3733 = vpop.f32.mrf.mxu0
        %v3734 = vadd.f32 %v3685, %v3733
        %3735 = vdwg.mxu0
        %v3736 = vld [vmem:[#allocation3 + $0x8] sm:$0xf]
        %v3737 = vld [vmem:[#allocation3 + $0xc] sm:$0xf]
        %v3738 = vld [vmem:[#allocation3 + $0x10] sm:$0x1]
        %v3739 = vld [vmem:[#allocation3 + $0x20] sm:$0xf]
        %v3740 = vld [vmem:[#allocation3 + $0x24] sm:$0xf]
        %v3741 = vld [vmem:[#allocation3 + $0x28] sm:$0x1]
        %v3742 = vld [vmem:[#allocation3 + $0x38] sm:$0xf]
        %v3743 = vld [vmem:[#allocation3 + $0x3c] sm:$0xf]
        %v3744 = vld [vmem:[#allocation3 + $0x40] sm:$0x1]
        %v3745 = vld [vmem:[#allocation3 + $0x50] sm:$0xf]
        %v3746 = vld [vmem:[#allocation3 + $0x54] sm:$0xf]
        %v3747 = vld [vmem:[#allocation3 + $0x58] sm:$0x1]
        %v3748 = vld [vmem:[#allocation3 + $0x68] sm:$0xf]
        %v3749 = vld [vmem:[#allocation3 + $0x6c] sm:$0xf]
        %v3750 = vld [vmem:[#allocation3 + $0x70] sm:$0x1]
        %v3751 = vld [vmem:[#allocation3 + $0x80] sm:$0xf]
        %v3752 = vld [vmem:[#allocation3 + $0x84] sm:$0xf]
        %v3753 = vld [vmem:[#allocation3 + $0x88] sm:$0x1]
        %v3754 = vld [vmem:[#allocation3 + $0x98] sm:$0xf]
        %v3755 = vld [vmem:[#allocation3 + $0x9c] sm:$0xf]
        %v3756 = vld [vmem:[#allocation3 + $0xa0] sm:$0x1]
        %v3757 = vld [vmem:[#allocation3 + $0xb0] sm:$0xf]
        %v3758 = vld [vmem:[#allocation3 + $0xb4] sm:$0xf]
        %v3759 = vld [vmem:[#allocation3 + $0xb8] sm:$0x1]
        %v3760 = vld [vmem:[%s2335 + $0x8] sm:$0xf]
        %v3761 = vld [vmem:[%s2335 + $0xc] sm:$0xf]
        %v3762 = vld [vmem:[%s2335 + $0x10] sm:$0x1]
        %v3763 = vld [vmem:[%s2335 + $0x20] sm:$0xf]
        %v3764 = vld [vmem:[%s2335 + $0x24] sm:$0xf]
        %v3765 = vld [vmem:[%s2335 + $0x28] sm:$0x1]
        %v3766 = vld [vmem:[%s2335 + $0x38] sm:$0xf]
        %v3767 = vld [vmem:[%s2335 + $0x3c] sm:$0xf]
        %v3768 = vld [vmem:[%s2335 + $0x40] sm:$0x1]
        %v3769 = vld [vmem:[%s2335 + $0x50] sm:$0xf]
        %v3770 = vld [vmem:[%s2335 + $0x54] sm:$0xf]
        %v3771 = vld [vmem:[%s2335 + $0x58] sm:$0x1]
        %v3772 = vld [vmem:[%s2335 + $0x68] sm:$0xf]
        %v3773 = vld [vmem:[%s2335 + $0x6c] sm:$0xf]
        %v3774 = vld [vmem:[%s2335 + $0x70] sm:$0x1]
        %v3775 = vld [vmem:[%s2335 + $0x80] sm:$0xf]
        %v3776 = vld [vmem:[%s2335 + $0x84] sm:$0xf]
        %v3777 = vld [vmem:[%s2335 + $0x88] sm:$0x1]
        %v3778 = vld [vmem:[%s2335 + $0x98] sm:$0xf]
        %v3779 = vld [vmem:[%s2335 + $0x9c] sm:$0xf]
        %v3780 = vld [vmem:[%s2335 + $0xa0] sm:$0x1]
        %v3781 = vld [vmem:[%s2335 + $0xb0] sm:$0xf]
        %v3782 = vld [vmem:[%s2335 + $0xb4] sm:$0xf]
        %v3783 = vld [vmem:[%s2335 + $0xb8] sm:$0x1]
        %v3784 = vld [vmem:[%s2360 + $0x8] sm:$0xf]
        %v3785 = vld [vmem:[%s2360 + $0xc] sm:$0xf]
        %v3786 = vld [vmem:[%s2360 + $0x10] sm:$0x1]
        %v3787 = vld [vmem:[%s2360 + $0x20] sm:$0xf]
        %v3788 = vld [vmem:[%s2360 + $0x24] sm:$0xf]
        %v3789 = vld [vmem:[%s2360 + $0x28] sm:$0x1]
        %v3790 = vld [vmem:[%s2360 + $0x38] sm:$0xf]
        %v3791 = vld [vmem:[%s2360 + $0x3c] sm:$0xf]
        %v3792 = vld [vmem:[%s2360 + $0x40] sm:$0x1]
        %v3793 = vld [vmem:[%s2360 + $0x50] sm:$0xf]
        %v3794 = vld [vmem:[%s2360 + $0x54] sm:$0xf]
        %v3795 = vld [vmem:[%s2360 + $0x58] sm:$0x1]
        %v3796 = vld [vmem:[%s2360 + $0x68] sm:$0xf]
        %v3797 = vld [vmem:[%s2360 + $0x6c] sm:$0xf]
        %v3798 = vld [vmem:[%s2360 + $0x70] sm:$0x1]
        %v3799 = vld [vmem:[%s2360 + $0x80] sm:$0xf]
        %v3800 = vld [vmem:[%s2360 + $0x84] sm:$0xf]
        %v3801 = vld [vmem:[%s2360 + $0x88] sm:$0x1]
        %v3802 = vld [vmem:[%s2360 + $0x98] sm:$0xf]
        %v3803 = vld [vmem:[%s2360 + $0x9c] sm:$0xf]
        %v3804 = vld [vmem:[%s2360 + $0xa0] sm:$0x1]
        %v3805 = vld [vmem:[%s2360 + $0xb0] sm:$0xf]
        %v3806 = vld [vmem:[%s2360 + $0xb4] sm:$0xf]
        %v3807 = vld [vmem:[%s2360 + $0xb8] sm:$0x1]
        %v3832 = vunpack.c.l.b16 %v3736
        %v3833 = vunpack.c.l.b16 %v3737
        %v3834 = vunpack.c.l.b16 %v3738
        %v3835 = vunpack.c.l.b16 %v3739
        %v3836 = vunpack.c.l.b16 %v3740
        %v3837 = vunpack.c.l.b16 %v3741
        %v3838 = vunpack.c.l.b16 %v3742
        %v3839 = vunpack.c.l.b16 %v3743
        %v3840 = vunpack.c.l.b16 %v3744
        %v3841 = vunpack.c.l.b16 %v3745
        %v3842 = vunpack.c.l.b16 %v3746
        %v3843 = vunpack.c.l.b16 %v3747
        %v3844 = vunpack.c.l.b16 %v3748
        %v3845 = vunpack.c.l.b16 %v3749
        %v3846 = vunpack.c.l.b16 %v3750
        %v3847 = vunpack.c.l.b16 %v3751
        %v3848 = vunpack.c.l.b16 %v3752
        %v3849 = vunpack.c.l.b16 %v3753
        %v3850 = vunpack.c.l.b16 %v3754
        %v3851 = vunpack.c.l.b16 %v3755
        %v3852 = vunpack.c.l.b16 %v3756
        %v3853 = vunpack.c.l.b16 %v3757
        %v3854 = vunpack.c.l.b16 %v3758
        %v3855 = vunpack.c.l.b16 %v3759
        %v3856 = vpack.c.b16 %v3833, %v3832
        %v3857 = vpack.c.b16 %v3834, %v3834
        %v3858 = vpack.c.b16 %v3836, %v3835
        %v3859 = vpack.c.b16 %v3837, %v3837
        %v3860 = vpack.c.b16 %v3839, %v3838
        %v3861 = vpack.c.b16 %v3840, %v3840
        %v3862 = vpack.c.b16 %v3842, %v3841
        %v3863 = vpack.c.b16 %v3843, %v3843
        %v3864 = vpack.c.b16 %v3845, %v3844
        %v3865 = vpack.c.b16 %v3846, %v3846
        %v3866 = vpack.c.b16 %v3848, %v3847
        %v3867 = vpack.c.b16 %v3849, %v3849
        %v3868 = vpack.c.b16 %v3851, %v3850
        %v3869 = vpack.c.b16 %v3852, %v3852
        %v3870 = vpack.c.b16 %v3854, %v3853
        %v3871 = vpack.c.b16 %v3855, %v3855
        %v3896 = vunpack.c.l.b16 %v3760
        %v3897 = vunpack.c.l.b16 %v3761
        %v3898 = vunpack.c.l.b16 %v3762
        %v3899 = vunpack.c.l.b16 %v3763
        %v3900 = vunpack.c.l.b16 %v3764
        %v3901 = vunpack.c.l.b16 %v3765
        %v3902 = vunpack.c.l.b16 %v3766
        %v3903 = vunpack.c.l.b16 %v3767
        %v3904 = vunpack.c.l.b16 %v3768
        %v3905 = vunpack.c.l.b16 %v3769
        %v3906 = vunpack.c.l.b16 %v3770
        %v3907 = vunpack.c.l.b16 %v3771
        %v3908 = vunpack.c.l.b16 %v3772
        %v3909 = vunpack.c.l.b16 %v3773
        %v3910 = vunpack.c.l.b16 %v3774
        %v3911 = vunpack.c.l.b16 %v3775
        %v3912 = vunpack.c.l.b16 %v3776
        %v3913 = vunpack.c.l.b16 %v3777
        %v3914 = vunpack.c.l.b16 %v3778
        %v3915 = vunpack.c.l.b16 %v3779
        %v3916 = vunpack.c.l.b16 %v3780
        %v3917 = vunpack.c.l.b16 %v3781
        %v3918 = vunpack.c.l.b16 %v3782
        %v3919 = vunpack.c.l.b16 %v3783
        %v3920 = vpack.c.b16 %v3897, %v3896
        %v3921 = vpack.c.b16 %v3898, %v3898
        %v3922 = vpack.c.b16 %v3900, %v3899
        %v3923 = vpack.c.b16 %v3901, %v3901
        %v3924 = vpack.c.b16 %v3903, %v3902
        %v3925 = vpack.c.b16 %v3904, %v3904
        %v3926 = vpack.c.b16 %v3906, %v3905
        %v3927 = vpack.c.b16 %v3907, %v3907
        %v3928 = vpack.c.b16 %v3909, %v3908
        %v3929 = vpack.c.b16 %v3910, %v3910
        %v3930 = vpack.c.b16 %v3912, %v3911
        %v3931 = vpack.c.b16 %v3913, %v3913
        %v3932 = vpack.c.b16 %v3915, %v3914
        %v3933 = vpack.c.b16 %v3916, %v3916
        %v3934 = vpack.c.b16 %v3918, %v3917
        %v3935 = vpack.c.b16 %v3919, %v3919
        %v3960 = vunpack.c.l.b16 %v3784
        %v3961 = vunpack.c.l.b16 %v3785
        %v3962 = vunpack.c.l.b16 %v3786
        %v3963 = vunpack.c.l.b16 %v3787
        %v3964 = vunpack.c.l.b16 %v3788
        %v3965 = vunpack.c.l.b16 %v3789
        %v3966 = vunpack.c.l.b16 %v3790
        %v3967 = vunpack.c.l.b16 %v3791
        %v3968 = vunpack.c.l.b16 %v3792
        %v3969 = vunpack.c.l.b16 %v3793
        %v3970 = vunpack.c.l.b16 %v3794
        %v3971 = vunpack.c.l.b16 %v3795
        %v3972 = vunpack.c.l.b16 %v3796
        %v3973 = vunpack.c.l.b16 %v3797
        %v3974 = vunpack.c.l.b16 %v3798
        %v3975 = vunpack.c.l.b16 %v3799
        %v3976 = vunpack.c.l.b16 %v3800
        %v3977 = vunpack.c.l.b16 %v3801
        %v3978 = vunpack.c.l.b16 %v3802
        %v3979 = vunpack.c.l.b16 %v3803
        %v3980 = vunpack.c.l.b16 %v3804
        %v3981 = vunpack.c.l.b16 %v3805
        %v3982 = vunpack.c.l.b16 %v3806
        %v3983 = vunpack.c.l.b16 %v3807
        %v3984 = vpack.c.b16 %v3961, %v3960
        %v3985 = vpack.c.b16 %v3962, %v3962
        %v3986 = vpack.c.b16 %v3964, %v3963
        %v3987 = vpack.c.b16 %v3965, %v3965
        %v3988 = vpack.c.b16 %v3967, %v3966
        %v3989 = vpack.c.b16 %v3968, %v3968
        %v3990 = vpack.c.b16 %v3970, %v3969
        %v3991 = vpack.c.b16 %v3971, %v3971
        %v3992 = vpack.c.b16 %v3973, %v3972
        %v3993 = vpack.c.b16 %v3974, %v3974
        %v3994 = vpack.c.b16 %v3976, %v3975
        %v3995 = vpack.c.b16 %v3977, %v3977
        %v3996 = vpack.c.b16 %v3979, %v3978
        %v3997 = vpack.c.b16 %v3980, %v3980
        %v3998 = vpack.c.b16 %v3982, %v3981
        %v3999 = vpack.c.b16 %v3983, %v3983
        %v4001 = vshrl.u32 %v3856, 16
        %v4003 = vshll.u32 %v3856, 16
        %v4005 = vrot.slane %v4003, 1
        %v4006 = vor.u32 %v4001, %v4005
        %v4008 = vshll.u32 %v3857, 16
        %v4010 = vrot.slane %v4008, 1
        %v4011 = vsel %vm1931, %v4006, %v4010
        %v4013 = vshrl.u32 %v3920, 16
        %v4015 = vshll.u32 %v3920, 16
        %v4017 = vrot.slane %v4015, 1
        %v4018 = vor.u32 %v4013, %v4017
        %v4020 = vshll.u32 %v3921, 16
        %v4022 = vrot.slane %v4020, 1
        %v4023 = vsel %vm1931, %v4018, %v4022
        %v4025 = vshrl.u32 %v3984, 16
        %v4027 = vshll.u32 %v3984, 16
        %v4029 = vrot.slane %v4027, 1
        %v4030 = vor.u32 %v4025, %v4029
        %v4032 = vshll.u32 %v3985, 16
        %v4034 = vrot.slane %v4032, 1
        %v4035 = vsel %vm1931, %v4030, %v4034
        %v4037 = vshrl.u32 %v3858, 16
        %v4039 = vshll.u32 %v3858, 16
        %v4041 = vrot.slane %v4039, 1
        %v4042 = vor.u32 %v4037, %v4041
        %v4044 = vshll.u32 %v3859, 16
        %v4046 = vrot.slane %v4044, 1
        %v4047 = vsel %vm1931, %v4042, %v4046
        %v4049 = vshrl.u32 %v3922, 16
        %v4051 = vshll.u32 %v3922, 16
        %v4053 = vrot.slane %v4051, 1
        %v4054 = vor.u32 %v4049, %v4053
        %v4056 = vshll.u32 %v3923, 16
        %v4058 = vrot.slane %v4056, 1
        %v4059 = vsel %vm1931, %v4054, %v4058
        %v4061 = vshrl.u32 %v3986, 16
        %v4063 = vshll.u32 %v3986, 16
        %v4065 = vrot.slane %v4063, 1
        %v4066 = vor.u32 %v4061, %v4065
        %v4068 = vshll.u32 %v3987, 16
        %v4070 = vrot.slane %v4068, 1
        %v4071 = vsel %vm1931, %v4066, %v4070
        %v4073 = vshrl.u32 %v3860, 16
        %v4075 = vshll.u32 %v3860, 16
        %v4077 = vrot.slane %v4075, 1
        %v4078 = vor.u32 %v4073, %v4077
        %v4080 = vshll.u32 %v3861, 16
        %v4082 = vrot.slane %v4080, 1
        %v4083 = vsel %vm1931, %v4078, %v4082
        %v4085 = vshrl.u32 %v3924, 16
        %v4087 = vshll.u32 %v3924, 16
        %v4089 = vrot.slane %v4087, 1
        %v4090 = vor.u32 %v4085, %v4089
        %v4092 = vshll.u32 %v3925, 16
        %v4094 = vrot.slane %v4092, 1
        %v4095 = vsel %vm1931, %v4090, %v4094
        %v4097 = vshrl.u32 %v3988, 16
        %v4099 = vshll.u32 %v3988, 16
        %v4101 = vrot.slane %v4099, 1
        %v4102 = vor.u32 %v4097, %v4101
        %v4104 = vshll.u32 %v3989, 16
        %v4106 = vrot.slane %v4104, 1
        %v4107 = vsel %vm1931, %v4102, %v4106
        %v4109 = vshrl.u32 %v3862, 16
        %v4111 = vshll.u32 %v3862, 16
        %v4113 = vrot.slane %v4111, 1
        %v4114 = vor.u32 %v4109, %v4113
        %v4116 = vshll.u32 %v3863, 16
        %v4118 = vrot.slane %v4116, 1
        %v4119 = vsel %vm1931, %v4114, %v4118
        %v4121 = vshrl.u32 %v3926, 16
        %v4123 = vshll.u32 %v3926, 16
        %v4125 = vrot.slane %v4123, 1
        %v4126 = vor.u32 %v4121, %v4125
        %v4128 = vshll.u32 %v3927, 16
        %v4130 = vrot.slane %v4128, 1
        %v4131 = vsel %vm1931, %v4126, %v4130
        %v4133 = vshrl.u32 %v3990, 16
        %v4135 = vshll.u32 %v3990, 16
        %v4137 = vrot.slane %v4135, 1
        %v4138 = vor.u32 %v4133, %v4137
        %v4140 = vshll.u32 %v3991, 16
        %v4142 = vrot.slane %v4140, 1
        %v4143 = vsel %vm1931, %v4138, %v4142
        %v4145 = vshrl.u32 %v3864, 16
        %v4147 = vshll.u32 %v3864, 16
        %v4149 = vrot.slane %v4147, 1
        %v4150 = vor.u32 %v4145, %v4149
        %v4152 = vshll.u32 %v3865, 16
        %v4154 = vrot.slane %v4152, 1
        %v4155 = vsel %vm1931, %v4150, %v4154
        %v4157 = vshrl.u32 %v3928, 16
        %v4159 = vshll.u32 %v3928, 16
        %v4161 = vrot.slane %v4159, 1
        %v4162 = vor.u32 %v4157, %v4161
        %v4164 = vshll.u32 %v3929, 16
        %v4166 = vrot.slane %v4164, 1
        %v4167 = vsel %vm1931, %v4162, %v4166
        %v4169 = vshrl.u32 %v3992, 16
        %v4171 = vshll.u32 %v3992, 16
        %v4173 = vrot.slane %v4171, 1
        %v4174 = vor.u32 %v4169, %v4173
        %v4176 = vshll.u32 %v3993, 16
        %v4178 = vrot.slane %v4176, 1
        %v4179 = vsel %vm1931, %v4174, %v4178
        %v4181 = vshrl.u32 %v3866, 16
        %v4183 = vshll.u32 %v3866, 16
        %v4185 = vrot.slane %v4183, 1
        %v4186 = vor.u32 %v4181, %v4185
        %v4188 = vshll.u32 %v3867, 16
        %v4190 = vrot.slane %v4188, 1
        %v4191 = vsel %vm1931, %v4186, %v4190
        %v4193 = vshrl.u32 %v3930, 16
        %v4195 = vshll.u32 %v3930, 16
        %v4197 = vrot.slane %v4195, 1
        %v4198 = vor.u32 %v4193, %v4197
        %v4200 = vshll.u32 %v3931, 16
        %v4202 = vrot.slane %v4200, 1
        %v4203 = vsel %vm1931, %v4198, %v4202
        %v4205 = vshrl.u32 %v3994, 16
        %v4207 = vshll.u32 %v3994, 16
        %v4209 = vrot.slane %v4207, 1
        %v4210 = vor.u32 %v4205, %v4209
        %v4212 = vshll.u32 %v3995, 16
        %v4214 = vrot.slane %v4212, 1
        %v4215 = vsel %vm1931, %v4210, %v4214
        %v4217 = vshrl.u32 %v3868, 16
        %v4219 = vshll.u32 %v3868, 16
        %v4221 = vrot.slane %v4219, 1
        %v4222 = vor.u32 %v4217, %v4221
        %v4224 = vshll.u32 %v3869, 16
        %v4226 = vrot.slane %v4224, 1
        %v4227 = vsel %vm1931, %v4222, %v4226
        %v4229 = vshrl.u32 %v3932, 16
        %v4231 = vshll.u32 %v3932, 16
        %v4233 = vrot.slane %v4231, 1
        %v4234 = vor.u32 %v4229, %v4233
        %v4236 = vshll.u32 %v3933, 16
        %v4238 = vrot.slane %v4236, 1
        %v4239 = vsel %vm1931, %v4234, %v4238
        %v4241 = vshrl.u32 %v3996, 16
        %v4243 = vshll.u32 %v3996, 16
        %v4245 = vrot.slane %v4243, 1
        %v4246 = vor.u32 %v4241, %v4245
        %v4248 = vshll.u32 %v3997, 16
        %v4250 = vrot.slane %v4248, 1
        %v4251 = vsel %vm1931, %v4246, %v4250
        %v4253 = vshrl.u32 %v3870, 16
        %v4255 = vshll.u32 %v3870, 16
        %v4257 = vrot.slane %v4255, 1
        %v4258 = vor.u32 %v4253, %v4257
        %v4260 = vshll.u32 %v3871, 16
        %v4262 = vrot.slane %v4260, 1
        %v4263 = vsel %vm1931, %v4258, %v4262
        %v4265 = vshrl.u32 %v3934, 16
        %v4267 = vshll.u32 %v3934, 16
        %v4269 = vrot.slane %v4267, 1
        %v4270 = vor.u32 %v4265, %v4269
        %v4272 = vshll.u32 %v3935, 16
        %v4274 = vrot.slane %v4272, 1
        %v4275 = vsel %vm1931, %v4270, %v4274
        %v4277 = vshrl.u32 %v3998, 16
        %v4279 = vshll.u32 %v3998, 16
        %v4281 = vrot.slane %v4279, 1
        %v4282 = vor.u32 %v4277, %v4281
        %v4284 = vshll.u32 %v3999, 16
        %v4286 = vrot.slane %v4284, 1
        %v4287 = vsel %vm1931, %v4282, %v4286
        %s4312 = scalar_lea.vmem [#allocation4], 384
        %v4313 = vld [vmem:[%s4312] sm:$0xf]
        %v4314 = vld [vmem:[%s4312 + $0x4] sm:$0xf]
        %v4315 = vld [vmem:[%s4312 + $0x8] sm:$0xf]
        %v4316 = vld [vmem:[%s4312 + $0xc] sm:$0xf]
        %v4317 = vld [vmem:[%s4312 + $0x10] sm:$0xf]
        %v4318 = vld [vmem:[%s4312 + $0x14] sm:$0xf]
        %v4319 = vld [vmem:[%s4312 + $0x18] sm:$0xf]
        %v4320 = vld [vmem:[%s4312 + $0x1c] sm:$0xf]
        %v4321 = vld [vmem:[%s4312 + $0x20] sm:$0xf]
        %v4322 = vld [vmem:[%s4312 + $0x24] sm:$0xf]
        %v4323 = vld [vmem:[%s4312 + $0x28] sm:$0xf]
        %v4324 = vld [vmem:[%s4312 + $0x2c] sm:$0xf]
        %v4325 = vld [vmem:[%s4312 + $0x30] sm:$0xf]
        %v4326 = vld [vmem:[%s4312 + $0x34] sm:$0xf]
        %v4327 = vld [vmem:[%s4312 + $0x38] sm:$0xf]
        %v4328 = vld [vmem:[%s4312 + $0x3c] sm:$0xf]
        %v4329 = vld [vmem:[%s4312 + $0x40] sm:$0xf]
        %v4330 = vld [vmem:[%s4312 + $0x44] sm:$0xf]
        %v4331 = vld [vmem:[%s4312 + $0x48] sm:$0xf]
        %v4332 = vld [vmem:[%s4312 + $0x4c] sm:$0xf]
        %v4333 = vld [vmem:[%s4312 + $0x50] sm:$0xf]
        %v4334 = vld [vmem:[%s4312 + $0x54] sm:$0xf]
        %v4335 = vld [vmem:[%s4312 + $0x58] sm:$0xf]
        %v4336 = vld [vmem:[%s4312 + $0x5c] sm:$0xf]
        %v4337 = vld [vmem:[%s4312 + $0x60] sm:$0xf]
        %v4338 = vld [vmem:[%s4312 + $0x64] sm:$0xf]
        %v4339 = vld [vmem:[%s4312 + $0x68] sm:$0xf]
        %v4340 = vld [vmem:[%s4312 + $0x6c] sm:$0xf]
        %v4341 = vld [vmem:[%s4312 + $0x70] sm:$0xf]
        %v4342 = vld [vmem:[%s4312 + $0x74] sm:$0xf]
        %v4343 = vld [vmem:[%s4312 + $0x78] sm:$0xf]
        %v4344 = vld [vmem:[%s4312 + $0x7c] sm:$0xf]
        %v4345 = vld [vmem:[%s4312 + $0x80] sm:$0xf]
        %v4346 = vld [vmem:[%s4312 + $0x84] sm:$0xf]
        %v4347 = vld [vmem:[%s4312 + $0x88] sm:$0xf]
        %v4348 = vld [vmem:[%s4312 + $0x8c] sm:$0xf]
        %v4349 = vld [vmem:[%s4312 + $0x90] sm:$0xf]
        %v4350 = vld [vmem:[%s4312 + $0x94] sm:$0xf]
        %v4351 = vld [vmem:[%s4312 + $0x98] sm:$0xf]
        %v4352 = vld [vmem:[%s4312 + $0x9c] sm:$0xf]
        %v4353 = vld [vmem:[%s4312 + $0xa0] sm:$0xf]
        %v4354 = vld [vmem:[%s4312 + $0xa4] sm:$0xf]
        %v4355 = vld [vmem:[%s4312 + $0xa8] sm:$0xf]
        %v4356 = vld [vmem:[%s4312 + $0xac] sm:$0xf]
        %v4357 = vld [vmem:[%s4312 + $0xb0] sm:$0xf]
        %v4358 = vld [vmem:[%s4312 + $0xb4] sm:$0xf]
        %v4359 = vld [vmem:[%s4312 + $0xb8] sm:$0xf]
        %v4360 = vld [vmem:[%s4312 + $0xbc] sm:$0xf]
        %v4409 = vunpack.c.l.b16 %v4313
        %v4410 = vunpack.c.l.b16 %v4314
        %v4411 = vunpack.c.l.b16 %v4315
        %v4412 = vunpack.c.l.b16 %v4316
        %v4413 = vunpack.c.l.b16 %v4317
        %v4414 = vunpack.c.l.b16 %v4318
        %v4415 = vunpack.c.l.b16 %v4319
        %v4416 = vunpack.c.l.b16 %v4320
        %v4417 = vunpack.c.l.b16 %v4321
        %v4418 = vunpack.c.l.b16 %v4322
        %v4419 = vunpack.c.l.b16 %v4323
        %v4420 = vunpack.c.l.b16 %v4324
        %v4421 = vunpack.c.l.b16 %v4325
        %v4422 = vunpack.c.l.b16 %v4326
        %v4423 = vunpack.c.l.b16 %v4327
        %v4424 = vunpack.c.l.b16 %v4328
        %v4425 = vunpack.c.l.b16 %v4329
        %v4426 = vunpack.c.l.b16 %v4330
        %v4427 = vunpack.c.l.b16 %v4331
        %v4428 = vunpack.c.l.b16 %v4332
        %v4429 = vunpack.c.l.b16 %v4333
        %v4430 = vunpack.c.l.b16 %v4334
        %v4431 = vunpack.c.l.b16 %v4335
        %v4432 = vunpack.c.l.b16 %v4336
        %v4433 = vunpack.c.l.b16 %v4337
        %v4434 = vunpack.c.l.b16 %v4338
        %v4435 = vunpack.c.l.b16 %v4339
        %v4436 = vunpack.c.l.b16 %v4340
        %v4437 = vunpack.c.l.b16 %v4341
        %v4438 = vunpack.c.l.b16 %v4342
        %v4439 = vunpack.c.l.b16 %v4343
        %v4440 = vunpack.c.l.b16 %v4344
        %v4441 = vunpack.c.l.b16 %v4345
        %v4442 = vunpack.c.l.b16 %v4346
        %v4443 = vunpack.c.l.b16 %v4347
        %v4444 = vunpack.c.l.b16 %v4348
        %v4445 = vunpack.c.l.b16 %v4349
        %v4446 = vunpack.c.l.b16 %v4350
        %v4447 = vunpack.c.l.b16 %v4351
        %v4448 = vunpack.c.l.b16 %v4352
        %v4449 = vunpack.c.l.b16 %v4353
        %v4450 = vunpack.c.l.b16 %v4354
        %v4451 = vunpack.c.l.b16 %v4355
        %v4452 = vunpack.c.l.b16 %v4356
        %v4453 = vunpack.c.l.b16 %v4357
        %v4454 = vunpack.c.l.b16 %v4358
        %v4455 = vunpack.c.l.b16 %v4359
        %v4456 = vunpack.c.l.b16 %v4360
        %v4457 = vpack.c.b16 %v4410, %v4409
        %v4458 = vpack.c.b16 %v4412, %v4411
        %v4459 = vpack.c.b16 %v4414, %v4413
        %v4460 = vpack.c.b16 %v4416, %v4415
        %v4461 = vpack.c.b16 %v4418, %v4417
        %v4462 = vpack.c.b16 %v4420, %v4419
        %v4463 = vpack.c.b16 %v4422, %v4421
        %v4464 = vpack.c.b16 %v4424, %v4423
        %v4465 = vpack.c.b16 %v4426, %v4425
        %v4466 = vpack.c.b16 %v4428, %v4427
        %v4467 = vpack.c.b16 %v4430, %v4429
        %v4468 = vpack.c.b16 %v4432, %v4431
        %v4469 = vpack.c.b16 %v4434, %v4433
        %v4470 = vpack.c.b16 %v4436, %v4435
        %v4471 = vpack.c.b16 %v4438, %v4437
        %v4472 = vpack.c.b16 %v4440, %v4439
        %v4473 = vpack.c.b16 %v4442, %v4441
        %v4474 = vpack.c.b16 %v4444, %v4443
        %v4475 = vpack.c.b16 %v4446, %v4445
        %v4476 = vpack.c.b16 %v4448, %v4447
        %v4477 = vpack.c.b16 %v4450, %v4449
        %v4478 = vpack.c.b16 %v4452, %v4451
        %v4479 = vpack.c.b16 %v4454, %v4453
        %v4480 = vpack.c.b16 %v4456, %v4455
        %4505 = vmatpush.bf16.msra.mxu0 %v4464
        %4506 = vmatpush.bf16.msra.mxu0 %v4463
        %4507 = vmatpush.bf16.msra.mxu0 %v4462
        %4508 = vmatpush.bf16.msra.mxu0 %v4461
        %4509 = vmatpush.bf16.msra.mxu0 %v4460
        %4510 = vmatpush.bf16.msra.mxu0 %v4459
        %4511 = vmatpush.bf16.msra.mxu0 %v4458
        %4512 = vmatpush.bf16.msra.mxu0 %v4457
        %4513 = vmatmul.bf16.gmra.mxu0 %v4011
        %v4514 = vpop.f32.mrf.mxu0
        %v4515 = vadd.f32 0.0, %v4514
        %v4516 = vpop.f32.mrf.mxu0
        %v4517 = vadd.f32 0.0, %v4516
        %4518 = vmatmul.bf16.gmra.mxu0 %v4047
        %v4519 = vpop.f32.mrf.mxu0
        %v4520 = vadd.f32 0.0, %v4519
        %v4521 = vpop.f32.mrf.mxu0
        %v4522 = vadd.f32 0.0, %v4521
        %4523 = vmatmul.bf16.gmra.mxu0 %v4083
        %v4524 = vpop.f32.mrf.mxu0
        %v4525 = vadd.f32 0.0, %v4524
        %v4526 = vpop.f32.mrf.mxu0
        %v4527 = vadd.f32 0.0, %v4526
        %4528 = vmatmul.bf16.gmra.mxu0 %v4119
        %v4529 = vpop.f32.mrf.mxu0
        %v4530 = vadd.f32 0.0, %v4529
        %v4531 = vpop.f32.mrf.mxu0
        %v4532 = vadd.f32 0.0, %v4531
        %4533 = vmatmul.bf16.gmra.mxu0 %v4155
        %v4534 = vpop.f32.mrf.mxu0
        %v4535 = vadd.f32 0.0, %v4534
        %v4536 = vpop.f32.mrf.mxu0
        %v4537 = vadd.f32 0.0, %v4536
        %4538 = vmatmul.bf16.gmra.mxu0 %v4191
        %v4539 = vpop.f32.mrf.mxu0
        %v4540 = vadd.f32 0.0, %v4539
        %v4541 = vpop.f32.mrf.mxu0
        %v4542 = vadd.f32 0.0, %v4541
        %4543 = vmatmul.bf16.gmra.mxu0 %v4227
        %v4544 = vpop.f32.mrf.mxu0
        %v4545 = vadd.f32 0.0, %v4544
        %v4546 = vpop.f32.mrf.mxu0
        %v4547 = vadd.f32 0.0, %v4546
        %4548 = vmatmul.bf16.gmra.mxu0 %v4263
        %v4549 = vpop.f32.mrf.mxu0
        %v4550 = vadd.f32 0.0, %v4549
        %v4551 = vpop.f32.mrf.mxu0
        %v4552 = vadd.f32 0.0, %v4551
        %4553 = vdwg.mxu0
        %4554 = vmatpush.bf16.msra.mxu0 %v4472
        %4555 = vmatpush.bf16.msra.mxu0 %v4471
        %4556 = vmatpush.bf16.msra.mxu0 %v4470
        %4557 = vmatpush.bf16.msra.mxu0 %v4469
        %4558 = vmatpush.bf16.msra.mxu0 %v4468
        %4559 = vmatpush.bf16.msra.mxu0 %v4467
        %4560 = vmatpush.bf16.msra.mxu0 %v4466
        %4561 = vmatpush.bf16.msra.mxu0 %v4465
        %4562 = vmatmul.bf16.gmra.mxu0 %v4023
        %v4563 = vpop.f32.mrf.mxu0
        %v4564 = vadd.f32 %v4515, %v4563
        %v4565 = vpop.f32.mrf.mxu0
        %v4566 = vadd.f32 %v4517, %v4565
        %4567 = vmatmul.bf16.gmra.mxu0 %v4059
        %v4568 = vpop.f32.mrf.mxu0
        %v4569 = vadd.f32 %v4520, %v4568
        %v4570 = vpop.f32.mrf.mxu0
        %v4571 = vadd.f32 %v4522, %v4570
        %4572 = vmatmul.bf16.gmra.mxu0 %v4095
        %v4573 = vpop.f32.mrf.mxu0
        %v4574 = vadd.f32 %v4525, %v4573
        %v4575 = vpop.f32.mrf.mxu0
        %v4576 = vadd.f32 %v4527, %v4575
        %4577 = vmatmul.bf16.gmra.mxu0 %v4131
        %v4578 = vpop.f32.mrf.mxu0
        %v4579 = vadd.f32 %v4530, %v4578
        %v4580 = vpop.f32.mrf.mxu0
        %v4581 = vadd.f32 %v4532, %v4580
        %4582 = vmatmul.bf16.gmra.mxu0 %v4167
        %v4583 = vpop.f32.mrf.mxu0
        %v4584 = vadd.f32 %v4535, %v4583
        %v4585 = vpop.f32.mrf.mxu0
        %v4586 = vadd.f32 %v4537, %v4585
        %4587 = vmatmul.bf16.gmra.mxu0 %v4203
        %v4588 = vpop.f32.mrf.mxu0
        %v4589 = vadd.f32 %v4540, %v4588
        %v4590 = vpop.f32.mrf.mxu0
        %v4591 = vadd.f32 %v4542, %v4590
        %4592 = vmatmul.bf16.gmra.mxu0 %v4239
        %v4593 = vpop.f32.mrf.mxu0
        %v4594 = vadd.f32 %v4545, %v4593
        %v4595 = vpop.f32.mrf.mxu0
        %v4596 = vadd.f32 %v4547, %v4595
        %4597 = vmatmul.bf16.gmra.mxu0 %v4275
        %v4598 = vpop.f32.mrf.mxu0
        %v4599 = vadd.f32 %v4550, %v4598
        %v4600 = vpop.f32.mrf.mxu0
        %v4601 = vadd.f32 %v4552, %v4600
        %4602 = vdwg.mxu0
        %4603 = vmatpush.bf16.msra.mxu0 %v4480
        %4604 = vmatpush.bf16.msra.mxu0 %v4479
        %4605 = vmatpush.bf16.msra.mxu0 %v4478
        %4606 = vmatpush.bf16.msra.mxu0 %v4477
        %4607 = vmatpush.bf16.msra.mxu0 %v4476
        %4608 = vmatpush.bf16.msra.mxu0 %v4475
        %4609 = vmatpush.bf16.msra.mxu0 %v4474
        %4610 = vmatpush.bf16.msra.mxu0 %v4473
        %4611 = vmatmul.bf16.gmra.mxu0 %v4035
        %v4612 = vpop.f32.mrf.mxu0
        %v4613 = vadd.f32 %v4564, %v4612
        %v4614 = vpop.f32.mrf.mxu0
        %v4615 = vadd.f32 %v4566, %v4614
        %4616 = vmatmul.bf16.gmra.mxu0 %v4071
        %v4617 = vpop.f32.mrf.mxu0
        %v4618 = vadd.f32 %v4569, %v4617
        %v4619 = vpop.f32.mrf.mxu0
        %v4620 = vadd.f32 %v4571, %v4619
        %4621 = vmatmul.bf16.gmra.mxu0 %v4107
        %v4622 = vpop.f32.mrf.mxu0
        %v4623 = vadd.f32 %v4574, %v4622
        %v4624 = vpop.f32.mrf.mxu0
        %v4625 = vadd.f32 %v4576, %v4624
        %4626 = vmatmul.bf16.gmra.mxu0 %v4143
        %v4627 = vpop.f32.mrf.mxu0
        %v4628 = vadd.f32 %v4579, %v4627
        %v4629 = vpop.f32.mrf.mxu0
        %v4630 = vadd.f32 %v4581, %v4629
        %4631 = vmatmul.bf16.gmra.mxu0 %v4179
        %v4632 = vpop.f32.mrf.mxu0
        %v4633 = vadd.f32 %v4584, %v4632
        %v4634 = vpop.f32.mrf.mxu0
        %v4635 = vadd.f32 %v4586, %v4634
        %4636 = vmatmul.bf16.gmra.mxu0 %v4215
        %v4637 = vpop.f32.mrf.mxu0
        %v4638 = vadd.f32 %v4589, %v4637
        %v4639 = vpop.f32.mrf.mxu0
        %v4640 = vadd.f32 %v4591, %v4639
        %4641 = vmatmul.bf16.gmra.mxu0 %v4251
        %v4642 = vpop.f32.mrf.mxu0
        %v4643 = vadd.f32 %v4594, %v4642
        %v4644 = vpop.f32.mrf.mxu0
        %v4645 = vadd.f32 %v4596, %v4644
        %4646 = vmatmul.bf16.gmra.mxu0 %v4287
        %v4647 = vpop.f32.mrf.mxu0
        %v4648 = vadd.f32 %v4599, %v4647
        %v4649 = vpop.f32.mrf.mxu0
        %v4650 = vadd.f32 %v4601, %v4649
        %4651 = vdwg.mxu0
        %v4652 = vadd.f32 %v3697, %v4613
        %v4653 = vadd.f32 %v3699, %v4615
        %v4654 = vadd.f32 %v3702, %v4618
        %v4655 = vadd.f32 %v3704, %v4620
        %v4656 = vadd.f32 %v3707, %v4623
        %v4657 = vadd.f32 %v3709, %v4625
        %v4658 = vadd.f32 %v3712, %v4628
        %v4659 = vadd.f32 %v3714, %v4630
        %v4660 = vadd.f32 %v3717, %v4633
        %v4661 = vadd.f32 %v3719, %v4635
        %v4662 = vadd.f32 %v3722, %v4638
        %v4663 = vadd.f32 %v3724, %v4640
        %v4664 = vadd.f32 %v3727, %v4643
        %v4665 = vadd.f32 %v3729, %v4645
        %v4666 = vadd.f32 %v3732, %v4648
        %v4667 = vadd.f32 %v3734, %v4650
        %v4668 = vld [vmem:[%s5] sm:$0x1]
        %v4670 = vperm.slane %v4668, 0
        %v4672 = vmul.f32 %v4652, %v4670
        %v4673 = vmul.f32 %v4653, %v4670
        %v4674 = vmul.f32 %v4654, %v4670
        %v4675 = vmul.f32 %v4655, %v4670
        %v4676 = vmul.f32 %v4656, %v4670
        %v4677 = vmul.f32 %v4657, %v4670
        %v4678 = vmul.f32 %v4658, %v4670
        %v4679 = vmul.f32 %v4659, %v4670
        %v4680 = vmul.f32 %v4660, %v4670
        %v4681 = vmul.f32 %v4661, %v4670
        %v4682 = vmul.f32 %v4662, %v4670
        %v4683 = vmul.f32 %v4663, %v4670
        %v4684 = vmul.f32 %v4664, %v4670
        %v4685 = vmul.f32 %v4665, %v4670
        %v4686 = vmul.f32 %v4666, %v4670
        %v4687 = vmul.f32 %v4667, %v4670
        %v4688 = vld [vmem:[%s6] sm:$0x1]
        %v4690 = vperm.slane %v4688, 0
        %v4692 = vadd.f32 %v4672, %v4690
        %v4693 = vadd.f32 %v4673, %v4690
        %v4694 = vadd.f32 %v4674, %v4690
        %v4695 = vadd.f32 %v4675, %v4690
        %v4696 = vadd.f32 %v4676, %v4690
        %v4697 = vadd.f32 %v4677, %v4690
        %v4698 = vadd.f32 %v4678, %v4690
        %v4699 = vadd.f32 %v4679, %v4690
        %v4700 = vadd.f32 %v4680, %v4690
        %v4701 = vadd.f32 %v4681, %v4690
        %v4702 = vadd.f32 %v4682, %v4690
        %v4703 = vadd.f32 %v4683, %v4690
        %v4704 = vadd.f32 %v4684, %v4690
        %v4705 = vadd.f32 %v4685, %v4690
        %v4706 = vadd.f32 %v4686, %v4690
        %v4707 = vadd.f32 %v4687, %v4690
        %v4708 = vmax.f32 %v4692, 0.0
        %v4709 = vmax.f32 %v4693, 0.0
        %v4710 = vmax.f32 %v4694, 0.0
        %v4711 = vmax.f32 %v4695, 0.0
        %v4712 = vmax.f32 %v4696, 0.0
        %v4713 = vmax.f32 %v4697, 0.0
        %v4714 = vmax.f32 %v4698, 0.0
        %v4715 = vmax.f32 %v4699, 0.0
        %v4716 = vmax.f32 %v4700, 0.0
        %v4717 = vmax.f32 %v4701, 0.0
        %v4718 = vmax.f32 %v4702, 0.0
        %v4719 = vmax.f32 %v4703, 0.0
        %v4720 = vmax.f32 %v4704, 0.0
        %v4721 = vmax.f32 %v4705, 0.0
        %v4722 = vmax.f32 %v4706, 0.0
        %v4723 = vmax.f32 %v4707, 0.0
        %v4724 = vpack.c.bf16 %v4708, %v4708
        %v4725 = vpack.c.bf16 %v4709, %v4709
        %v4726 = vpack.c.bf16 %v4710, %v4710
        %v4727 = vpack.c.bf16 %v4711, %v4711
        %v4728 = vpack.c.bf16 %v4712, %v4712
        %v4729 = vpack.c.bf16 %v4713, %v4713
        %v4730 = vpack.c.bf16 %v4714, %v4714
        %v4731 = vpack.c.bf16 %v4715, %v4715
        %v4732 = vpack.c.bf16 %v4716, %v4716
        %v4733 = vpack.c.bf16 %v4717, %v4717
        %v4734 = vpack.c.bf16 %v4718, %v4718
        %v4735 = vpack.c.bf16 %v4719, %v4719
        %v4736 = vpack.c.bf16 %v4720, %v4720
        %v4737 = vpack.c.bf16 %v4721, %v4721
        %v4738 = vpack.c.bf16 %v4722, %v4722
        %v4739 = vpack.c.bf16 %v4723, %v4723
        %4740 = vst [vmem:[%s302] sm:$0xf] %v4724
        %4741 = vst [vmem:[%s302 + $0x4] sm:$0xf] %v4725
        %4742 = vst [vmem:[%s302 + $0x8] sm:$0xf] %v4726
        %4743 = vst [vmem:[%s302 + $0xc] sm:$0xf] %v4727
        %4744 = vst [vmem:[%s302 + $0x10] sm:$0xf] %v4728
        %4745 = vst [vmem:[%s302 + $0x14] sm:$0xf] %v4729
        %4746 = vst [vmem:[%s302 + $0x18] sm:$0xf] %v4730
        %4747 = vst [vmem:[%s302 + $0x1c] sm:$0xf] %v4731
        %4748 = vst [vmem:[%s302 + $0x20] sm:$0xf] %v4732
        %4749 = vst [vmem:[%s302 + $0x24] sm:$0xf] %v4733
        %4750 = vst [vmem:[%s302 + $0x28] sm:$0xf] %v4734
        %4751 = vst [vmem:[%s302 + $0x2c] sm:$0xf] %v4735
        %4752 = vst [vmem:[%s302 + $0x30] sm:$0xf] %v4736
        %4753 = vst [vmem:[%s302 + $0x34] sm:$0xf] %v4737
        %4754 = vst [vmem:[%s302 + $0x38] sm:$0xf] %v4738
        %4755 = vst [vmem:[%s302 + $0x3c] sm:$0xf] %v4739
        %s4756 = sand.u32 %s196, 1
        %s4757 = scalar_lea.sflag [#allocation6], %s4756
        %s4758 = sand.u32 %s196, 1
        %s4759 = smul.addr %s4758, 64
        %s4760 = scalar_lea.vmem [#allocation7], %s4759
        // Predicated region
        $region77: #{tpu_custom_call.1} parent=47 // pred_check
          %p4761 = pneg %p206
        $region78: #{tpu_custom_call.1} parent=47 // pred_check_branch
          %4763 = sbr.rel (%p4761) target = $region80
        $region79: #{tpu_custom_call.1} parent=47 // pred_region
          %s4764 = smul.u32 8, %s27
          %4766 = vsyncadd %s4757, 0
          %s4767 = smul.addr %s4764, 2
          %s4768 = smul.addr %s26, 32
          %s4769 = sadd.s32 %s4767, %s4768
          %s4770 = smul.addr %s4769, 4
          %s4771 = scalar_lea.hbm %s7, %s4770
          %s4772 = sshll.u32 %s4760, 4
          %s4773 = int_to_ptr.vmem [resolvable:$true] %s4772
          %s4774 = sshll.u32 %s4771, 4
          %s4775 = int_to_ptr.hbm [resolvable:$true] %s4774
          %4780 = dma.vmem_to_hbm [thread:$0]  %s4773, 1024, %s4775, %s4757, 64, 64, 4
        $region80: #{tpu_custom_call.1} parent=47 // pred_fallthru
          _
      $region48: #{tpu_custom_call.1} parent=5 // pred_fallthru
        _
      %p4781 = scmp.le.s32.totalorder 2, %s17
      // Predicated region
      $region81: #{tpu_custom_call.1} parent=5 // pred_check
        %p4782 = pneg %p4781
      $region82: #{tpu_custom_call.1} parent=5 // pred_check_branch
        %4784 = sbr.rel (%p4782) target = $region84
      $region83: #{tpu_custom_call.1} parent=5 // pred_region
        %s4785 = ssub.s32 %s17, 2
        // Predicated region
        $region85: #{tpu_custom_call.1} parent=83 // pred_check
          %p4786 = pneg %p212
        $region86: #{tpu_custom_call.1} parent=83 // pred_check_branch
          %4788 = sbr.rel (%p4786) target = $region88
        $region87: #{tpu_custom_call.1} parent=83 // pred_region
          %s4789 = sand.u32 %s197, 1
          %s4790 = scalar_lea.sflag [#allocation6], %s4789
          %s4791 = sand.u32 %s197, 1
          %s4792 = smul.addr %s4791, 64
          %s4793 = scalar_lea.vmem [#allocation7], %s4792
          %4795 = dma.done %s4790, 1024
        $region88: #{tpu_custom_call.1} parent=83 // pred_fallthru
          _
      $region84: #{tpu_custom_call.1} parent=5 // pred_fallthru
        _
    $region6: #{tpu_custom_call.1} parent=1 // loop_footer
      %s21 = sadd.s32 1, %s17
    $region7: #{tpu_custom_call.1} parent=1 // loop_footer_branch
      %16 = sbr.rel target = $region3
    $region8: #{tpu_custom_call.1} parent=1 // loop_exit
      _
    %4796 = vsyncpa [#allocation5], 1
    %s4797 = scalar_lea.sflag [#allocation5], 1
    %4798 = vsyncpa %s4797, 1
    %4799 = vsyncpa [#allocation6], 1
    %s4800 = scalar_lea.sflag [#allocation6], 1
    %4801 = vsyncpa %s4800, 1

</llo_original>
